<compile_context>
chip_gen: v7x
topology: tpu7x:2x2x1
jax: 0.10.0
libtpu: 0.0.40
codegen_flags: <defaults>
</compile_context>

<pallas_src>
import functools

import jax
import jax.numpy as jnp
from jax import lax
from jax.experimental import pallas as pl
from jax.experimental.pallas import tpu as pltpu


# -------------------- configuration ("args" from the PyTorch code) ----------
class Args:
    tau = 0.5
    cnsts = (1.0, 1.0)
    iter_num = 3            # > 0  -> iterative sigAct1 (3 fixed-point steps)
    alpha = 0.5
    sigma = 1.0
    mid_channels = (4, 8)   # level_max = 2 -> kernel_size_max = 3**2 = 9
    connect = True
    times_list = (2, 2)
    num_blocks = 1
    kernel_size_bound = 3
    BNLearn = True
    tau_explicit = True
    lambdaLearn = False
    device = "tpu"


# -------------------- fused Pallas kernel ------------------------------------
def _fused_kernel(*refs, N, Cin, Cout, H, W, K, times, eps,
                  half_inv_denom, alpha, iter_num, has_wrest):
    # refs: x, f, w0, [wrest], gamma, beta, out, pad_scratch
    #   x_ref:     (N, Cin, H, W)      native NCHW input (W on lanes)
    #   f_ref:     (N, 3, Ho, Wo)      flist[level], native NCHW
    #   w0_ref:    SMEM (K*K*Cin0*Cout,)   layer-0 weights (scale/tau folded)
    #   wr_ref:    SMEM ((times-1)*K*K*Cout*Cout,)   remaining layers' weights
    #   gamma/beta:SMEM (times*Cout,)  BatchNorm affine params
    #   pad_ref:   VMEM (N, Cmax, Hp, Wp) zero-haloed conv input planes
    if has_wrest:
        x_ref, f_ref, w0_ref, wr_ref, gamma_ref, beta_ref, o_ref, pad_ref = refs
    else:
        x_ref, f_ref, w0_ref, gamma_ref, beta_ref, o_ref, pad_ref = refs
        wr_ref = None

    Ho, Wo = H // 2, W // 2
    p = K // 2
    Hp, Wp = Ho + 2 * p, Wo + 2 * p
    Cin0 = Cin + 3
    Cmax = max(Cin0, Cout)
    inv_npix = 1.0 / float(N * Ho * Wo)

    # ---- 2x2 stride-2 max pool on the native NCHW layout ---------------------
    xv = x_ref[...]                                          # (N, Cin, H, W)
    # H direction: split H into (Ho, 2) (sublane regroup, lanes untouched)
    x6 = xv.reshape(N, Cin, Ho, 2, W)
    xh = jnp.maximum(x6[:, :, :, 0:1, :], x6[:, :, :, 1:2, :])   # (N,Cin,Ho,1,W)
    xf = xh.reshape(N * Cin * Ho, W)
    # W direction: even/odd lane decimation via two 0/1 selection matmuls on
    # the MXU (a lane-strided relayout has no cheap native lowering).
    row = lax.broadcasted_iota(jnp.int32, (W, Wo), 0)
    col = lax.broadcasted_iota(jnp.int32, (W, Wo), 1)
    sel_e = jnp.where(row == 2 * col, 1.0, 0.0).astype(jnp.float32)
    sel_o = jnp.where(row == 2 * col + 1, 1.0, 0.0).astype(jnp.float32)
    pooled = jnp.maximum(
        jnp.dot(xf, sel_e, preferred_element_type=jnp.float32),
        jnp.dot(xf, sel_o, preferred_element_type=jnp.float32),
    ).reshape(N, Cin, Ho, Wo)                                # (N, Cin, Ho, Wo)

    # ---- zero only the p-wide halo of the padded scratch (stays zero) --------
    if p > 0:
        zrow = jnp.zeros((N, Cmax, p, Wp), jnp.float32)
        pad_ref[:, :, 0:p, :] = zrow
        pad_ref[:, :, p + Ho:Hp, :] = zrow
        zcol = jnp.zeros((N, Cmax, Hp, p), jnp.float32)
        pad_ref[:, :, :, 0:p] = zcol
        pad_ref[:, :, :, p + Wo:Wp] = zcol

    u_planes = None
    for layer in range(times):                               # statically unrolled
        cur_cin = Cin0 if layer == 0 else Cout

        # conv input for this layer, written with a single interior store
        if layer == 0:
            interior = jnp.concatenate([pooled, f_ref[...]], axis=1)
        else:
            interior = jnp.concatenate([u[:, None] for u in u_planes], axis=1)
        pad_ref[:, 0:cur_cin, p:p + Ho, p:p + Wo] = interior

        # ---- direct conv on the VPU: shifted channel planes x SMEM scalars ----
        # The tau_explicit scale and the channel-sum term are already folded
        # into the weights, so no extra input stream / cross-channel sum here.
        acc = [None] * Cout
        for ci in range(cur_cin):
            plane = pad_ref[:, ci:ci + 1, :, :][:, 0]        # (N, Hp, Wp)
            for kh in range(K):
                for kw in range(K):
                    tap = plane[:, kh:kh + Ho, kw:kw + Wo]   # (N, Ho, Wo)
                    for co in range(Cout):
                        if layer == 0:
                            w = w0_ref[((kh * K + kw) * Cin0 + ci) * Cout + co]
                        else:
                            w = wr_ref[(((layer - 1) * K * K + kh * K + kw)
                                        * Cout + ci) * Cout + co]
                        t = tap * w
                        acc[co] = t if acc[co] is None else acc[co] + t

        # ---- BatchNorm (training-mode batch stats, single pass) + sigAct1 -----
        new_planes = []
        for co in range(Cout):
            a = acc[co]
            mean = jnp.sum(a) * inv_npix
            var = jnp.sum(a * a) * inv_npix - mean * mean
            scale = gamma_ref[layer * Cout + co] * lax.rsqrt(var + eps)
            shift = beta_ref[layer * Cout + co] - mean * scale
            xn = a * scale + shift
            if iter_num < 0:
                u = 0.5 * jnp.tanh(0.5 * xn) + 0.5           # sigmoid via tanh
            elif iter_num == 0:
                u = jnp.maximum(xn, 0.0)
            else:
                u = 0.5
                for _ in range(iter_num):
                    uu = 0.5 * jnp.tanh((xn - u) * half_inv_denom) + 0.5
                    u = (1.0 - alpha) * u + alpha * uu
            new_planes.append(u)
        u_planes = new_planes

    # ---- single full-block output store (native NCHW, W-minor) ---------------
    out = jnp.concatenate([u[:, None] for u in u_planes], axis=1)
    o_ref[...] = out.astype(o_ref.dtype)


def fused_mgpc_down(x, f, w0_flat, wrest_flat, gamma_flat, beta_flat, *,
                    Cin, Cout, K, times, eps, denom, alpha, iter_num):
    N, _, H, W = x.shape
    assert H % 2 == 0 and W % 2 == 0, "2x2/2 pooling needs even spatial dims"
    Ho, Wo = H // 2, W // 2
    p = K // 2
    Cin0 = Cin + 3
    Cmax = max(Cin0, Cout)
    has_wrest = times > 1

    kern = functools.partial(
        _fused_kernel, N=N, Cin=Cin, Cout=Cout, H=H, W=W, K=K, times=times,
        eps=float(eps), half_inv_denom=float(0.5 / denom), alpha=float(alpha),
        iter_num=int(iter_num), has_wrest=has_wrest)

    def vspec(shape):
        return pl.BlockSpec(shape, lambda i: (0,) * len(shape))

    smem = pl.BlockSpec(memory_space=pltpu.MemorySpace.SMEM)

    in_specs = [vspec((N, Cin, H, W)), vspec((N, 3, Ho, Wo)), smem]
    args = [x, f, w0_flat]
    if has_wrest:                       # skip the dummy wrest DMA when times == 1
        in_specs.append(smem)
        args.append(wrest_flat)
    in_specs += [smem, smem]
    args += [gamma_flat, beta_flat]

    return pl.pallas_call(
        kern,
        out_shape=jax.ShapeDtypeStruct((N, Cout, Ho, Wo), x.dtype),
        grid=(1,),
        in_specs=in_specs,
        out_specs=vspec((N, Cout, Ho, Wo)),
        scratch_shapes=[pltpu.VMEM((N, Cmax, Ho + 2 * p, Wo + 2 * p),
                                   jnp.float32)],
        compiler_params=pltpu.CompilerParams(
            dimension_semantics=("arbitrary",)),
    )(*args)


# -------------------- module wrapper -----------------------------------------
class MGPCConvDownPallas:
    def __init__(self, args, *, times=2, in_channels=1, out_channels=1,
                 output_level=1, key=None):
        if key is None:
            key = jax.random.PRNGKey(0)
        self.args = args
        self.times = int(times)
        self.in_channels = int(in_channels)
        self.out_channels = int(out_channels)
        self.output_level = int(output_level)

        level_max = len(args.mid_channels)
        kernel_size_max = 3 ** level_max
        self.kernel_size = int(min(kernel_size_max // (3 ** output_level),
                                   args.kernel_size_bound))
        K = self.kernel_size
        if args.tau_explicit:
            assert K % 2 == 1, "center-tap fold needs an odd kernel size"

        # deterministic synthetic parameter init (PyTorch-like fan_in scaling)
        keys = jax.random.split(key, times)
        cin0 = in_channels + 3
        self.weights = []
        w0 = jax.random.normal(keys[0], (K, K, cin0, out_channels),
                               jnp.float32) / jnp.sqrt(float(cin0 * K * K))
        self.weights.append(w0)
        for i in range(1, times):
            wi = jax.random.normal(
                keys[i], (K, K, out_channels, out_channels),
                jnp.float32) / jnp.sqrt(float(out_channels * K * K))
            self.weights.append(wi)

        # BatchNorm affine params at init (affine=BNLearn): gamma=1, beta=0
        self.gammas = jnp.ones((times, out_channels), jnp.float32)
        self.betas = jnp.zeros((times, out_channels), jnp.float32)
        self.gamma_flat = self.gammas.reshape(-1)
        self.beta_flat = self.betas.reshape(-1)

        self.bn_eps = 1e-5
        self.epsilon = args.cnsts[0] / args.tau
        self.denom = args.tau * self.epsilon           # == cnsts[0]
        self.scale = (out_channels * args.tau) if args.tau_explicit else 1.0

        # ---- fold the tau_explicit scale + channel-sum term into the weights
        # (host-side, once).  Exact because the center tap of a 'same' conv with
        # odd K always reads the real pixel, never padding.
        p = K // 2
        w0_eff = self.scale * w0
        if args.tau_explicit:
            w0_eff = w0_eff.at[p, p, :in_channels, :].add(1.0 / in_channels)
        self.w0_flat = w0_eff.reshape(-1)
        if times > 1:
            wr = jnp.stack([self.scale * self.weights[i]
                            for i in range(1, times)], axis=0)
            if args.tau_explicit:
                wr = wr.at[:, p, p, :, :].add(1.0 / out_channels)
            self.wrest_flat = wr.reshape(-1)
        else:   # unused placeholder; never passed to the kernel when times == 1
            self.wrest_flat = jnp.zeros((1,), jnp.float32)

        self._jit_fwd = jax.jit(self._forward_impl)

    # ---- Pallas forward: NCHW in, NCHW out, no boundary transposes ----------
    def _forward_impl(self, x_nchw, f_nchw, w0_flat, wrest_flat,
                      gamma_flat, beta_flat):
        a = self.args
        return fused_mgpc_down(
            x_nchw, f_nchw, w0_flat, wrest_flat, gamma_flat, beta_flat,
            Cin=self.in_channels, Cout=self.out_channels, K=self.kernel_size,
            times=self.times, eps=self.bn_eps, denom=self.denom,
            alpha=a.alpha, iter_num=a.iter_num)

    def __call__(self, x_nchw, flist_nchw):
        f_nchw = flist_nchw[self.output_level]
        return self._jit_fwd(x_nchw, f_nchw, self.w0_flat, self.wrest_flat,
                             self.gamma_flat, self.beta_flat)

    # ---- pure-JAX reference (unfolded weights, same math) for verification --
    def reference(self, x_nchw, flist_nchw):
        a = self.args
        x = jnp.transpose(x_nchw, (0, 2, 3, 1))
        f = jnp.transpose(flist_nchw[self.output_level], (0, 2, 3, 1))
        N, H, W, C = x.shape
        pooled = x.reshape(N, H // 2, 2, W // 2, 2, C).max(axis=(2, 4))

        def conv(inp, w):
            return lax.conv_general_dilated(
                inp, w, (1, 1), "SAME",
                dimension_numbers=("NHWC", "HWIO", "NHWC"))

        def bn_act(z, gamma, beta):
            mean = jnp.mean(z, axis=(0, 1, 2), keepdims=True)
            var = jnp.mean((z - mean) ** 2, axis=(0, 1, 2), keepdims=True)
            zn = (z - mean) / jnp.sqrt(var + self.bn_eps)
            zn = zn * gamma.reshape(1, 1, 1, -1) + beta.reshape(1, 1, 1, -1)
            if a.iter_num < 0:
                return jax.nn.sigmoid(zn)
            if a.iter_num == 0:
                return jnp.maximum(zn, 0.0)
            u = jnp.full_like(zn, 0.5)
            for _ in range(a.iter_num):
                uu = jax.nn.sigmoid(-(u - zn) / self.denom)
                u = (1.0 - a.alpha) * u + a.alpha * uu
            return u

        out1 = jnp.concatenate([pooled, f], axis=-1)
        c0 = conv(out1, self.weights[0])
        if a.tau_explicit:
            out = self.scale * c0 + pooled.sum(-1, keepdims=True) / self.in_channels
        else:
            out = c0
        out = bn_act(out, self.gammas[0], self.betas[0])
        for i in range(1, self.times):
            ci = conv(out, self.weights[i])
            if a.tau_explicit:
                new = self.scale * ci + out.sum(-1, keepdims=True) / self.out_channels
            else:
                new = ci
            out = bn_act(new, self.gammas[i], self.betas[i])
        return jnp.transpose(out, (0, 3, 1, 2))


# -------------------- demo / smoke test --------------------------------------
if __name__ == "__main__":
    args = Args()
    N, Cin, H, W = 2, 4, 16, 16
    out_channels = 4
    output_level = 1
    times = 2

    key = jax.random.PRNGKey(0)
    k_x, k_f0, k_f1, k_w = jax.random.split(key, 4)

    x = jax.random.normal(k_x, (N, Cin, H, W), jnp.float32)
    # flist[l] has 3 channels at the spatial resolution of level l
    flist = [
        jax.random.normal(k_f0, (N, 3, H, W), jnp.float32),
        jax.random.normal(k_f1, (N, 3, H // 2, W // 2), jnp.float32),
    ]

    module = MGPCConvDownPallas(args, times=times, in_channels=Cin,
                                out_channels=out_channels,
                                output_level=output_level, key=k_w)

    out = jax.block_until_ready(module(x, flist))
    ref = jax.block_until_ready(module.reference(x, flist))

    assert out.shape == (N, out_channels, H // 2, W // 2)
    assert jnp.allclose(out, ref, atol=1e-4, rtol=1e-4), "mismatch vs reference"

    print("KERNEL_OK")
</pallas_src>

<mosaic_0001>
module attributes {stable_mosaic.version = 11 : i64} {
  func.func @_fused_kernel(%arg0: i32, %arg1: memref<2x4x16x16xf32, #tpu.memory_space<vmem>>, %arg2: memref<2x3x8x8xf32, #tpu.memory_space<vmem>>, %arg3: memref<252xf32, #tpu.memory_space<smem>>, %arg4: memref<144xf32, #tpu.memory_space<smem>>, %arg5: memref<8xf32, #tpu.memory_space<smem>>, %arg6: memref<8xf32, #tpu.memory_space<smem>>, %arg7: memref<2x4x8x8xf32, #tpu.memory_space<vmem>>, %arg8: memref<2x7x10x10xf32, #tpu.memory_space<vmem>>) attributes {dimension_semantics = [#tpu.dimension_semantics<arbitrary>], iteration_bounds = array<i64: 1>, scalar_prefetch = 0 : i64, scratch_operands = 1 : i64, tpu.core_type = #tpu.core_type<tc>, window_params = [{pipeline_mode = #tpu.pipeline_mode<synchronous>, transform_indices = @transform_0, window_bounds = array<i64: 2, 4, 16, 16>}, {pipeline_mode = #tpu.pipeline_mode<synchronous>, transform_indices = @transform_1, window_bounds = array<i64: 2, 3, 8, 8>}, {transform_indices = @transform_2, window_bounds = array<i64: 252>}, {transform_indices = @transform_3, window_bounds = array<i64: 144>}, {transform_indices = @transform_4, window_bounds = array<i64: 8>}, {transform_indices = @transform_5, window_bounds = array<i64: 8>}, {pipeline_mode = #tpu.pipeline_mode<synchronous>, transform_indices = @transform_6, window_bounds = array<i64: 2, 4, 8, 8>}]} {
    %c0 = arith.constant 0 : index
    %c0_0 = arith.constant 0 : index
    %c0_1 = arith.constant 0 : index
    %c0_2 = arith.constant 0 : index
    %0 = vector.load %arg1[%c0, %c0_0, %c0_1, %c0_2] : memref<2x4x16x16xf32, #tpu.memory_space<vmem>>, vector<2x4x16x16xf32>
    %1 = vector.shape_cast %0 : vector<2x4x16x16xf32> to vector<2x4x8x2x16xf32>
    %2 = vector.extract_strided_slice %1 {offsets = [0, 0, 0, 0, 0], sizes = [2, 4, 8, 1, 16], strides = [1, 1, 1, 1, 1]} : vector<2x4x8x2x16xf32> to vector<2x4x8x1x16xf32>
    %3 = vector.extract_strided_slice %1 {offsets = [0, 0, 0, 1, 0], sizes = [2, 4, 8, 1, 16], strides = [1, 1, 1, 1, 1]} : vector<2x4x8x2x16xf32> to vector<2x4x8x1x16xf32>
    %4 = arith.maximumf %2, %3 : vector<2x4x8x1x16xf32>
    %5 = vector.shape_cast %4 : vector<2x4x8x1x16xf32> to vector<64x16xf32>
    %6 = tpu.iota {dimensions = array<i32: 0>} : vector<16x8xi32>
    %7 = tpu.iota {dimensions = array<i32: 1>} : vector<16x8xi32>
    %c2_i32 = arith.constant 2 : i32
    %8 = vector.broadcast %c2_i32 : i32 to vector<16x8xi32>
    %9 = arith.muli %8, %7 : vector<16x8xi32>
    %10 = arith.cmpi eq, %6, %9 : vector<16x8xi32>
    %cst = arith.constant 1.000000e+00 : f32
    %cst_3 = arith.constant 0.000000e+00 : f32
    %11 = vector.broadcast %cst : f32 to vector<16x8xf32>
    %12 = vector.broadcast %cst_3 : f32 to vector<16x8xf32>
    %13 = arith.select %10, %11, %12 : vector<16x8xi1>, vector<16x8xf32>
    %c2_i32_4 = arith.constant 2 : i32
    %14 = vector.broadcast %c2_i32_4 : i32 to vector<16x8xi32>
    %15 = arith.muli %14, %7 : vector<16x8xi32>
    %c1_i32 = arith.constant 1 : i32
    %16 = vector.broadcast %c1_i32 : i32 to vector<16x8xi32>
    %17 = arith.addi %15, %16 : vector<16x8xi32>
    %18 = arith.cmpi eq, %6, %17 : vector<16x8xi32>
    %cst_5 = arith.constant 1.000000e+00 : f32
    %cst_6 = arith.constant 0.000000e+00 : f32
    %19 = vector.broadcast %cst_5 : f32 to vector<16x8xf32>
    %20 = vector.broadcast %cst_6 : f32 to vector<16x8xf32>
    %21 = arith.select %18, %19, %20 : vector<16x8xi1>, vector<16x8xf32>
    %cst_7 = arith.constant dense<0.000000e+00> : vector<64x8xf32>
    %22 = tpu.matmul %5, %13, %cst_7 {dimension_numbers = #tpu.dot_dimension_numbers<[1], [0], [0], [1], [0, 0, 1, 1], [], []>} : vector<64x16xf32>, vector<16x8xf32>, vector<64x8xf32> -> vector<64x8xf32>
    %cst_8 = arith.constant dense<0.000000e+00> : vector<64x8xf32>
    %23 = tpu.matmul %5, %21, %cst_8 {dimension_numbers = #tpu.dot_dimension_numbers<[1], [0], [0], [1], [0, 0, 1, 1], [], []>} : vector<64x16xf32>, vector<16x8xf32>, vector<64x8xf32> -> vector<64x8xf32>
    %24 = arith.maximumf %22, %23 : vector<64x8xf32>
    %25 = vector.shape_cast %24 : vector<64x8xf32> to vector<2x4x8x8xf32>
    %cst_9 = arith.constant 0.000000e+00 : f32
    %26 = vector.broadcast %cst_9 : f32 to vector<2x7x1x10xf32>
    %c0_10 = arith.constant 0 : index
    %c0_11 = arith.constant 0 : index
    %c0_12 = arith.constant 0 : index
    %c0_13 = arith.constant 0 : index
    %27 = vector.load %arg8[%c0_10, %c0_11, %c0_12, %c0_13] : memref<2x7x10x10xf32, #tpu.memory_space<vmem>>, vector<2x7x1x10xf32>
    tpu.vector_store %arg8[%c0_10, %c0_11, %c0_12, %c0_13], %26 {strides = array<i32>} : memref<2x7x10x10xf32, #tpu.memory_space<vmem>>, vector<2x7x1x10xf32>,
    %c0_14 = arith.constant 0 : index
    %c0_15 = arith.constant 0 : index
    %c9 = arith.constant 9 : index
    %c0_16 = arith.constant 0 : index
    %28 = vector.load %arg8[%c0_14, %c0_15, %c9, %c0_16] : memref<2x7x10x10xf32, #tpu.memory_space<vmem>>, vector<2x7x1x10xf32>
    tpu.vector_store %arg8[%c0_14, %c0_15, %c9, %c0_16], %26 {strides = array<i32>} : memref<2x7x10x10xf32, #tpu.memory_space<vmem>>, vector<2x7x1x10xf32>,
    %cst_17 = arith.constant 0.000000e+00 : f32
    %29 = vector.broadcast %cst_17 : f32 to vector<2x7x10x1xf32>
    %c0_18 = arith.constant 0 : index
    %c0_19 = arith.constant 0 : index
    %c0_20 = arith.constant 0 : index
    %c0_21 = arith.constant 0 : index
    %30 = vector.load %arg8[%c0_18, %c0_19, %c0_20, %c0_21] : memref<2x7x10x10xf32, #tpu.memory_space<vmem>>, vector<2x7x10x1xf32>
    tpu.vector_store %arg8[%c0_18, %c0_19, %c0_20, %c0_21], %29 {strides = array<i32>} : memref<2x7x10x10xf32, #tpu.memory_space<vmem>>, vector<2x7x10x1xf32>,
    %c0_22 = arith.constant 0 : index
    %c0_23 = arith.constant 0 : index
    %c0_24 = arith.constant 0 : index
    %c9_25 = arith.constant 9 : index
    %31 = vector.load %arg8[%c0_22, %c0_23, %c0_24, %c9_25] : memref<2x7x10x10xf32, #tpu.memory_space<vmem>>, vector<2x7x10x1xf32>
    tpu.vector_store %arg8[%c0_22, %c0_23, %c0_24, %c9_25], %29 {strides = array<i32>} : memref<2x7x10x10xf32, #tpu.memory_space<vmem>>, vector<2x7x10x1xf32>,
    %c0_26 = arith.constant 0 : index
    %c0_27 = arith.constant 0 : index
    %c0_28 = arith.constant 0 : index
    %c0_29 = arith.constant 0 : index
    %32 = vector.load %arg2[%c0_26, %c0_27, %c0_28, %c0_29] : memref<2x3x8x8xf32, #tpu.memory_space<vmem>>, vector<2x3x8x8xf32>
    %33 = tpu.concatenate %25, %32 in 1 : vector<2x4x8x8xf32>, vector<2x3x8x8xf32> -> vector<2x7x8x8xf32>
    %c0_30 = arith.constant 0 : index
    %c0_31 = arith.constant 0 : index
    %c1 = arith.constant 1 : index
    %c1_32 = arith.constant 1 : index
    %34 = vector.load %arg8[%c0_30, %c0_31, %c1, %c1_32] : memref<2x7x10x10xf32, #tpu.memory_space<vmem>>, vector<2x7x8x8xf32>
    tpu.vector_store %arg8[%c0_30, %c0_31, %c1, %c1_32], %33 {strides = array<i32>} : memref<2x7x10x10xf32, #tpu.memory_space<vmem>>, vector<2x7x8x8xf32>,
    %c0_33 = arith.constant 0 : index
    %c0_34 = arith.constant 0 : index
    %c0_35 = arith.constant 0 : index
    %c0_36 = arith.constant 0 : index
    %35 = vector.load %arg8[%c0_33, %c0_34, %c0_35, %c0_36] : memref<2x7x10x10xf32, #tpu.memory_space<vmem>>, vector<2x1x10x10xf32>
    %36 = vector.shape_cast %35 : vector<2x1x10x10xf32> to vector<2x10x10xf32>
    %37 = vector.extract_strided_slice %36 {offsets = [0, 0, 0], sizes = [2, 8, 8], strides = [1, 1, 1]} : vector<2x10x10xf32> to vector<2x8x8xf32>
    %c0_37 = arith.constant 0 : index
    %38 = memref.load %arg3[%c0_37] : memref<252xf32, #tpu.memory_space<smem>>
    %39 = vector.broadcast %38 : f32 to vector<2x8x8xf32>
    %40 = arith.mulf %37, %39 : vector<2x8x8xf32>
    %c1_38 = arith.constant 1 : index
    %41 = memref.load %arg3[%c1_38] : memref<252xf32, #tpu.memory_space<smem>>
    %42 = vector.broadcast %41 : f32 to vector<2x8x8xf32>
    %43 = arith.mulf %37, %42 : vector<2x8x8xf32>
    %c2 = arith.constant 2 : index
    %44 = memref.load %arg3[%c2] : memref<252xf32, #tpu.memory_space<smem>>
    %45 = vector.broadcast %44 : f32 to vector<2x8x8xf32>
    %46 = arith.mulf %37, %45 : vector<2x8x8xf32>
    %c3 = arith.constant 3 : index
    %47 = memref.load %arg3[%c3] : memref<252xf32, #tpu.memory_space<smem>>
    %48 = vector.broadcast %47 : f32 to vector<2x8x8xf32>
    %49 = arith.mulf %37, %48 : vector<2x8x8xf32>
    %50 = vector.extract_strided_slice %36 {offsets = [0, 0, 1], sizes = [2, 8, 8], strides = [1, 1, 1]} : vector<2x10x10xf32> to vector<2x8x8xf32>
    %c28 = arith.constant 28 : index
    %51 = memref.load %arg3[%c28] : memref<252xf32, #tpu.memory_space<smem>>
    %52 = vector.broadcast %51 : f32 to vector<2x8x8xf32>
    %53 = arith.mulf %50, %52 : vector<2x8x8xf32>
    %54 = arith.addf %40, %53 : vector<2x8x8xf32>
    %c29 = arith.constant 29 : index
    %55 = memref.load %arg3[%c29] : memref<252xf32, #tpu.memory_space<smem>>
    %56 = vector.broadcast %55 : f32 to vector<2x8x8xf32>
    %57 = arith.mulf %50, %56 : vector<2x8x8xf32>
    %58 = arith.addf %43, %57 : vector<2x8x8xf32>
    %c30 = arith.constant 30 : index
    %59 = memref.load %arg3[%c30] : memref<252xf32, #tpu.memory_space<smem>>
    %60 = vector.broadcast %59 : f32 to vector<2x8x8xf32>
    %61 = arith.mulf %50, %60 : vector<2x8x8xf32>
    %62 = arith.addf %46, %61 : vector<2x8x8xf32>
    %c31 = arith.constant 31 : index
    %63 = memref.load %arg3[%c31] : memref<252xf32, #tpu.memory_space<smem>>
    %64 = vector.broadcast %63 : f32 to vector<2x8x8xf32>
    %65 = arith.mulf %50, %64 : vector<2x8x8xf32>
    %66 = arith.addf %49, %65 : vector<2x8x8xf32>
    %67 = vector.extract_strided_slice %36 {offsets = [0, 0, 2], sizes = [2, 8, 8], strides = [1, 1, 1]} : vector<2x10x10xf32> to vector<2x8x8xf32>
    %c56 = arith.constant 56 : index
    %68 = memref.load %arg3[%c56] : memref<252xf32, #tpu.memory_space<smem>>
    %69 = vector.broadcast %68 : f32 to vector<2x8x8xf32>
    %70 = arith.mulf %67, %69 : vector<2x8x8xf32>
    %71 = arith.addf %54, %70 : vector<2x8x8xf32>
    %c57 = arith.constant 57 : index
    %72 = memref.load %arg3[%c57] : memref<252xf32, #tpu.memory_space<smem>>
    %73 = vector.broadcast %72 : f32 to vector<2x8x8xf32>
    %74 = arith.mulf %67, %73 : vector<2x8x8xf32>
    %75 = arith.addf %58, %74 : vector<2x8x8xf32>
    %c58 = arith.constant 58 : index
    %76 = memref.load %arg3[%c58] : memref<252xf32, #tpu.memory_space<smem>>
    %77 = vector.broadcast %76 : f32 to vector<2x8x8xf32>
    %78 = arith.mulf %67, %77 : vector<2x8x8xf32>
    %79 = arith.addf %62, %78 : vector<2x8x8xf32>
    %c59 = arith.constant 59 : index
    %80 = memref.load %arg3[%c59] : memref<252xf32, #tpu.memory_space<smem>>
    %81 = vector.broadcast %80 : f32 to vector<2x8x8xf32>
    %82 = arith.mulf %67, %81 : vector<2x8x8xf32>
    %83 = arith.addf %66, %82 : vector<2x8x8xf32>
    %84 = vector.extract_strided_slice %36 {offsets = [0, 1, 0], sizes = [2, 8, 8], strides = [1, 1, 1]} : vector<2x10x10xf32> to vector<2x8x8xf32>
    %c84 = arith.constant 84 : index
    %85 = memref.load %arg3[%c84] : memref<252xf32, #tpu.memory_space<smem>>
    %86 = vector.broadcast %85 : f32 to vector<2x8x8xf32>
    %87 = arith.mulf %84, %86 : vector<2x8x8xf32>
    %88 = arith.addf %71, %87 : vector<2x8x8xf32>
    %c85 = arith.constant 85 : index
    %89 = memref.load %arg3[%c85] : memref<252xf32, #tpu.memory_space<smem>>
    %90 = vector.broadcast %89 : f32 to vector<2x8x8xf32>
    %91 = arith.mulf %84, %90 : vector<2x8x8xf32>
    %92 = arith.addf %75, %91 : vector<2x8x8xf32>
    %c86 = arith.constant 86 : index
    %93 = memref.load %arg3[%c86] : memref<252xf32, #tpu.memory_space<smem>>
    %94 = vector.broadcast %93 : f32 to vector<2x8x8xf32>
    %95 = arith.mulf %84, %94 : vector<2x8x8xf32>
    %96 = arith.addf %79, %95 : vector<2x8x8xf32>
    %c87 = arith.constant 87 : index
    %97 = memref.load %arg3[%c87] : memref<252xf32, #tpu.memory_space<smem>>
    %98 = vector.broadcast %97 : f32 to vector<2x8x8xf32>
    %99 = arith.mulf %84, %98 : vector<2x8x8xf32>
    %100 = arith.addf %83, %99 : vector<2x8x8xf32>
    %101 = vector.extract_strided_slice %36 {offsets = [0, 1, 1], sizes = [2, 8, 8], strides = [1, 1, 1]} : vector<2x10x10xf32> to vector<2x8x8xf32>
    %c112 = arith.constant 112 : index
    %102 = memref.load %arg3[%c112] : memref<252xf32, #tpu.memory_space<smem>>
    %103 = vector.broadcast %102 : f32 to vector<2x8x8xf32>
    %104 = arith.mulf %101, %103 : vector<2x8x8xf32>
    %105 = arith.addf %88, %104 : vector<2x8x8xf32>
    %c113 = arith.constant 113 : index
    %106 = memref.load %arg3[%c113] : memref<252xf32, #tpu.memory_space<smem>>
    %107 = vector.broadcast %106 : f32 to vector<2x8x8xf32>
    %108 = arith.mulf %101, %107 : vector<2x8x8xf32>
    %109 = arith.addf %92, %108 : vector<2x8x8xf32>
    %c114 = arith.constant 114 : index
    %110 = memref.load %arg3[%c114] : memref<252xf32, #tpu.memory_space<smem>>
    %111 = vector.broadcast %110 : f32 to vector<2x8x8xf32>
    %112 = arith.mulf %101, %111 : vector<2x8x8xf32>
    %113 = arith.addf %96, %112 : vector<2x8x8xf32>
    %c115 = arith.constant 115 : index
    %114 = memref.load %arg3[%c115] : memref<252xf32, #tpu.memory_space<smem>>
    %115 = vector.broadcast %114 : f32 to vector<2x8x8xf32>
    %116 = arith.mulf %101, %115 : vector<2x8x8xf32>
    %117 = arith.addf %100, %116 : vector<2x8x8xf32>
    %118 = vector.extract_strided_slice %36 {offsets = [0, 1, 2], sizes = [2, 8, 8], strides = [1, 1, 1]} : vector<2x10x10xf32> to vector<2x8x8xf32>
    %c140 = arith.constant 140 : index
    %119 = memref.load %arg3[%c140] : memref<252xf32, #tpu.memory_space<smem>>
    %120 = vector.broadcast %119 : f32 to vector<2x8x8xf32>
    %121 = arith.mulf %118, %120 : vector<2x8x8xf32>
    %122 = arith.addf %105, %121 : vector<2x8x8xf32>
    %c141 = arith.constant 141 : index
    %123 = memref.load %arg3[%c141] : memref<252xf32, #tpu.memory_space<smem>>
    %124 = vector.broadcast %123 : f32 to vector<2x8x8xf32>
    %125 = arith.mulf %118, %124 : vector<2x8x8xf32>
    %126 = arith.addf %109, %125 : vector<2x8x8xf32>
    %c142 = arith.constant 142 : index
    %127 = memref.load %arg3[%c142] : memref<252xf32, #tpu.memory_space<smem>>
    %128 = vector.broadcast %127 : f32 to vector<2x8x8xf32>
    %129 = arith.mulf %118, %128 : vector<2x8x8xf32>
    %130 = arith.addf %113, %129 : vector<2x8x8xf32>
    %c143 = arith.constant 143 : index
    %131 = memref.load %arg3[%c143] : memref<252xf32, #tpu.memory_space<smem>>
    %132 = vector.broadcast %131 : f32 to vector<2x8x8xf32>
    %133 = arith.mulf %118, %132 : vector<2x8x8xf32>
    %134 = arith.addf %117, %133 : vector<2x8x8xf32>
    %135 = vector.extract_strided_slice %36 {offsets = [0, 2, 0], sizes = [2, 8, 8], strides = [1, 1, 1]} : vector<2x10x10xf32> to vector<2x8x8xf32>
    %c168 = arith.constant 168 : index
    %136 = memref.load %arg3[%c168] : memref<252xf32, #tpu.memory_space<smem>>
    %137 = vector.broadcast %136 : f32 to vector<2x8x8xf32>
    %138 = arith.mulf %135, %137 : vector<2x8x8xf32>
    %139 = arith.addf %122, %138 : vector<2x8x8xf32>
    %c169 = arith.constant 169 : index
    %140 = memref.load %arg3[%c169] : memref<252xf32, #tpu.memory_space<smem>>
    %141 = vector.broadcast %140 : f32 to vector<2x8x8xf32>
    %142 = arith.mulf %135, %141 : vector<2x8x8xf32>
    %143 = arith.addf %126, %142 : vector<2x8x8xf32>
    %c170 = arith.constant 170 : index
    %144 = memref.load %arg3[%c170] : memref<252xf32, #tpu.memory_space<smem>>
    %145 = vector.broadcast %144 : f32 to vector<2x8x8xf32>
    %146 = arith.mulf %135, %145 : vector<2x8x8xf32>
    %147 = arith.addf %130, %146 : vector<2x8x8xf32>
    %c171 = arith.constant 171 : index
    %148 = memref.load %arg3[%c171] : memref<252xf32, #tpu.memory_space<smem>>
    %149 = vector.broadcast %148 : f32 to vector<2x8x8xf32>
    %150 = arith.mulf %135, %149 : vector<2x8x8xf32>
    %151 = arith.addf %134, %150 : vector<2x8x8xf32>
    %152 = vector.extract_strided_slice %36 {offsets = [0, 2, 1], sizes = [2, 8, 8], strides = [1, 1, 1]} : vector<2x10x10xf32> to vector<2x8x8xf32>
    %c196 = arith.constant 196 : index
    %153 = memref.load %arg3[%c196] : memref<252xf32, #tpu.memory_space<smem>>
    %154 = vector.broadcast %153 : f32 to vector<2x8x8xf32>
    %155 = arith.mulf %152, %154 : vector<2x8x8xf32>
    %156 = arith.addf %139, %155 : vector<2x8x8xf32>
    %c197 = arith.constant 197 : index
    %157 = memref.load %arg3[%c197] : memref<252xf32, #tpu.memory_space<smem>>
    %158 = vector.broadcast %157 : f32 to vector<2x8x8xf32>
    %159 = arith.mulf %152, %158 : vector<2x8x8xf32>
    %160 = arith.addf %143, %159 : vector<2x8x8xf32>
    %c198 = arith.constant 198 : index
    %161 = memref.load %arg3[%c198] : memref<252xf32, #tpu.memory_space<smem>>
    %162 = vector.broadcast %161 : f32 to vector<2x8x8xf32>
    %163 = arith.mulf %152, %162 : vector<2x8x8xf32>
    %164 = arith.addf %147, %163 : vector<2x8x8xf32>
    %c199 = arith.constant 199 : index
    %165 = memref.load %arg3[%c199] : memref<252xf32, #tpu.memory_space<smem>>
    %166 = vector.broadcast %165 : f32 to vector<2x8x8xf32>
    %167 = arith.mulf %152, %166 : vector<2x8x8xf32>
    %168 = arith.addf %151, %167 : vector<2x8x8xf32>
    %169 = vector.extract_strided_slice %36 {offsets = [0, 2, 2], sizes = [2, 8, 8], strides = [1, 1, 1]} : vector<2x10x10xf32> to vector<2x8x8xf32>
    %c224 = arith.constant 224 : index
    %170 = memref.load %arg3[%c224] : memref<252xf32, #tpu.memory_space<smem>>
    %171 = vector.broadcast %170 : f32 to vector<2x8x8xf32>
    %172 = arith.mulf %169, %171 : vector<2x8x8xf32>
    %173 = arith.addf %156, %172 : vector<2x8x8xf32>
    %c225 = arith.constant 225 : index
    %174 = memref.load %arg3[%c225] : memref<252xf32, #tpu.memory_space<smem>>
    %175 = vector.broadcast %174 : f32 to vector<2x8x8xf32>
    %176 = arith.mulf %169, %175 : vector<2x8x8xf32>
    %177 = arith.addf %160, %176 : vector<2x8x8xf32>
    %c226 = arith.constant 226 : index
    %178 = memref.load %arg3[%c226] : memref<252xf32, #tpu.memory_space<smem>>
    %179 = vector.broadcast %178 : f32 to vector<2x8x8xf32>
    %180 = arith.mulf %169, %179 : vector<2x8x8xf32>
    %181 = arith.addf %164, %180 : vector<2x8x8xf32>
    %c227 = arith.constant 227 : index
    %182 = memref.load %arg3[%c227] : memref<252xf32, #tpu.memory_space<smem>>
    %183 = vector.broadcast %182 : f32 to vector<2x8x8xf32>
    %184 = arith.mulf %169, %183 : vector<2x8x8xf32>
    %185 = arith.addf %168, %184 : vector<2x8x8xf32>
    %c0_39 = arith.constant 0 : index
    %c1_40 = arith.constant 1 : index
    %c0_41 = arith.constant 0 : index
    %c0_42 = arith.constant 0 : index
    %186 = vector.load %arg8[%c0_39, %c1_40, %c0_41, %c0_42] : memref<2x7x10x10xf32, #tpu.memory_space<vmem>>, vector<2x1x10x10xf32>
    %187 = vector.shape_cast %186 : vector<2x1x10x10xf32> to vector<2x10x10xf32>
    %188 = vector.extract_strided_slice %187 {offsets = [0, 0, 0], sizes = [2, 8, 8], strides = [1, 1, 1]} : vector<2x10x10xf32> to vector<2x8x8xf32>
    %c4 = arith.constant 4 : index
    %189 = memref.load %arg3[%c4] : memref<252xf32, #tpu.memory_space<smem>>
    %190 = vector.broadcast %189 : f32 to vector<2x8x8xf32>
    %191 = arith.mulf %188, %190 : vector<2x8x8xf32>
    %192 = arith.addf %173, %191 : vector<2x8x8xf32>
    %c5 = arith.constant 5 : index
    %193 = memref.load %arg3[%c5] : memref<252xf32, #tpu.memory_space<smem>>
    %194 = vector.broadcast %193 : f32 to vector<2x8x8xf32>
    %195 = arith.mulf %188, %194 : vector<2x8x8xf32>
    %196 = arith.addf %177, %195 : vector<2x8x8xf32>
    %c6 = arith.constant 6 : index
    %197 = memref.load %arg3[%c6] : memref<252xf32, #tpu.memory_space<smem>>
    %198 = vector.broadcast %197 : f32 to vector<2x8x8xf32>
    %199 = arith.mulf %188, %198 : vector<2x8x8xf32>
    %200 = arith.addf %181, %199 : vector<2x8x8xf32>
    %c7 = arith.constant 7 : index
    %201 = memref.load %arg3[%c7] : memref<252xf32, #tpu.memory_space<smem>>
    %202 = vector.broadcast %201 : f32 to vector<2x8x8xf32>
    %203 = arith.mulf %188, %202 : vector<2x8x8xf32>
    %204 = arith.addf %185, %203 : vector<2x8x8xf32>
    %205 = vector.extract_strided_slice %187 {offsets = [0, 0, 1], sizes = [2, 8, 8], strides = [1, 1, 1]} : vector<2x10x10xf32> to vector<2x8x8xf32>
    %c32 = arith.constant 32 : index
    %206 = memref.load %arg3[%c32] : memref<252xf32, #tpu.memory_space<smem>>
    %207 = vector.broadcast %206 : f32 to vector<2x8x8xf32>
    %208 = arith.mulf %205, %207 : vector<2x8x8xf32>
    %209 = arith.addf %192, %208 : vector<2x8x8xf32>
    %c33 = arith.constant 33 : index
    %210 = memref.load %arg3[%c33] : memref<252xf32, #tpu.memory_space<smem>>
    %211 = vector.broadcast %210 : f32 to vector<2x8x8xf32>
    %212 = arith.mulf %205, %211 : vector<2x8x8xf32>
    %213 = arith.addf %196, %212 : vector<2x8x8xf32>
    %c34 = arith.constant 34 : index
    %214 = memref.load %arg3[%c34] : memref<252xf32, #tpu.memory_space<smem>>
    %215 = vector.broadcast %214 : f32 to vector<2x8x8xf32>
    %216 = arith.mulf %205, %215 : vector<2x8x8xf32>
    %217 = arith.addf %200, %216 : vector<2x8x8xf32>
    %c35 = arith.constant 35 : index
    %218 = memref.load %arg3[%c35] : memref<252xf32, #tpu.memory_space<smem>>
    %219 = vector.broadcast %218 : f32 to vector<2x8x8xf32>
    %220 = arith.mulf %205, %219 : vector<2x8x8xf32>
    %221 = arith.addf %204, %220 : vector<2x8x8xf32>
    %222 = vector.extract_strided_slice %187 {offsets = [0, 0, 2], sizes = [2, 8, 8], strides = [1, 1, 1]} : vector<2x10x10xf32> to vector<2x8x8xf32>
    %c60 = arith.constant 60 : index
    %223 = memref.load %arg3[%c60] : memref<252xf32, #tpu.memory_space<smem>>
    %224 = vector.broadcast %223 : f32 to vector<2x8x8xf32>
    %225 = arith.mulf %222, %224 : vector<2x8x8xf32>
    %226 = arith.addf %209, %225 : vector<2x8x8xf32>
    %c61 = arith.constant 61 : index
    %227 = memref.load %arg3[%c61] : memref<252xf32, #tpu.memory_space<smem>>
    %228 = vector.broadcast %227 : f32 to vector<2x8x8xf32>
    %229 = arith.mulf %222, %228 : vector<2x8x8xf32>
    %230 = arith.addf %213, %229 : vector<2x8x8xf32>
    %c62 = arith.constant 62 : index
    %231 = memref.load %arg3[%c62] : memref<252xf32, #tpu.memory_space<smem>>
    %232 = vector.broadcast %231 : f32 to vector<2x8x8xf32>
    %233 = arith.mulf %222, %232 : vector<2x8x8xf32>
    %234 = arith.addf %217, %233 : vector<2x8x8xf32>
    %c63 = arith.constant 63 : index
    %235 = memref.load %arg3[%c63] : memref<252xf32, #tpu.memory_space<smem>>
    %236 = vector.broadcast %235 : f32 to vector<2x8x8xf32>
    %237 = arith.mulf %222, %236 : vector<2x8x8xf32>
    %238 = arith.addf %221, %237 : vector<2x8x8xf32>
    %239 = vector.extract_strided_slice %187 {offsets = [0, 1, 0], sizes = [2, 8, 8], strides = [1, 1, 1]} : vector<2x10x10xf32> to vector<2x8x8xf32>
    %c88 = arith.constant 88 : index
    %240 = memref.load %arg3[%c88] : memref<252xf32, #tpu.memory_space<smem>>
    %241 = vector.broadcast %240 : f32 to vector<2x8x8xf32>
    %242 = arith.mulf %239, %241 : vector<2x8x8xf32>
    %243 = arith.addf %226, %242 : vector<2x8x8xf32>
    %c89 = arith.constant 89 : index
    %244 = memref.load %arg3[%c89] : memref<252xf32, #tpu.memory_space<smem>>
    %245 = vector.broadcast %244 : f32 to vector<2x8x8xf32>
    %246 = arith.mulf %239, %245 : vector<2x8x8xf32>
    %247 = arith.addf %230, %246 : vector<2x8x8xf32>
    %c90 = arith.constant 90 : index
    %248 = memref.load %arg3[%c90] : memref<252xf32, #tpu.memory_space<smem>>
    %249 = vector.broadcast %248 : f32 to vector<2x8x8xf32>
    %250 = arith.mulf %239, %249 : vector<2x8x8xf32>
    %251 = arith.addf %234, %250 : vector<2x8x8xf32>
    %c91 = arith.constant 91 : index
    %252 = memref.load %arg3[%c91] : memref<252xf32, #tpu.memory_space<smem>>
    %253 = vector.broadcast %252 : f32 to vector<2x8x8xf32>
    %254 = arith.mulf %239, %253 : vector<2x8x8xf32>
    %255 = arith.addf %238, %254 : vector<2x8x8xf32>
    %256 = vector.extract_strided_slice %187 {offsets = [0, 1, 1], sizes = [2, 8, 8], strides = [1, 1, 1]} : vector<2x10x10xf32> to vector<2x8x8xf32>
    %c116 = arith.constant 116 : index
    %257 = memref.load %arg3[%c116] : memref<252xf32, #tpu.memory_space<smem>>
    %258 = vector.broadcast %257 : f32 to vector<2x8x8xf32>
    %259 = arith.mulf %256, %258 : vector<2x8x8xf32>
    %260 = arith.addf %243, %259 : vector<2x8x8xf32>
    %c117 = arith.constant 117 : index
    %261 = memref.load %arg3[%c117] : memref<252xf32, #tpu.memory_space<smem>>
    %262 = vector.broadcast %261 : f32 to vector<2x8x8xf32>
    %263 = arith.mulf %256, %262 : vector<2x8x8xf32>
    %264 = arith.addf %247, %263 : vector<2x8x8xf32>
    %c118 = arith.constant 118 : index
    %265 = memref.load %arg3[%c118] : memref<252xf32, #tpu.memory_space<smem>>
    %266 = vector.broadcast %265 : f32 to vector<2x8x8xf32>
    %267 = arith.mulf %256, %266 : vector<2x8x8xf32>
    %268 = arith.addf %251, %267 : vector<2x8x8xf32>
    %c119 = arith.constant 119 : index
    %269 = memref.load %arg3[%c119] : memref<252xf32, #tpu.memory_space<smem>>
    %270 = vector.broadcast %269 : f32 to vector<2x8x8xf32>
    %271 = arith.mulf %256, %270 : vector<2x8x8xf32>
    %272 = arith.addf %255, %271 : vector<2x8x8xf32>
    %273 = vector.extract_strided_slice %187 {offsets = [0, 1, 2], sizes = [2, 8, 8], strides = [1, 1, 1]} : vector<2x10x10xf32> to vector<2x8x8xf32>
    %c144 = arith.constant 144 : index
    %274 = memref.load %arg3[%c144] : memref<252xf32, #tpu.memory_space<smem>>
    %275 = vector.broadcast %274 : f32 to vector<2x8x8xf32>
    %276 = arith.mulf %273, %275 : vector<2x8x8xf32>
    %277 = arith.addf %260, %276 : vector<2x8x8xf32>
    %c145 = arith.constant 145 : index
    %278 = memref.load %arg3[%c145] : memref<252xf32, #tpu.memory_space<smem>>
    %279 = vector.broadcast %278 : f32 to vector<2x8x8xf32>
    %280 = arith.mulf %273, %279 : vector<2x8x8xf32>
    %281 = arith.addf %264, %280 : vector<2x8x8xf32>
    %c146 = arith.constant 146 : index
    %282 = memref.load %arg3[%c146] : memref<252xf32, #tpu.memory_space<smem>>
    %283 = vector.broadcast %282 : f32 to vector<2x8x8xf32>
    %284 = arith.mulf %273, %283 : vector<2x8x8xf32>
    %285 = arith.addf %268, %284 : vector<2x8x8xf32>
    %c147 = arith.constant 147 : index
    %286 = memref.load %arg3[%c147] : memref<252xf32, #tpu.memory_space<smem>>
    %287 = vector.broadcast %286 : f32 to vector<2x8x8xf32>
    %288 = arith.mulf %273, %287 : vector<2x8x8xf32>
    %289 = arith.addf %272, %288 : vector<2x8x8xf32>
    %290 = vector.extract_strided_slice %187 {offsets = [0, 2, 0], sizes = [2, 8, 8], strides = [1, 1, 1]} : vector<2x10x10xf32> to vector<2x8x8xf32>
    %c172 = arith.constant 172 : index
    %291 = memref.load %arg3[%c172] : memref<252xf32, #tpu.memory_space<smem>>
    %292 = vector.broadcast %291 : f32 to vector<2x8x8xf32>
    %293 = arith.mulf %290, %292 : vector<2x8x8xf32>
    %294 = arith.addf %277, %293 : vector<2x8x8xf32>
    %c173 = arith.constant 173 : index
    %295 = memref.load %arg3[%c173] : memref<252xf32, #tpu.memory_space<smem>>
    %296 = vector.broadcast %295 : f32 to vector<2x8x8xf32>
    %297 = arith.mulf %290, %296 : vector<2x8x8xf32>
    %298 = arith.addf %281, %297 : vector<2x8x8xf32>
    %c174 = arith.constant 174 : index
    %299 = memref.load %arg3[%c174] : memref<252xf32, #tpu.memory_space<smem>>
    %300 = vector.broadcast %299 : f32 to vector<2x8x8xf32>
    %301 = arith.mulf %290, %300 : vector<2x8x8xf32>
    %302 = arith.addf %285, %301 : vector<2x8x8xf32>
    %c175 = arith.constant 175 : index
    %303 = memref.load %arg3[%c175] : memref<252xf32, #tpu.memory_space<smem>>
    %304 = vector.broadcast %303 : f32 to vector<2x8x8xf32>
    %305 = arith.mulf %290, %304 : vector<2x8x8xf32>
    %306 = arith.addf %289, %305 : vector<2x8x8xf32>
    %307 = vector.extract_strided_slice %187 {offsets = [0, 2, 1], sizes = [2, 8, 8], strides = [1, 1, 1]} : vector<2x10x10xf32> to vector<2x8x8xf32>
    %c200 = arith.constant 200 : index
    %308 = memref.load %arg3[%c200] : memref<252xf32, #tpu.memory_space<smem>>
    %309 = vector.broadcast %308 : f32 to vector<2x8x8xf32>
    %310 = arith.mulf %307, %309 : vector<2x8x8xf32>
    %311 = arith.addf %294, %310 : vector<2x8x8xf32>
    %c201 = arith.constant 201 : index
    %312 = memref.load %arg3[%c201] : memref<252xf32, #tpu.memory_space<smem>>
    %313 = vector.broadcast %312 : f32 to vector<2x8x8xf32>
    %314 = arith.mulf %307, %313 : vector<2x8x8xf32>
    %315 = arith.addf %298, %314 : vector<2x8x8xf32>
    %c202 = arith.constant 202 : index
    %316 = memref.load %arg3[%c202] : memref<252xf32, #tpu.memory_space<smem>>
    %317 = vector.broadcast %316 : f32 to vector<2x8x8xf32>
    %318 = arith.mulf %307, %317 : vector<2x8x8xf32>
    %319 = arith.addf %302, %318 : vector<2x8x8xf32>
    %c203 = arith.constant 203 : index
    %320 = memref.load %arg3[%c203] : memref<252xf32, #tpu.memory_space<smem>>
    %321 = vector.broadcast %320 : f32 to vector<2x8x8xf32>
    %322 = arith.mulf %307, %321 : vector<2x8x8xf32>
    %323 = arith.addf %306, %322 : vector<2x8x8xf32>
    %324 = vector.extract_strided_slice %187 {offsets = [0, 2, 2], sizes = [2, 8, 8], strides = [1, 1, 1]} : vector<2x10x10xf32> to vector<2x8x8xf32>
    %c228 = arith.constant 228 : index
    %325 = memref.load %arg3[%c228] : memref<252xf32, #tpu.memory_space<smem>>
    %326 = vector.broadcast %325 : f32 to vector<2x8x8xf32>
    %327 = arith.mulf %324, %326 : vector<2x8x8xf32>
    %328 = arith.addf %311, %327 : vector<2x8x8xf32>
    %c229 = arith.constant 229 : index
    %329 = memref.load %arg3[%c229] : memref<252xf32, #tpu.memory_space<smem>>
    %330 = vector.broadcast %329 : f32 to vector<2x8x8xf32>
    %331 = arith.mulf %324, %330 : vector<2x8x8xf32>
    %332 = arith.addf %315, %331 : vector<2x8x8xf32>
    %c230 = arith.constant 230 : index
    %333 = memref.load %arg3[%c230] : memref<252xf32, #tpu.memory_space<smem>>
    %334 = vector.broadcast %333 : f32 to vector<2x8x8xf32>
    %335 = arith.mulf %324, %334 : vector<2x8x8xf32>
    %336 = arith.addf %319, %335 : vector<2x8x8xf32>
    %c231 = arith.constant 231 : index
    %337 = memref.load %arg3[%c231] : memref<252xf32, #tpu.memory_space<smem>>
    %338 = vector.broadcast %337 : f32 to vector<2x8x8xf32>
    %339 = arith.mulf %324, %338 : vector<2x8x8xf32>
    %340 = arith.addf %323, %339 : vector<2x8x8xf32>
    %c0_43 = arith.constant 0 : index
    %c2_44 = arith.constant 2 : index
    %c0_45 = arith.constant 0 : index
    %c0_46 = arith.constant 0 : index
    %341 = vector.load %arg8[%c0_43, %c2_44, %c0_45, %c0_46] : memref<2x7x10x10xf32, #tpu.memory_space<vmem>>, vector<2x1x10x10xf32>
    %342 = vector.shape_cast %341 : vector<2x1x10x10xf32> to vector<2x10x10xf32>
    %343 = vector.extract_strided_slice %342 {offsets = [0, 0, 0], sizes = [2, 8, 8], strides = [1, 1, 1]} : vector<2x10x10xf32> to vector<2x8x8xf32>
    %c8 = arith.constant 8 : index
    %344 = memref.load %arg3[%c8] : memref<252xf32, #tpu.memory_space<smem>>
    %345 = vector.broadcast %344 : f32 to vector<2x8x8xf32>
    %346 = arith.mulf %343, %345 : vector<2x8x8xf32>
    %347 = arith.addf %328, %346 : vector<2x8x8xf32>
    %c9_47 = arith.constant 9 : index
    %348 = memref.load %arg3[%c9_47] : memref<252xf32, #tpu.memory_space<smem>>
    %349 = vector.broadcast %348 : f32 to vector<2x8x8xf32>
    %350 = arith.mulf %343, %349 : vector<2x8x8xf32>
    %351 = arith.addf %332, %350 : vector<2x8x8xf32>
    %c10 = arith.constant 10 : index
    %352 = memref.load %arg3[%c10] : memref<252xf32, #tpu.memory_space<smem>>
    %353 = vector.broadcast %352 : f32 to vector<2x8x8xf32>
    %354 = arith.mulf %343, %353 : vector<2x8x8xf32>
    %355 = arith.addf %336, %354 : vector<2x8x8xf32>
    %c11 = arith.constant 11 : index
    %356 = memref.load %arg3[%c11] : memref<252xf32, #tpu.memory_space<smem>>
    %357 = vector.broadcast %356 : f32 to vector<2x8x8xf32>
    %358 = arith.mulf %343, %357 : vector<2x8x8xf32>
    %359 = arith.addf %340, %358 : vector<2x8x8xf32>
    %360 = vector.extract_strided_slice %342 {offsets = [0, 0, 1], sizes = [2, 8, 8], strides = [1, 1, 1]} : vector<2x10x10xf32> to vector<2x8x8xf32>
    %c36 = arith.constant 36 : index
    %361 = memref.load %arg3[%c36] : memref<252xf32, #tpu.memory_space<smem>>
    %362 = vector.broadcast %361 : f32 to vector<2x8x8xf32>
    %363 = arith.mulf %360, %362 : vector<2x8x8xf32>
    %364 = arith.addf %347, %363 : vector<2x8x8xf32>
    %c37 = arith.constant 37 : index
    %365 = memref.load %arg3[%c37] : memref<252xf32, #tpu.memory_space<smem>>
    %366 = vector.broadcast %365 : f32 to vector<2x8x8xf32>
    %367 = arith.mulf %360, %366 : vector<2x8x8xf32>
    %368 = arith.addf %351, %367 : vector<2x8x8xf32>
    %c38 = arith.constant 38 : index
    %369 = memref.load %arg3[%c38] : memref<252xf32, #tpu.memory_space<smem>>
    %370 = vector.broadcast %369 : f32 to vector<2x8x8xf32>
    %371 = arith.mulf %360, %370 : vector<2x8x8xf32>
    %372 = arith.addf %355, %371 : vector<2x8x8xf32>
    %c39 = arith.constant 39 : index
    %373 = memref.load %arg3[%c39] : memref<252xf32, #tpu.memory_space<smem>>
    %374 = vector.broadcast %373 : f32 to vector<2x8x8xf32>
    %375 = arith.mulf %360, %374 : vector<2x8x8xf32>
    %376 = arith.addf %359, %375 : vector<2x8x8xf32>
    %377 = vector.extract_strided_slice %342 {offsets = [0, 0, 2], sizes = [2, 8, 8], strides = [1, 1, 1]} : vector<2x10x10xf32> to vector<2x8x8xf32>
    %c64 = arith.constant 64 : index
    %378 = memref.load %arg3[%c64] : memref<252xf32, #tpu.memory_space<smem>>
    %379 = vector.broadcast %378 : f32 to vector<2x8x8xf32>
    %380 = arith.mulf %377, %379 : vector<2x8x8xf32>
    %381 = arith.addf %364, %380 : vector<2x8x8xf32>
    %c65 = arith.constant 65 : index
    %382 = memref.load %arg3[%c65] : memref<252xf32, #tpu.memory_space<smem>>
    %383 = vector.broadcast %382 : f32 to vector<2x8x8xf32>
    %384 = arith.mulf %377, %383 : vector<2x8x8xf32>
    %385 = arith.addf %368, %384 : vector<2x8x8xf32>
    %c66 = arith.constant 66 : index
    %386 = memref.load %arg3[%c66] : memref<252xf32, #tpu.memory_space<smem>>
    %387 = vector.broadcast %386 : f32 to vector<2x8x8xf32>
    %388 = arith.mulf %377, %387 : vector<2x8x8xf32>
    %389 = arith.addf %372, %388 : vector<2x8x8xf32>
    %c67 = arith.constant 67 : index
    %390 = memref.load %arg3[%c67] : memref<252xf32, #tpu.memory_space<smem>>
    %391 = vector.broadcast %390 : f32 to vector<2x8x8xf32>
    %392 = arith.mulf %377, %391 : vector<2x8x8xf32>
    %393 = arith.addf %376, %392 : vector<2x8x8xf32>
    %394 = vector.extract_strided_slice %342 {offsets = [0, 1, 0], sizes = [2, 8, 8], strides = [1, 1, 1]} : vector<2x10x10xf32> to vector<2x8x8xf32>
    %c92 = arith.constant 92 : index
    %395 = memref.load %arg3[%c92] : memref<252xf32, #tpu.memory_space<smem>>
    %396 = vector.broadcast %395 : f32 to vector<2x8x8xf32>
    %397 = arith.mulf %394, %396 : vector<2x8x8xf32>
    %398 = arith.addf %381, %397 : vector<2x8x8xf32>
    %c93 = arith.constant 93 : index
    %399 = memref.load %arg3[%c93] : memref<252xf32, #tpu.memory_space<smem>>
    %400 = vector.broadcast %399 : f32 to vector<2x8x8xf32>
    %401 = arith.mulf %394, %400 : vector<2x8x8xf32>
    %402 = arith.addf %385, %401 : vector<2x8x8xf32>
    %c94 = arith.constant 94 : index
    %403 = memref.load %arg3[%c94] : memref<252xf32, #tpu.memory_space<smem>>
    %404 = vector.broadcast %403 : f32 to vector<2x8x8xf32>
    %405 = arith.mulf %394, %404 : vector<2x8x8xf32>
    %406 = arith.addf %389, %405 : vector<2x8x8xf32>
    %c95 = arith.constant 95 : index
    %407 = memref.load %arg3[%c95] : memref<252xf32, #tpu.memory_space<smem>>
    %408 = vector.broadcast %407 : f32 to vector<2x8x8xf32>
    %409 = arith.mulf %394, %408 : vector<2x8x8xf32>
    %410 = arith.addf %393, %409 : vector<2x8x8xf32>
    %411 = vector.extract_strided_slice %342 {offsets = [0, 1, 1], sizes = [2, 8, 8], strides = [1, 1, 1]} : vector<2x10x10xf32> to vector<2x8x8xf32>
    %c120 = arith.constant 120 : index
    %412 = memref.load %arg3[%c120] : memref<252xf32, #tpu.memory_space<smem>>
    %413 = vector.broadcast %412 : f32 to vector<2x8x8xf32>
    %414 = arith.mulf %411, %413 : vector<2x8x8xf32>
    %415 = arith.addf %398, %414 : vector<2x8x8xf32>
    %c121 = arith.constant 121 : index
    %416 = memref.load %arg3[%c121] : memref<252xf32, #tpu.memory_space<smem>>
    %417 = vector.broadcast %416 : f32 to vector<2x8x8xf32>
    %418 = arith.mulf %411, %417 : vector<2x8x8xf32>
    %419 = arith.addf %402, %418 : vector<2x8x8xf32>
    %c122 = arith.constant 122 : index
    %420 = memref.load %arg3[%c122] : memref<252xf32, #tpu.memory_space<smem>>
    %421 = vector.broadcast %420 : f32 to vector<2x8x8xf32>
    %422 = arith.mulf %411, %421 : vector<2x8x8xf32>
    %423 = arith.addf %406, %422 : vector<2x8x8xf32>
    %c123 = arith.constant 123 : index
    %424 = memref.load %arg3[%c123] : memref<252xf32, #tpu.memory_space<smem>>
    %425 = vector.broadcast %424 : f32 to vector<2x8x8xf32>
    %426 = arith.mulf %411, %425 : vector<2x8x8xf32>
    %427 = arith.addf %410, %426 : vector<2x8x8xf32>
    %428 = vector.extract_strided_slice %342 {offsets = [0, 1, 2], sizes = [2, 8, 8], strides = [1, 1, 1]} : vector<2x10x10xf32> to vector<2x8x8xf32>
    %c148 = arith.constant 148 : index
    %429 = memref.load %arg3[%c148] : memref<252xf32, #tpu.memory_space<smem>>
    %430 = vector.broadcast %429 : f32 to vector<2x8x8xf32>
    %431 = arith.mulf %428, %430 : vector<2x8x8xf32>
    %432 = arith.addf %415, %431 : vector<2x8x8xf32>
    %c149 = arith.constant 149 : index
    %433 = memref.load %arg3[%c149] : memref<252xf32, #tpu.memory_space<smem>>
    %434 = vector.broadcast %433 : f32 to vector<2x8x8xf32>
    %435 = arith.mulf %428, %434 : vector<2x8x8xf32>
    %436 = arith.addf %419, %435 : vector<2x8x8xf32>
    %c150 = arith.constant 150 : index
    %437 = memref.load %arg3[%c150] : memref<252xf32, #tpu.memory_space<smem>>
    %438 = vector.broadcast %437 : f32 to vector<2x8x8xf32>
    %439 = arith.mulf %428, %438 : vector<2x8x8xf32>
    %440 = arith.addf %423, %439 : vector<2x8x8xf32>
    %c151 = arith.constant 151 : index
    %441 = memref.load %arg3[%c151] : memref<252xf32, #tpu.memory_space<smem>>
    %442 = vector.broadcast %441 : f32 to vector<2x8x8xf32>
    %443 = arith.mulf %428, %442 : vector<2x8x8xf32>
    %444 = arith.addf %427, %443 : vector<2x8x8xf32>
    %445 = vector.extract_strided_slice %342 {offsets = [0, 2, 0], sizes = [2, 8, 8], strides = [1, 1, 1]} : vector<2x10x10xf32> to vector<2x8x8xf32>
    %c176 = arith.constant 176 : index
    %446 = memref.load %arg3[%c176] : memref<252xf32, #tpu.memory_space<smem>>
    %447 = vector.broadcast %446 : f32 to vector<2x8x8xf32>
    %448 = arith.mulf %445, %447 : vector<2x8x8xf32>
    %449 = arith.addf %432, %448 : vector<2x8x8xf32>
    %c177 = arith.constant 177 : index
    %450 = memref.load %arg3[%c177] : memref<252xf32, #tpu.memory_space<smem>>
    %451 = vector.broadcast %450 : f32 to vector<2x8x8xf32>
    %452 = arith.mulf %445, %451 : vector<2x8x8xf32>
    %453 = arith.addf %436, %452 : vector<2x8x8xf32>
    %c178 = arith.constant 178 : index
    %454 = memref.load %arg3[%c178] : memref<252xf32, #tpu.memory_space<smem>>
    %455 = vector.broadcast %454 : f32 to vector<2x8x8xf32>
    %456 = arith.mulf %445, %455 : vector<2x8x8xf32>
    %457 = arith.addf %440, %456 : vector<2x8x8xf32>
    %c179 = arith.constant 179 : index
    %458 = memref.load %arg3[%c179] : memref<252xf32, #tpu.memory_space<smem>>
    %459 = vector.broadcast %458 : f32 to vector<2x8x8xf32>
    %460 = arith.mulf %445, %459 : vector<2x8x8xf32>
    %461 = arith.addf %444, %460 : vector<2x8x8xf32>
    %462 = vector.extract_strided_slice %342 {offsets = [0, 2, 1], sizes = [2, 8, 8], strides = [1, 1, 1]} : vector<2x10x10xf32> to vector<2x8x8xf32>
    %c204 = arith.constant 204 : index
    %463 = memref.load %arg3[%c204] : memref<252xf32, #tpu.memory_space<smem>>
    %464 = vector.broadcast %463 : f32 to vector<2x8x8xf32>
    %465 = arith.mulf %462, %464 : vector<2x8x8xf32>
    %466 = arith.addf %449, %465 : vector<2x8x8xf32>
    %c205 = arith.constant 205 : index
    %467 = memref.load %arg3[%c205] : memref<252xf32, #tpu.memory_space<smem>>
    %468 = vector.broadcast %467 : f32 to vector<2x8x8xf32>
    %469 = arith.mulf %462, %468 : vector<2x8x8xf32>
    %470 = arith.addf %453, %469 : vector<2x8x8xf32>
    %c206 = arith.constant 206 : index
    %471 = memref.load %arg3[%c206] : memref<252xf32, #tpu.memory_space<smem>>
    %472 = vector.broadcast %471 : f32 to vector<2x8x8xf32>
    %473 = arith.mulf %462, %472 : vector<2x8x8xf32>
    %474 = arith.addf %457, %473 : vector<2x8x8xf32>
    %c207 = arith.constant 207 : index
    %475 = memref.load %arg3[%c207] : memref<252xf32, #tpu.memory_space<smem>>
    %476 = vector.broadcast %475 : f32 to vector<2x8x8xf32>
    %477 = arith.mulf %462, %476 : vector<2x8x8xf32>
    %478 = arith.addf %461, %477 : vector<2x8x8xf32>
    %479 = vector.extract_strided_slice %342 {offsets = [0, 2, 2], sizes = [2, 8, 8], strides = [1, 1, 1]} : vector<2x10x10xf32> to vector<2x8x8xf32>
    %c232 = arith.constant 232 : index
    %480 = memref.load %arg3[%c232] : memref<252xf32, #tpu.memory_space<smem>>
    %481 = vector.broadcast %480 : f32 to vector<2x8x8xf32>
    %482 = arith.mulf %479, %481 : vector<2x8x8xf32>
    %483 = arith.addf %466, %482 : vector<2x8x8xf32>
    %c233 = arith.constant 233 : index
    %484 = memref.load %arg3[%c233] : memref<252xf32, #tpu.memory_space<smem>>
    %485 = vector.broadcast %484 : f32 to vector<2x8x8xf32>
    %486 = arith.mulf %479, %485 : vector<2x8x8xf32>
    %487 = arith.addf %470, %486 : vector<2x8x8xf32>
    %c234 = arith.constant 234 : index
    %488 = memref.load %arg3[%c234] : memref<252xf32, #tpu.memory_space<smem>>
    %489 = vector.broadcast %488 : f32 to vector<2x8x8xf32>
    %490 = arith.mulf %479, %489 : vector<2x8x8xf32>
    %491 = arith.addf %474, %490 : vector<2x8x8xf32>
    %c235 = arith.constant 235 : index
    %492 = memref.load %arg3[%c235] : memref<252xf32, #tpu.memory_space<smem>>
    %493 = vector.broadcast %492 : f32 to vector<2x8x8xf32>
    %494 = arith.mulf %479, %493 : vector<2x8x8xf32>
    %495 = arith.addf %478, %494 : vector<2x8x8xf32>
    %c0_48 = arith.constant 0 : index
    %c3_49 = arith.constant 3 : index
    %c0_50 = arith.constant 0 : index
    %c0_51 = arith.constant 0 : index
    %496 = vector.load %arg8[%c0_48, %c3_49, %c0_50, %c0_51] : memref<2x7x10x10xf32, #tpu.memory_space<vmem>>, vector<2x1x10x10xf32>
    %497 = vector.shape_cast %496 : vector<2x1x10x10xf32> to vector<2x10x10xf32>
    %498 = vector.extract_strided_slice %497 {offsets = [0, 0, 0], sizes = [2, 8, 8], strides = [1, 1, 1]} : vector<2x10x10xf32> to vector<2x8x8xf32>
    %c12 = arith.constant 12 : index
    %499 = memref.load %arg3[%c12] : memref<252xf32, #tpu.memory_space<smem>>
    %500 = vector.broadcast %499 : f32 to vector<2x8x8xf32>
    %501 = arith.mulf %498, %500 : vector<2x8x8xf32>
    %502 = arith.addf %483, %501 : vector<2x8x8xf32>
    %c13 = arith.constant 13 : index
    %503 = memref.load %arg3[%c13] : memref<252xf32, #tpu.memory_space<smem>>
    %504 = vector.broadcast %503 : f32 to vector<2x8x8xf32>
    %505 = arith.mulf %498, %504 : vector<2x8x8xf32>
    %506 = arith.addf %487, %505 : vector<2x8x8xf32>
    %c14 = arith.constant 14 : index
    %507 = memref.load %arg3[%c14] : memref<252xf32, #tpu.memory_space<smem>>
    %508 = vector.broadcast %507 : f32 to vector<2x8x8xf32>
    %509 = arith.mulf %498, %508 : vector<2x8x8xf32>
    %510 = arith.addf %491, %509 : vector<2x8x8xf32>
    %c15 = arith.constant 15 : index
    %511 = memref.load %arg3[%c15] : memref<252xf32, #tpu.memory_space<smem>>
    %512 = vector.broadcast %511 : f32 to vector<2x8x8xf32>
    %513 = arith.mulf %498, %512 : vector<2x8x8xf32>
    %514 = arith.addf %495, %513 : vector<2x8x8xf32>
    %515 = vector.extract_strided_slice %497 {offsets = [0, 0, 1], sizes = [2, 8, 8], strides = [1, 1, 1]} : vector<2x10x10xf32> to vector<2x8x8xf32>
    %c40 = arith.constant 40 : index
    %516 = memref.load %arg3[%c40] : memref<252xf32, #tpu.memory_space<smem>>
    %517 = vector.broadcast %516 : f32 to vector<2x8x8xf32>
    %518 = arith.mulf %515, %517 : vector<2x8x8xf32>
    %519 = arith.addf %502, %518 : vector<2x8x8xf32>
    %c41 = arith.constant 41 : index
    %520 = memref.load %arg3[%c41] : memref<252xf32, #tpu.memory_space<smem>>
    %521 = vector.broadcast %520 : f32 to vector<2x8x8xf32>
    %522 = arith.mulf %515, %521 : vector<2x8x8xf32>
    %523 = arith.addf %506, %522 : vector<2x8x8xf32>
    %c42 = arith.constant 42 : index
    %524 = memref.load %arg3[%c42] : memref<252xf32, #tpu.memory_space<smem>>
    %525 = vector.broadcast %524 : f32 to vector<2x8x8xf32>
    %526 = arith.mulf %515, %525 : vector<2x8x8xf32>
    %527 = arith.addf %510, %526 : vector<2x8x8xf32>
    %c43 = arith.constant 43 : index
    %528 = memref.load %arg3[%c43] : memref<252xf32, #tpu.memory_space<smem>>
    %529 = vector.broadcast %528 : f32 to vector<2x8x8xf32>
    %530 = arith.mulf %515, %529 : vector<2x8x8xf32>
    %531 = arith.addf %514, %530 : vector<2x8x8xf32>
    %532 = vector.extract_strided_slice %497 {offsets = [0, 0, 2], sizes = [2, 8, 8], strides = [1, 1, 1]} : vector<2x10x10xf32> to vector<2x8x8xf32>
    %c68 = arith.constant 68 : index
    %533 = memref.load %arg3[%c68] : memref<252xf32, #tpu.memory_space<smem>>
    %534 = vector.broadcast %533 : f32 to vector<2x8x8xf32>
    %535 = arith.mulf %532, %534 : vector<2x8x8xf32>
    %536 = arith.addf %519, %535 : vector<2x8x8xf32>
    %c69 = arith.constant 69 : index
    %537 = memref.load %arg3[%c69] : memref<252xf32, #tpu.memory_space<smem>>
    %538 = vector.broadcast %537 : f32 to vector<2x8x8xf32>
    %539 = arith.mulf %532, %538 : vector<2x8x8xf32>
    %540 = arith.addf %523, %539 : vector<2x8x8xf32>
    %c70 = arith.constant 70 : index
    %541 = memref.load %arg3[%c70] : memref<252xf32, #tpu.memory_space<smem>>
    %542 = vector.broadcast %541 : f32 to vector<2x8x8xf32>
    %543 = arith.mulf %532, %542 : vector<2x8x8xf32>
    %544 = arith.addf %527, %543 : vector<2x8x8xf32>
    %c71 = arith.constant 71 : index
    %545 = memref.load %arg3[%c71] : memref<252xf32, #tpu.memory_space<smem>>
    %546 = vector.broadcast %545 : f32 to vector<2x8x8xf32>
    %547 = arith.mulf %532, %546 : vector<2x8x8xf32>
    %548 = arith.addf %531, %547 : vector<2x8x8xf32>
    %549 = vector.extract_strided_slice %497 {offsets = [0, 1, 0], sizes = [2, 8, 8], strides = [1, 1, 1]} : vector<2x10x10xf32> to vector<2x8x8xf32>
    %c96 = arith.constant 96 : index
    %550 = memref.load %arg3[%c96] : memref<252xf32, #tpu.memory_space<smem>>
    %551 = vector.broadcast %550 : f32 to vector<2x8x8xf32>
    %552 = arith.mulf %549, %551 : vector<2x8x8xf32>
    %553 = arith.addf %536, %552 : vector<2x8x8xf32>
    %c97 = arith.constant 97 : index
    %554 = memref.load %arg3[%c97] : memref<252xf32, #tpu.memory_space<smem>>
    %555 = vector.broadcast %554 : f32 to vector<2x8x8xf32>
    %556 = arith.mulf %549, %555 : vector<2x8x8xf32>
    %557 = arith.addf %540, %556 : vector<2x8x8xf32>
    %c98 = arith.constant 98 : index
    %558 = memref.load %arg3[%c98] : memref<252xf32, #tpu.memory_space<smem>>
    %559 = vector.broadcast %558 : f32 to vector<2x8x8xf32>
    %560 = arith.mulf %549, %559 : vector<2x8x8xf32>
    %561 = arith.addf %544, %560 : vector<2x8x8xf32>
    %c99 = arith.constant 99 : index
    %562 = memref.load %arg3[%c99] : memref<252xf32, #tpu.memory_space<smem>>
    %563 = vector.broadcast %562 : f32 to vector<2x8x8xf32>
    %564 = arith.mulf %549, %563 : vector<2x8x8xf32>
    %565 = arith.addf %548, %564 : vector<2x8x8xf32>
    %566 = vector.extract_strided_slice %497 {offsets = [0, 1, 1], sizes = [2, 8, 8], strides = [1, 1, 1]} : vector<2x10x10xf32> to vector<2x8x8xf32>
    %c124 = arith.constant 124 : index
    %567 = memref.load %arg3[%c124] : memref<252xf32, #tpu.memory_space<smem>>
    %568 = vector.broadcast %567 : f32 to vector<2x8x8xf32>
    %569 = arith.mulf %566, %568 : vector<2x8x8xf32>
    %570 = arith.addf %553, %569 : vector<2x8x8xf32>
    %c125 = arith.constant 125 : index
    %571 = memref.load %arg3[%c125] : memref<252xf32, #tpu.memory_space<smem>>
    %572 = vector.broadcast %571 : f32 to vector<2x8x8xf32>
    %573 = arith.mulf %566, %572 : vector<2x8x8xf32>
    %574 = arith.addf %557, %573 : vector<2x8x8xf32>
    %c126 = arith.constant 126 : index
    %575 = memref.load %arg3[%c126] : memref<252xf32, #tpu.memory_space<smem>>
    %576 = vector.broadcast %575 : f32 to vector<2x8x8xf32>
    %577 = arith.mulf %566, %576 : vector<2x8x8xf32>
    %578 = arith.addf %561, %577 : vector<2x8x8xf32>
    %c127 = arith.constant 127 : index
    %579 = memref.load %arg3[%c127] : memref<252xf32, #tpu.memory_space<smem>>
    %580 = vector.broadcast %579 : f32 to vector<2x8x8xf32>
    %581 = arith.mulf %566, %580 : vector<2x8x8xf32>
    %582 = arith.addf %565, %581 : vector<2x8x8xf32>
    %583 = vector.extract_strided_slice %497 {offsets = [0, 1, 2], sizes = [2, 8, 8], strides = [1, 1, 1]} : vector<2x10x10xf32> to vector<2x8x8xf32>
    %c152 = arith.constant 152 : index
    %584 = memref.load %arg3[%c152] : memref<252xf32, #tpu.memory_space<smem>>
    %585 = vector.broadcast %584 : f32 to vector<2x8x8xf32>
    %586 = arith.mulf %583, %585 : vector<2x8x8xf32>
    %587 = arith.addf %570, %586 : vector<2x8x8xf32>
    %c153 = arith.constant 153 : index
    %588 = memref.load %arg3[%c153] : memref<252xf32, #tpu.memory_space<smem>>
    %589 = vector.broadcast %588 : f32 to vector<2x8x8xf32>
    %590 = arith.mulf %583, %589 : vector<2x8x8xf32>
    %591 = arith.addf %574, %590 : vector<2x8x8xf32>
    %c154 = arith.constant 154 : index
    %592 = memref.load %arg3[%c154] : memref<252xf32, #tpu.memory_space<smem>>
    %593 = vector.broadcast %592 : f32 to vector<2x8x8xf32>
    %594 = arith.mulf %583, %593 : vector<2x8x8xf32>
    %595 = arith.addf %578, %594 : vector<2x8x8xf32>
    %c155 = arith.constant 155 : index
    %596 = memref.load %arg3[%c155] : memref<252xf32, #tpu.memory_space<smem>>
    %597 = vector.broadcast %596 : f32 to vector<2x8x8xf32>
    %598 = arith.mulf %583, %597 : vector<2x8x8xf32>
    %599 = arith.addf %582, %598 : vector<2x8x8xf32>
    %600 = vector.extract_strided_slice %497 {offsets = [0, 2, 0], sizes = [2, 8, 8], strides = [1, 1, 1]} : vector<2x10x10xf32> to vector<2x8x8xf32>
    %c180 = arith.constant 180 : index
    %601 = memref.load %arg3[%c180] : memref<252xf32, #tpu.memory_space<smem>>
    %602 = vector.broadcast %601 : f32 to vector<2x8x8xf32>
    %603 = arith.mulf %600, %602 : vector<2x8x8xf32>
    %604 = arith.addf %587, %603 : vector<2x8x8xf32>
    %c181 = arith.constant 181 : index
    %605 = memref.load %arg3[%c181] : memref<252xf32, #tpu.memory_space<smem>>
    %606 = vector.broadcast %605 : f32 to vector<2x8x8xf32>
    %607 = arith.mulf %600, %606 : vector<2x8x8xf32>
    %608 = arith.addf %591, %607 : vector<2x8x8xf32>
    %c182 = arith.constant 182 : index
    %609 = memref.load %arg3[%c182] : memref<252xf32, #tpu.memory_space<smem>>
    %610 = vector.broadcast %609 : f32 to vector<2x8x8xf32>
    %611 = arith.mulf %600, %610 : vector<2x8x8xf32>
    %612 = arith.addf %595, %611 : vector<2x8x8xf32>
    %c183 = arith.constant 183 : index
    %613 = memref.load %arg3[%c183] : memref<252xf32, #tpu.memory_space<smem>>
    %614 = vector.broadcast %613 : f32 to vector<2x8x8xf32>
    %615 = arith.mulf %600, %614 : vector<2x8x8xf32>
    %616 = arith.addf %599, %615 : vector<2x8x8xf32>
    %617 = vector.extract_strided_slice %497 {offsets = [0, 2, 1], sizes = [2, 8, 8], strides = [1, 1, 1]} : vector<2x10x10xf32> to vector<2x8x8xf32>
    %c208 = arith.constant 208 : index
    %618 = memref.load %arg3[%c208] : memref<252xf32, #tpu.memory_space<smem>>
    %619 = vector.broadcast %618 : f32 to vector<2x8x8xf32>
    %620 = arith.mulf %617, %619 : vector<2x8x8xf32>
    %621 = arith.addf %604, %620 : vector<2x8x8xf32>
    %c209 = arith.constant 209 : index
    %622 = memref.load %arg3[%c209] : memref<252xf32, #tpu.memory_space<smem>>
    %623 = vector.broadcast %622 : f32 to vector<2x8x8xf32>
    %624 = arith.mulf %617, %623 : vector<2x8x8xf32>
    %625 = arith.addf %608, %624 : vector<2x8x8xf32>
    %c210 = arith.constant 210 : index
    %626 = memref.load %arg3[%c210] : memref<252xf32, #tpu.memory_space<smem>>
    %627 = vector.broadcast %626 : f32 to vector<2x8x8xf32>
    %628 = arith.mulf %617, %627 : vector<2x8x8xf32>
    %629 = arith.addf %612, %628 : vector<2x8x8xf32>
    %c211 = arith.constant 211 : index
    %630 = memref.load %arg3[%c211] : memref<252xf32, #tpu.memory_space<smem>>
    %631 = vector.broadcast %630 : f32 to vector<2x8x8xf32>
    %632 = arith.mulf %617, %631 : vector<2x8x8xf32>
    %633 = arith.addf %616, %632 : vector<2x8x8xf32>
    %634 = vector.extract_strided_slice %497 {offsets = [0, 2, 2], sizes = [2, 8, 8], strides = [1, 1, 1]} : vector<2x10x10xf32> to vector<2x8x8xf32>
    %c236 = arith.constant 236 : index
    %635 = memref.load %arg3[%c236] : memref<252xf32, #tpu.memory_space<smem>>
    %636 = vector.broadcast %635 : f32 to vector<2x8x8xf32>
    %637 = arith.mulf %634, %636 : vector<2x8x8xf32>
    %638 = arith.addf %621, %637 : vector<2x8x8xf32>
    %c237 = arith.constant 237 : index
    %639 = memref.load %arg3[%c237] : memref<252xf32, #tpu.memory_space<smem>>
    %640 = vector.broadcast %639 : f32 to vector<2x8x8xf32>
    %641 = arith.mulf %634, %640 : vector<2x8x8xf32>
    %642 = arith.addf %625, %641 : vector<2x8x8xf32>
    %c238 = arith.constant 238 : index
    %643 = memref.load %arg3[%c238] : memref<252xf32, #tpu.memory_space<smem>>
    %644 = vector.broadcast %643 : f32 to vector<2x8x8xf32>
    %645 = arith.mulf %634, %644 : vector<2x8x8xf32>
    %646 = arith.addf %629, %645 : vector<2x8x8xf32>
    %c239 = arith.constant 239 : index
    %647 = memref.load %arg3[%c239] : memref<252xf32, #tpu.memory_space<smem>>
    %648 = vector.broadcast %647 : f32 to vector<2x8x8xf32>
    %649 = arith.mulf %634, %648 : vector<2x8x8xf32>
    %650 = arith.addf %633, %649 : vector<2x8x8xf32>
    %c0_52 = arith.constant 0 : index
    %c4_53 = arith.constant 4 : index
    %c0_54 = arith.constant 0 : index
    %c0_55 = arith.constant 0 : index
    %651 = vector.load %arg8[%c0_52, %c4_53, %c0_54, %c0_55] : memref<2x7x10x10xf32, #tpu.memory_space<vmem>>, vector<2x1x10x10xf32>
    %652 = vector.shape_cast %651 : vector<2x1x10x10xf32> to vector<2x10x10xf32>
    %653 = vector.extract_strided_slice %652 {offsets = [0, 0, 0], sizes = [2, 8, 8], strides = [1, 1, 1]} : vector<2x10x10xf32> to vector<2x8x8xf32>
    %c16 = arith.constant 16 : index
    %654 = memref.load %arg3[%c16] : memref<252xf32, #tpu.memory_space<smem>>
    %655 = vector.broadcast %654 : f32 to vector<2x8x8xf32>
    %656 = arith.mulf %653, %655 : vector<2x8x8xf32>
    %657 = arith.addf %638, %656 : vector<2x8x8xf32>
    %c17 = arith.constant 17 : index
    %658 = memref.load %arg3[%c17] : memref<252xf32, #tpu.memory_space<smem>>
    %659 = vector.broadcast %658 : f32 to vector<2x8x8xf32>
    %660 = arith.mulf %653, %659 : vector<2x8x8xf32>
    %661 = arith.addf %642, %660 : vector<2x8x8xf32>
    %c18 = arith.constant 18 : index
    %662 = memref.load %arg3[%c18] : memref<252xf32, #tpu.memory_space<smem>>
    %663 = vector.broadcast %662 : f32 to vector<2x8x8xf32>
    %664 = arith.mulf %653, %663 : vector<2x8x8xf32>
    %665 = arith.addf %646, %664 : vector<2x8x8xf32>
    %c19 = arith.constant 19 : index
    %666 = memref.load %arg3[%c19] : memref<252xf32, #tpu.memory_space<smem>>
    %667 = vector.broadcast %666 : f32 to vector<2x8x8xf32>
    %668 = arith.mulf %653, %667 : vector<2x8x8xf32>
    %669 = arith.addf %650, %668 : vector<2x8x8xf32>
    %670 = vector.extract_strided_slice %652 {offsets = [0, 0, 1], sizes = [2, 8, 8], strides = [1, 1, 1]} : vector<2x10x10xf32> to vector<2x8x8xf32>
    %c44 = arith.constant 44 : index
    %671 = memref.load %arg3[%c44] : memref<252xf32, #tpu.memory_space<smem>>
    %672 = vector.broadcast %671 : f32 to vector<2x8x8xf32>
    %673 = arith.mulf %670, %672 : vector<2x8x8xf32>
    %674 = arith.addf %657, %673 : vector<2x8x8xf32>
    %c45 = arith.constant 45 : index
    %675 = memref.load %arg3[%c45] : memref<252xf32, #tpu.memory_space<smem>>
    %676 = vector.broadcast %675 : f32 to vector<2x8x8xf32>
    %677 = arith.mulf %670, %676 : vector<2x8x8xf32>
    %678 = arith.addf %661, %677 : vector<2x8x8xf32>
    %c46 = arith.constant 46 : index
    %679 = memref.load %arg3[%c46] : memref<252xf32, #tpu.memory_space<smem>>
    %680 = vector.broadcast %679 : f32 to vector<2x8x8xf32>
    %681 = arith.mulf %670, %680 : vector<2x8x8xf32>
    %682 = arith.addf %665, %681 : vector<2x8x8xf32>
    %c47 = arith.constant 47 : index
    %683 = memref.load %arg3[%c47] : memref<252xf32, #tpu.memory_space<smem>>
    %684 = vector.broadcast %683 : f32 to vector<2x8x8xf32>
    %685 = arith.mulf %670, %684 : vector<2x8x8xf32>
    %686 = arith.addf %669, %685 : vector<2x8x8xf32>
    %687 = vector.extract_strided_slice %652 {offsets = [0, 0, 2], sizes = [2, 8, 8], strides = [1, 1, 1]} : vector<2x10x10xf32> to vector<2x8x8xf32>
    %c72 = arith.constant 72 : index
    %688 = memref.load %arg3[%c72] : memref<252xf32, #tpu.memory_space<smem>>
    %689 = vector.broadcast %688 : f32 to vector<2x8x8xf32>
    %690 = arith.mulf %687, %689 : vector<2x8x8xf32>
    %691 = arith.addf %674, %690 : vector<2x8x8xf32>
    %c73 = arith.constant 73 : index
    %692 = memref.load %arg3[%c73] : memref<252xf32, #tpu.memory_space<smem>>
    %693 = vector.broadcast %692 : f32 to vector<2x8x8xf32>
    %694 = arith.mulf %687, %693 : vector<2x8x8xf32>
    %695 = arith.addf %678, %694 : vector<2x8x8xf32>
    %c74 = arith.constant 74 : index
    %696 = memref.load %arg3[%c74] : memref<252xf32, #tpu.memory_space<smem>>
    %697 = vector.broadcast %696 : f32 to vector<2x8x8xf32>
    %698 = arith.mulf %687, %697 : vector<2x8x8xf32>
    %699 = arith.addf %682, %698 : vector<2x8x8xf32>
    %c75 = arith.constant 75 : index
    %700 = memref.load %arg3[%c75] : memref<252xf32, #tpu.memory_space<smem>>
    %701 = vector.broadcast %700 : f32 to vector<2x8x8xf32>
    %702 = arith.mulf %687, %701 : vector<2x8x8xf32>
    %703 = arith.addf %686, %702 : vector<2x8x8xf32>
    %704 = vector.extract_strided_slice %652 {offsets = [0, 1, 0], sizes = [2, 8, 8], strides = [1, 1, 1]} : vector<2x10x10xf32> to vector<2x8x8xf32>
    %c100 = arith.constant 100 : index
    %705 = memref.load %arg3[%c100] : memref<252xf32, #tpu.memory_space<smem>>
    %706 = vector.broadcast %705 : f32 to vector<2x8x8xf32>
    %707 = arith.mulf %704, %706 : vector<2x8x8xf32>
    %708 = arith.addf %691, %707 : vector<2x8x8xf32>
    %c101 = arith.constant 101 : index
    %709 = memref.load %arg3[%c101] : memref<252xf32, #tpu.memory_space<smem>>
    %710 = vector.broadcast %709 : f32 to vector<2x8x8xf32>
    %711 = arith.mulf %704, %710 : vector<2x8x8xf32>
    %712 = arith.addf %695, %711 : vector<2x8x8xf32>
    %c102 = arith.constant 102 : index
    %713 = memref.load %arg3[%c102] : memref<252xf32, #tpu.memory_space<smem>>
    %714 = vector.broadcast %713 : f32 to vector<2x8x8xf32>
    %715 = arith.mulf %704, %714 : vector<2x8x8xf32>
    %716 = arith.addf %699, %715 : vector<2x8x8xf32>
    %c103 = arith.constant 103 : index
    %717 = memref.load %arg3[%c103] : memref<252xf32, #tpu.memory_space<smem>>
    %718 = vector.broadcast %717 : f32 to vector<2x8x8xf32>
    %719 = arith.mulf %704, %718 : vector<2x8x8xf32>
    %720 = arith.addf %703, %719 : vector<2x8x8xf32>
    %721 = vector.extract_strided_slice %652 {offsets = [0, 1, 1], sizes = [2, 8, 8], strides = [1, 1, 1]} : vector<2x10x10xf32> to vector<2x8x8xf32>
    %c128 = arith.constant 128 : index
    %722 = memref.load %arg3[%c128] : memref<252xf32, #tpu.memory_space<smem>>
    %723 = vector.broadcast %722 : f32 to vector<2x8x8xf32>
    %724 = arith.mulf %721, %723 : vector<2x8x8xf32>
    %725 = arith.addf %708, %724 : vector<2x8x8xf32>
    %c129 = arith.constant 129 : index
    %726 = memref.load %arg3[%c129] : memref<252xf32, #tpu.memory_space<smem>>
    %727 = vector.broadcast %726 : f32 to vector<2x8x8xf32>
    %728 = arith.mulf %721, %727 : vector<2x8x8xf32>
    %729 = arith.addf %712, %728 : vector<2x8x8xf32>
    %c130 = arith.constant 130 : index
    %730 = memref.load %arg3[%c130] : memref<252xf32, #tpu.memory_space<smem>>
    %731 = vector.broadcast %730 : f32 to vector<2x8x8xf32>
    %732 = arith.mulf %721, %731 : vector<2x8x8xf32>
    %733 = arith.addf %716, %732 : vector<2x8x8xf32>
    %c131 = arith.constant 131 : index
    %734 = memref.load %arg3[%c131] : memref<252xf32, #tpu.memory_space<smem>>
    %735 = vector.broadcast %734 : f32 to vector<2x8x8xf32>
    %736 = arith.mulf %721, %735 : vector<2x8x8xf32>
    %737 = arith.addf %720, %736 : vector<2x8x8xf32>
    %738 = vector.extract_strided_slice %652 {offsets = [0, 1, 2], sizes = [2, 8, 8], strides = [1, 1, 1]} : vector<2x10x10xf32> to vector<2x8x8xf32>
    %c156 = arith.constant 156 : index
    %739 = memref.load %arg3[%c156] : memref<252xf32, #tpu.memory_space<smem>>
    %740 = vector.broadcast %739 : f32 to vector<2x8x8xf32>
    %741 = arith.mulf %738, %740 : vector<2x8x8xf32>
    %742 = arith.addf %725, %741 : vector<2x8x8xf32>
    %c157 = arith.constant 157 : index
    %743 = memref.load %arg3[%c157] : memref<252xf32, #tpu.memory_space<smem>>
    %744 = vector.broadcast %743 : f32 to vector<2x8x8xf32>
    %745 = arith.mulf %738, %744 : vector<2x8x8xf32>
    %746 = arith.addf %729, %745 : vector<2x8x8xf32>
    %c158 = arith.constant 158 : index
    %747 = memref.load %arg3[%c158] : memref<252xf32, #tpu.memory_space<smem>>
    %748 = vector.broadcast %747 : f32 to vector<2x8x8xf32>
    %749 = arith.mulf %738, %748 : vector<2x8x8xf32>
    %750 = arith.addf %733, %749 : vector<2x8x8xf32>
    %c159 = arith.constant 159 : index
    %751 = memref.load %arg3[%c159] : memref<252xf32, #tpu.memory_space<smem>>
    %752 = vector.broadcast %751 : f32 to vector<2x8x8xf32>
    %753 = arith.mulf %738, %752 : vector<2x8x8xf32>
    %754 = arith.addf %737, %753 : vector<2x8x8xf32>
    %755 = vector.extract_strided_slice %652 {offsets = [0, 2, 0], sizes = [2, 8, 8], strides = [1, 1, 1]} : vector<2x10x10xf32> to vector<2x8x8xf32>
    %c184 = arith.constant 184 : index
    %756 = memref.load %arg3[%c184] : memref<252xf32, #tpu.memory_space<smem>>
    %757 = vector.broadcast %756 : f32 to vector<2x8x8xf32>
    %758 = arith.mulf %755, %757 : vector<2x8x8xf32>
    %759 = arith.addf %742, %758 : vector<2x8x8xf32>
    %c185 = arith.constant 185 : index
    %760 = memref.load %arg3[%c185] : memref<252xf32, #tpu.memory_space<smem>>
    %761 = vector.broadcast %760 : f32 to vector<2x8x8xf32>
    %762 = arith.mulf %755, %761 : vector<2x8x8xf32>
    %763 = arith.addf %746, %762 : vector<2x8x8xf32>
    %c186 = arith.constant 186 : index
    %764 = memref.load %arg3[%c186] : memref<252xf32, #tpu.memory_space<smem>>
    %765 = vector.broadcast %764 : f32 to vector<2x8x8xf32>
    %766 = arith.mulf %755, %765 : vector<2x8x8xf32>
    %767 = arith.addf %750, %766 : vector<2x8x8xf32>
    %c187 = arith.constant 187 : index
    %768 = memref.load %arg3[%c187] : memref<252xf32, #tpu.memory_space<smem>>
    %769 = vector.broadcast %768 : f32 to vector<2x8x8xf32>
    %770 = arith.mulf %755, %769 : vector<2x8x8xf32>
    %771 = arith.addf %754, %770 : vector<2x8x8xf32>
    %772 = vector.extract_strided_slice %652 {offsets = [0, 2, 1], sizes = [2, 8, 8], strides = [1, 1, 1]} : vector<2x10x10xf32> to vector<2x8x8xf32>
    %c212 = arith.constant 212 : index
    %773 = memref.load %arg3[%c212] : memref<252xf32, #tpu.memory_space<smem>>
    %774 = vector.broadcast %773 : f32 to vector<2x8x8xf32>
    %775 = arith.mulf %772, %774 : vector<2x8x8xf32>
    %776 = arith.addf %759, %775 : vector<2x8x8xf32>
    %c213 = arith.constant 213 : index
    %777 = memref.load %arg3[%c213] : memref<252xf32, #tpu.memory_space<smem>>
    %778 = vector.broadcast %777 : f32 to vector<2x8x8xf32>
    %779 = arith.mulf %772, %778 : vector<2x8x8xf32>
    %780 = arith.addf %763, %779 : vector<2x8x8xf32>
    %c214 = arith.constant 214 : index
    %781 = memref.load %arg3[%c214] : memref<252xf32, #tpu.memory_space<smem>>
    %782 = vector.broadcast %781 : f32 to vector<2x8x8xf32>
    %783 = arith.mulf %772, %782 : vector<2x8x8xf32>
    %784 = arith.addf %767, %783 : vector<2x8x8xf32>
    %c215 = arith.constant 215 : index
    %785 = memref.load %arg3[%c215] : memref<252xf32, #tpu.memory_space<smem>>
    %786 = vector.broadcast %785 : f32 to vector<2x8x8xf32>
    %787 = arith.mulf %772, %786 : vector<2x8x8xf32>
    %788 = arith.addf %771, %787 : vector<2x8x8xf32>
    %789 = vector.extract_strided_slice %652 {offsets = [0, 2, 2], sizes = [2, 8, 8], strides = [1, 1, 1]} : vector<2x10x10xf32> to vector<2x8x8xf32>
    %c240 = arith.constant 240 : index
    %790 = memref.load %arg3[%c240] : memref<252xf32, #tpu.memory_space<smem>>
    %791 = vector.broadcast %790 : f32 to vector<2x8x8xf32>
    %792 = arith.mulf %789, %791 : vector<2x8x8xf32>
    %793 = arith.addf %776, %792 : vector<2x8x8xf32>
    %c241 = arith.constant 241 : index
    %794 = memref.load %arg3[%c241] : memref<252xf32, #tpu.memory_space<smem>>
    %795 = vector.broadcast %794 : f32 to vector<2x8x8xf32>
    %796 = arith.mulf %789, %795 : vector<2x8x8xf32>
    %797 = arith.addf %780, %796 : vector<2x8x8xf32>
    %c242 = arith.constant 242 : index
    %798 = memref.load %arg3[%c242] : memref<252xf32, #tpu.memory_space<smem>>
    %799 = vector.broadcast %798 : f32 to vector<2x8x8xf32>
    %800 = arith.mulf %789, %799 : vector<2x8x8xf32>
    %801 = arith.addf %784, %800 : vector<2x8x8xf32>
    %c243 = arith.constant 243 : index
    %802 = memref.load %arg3[%c243] : memref<252xf32, #tpu.memory_space<smem>>
    %803 = vector.broadcast %802 : f32 to vector<2x8x8xf32>
    %804 = arith.mulf %789, %803 : vector<2x8x8xf32>
    %805 = arith.addf %788, %804 : vector<2x8x8xf32>
    %c0_56 = arith.constant 0 : index
    %c5_57 = arith.constant 5 : index
    %c0_58 = arith.constant 0 : index
    %c0_59 = arith.constant 0 : index
    %806 = vector.load %arg8[%c0_56, %c5_57, %c0_58, %c0_59] : memref<2x7x10x10xf32, #tpu.memory_space<vmem>>, vector<2x1x10x10xf32>
    %807 = vector.shape_cast %806 : vector<2x1x10x10xf32> to vector<2x10x10xf32>
    %808 = vector.extract_strided_slice %807 {offsets = [0, 0, 0], sizes = [2, 8, 8], strides = [1, 1, 1]} : vector<2x10x10xf32> to vector<2x8x8xf32>
    %c20 = arith.constant 20 : index
    %809 = memref.load %arg3[%c20] : memref<252xf32, #tpu.memory_space<smem>>
    %810 = vector.broadcast %809 : f32 to vector<2x8x8xf32>
    %811 = arith.mulf %808, %810 : vector<2x8x8xf32>
    %812 = arith.addf %793, %811 : vector<2x8x8xf32>
    %c21 = arith.constant 21 : index
    %813 = memref.load %arg3[%c21] : memref<252xf32, #tpu.memory_space<smem>>
    %814 = vector.broadcast %813 : f32 to vector<2x8x8xf32>
    %815 = arith.mulf %808, %814 : vector<2x8x8xf32>
    %816 = arith.addf %797, %815 : vector<2x8x8xf32>
    %c22 = arith.constant 22 : index
    %817 = memref.load %arg3[%c22] : memref<252xf32, #tpu.memory_space<smem>>
    %818 = vector.broadcast %817 : f32 to vector<2x8x8xf32>
    %819 = arith.mulf %808, %818 : vector<2x8x8xf32>
    %820 = arith.addf %801, %819 : vector<2x8x8xf32>
    %c23 = arith.constant 23 : index
    %821 = memref.load %arg3[%c23] : memref<252xf32, #tpu.memory_space<smem>>
    %822 = vector.broadcast %821 : f32 to vector<2x8x8xf32>
    %823 = arith.mulf %808, %822 : vector<2x8x8xf32>
    %824 = arith.addf %805, %823 : vector<2x8x8xf32>
    %825 = vector.extract_strided_slice %807 {offsets = [0, 0, 1], sizes = [2, 8, 8], strides = [1, 1, 1]} : vector<2x10x10xf32> to vector<2x8x8xf32>
    %c48 = arith.constant 48 : index
    %826 = memref.load %arg3[%c48] : memref<252xf32, #tpu.memory_space<smem>>
    %827 = vector.broadcast %826 : f32 to vector<2x8x8xf32>
    %828 = arith.mulf %825, %827 : vector<2x8x8xf32>
    %829 = arith.addf %812, %828 : vector<2x8x8xf32>
    %c49 = arith.constant 49 : index
    %830 = memref.load %arg3[%c49] : memref<252xf32, #tpu.memory_space<smem>>
    %831 = vector.broadcast %830 : f32 to vector<2x8x8xf32>
    %832 = arith.mulf %825, %831 : vector<2x8x8xf32>
    %833 = arith.addf %816, %832 : vector<2x8x8xf32>
    %c50 = arith.constant 50 : index
    %834 = memref.load %arg3[%c50] : memref<252xf32, #tpu.memory_space<smem>>
    %835 = vector.broadcast %834 : f32 to vector<2x8x8xf32>
    %836 = arith.mulf %825, %835 : vector<2x8x8xf32>
    %837 = arith.addf %820, %836 : vector<2x8x8xf32>
    %c51 = arith.constant 51 : index
    %838 = memref.load %arg3[%c51] : memref<252xf32, #tpu.memory_space<smem>>
    %839 = vector.broadcast %838 : f32 to vector<2x8x8xf32>
    %840 = arith.mulf %825, %839 : vector<2x8x8xf32>
    %841 = arith.addf %824, %840 : vector<2x8x8xf32>
    %842 = vector.extract_strided_slice %807 {offsets = [0, 0, 2], sizes = [2, 8, 8], strides = [1, 1, 1]} : vector<2x10x10xf32> to vector<2x8x8xf32>
    %c76 = arith.constant 76 : index
    %843 = memref.load %arg3[%c76] : memref<252xf32, #tpu.memory_space<smem>>
    %844 = vector.broadcast %843 : f32 to vector<2x8x8xf32>
    %845 = arith.mulf %842, %844 : vector<2x8x8xf32>
    %846 = arith.addf %829, %845 : vector<2x8x8xf32>
    %c77 = arith.constant 77 : index
    %847 = memref.load %arg3[%c77] : memref<252xf32, #tpu.memory_space<smem>>
    %848 = vector.broadcast %847 : f32 to vector<2x8x8xf32>
    %849 = arith.mulf %842, %848 : vector<2x8x8xf32>
    %850 = arith.addf %833, %849 : vector<2x8x8xf32>
    %c78 = arith.constant 78 : index
    %851 = memref.load %arg3[%c78] : memref<252xf32, #tpu.memory_space<smem>>
    %852 = vector.broadcast %851 : f32 to vector<2x8x8xf32>
    %853 = arith.mulf %842, %852 : vector<2x8x8xf32>
    %854 = arith.addf %837, %853 : vector<2x8x8xf32>
    %c79 = arith.constant 79 : index
    %855 = memref.load %arg3[%c79] : memref<252xf32, #tpu.memory_space<smem>>
    %856 = vector.broadcast %855 : f32 to vector<2x8x8xf32>
    %857 = arith.mulf %842, %856 : vector<2x8x8xf32>
    %858 = arith.addf %841, %857 : vector<2x8x8xf32>
    %859 = vector.extract_strided_slice %807 {offsets = [0, 1, 0], sizes = [2, 8, 8], strides = [1, 1, 1]} : vector<2x10x10xf32> to vector<2x8x8xf32>
    %c104 = arith.constant 104 : index
    %860 = memref.load %arg3[%c104] : memref<252xf32, #tpu.memory_space<smem>>
    %861 = vector.broadcast %860 : f32 to vector<2x8x8xf32>
    %862 = arith.mulf %859, %861 : vector<2x8x8xf32>
    %863 = arith.addf %846, %862 : vector<2x8x8xf32>
    %c105 = arith.constant 105 : index
    %864 = memref.load %arg3[%c105] : memref<252xf32, #tpu.memory_space<smem>>
    %865 = vector.broadcast %864 : f32 to vector<2x8x8xf32>
    %866 = arith.mulf %859, %865 : vector<2x8x8xf32>
    %867 = arith.addf %850, %866 : vector<2x8x8xf32>
    %c106 = arith.constant 106 : index
    %868 = memref.load %arg3[%c106] : memref<252xf32, #tpu.memory_space<smem>>
    %869 = vector.broadcast %868 : f32 to vector<2x8x8xf32>
    %870 = arith.mulf %859, %869 : vector<2x8x8xf32>
    %871 = arith.addf %854, %870 : vector<2x8x8xf32>
    %c107 = arith.constant 107 : index
    %872 = memref.load %arg3[%c107] : memref<252xf32, #tpu.memory_space<smem>>
    %873 = vector.broadcast %872 : f32 to vector<2x8x8xf32>
    %874 = arith.mulf %859, %873 : vector<2x8x8xf32>
    %875 = arith.addf %858, %874 : vector<2x8x8xf32>
    %876 = vector.extract_strided_slice %807 {offsets = [0, 1, 1], sizes = [2, 8, 8], strides = [1, 1, 1]} : vector<2x10x10xf32> to vector<2x8x8xf32>
    %c132 = arith.constant 132 : index
    %877 = memref.load %arg3[%c132] : memref<252xf32, #tpu.memory_space<smem>>
    %878 = vector.broadcast %877 : f32 to vector<2x8x8xf32>
    %879 = arith.mulf %876, %878 : vector<2x8x8xf32>
    %880 = arith.addf %863, %879 : vector<2x8x8xf32>
    %c133 = arith.constant 133 : index
    %881 = memref.load %arg3[%c133] : memref<252xf32, #tpu.memory_space<smem>>
    %882 = vector.broadcast %881 : f32 to vector<2x8x8xf32>
    %883 = arith.mulf %876, %882 : vector<2x8x8xf32>
    %884 = arith.addf %867, %883 : vector<2x8x8xf32>
    %c134 = arith.constant 134 : index
    %885 = memref.load %arg3[%c134] : memref<252xf32, #tpu.memory_space<smem>>
    %886 = vector.broadcast %885 : f32 to vector<2x8x8xf32>
    %887 = arith.mulf %876, %886 : vector<2x8x8xf32>
    %888 = arith.addf %871, %887 : vector<2x8x8xf32>
    %c135 = arith.constant 135 : index
    %889 = memref.load %arg3[%c135] : memref<252xf32, #tpu.memory_space<smem>>
    %890 = vector.broadcast %889 : f32 to vector<2x8x8xf32>
    %891 = arith.mulf %876, %890 : vector<2x8x8xf32>
    %892 = arith.addf %875, %891 : vector<2x8x8xf32>
    %893 = vector.extract_strided_slice %807 {offsets = [0, 1, 2], sizes = [2, 8, 8], strides = [1, 1, 1]} : vector<2x10x10xf32> to vector<2x8x8xf32>
    %c160 = arith.constant 160 : index
    %894 = memref.load %arg3[%c160] : memref<252xf32, #tpu.memory_space<smem>>
    %895 = vector.broadcast %894 : f32 to vector<2x8x8xf32>
    %896 = arith.mulf %893, %895 : vector<2x8x8xf32>
    %897 = arith.addf %880, %896 : vector<2x8x8xf32>
    %c161 = arith.constant 161 : index
    %898 = memref.load %arg3[%c161] : memref<252xf32, #tpu.memory_space<smem>>
    %899 = vector.broadcast %898 : f32 to vector<2x8x8xf32>
    %900 = arith.mulf %893, %899 : vector<2x8x8xf32>
    %901 = arith.addf %884, %900 : vector<2x8x8xf32>
    %c162 = arith.constant 162 : index
    %902 = memref.load %arg3[%c162] : memref<252xf32, #tpu.memory_space<smem>>
    %903 = vector.broadcast %902 : f32 to vector<2x8x8xf32>
    %904 = arith.mulf %893, %903 : vector<2x8x8xf32>
    %905 = arith.addf %888, %904 : vector<2x8x8xf32>
    %c163 = arith.constant 163 : index
    %906 = memref.load %arg3[%c163] : memref<252xf32, #tpu.memory_space<smem>>
    %907 = vector.broadcast %906 : f32 to vector<2x8x8xf32>
    %908 = arith.mulf %893, %907 : vector<2x8x8xf32>
    %909 = arith.addf %892, %908 : vector<2x8x8xf32>
    %910 = vector.extract_strided_slice %807 {offsets = [0, 2, 0], sizes = [2, 8, 8], strides = [1, 1, 1]} : vector<2x10x10xf32> to vector<2x8x8xf32>
    %c188 = arith.constant 188 : index
    %911 = memref.load %arg3[%c188] : memref<252xf32, #tpu.memory_space<smem>>
    %912 = vector.broadcast %911 : f32 to vector<2x8x8xf32>
    %913 = arith.mulf %910, %912 : vector<2x8x8xf32>
    %914 = arith.addf %897, %913 : vector<2x8x8xf32>
    %c189 = arith.constant 189 : index
    %915 = memref.load %arg3[%c189] : memref<252xf32, #tpu.memory_space<smem>>
    %916 = vector.broadcast %915 : f32 to vector<2x8x8xf32>
    %917 = arith.mulf %910, %916 : vector<2x8x8xf32>
    %918 = arith.addf %901, %917 : vector<2x8x8xf32>
    %c190 = arith.constant 190 : index
    %919 = memref.load %arg3[%c190] : memref<252xf32, #tpu.memory_space<smem>>
    %920 = vector.broadcast %919 : f32 to vector<2x8x8xf32>
    %921 = arith.mulf %910, %920 : vector<2x8x8xf32>
    %922 = arith.addf %905, %921 : vector<2x8x8xf32>
    %c191 = arith.constant 191 : index
    %923 = memref.load %arg3[%c191] : memref<252xf32, #tpu.memory_space<smem>>
    %924 = vector.broadcast %923 : f32 to vector<2x8x8xf32>
    %925 = arith.mulf %910, %924 : vector<2x8x8xf32>
    %926 = arith.addf %909, %925 : vector<2x8x8xf32>
    %927 = vector.extract_strided_slice %807 {offsets = [0, 2, 1], sizes = [2, 8, 8], strides = [1, 1, 1]} : vector<2x10x10xf32> to vector<2x8x8xf32>
    %c216 = arith.constant 216 : index
    %928 = memref.load %arg3[%c216] : memref<252xf32, #tpu.memory_space<smem>>
    %929 = vector.broadcast %928 : f32 to vector<2x8x8xf32>
    %930 = arith.mulf %927, %929 : vector<2x8x8xf32>
    %931 = arith.addf %914, %930 : vector<2x8x8xf32>
    %c217 = arith.constant 217 : index
    %932 = memref.load %arg3[%c217] : memref<252xf32, #tpu.memory_space<smem>>
    %933 = vector.broadcast %932 : f32 to vector<2x8x8xf32>
    %934 = arith.mulf %927, %933 : vector<2x8x8xf32>
    %935 = arith.addf %918, %934 : vector<2x8x8xf32>
    %c218 = arith.constant 218 : index
    %936 = memref.load %arg3[%c218] : memref<252xf32, #tpu.memory_space<smem>>
    %937 = vector.broadcast %936 : f32 to vector<2x8x8xf32>
    %938 = arith.mulf %927, %937 : vector<2x8x8xf32>
    %939 = arith.addf %922, %938 : vector<2x8x8xf32>
    %c219 = arith.constant 219 : index
    %940 = memref.load %arg3[%c219] : memref<252xf32, #tpu.memory_space<smem>>
    %941 = vector.broadcast %940 : f32 to vector<2x8x8xf32>
    %942 = arith.mulf %927, %941 : vector<2x8x8xf32>
    %943 = arith.addf %926, %942 : vector<2x8x8xf32>
    %944 = vector.extract_strided_slice %807 {offsets = [0, 2, 2], sizes = [2, 8, 8], strides = [1, 1, 1]} : vector<2x10x10xf32> to vector<2x8x8xf32>
    %c244 = arith.constant 244 : index
    %945 = memref.load %arg3[%c244] : memref<252xf32, #tpu.memory_space<smem>>
    %946 = vector.broadcast %945 : f32 to vector<2x8x8xf32>
    %947 = arith.mulf %944, %946 : vector<2x8x8xf32>
    %948 = arith.addf %931, %947 : vector<2x8x8xf32>
    %c245 = arith.constant 245 : index
    %949 = memref.load %arg3[%c245] : memref<252xf32, #tpu.memory_space<smem>>
    %950 = vector.broadcast %949 : f32 to vector<2x8x8xf32>
    %951 = arith.mulf %944, %950 : vector<2x8x8xf32>
    %952 = arith.addf %935, %951 : vector<2x8x8xf32>
    %c246 = arith.constant 246 : index
    %953 = memref.load %arg3[%c246] : memref<252xf32, #tpu.memory_space<smem>>
    %954 = vector.broadcast %953 : f32 to vector<2x8x8xf32>
    %955 = arith.mulf %944, %954 : vector<2x8x8xf32>
    %956 = arith.addf %939, %955 : vector<2x8x8xf32>
    %c247 = arith.constant 247 : index
    %957 = memref.load %arg3[%c247] : memref<252xf32, #tpu.memory_space<smem>>
    %958 = vector.broadcast %957 : f32 to vector<2x8x8xf32>
    %959 = arith.mulf %944, %958 : vector<2x8x8xf32>
    %960 = arith.addf %943, %959 : vector<2x8x8xf32>
    %c0_60 = arith.constant 0 : index
    %c6_61 = arith.constant 6 : index
    %c0_62 = arith.constant 0 : index
    %c0_63 = arith.constant 0 : index
    %961 = vector.load %arg8[%c0_60, %c6_61, %c0_62, %c0_63] : memref<2x7x10x10xf32, #tpu.memory_space<vmem>>, vector<2x1x10x10xf32>
    %962 = vector.shape_cast %961 : vector<2x1x10x10xf32> to vector<2x10x10xf32>
    %963 = vector.extract_strided_slice %962 {offsets = [0, 0, 0], sizes = [2, 8, 8], strides = [1, 1, 1]} : vector<2x10x10xf32> to vector<2x8x8xf32>
    %c24 = arith.constant 24 : index
    %964 = memref.load %arg3[%c24] : memref<252xf32, #tpu.memory_space<smem>>
    %965 = vector.broadcast %964 : f32 to vector<2x8x8xf32>
    %966 = arith.mulf %963, %965 : vector<2x8x8xf32>
    %967 = arith.addf %948, %966 : vector<2x8x8xf32>
    %c25 = arith.constant 25 : index
    %968 = memref.load %arg3[%c25] : memref<252xf32, #tpu.memory_space<smem>>
    %969 = vector.broadcast %968 : f32 to vector<2x8x8xf32>
    %970 = arith.mulf %963, %969 : vector<2x8x8xf32>
    %971 = arith.addf %952, %970 : vector<2x8x8xf32>
    %c26 = arith.constant 26 : index
    %972 = memref.load %arg3[%c26] : memref<252xf32, #tpu.memory_space<smem>>
    %973 = vector.broadcast %972 : f32 to vector<2x8x8xf32>
    %974 = arith.mulf %963, %973 : vector<2x8x8xf32>
    %975 = arith.addf %956, %974 : vector<2x8x8xf32>
    %c27 = arith.constant 27 : index
    %976 = memref.load %arg3[%c27] : memref<252xf32, #tpu.memory_space<smem>>
    %977 = vector.broadcast %976 : f32 to vector<2x8x8xf32>
    %978 = arith.mulf %963, %977 : vector<2x8x8xf32>
    %979 = arith.addf %960, %978 : vector<2x8x8xf32>
    %980 = vector.extract_strided_slice %962 {offsets = [0, 0, 1], sizes = [2, 8, 8], strides = [1, 1, 1]} : vector<2x10x10xf32> to vector<2x8x8xf32>
    %c52 = arith.constant 52 : index
    %981 = memref.load %arg3[%c52] : memref<252xf32, #tpu.memory_space<smem>>
    %982 = vector.broadcast %981 : f32 to vector<2x8x8xf32>
    %983 = arith.mulf %980, %982 : vector<2x8x8xf32>
    %984 = arith.addf %967, %983 : vector<2x8x8xf32>
    %c53 = arith.constant 53 : index
    %985 = memref.load %arg3[%c53] : memref<252xf32, #tpu.memory_space<smem>>
    %986 = vector.broadcast %985 : f32 to vector<2x8x8xf32>
    %987 = arith.mulf %980, %986 : vector<2x8x8xf32>
    %988 = arith.addf %971, %987 : vector<2x8x8xf32>
    %c54 = arith.constant 54 : index
    %989 = memref.load %arg3[%c54] : memref<252xf32, #tpu.memory_space<smem>>
    %990 = vector.broadcast %989 : f32 to vector<2x8x8xf32>
    %991 = arith.mulf %980, %990 : vector<2x8x8xf32>
    %992 = arith.addf %975, %991 : vector<2x8x8xf32>
    %c55 = arith.constant 55 : index
    %993 = memref.load %arg3[%c55] : memref<252xf32, #tpu.memory_space<smem>>
    %994 = vector.broadcast %993 : f32 to vector<2x8x8xf32>
    %995 = arith.mulf %980, %994 : vector<2x8x8xf32>
    %996 = arith.addf %979, %995 : vector<2x8x8xf32>
    %997 = vector.extract_strided_slice %962 {offsets = [0, 0, 2], sizes = [2, 8, 8], strides = [1, 1, 1]} : vector<2x10x10xf32> to vector<2x8x8xf32>
    %c80 = arith.constant 80 : index
    %998 = memref.load %arg3[%c80] : memref<252xf32, #tpu.memory_space<smem>>
    %999 = vector.broadcast %998 : f32 to vector<2x8x8xf32>
    %1000 = arith.mulf %997, %999 : vector<2x8x8xf32>
    %1001 = arith.addf %984, %1000 : vector<2x8x8xf32>
    %c81 = arith.constant 81 : index
    %1002 = memref.load %arg3[%c81] : memref<252xf32, #tpu.memory_space<smem>>
    %1003 = vector.broadcast %1002 : f32 to vector<2x8x8xf32>
    %1004 = arith.mulf %997, %1003 : vector<2x8x8xf32>
    %1005 = arith.addf %988, %1004 : vector<2x8x8xf32>
    %c82 = arith.constant 82 : index
    %1006 = memref.load %arg3[%c82] : memref<252xf32, #tpu.memory_space<smem>>
    %1007 = vector.broadcast %1006 : f32 to vector<2x8x8xf32>
    %1008 = arith.mulf %997, %1007 : vector<2x8x8xf32>
    %1009 = arith.addf %992, %1008 : vector<2x8x8xf32>
    %c83 = arith.constant 83 : index
    %1010 = memref.load %arg3[%c83] : memref<252xf32, #tpu.memory_space<smem>>
    %1011 = vector.broadcast %1010 : f32 to vector<2x8x8xf32>
    %1012 = arith.mulf %997, %1011 : vector<2x8x8xf32>
    %1013 = arith.addf %996, %1012 : vector<2x8x8xf32>
    %1014 = vector.extract_strided_slice %962 {offsets = [0, 1, 0], sizes = [2, 8, 8], strides = [1, 1, 1]} : vector<2x10x10xf32> to vector<2x8x8xf32>
    %c108 = arith.constant 108 : index
    %1015 = memref.load %arg3[%c108] : memref<252xf32, #tpu.memory_space<smem>>
    %1016 = vector.broadcast %1015 : f32 to vector<2x8x8xf32>
    %1017 = arith.mulf %1014, %1016 : vector<2x8x8xf32>
    %1018 = arith.addf %1001, %1017 : vector<2x8x8xf32>
    %c109 = arith.constant 109 : index
    %1019 = memref.load %arg3[%c109] : memref<252xf32, #tpu.memory_space<smem>>
    %1020 = vector.broadcast %1019 : f32 to vector<2x8x8xf32>
    %1021 = arith.mulf %1014, %1020 : vector<2x8x8xf32>
    %1022 = arith.addf %1005, %1021 : vector<2x8x8xf32>
    %c110 = arith.constant 110 : index
    %1023 = memref.load %arg3[%c110] : memref<252xf32, #tpu.memory_space<smem>>
    %1024 = vector.broadcast %1023 : f32 to vector<2x8x8xf32>
    %1025 = arith.mulf %1014, %1024 : vector<2x8x8xf32>
    %1026 = arith.addf %1009, %1025 : vector<2x8x8xf32>
    %c111 = arith.constant 111 : index
    %1027 = memref.load %arg3[%c111] : memref<252xf32, #tpu.memory_space<smem>>
    %1028 = vector.broadcast %1027 : f32 to vector<2x8x8xf32>
    %1029 = arith.mulf %1014, %1028 : vector<2x8x8xf32>
    %1030 = arith.addf %1013, %1029 : vector<2x8x8xf32>
    %1031 = vector.extract_strided_slice %962 {offsets = [0, 1, 1], sizes = [2, 8, 8], strides = [1, 1, 1]} : vector<2x10x10xf32> to vector<2x8x8xf32>
    %c136 = arith.constant 136 : index
    %1032 = memref.load %arg3[%c136] : memref<252xf32, #tpu.memory_space<smem>>
    %1033 = vector.broadcast %1032 : f32 to vector<2x8x8xf32>
    %1034 = arith.mulf %1031, %1033 : vector<2x8x8xf32>
    %1035 = arith.addf %1018, %1034 : vector<2x8x8xf32>
    %c137 = arith.constant 137 : index
    %1036 = memref.load %arg3[%c137] : memref<252xf32, #tpu.memory_space<smem>>
    %1037 = vector.broadcast %1036 : f32 to vector<2x8x8xf32>
    %1038 = arith.mulf %1031, %1037 : vector<2x8x8xf32>
    %1039 = arith.addf %1022, %1038 : vector<2x8x8xf32>
    %c138 = arith.constant 138 : index
    %1040 = memref.load %arg3[%c138] : memref<252xf32, #tpu.memory_space<smem>>
    %1041 = vector.broadcast %1040 : f32 to vector<2x8x8xf32>
    %1042 = arith.mulf %1031, %1041 : vector<2x8x8xf32>
    %1043 = arith.addf %1026, %1042 : vector<2x8x8xf32>
    %c139 = arith.constant 139 : index
    %1044 = memref.load %arg3[%c139] : memref<252xf32, #tpu.memory_space<smem>>
    %1045 = vector.broadcast %1044 : f32 to vector<2x8x8xf32>
    %1046 = arith.mulf %1031, %1045 : vector<2x8x8xf32>
    %1047 = arith.addf %1030, %1046 : vector<2x8x8xf32>
    %1048 = vector.extract_strided_slice %962 {offsets = [0, 1, 2], sizes = [2, 8, 8], strides = [1, 1, 1]} : vector<2x10x10xf32> to vector<2x8x8xf32>
    %c164 = arith.constant 164 : index
    %1049 = memref.load %arg3[%c164] : memref<252xf32, #tpu.memory_space<smem>>
    %1050 = vector.broadcast %1049 : f32 to vector<2x8x8xf32>
    %1051 = arith.mulf %1048, %1050 : vector<2x8x8xf32>
    %1052 = arith.addf %1035, %1051 : vector<2x8x8xf32>
    %c165 = arith.constant 165 : index
    %1053 = memref.load %arg3[%c165] : memref<252xf32, #tpu.memory_space<smem>>
    %1054 = vector.broadcast %1053 : f32 to vector<2x8x8xf32>
    %1055 = arith.mulf %1048, %1054 : vector<2x8x8xf32>
    %1056 = arith.addf %1039, %1055 : vector<2x8x8xf32>
    %c166 = arith.constant 166 : index
    %1057 = memref.load %arg3[%c166] : memref<252xf32, #tpu.memory_space<smem>>
    %1058 = vector.broadcast %1057 : f32 to vector<2x8x8xf32>
    %1059 = arith.mulf %1048, %1058 : vector<2x8x8xf32>
    %1060 = arith.addf %1043, %1059 : vector<2x8x8xf32>
    %c167 = arith.constant 167 : index
    %1061 = memref.load %arg3[%c167] : memref<252xf32, #tpu.memory_space<smem>>
    %1062 = vector.broadcast %1061 : f32 to vector<2x8x8xf32>
    %1063 = arith.mulf %1048, %1062 : vector<2x8x8xf32>
    %1064 = arith.addf %1047, %1063 : vector<2x8x8xf32>
    %1065 = vector.extract_strided_slice %962 {offsets = [0, 2, 0], sizes = [2, 8, 8], strides = [1, 1, 1]} : vector<2x10x10xf32> to vector<2x8x8xf32>
    %c192 = arith.constant 192 : index
    %1066 = memref.load %arg3[%c192] : memref<252xf32, #tpu.memory_space<smem>>
    %1067 = vector.broadcast %1066 : f32 to vector<2x8x8xf32>
    %1068 = arith.mulf %1065, %1067 : vector<2x8x8xf32>
    %1069 = arith.addf %1052, %1068 : vector<2x8x8xf32>
    %c193 = arith.constant 193 : index
    %1070 = memref.load %arg3[%c193] : memref<252xf32, #tpu.memory_space<smem>>
    %1071 = vector.broadcast %1070 : f32 to vector<2x8x8xf32>
    %1072 = arith.mulf %1065, %1071 : vector<2x8x8xf32>
    %1073 = arith.addf %1056, %1072 : vector<2x8x8xf32>
    %c194 = arith.constant 194 : index
    %1074 = memref.load %arg3[%c194] : memref<252xf32, #tpu.memory_space<smem>>
    %1075 = vector.broadcast %1074 : f32 to vector<2x8x8xf32>
    %1076 = arith.mulf %1065, %1075 : vector<2x8x8xf32>
    %1077 = arith.addf %1060, %1076 : vector<2x8x8xf32>
    %c195 = arith.constant 195 : index
    %1078 = memref.load %arg3[%c195] : memref<252xf32, #tpu.memory_space<smem>>
    %1079 = vector.broadcast %1078 : f32 to vector<2x8x8xf32>
    %1080 = arith.mulf %1065, %1079 : vector<2x8x8xf32>
    %1081 = arith.addf %1064, %1080 : vector<2x8x8xf32>
    %1082 = vector.extract_strided_slice %962 {offsets = [0, 2, 1], sizes = [2, 8, 8], strides = [1, 1, 1]} : vector<2x10x10xf32> to vector<2x8x8xf32>
    %c220 = arith.constant 220 : index
    %1083 = memref.load %arg3[%c220] : memref<252xf32, #tpu.memory_space<smem>>
    %1084 = vector.broadcast %1083 : f32 to vector<2x8x8xf32>
    %1085 = arith.mulf %1082, %1084 : vector<2x8x8xf32>
    %1086 = arith.addf %1069, %1085 : vector<2x8x8xf32>
    %c221 = arith.constant 221 : index
    %1087 = memref.load %arg3[%c221] : memref<252xf32, #tpu.memory_space<smem>>
    %1088 = vector.broadcast %1087 : f32 to vector<2x8x8xf32>
    %1089 = arith.mulf %1082, %1088 : vector<2x8x8xf32>
    %1090 = arith.addf %1073, %1089 : vector<2x8x8xf32>
    %c222 = arith.constant 222 : index
    %1091 = memref.load %arg3[%c222] : memref<252xf32, #tpu.memory_space<smem>>
    %1092 = vector.broadcast %1091 : f32 to vector<2x8x8xf32>
    %1093 = arith.mulf %1082, %1092 : vector<2x8x8xf32>
    %1094 = arith.addf %1077, %1093 : vector<2x8x8xf32>
    %c223 = arith.constant 223 : index
    %1095 = memref.load %arg3[%c223] : memref<252xf32, #tpu.memory_space<smem>>
    %1096 = vector.broadcast %1095 : f32 to vector<2x8x8xf32>
    %1097 = arith.mulf %1082, %1096 : vector<2x8x8xf32>
    %1098 = arith.addf %1081, %1097 : vector<2x8x8xf32>
    %1099 = vector.extract_strided_slice %962 {offsets = [0, 2, 2], sizes = [2, 8, 8], strides = [1, 1, 1]} : vector<2x10x10xf32> to vector<2x8x8xf32>
    %c248 = arith.constant 248 : index
    %1100 = memref.load %arg3[%c248] : memref<252xf32, #tpu.memory_space<smem>>
    %1101 = vector.broadcast %1100 : f32 to vector<2x8x8xf32>
    %1102 = arith.mulf %1099, %1101 : vector<2x8x8xf32>
    %1103 = arith.addf %1086, %1102 : vector<2x8x8xf32>
    %c249 = arith.constant 249 : index
    %1104 = memref.load %arg3[%c249] : memref<252xf32, #tpu.memory_space<smem>>
    %1105 = vector.broadcast %1104 : f32 to vector<2x8x8xf32>
    %1106 = arith.mulf %1099, %1105 : vector<2x8x8xf32>
    %1107 = arith.addf %1090, %1106 : vector<2x8x8xf32>
    %c250 = arith.constant 250 : index
    %1108 = memref.load %arg3[%c250] : memref<252xf32, #tpu.memory_space<smem>>
    %1109 = vector.broadcast %1108 : f32 to vector<2x8x8xf32>
    %1110 = arith.mulf %1099, %1109 : vector<2x8x8xf32>
    %1111 = arith.addf %1094, %1110 : vector<2x8x8xf32>
    %c251 = arith.constant 251 : index
    %1112 = memref.load %arg3[%c251] : memref<252xf32, #tpu.memory_space<smem>>
    %1113 = vector.broadcast %1112 : f32 to vector<2x8x8xf32>
    %1114 = arith.mulf %1099, %1113 : vector<2x8x8xf32>
    %1115 = arith.addf %1098, %1114 : vector<2x8x8xf32>
    %1116 = vector.shape_cast %1103 : vector<2x8x8xf32> to vector<1x2x8x8xf32>
    %cst_64 = arith.constant dense<0.000000e+00> : vector<1xf32>
    %1117 = vector.multi_reduction <add>, %1116, %cst_64 [1, 2, 3] : vector<1x2x8x8xf32> to vector<1xf32>
    %1118 = vector.shape_cast %1117 : vector<1xf32> to vector<1x1x1x1xf32>
    %1119 = vector.extract %1118[0, 0, 0, 0] : f32 from vector<1x1x1x1xf32>
    %cst_65 = arith.constant 7.812500e-03 : f32
    %1120 = arith.mulf %1119, %cst_65 : f32
    %1121 = arith.mulf %1103, %1103 : vector<2x8x8xf32>
    %1122 = vector.shape_cast %1121 : vector<2x8x8xf32> to vector<1x2x8x8xf32>
    %cst_66 = arith.constant dense<0.000000e+00> : vector<1xf32>
    %1123 = vector.multi_reduction <add>, %1122, %cst_66 [1, 2, 3] : vector<1x2x8x8xf32> to vector<1xf32>
    %1124 = vector.shape_cast %1123 : vector<1xf32> to vector<1x1x1x1xf32>
    %1125 = vector.extract %1124[0, 0, 0, 0] : f32 from vector<1x1x1x1xf32>
    %cst_67 = arith.constant 7.812500e-03 : f32
    %1126 = arith.mulf %1125, %cst_67 : f32
    %1127 = arith.mulf %1120, %1120 : f32
    %1128 = arith.subf %1126, %1127 : f32
    %c0_68 = arith.constant 0 : index
    %1129 = memref.load %arg5[%c0_68] : memref<8xf32, #tpu.memory_space<smem>>
    %cst_69 = arith.constant 9.99999974E-6 : f32
    %1130 = arith.addf %1128, %cst_69 : f32
    %1131 = math.rsqrt %1130 : f32
    %1132 = arith.mulf %1129, %1131 : f32
    %c0_70 = arith.constant 0 : index
    %1133 = memref.load %arg6[%c0_70] : memref<8xf32, #tpu.memory_space<smem>>
    %1134 = arith.mulf %1120, %1132 : f32
    %1135 = arith.subf %1133, %1134 : f32
    %1136 = vector.broadcast %1132 : f32 to vector<2x8x8xf32>
    %1137 = arith.mulf %1103, %1136 : vector<2x8x8xf32>
    %1138 = vector.broadcast %1135 : f32 to vector<2x8x8xf32>
    %1139 = arith.addf %1137, %1138 : vector<2x8x8xf32>
    %cst_71 = arith.constant 5.000000e-01 : f32
    %1140 = vector.broadcast %cst_71 : f32 to vector<2x8x8xf32>
    %1141 = arith.subf %1139, %1140 : vector<2x8x8xf32>
    %cst_72 = arith.constant 5.000000e-01 : f32
    %1142 = vector.broadcast %cst_72 : f32 to vector<2x8x8xf32>
    %1143 = arith.mulf %1141, %1142 : vector<2x8x8xf32>
    %1144 = math.tanh %1143 : vector<2x8x8xf32>
    %cst_73 = arith.constant 5.000000e-01 : f32
    %1145 = vector.broadcast %cst_73 : f32 to vector<2x8x8xf32>
    %1146 = arith.mulf %1145, %1144 : vector<2x8x8xf32>
    %cst_74 = arith.constant 5.000000e-01 : f32
    %1147 = vector.broadcast %cst_74 : f32 to vector<2x8x8xf32>
    %1148 = arith.addf %1146, %1147 : vector<2x8x8xf32>
    %cst_75 = arith.constant 5.000000e-01 : f32
    %1149 = vector.broadcast %cst_75 : f32 to vector<2x8x8xf32>
    %1150 = arith.mulf %1149, %1148 : vector<2x8x8xf32>
    %cst_76 = arith.constant 2.500000e-01 : f32
    %1151 = vector.broadcast %cst_76 : f32 to vector<2x8x8xf32>
    %1152 = arith.addf %1151, %1150 : vector<2x8x8xf32>
    %1153 = arith.subf %1139, %1152 : vector<2x8x8xf32>
    %cst_77 = arith.constant 5.000000e-01 : f32
    %1154 = vector.broadcast %cst_77 : f32 to vector<2x8x8xf32>
    %1155 = arith.mulf %1153, %1154 : vector<2x8x8xf32>
    %1156 = math.tanh %1155 : vector<2x8x8xf32>
    %cst_78 = arith.constant 5.000000e-01 : f32
    %1157 = vector.broadcast %cst_78 : f32 to vector<2x8x8xf32>
    %1158 = arith.mulf %1157, %1156 : vector<2x8x8xf32>
    %cst_79 = arith.constant 5.000000e-01 : f32
    %1159 = vector.broadcast %cst_79 : f32 to vector<2x8x8xf32>
    %1160 = arith.addf %1158, %1159 : vector<2x8x8xf32>
    %cst_80 = arith.constant 5.000000e-01 : f32
    %1161 = vector.broadcast %cst_80 : f32 to vector<2x8x8xf32>
    %1162 = arith.mulf %1161, %1152 : vector<2x8x8xf32>
    %cst_81 = arith.constant 5.000000e-01 : f32
    %1163 = vector.broadcast %cst_81 : f32 to vector<2x8x8xf32>
    %1164 = arith.mulf %1163, %1160 : vector<2x8x8xf32>
    %1165 = arith.addf %1162, %1164 : vector<2x8x8xf32>
    %1166 = arith.subf %1139, %1165 : vector<2x8x8xf32>
    %cst_82 = arith.constant 5.000000e-01 : f32
    %1167 = vector.broadcast %cst_82 : f32 to vector<2x8x8xf32>
    %1168 = arith.mulf %1166, %1167 : vector<2x8x8xf32>
    %1169 = math.tanh %1168 : vector<2x8x8xf32>
    %cst_83 = arith.constant 5.000000e-01 : f32
    %1170 = vector.broadcast %cst_83 : f32 to vector<2x8x8xf32>
    %1171 = arith.mulf %1170, %1169 : vector<2x8x8xf32>
    %cst_84 = arith.constant 5.000000e-01 : f32
    %1172 = vector.broadcast %cst_84 : f32 to vector<2x8x8xf32>
    %1173 = arith.addf %1171, %1172 : vector<2x8x8xf32>
    %cst_85 = arith.constant 5.000000e-01 : f32
    %1174 = vector.broadcast %cst_85 : f32 to vector<2x8x8xf32>
    %1175 = arith.mulf %1174, %1165 : vector<2x8x8xf32>
    %cst_86 = arith.constant 5.000000e-01 : f32
    %1176 = vector.broadcast %cst_86 : f32 to vector<2x8x8xf32>
    %1177 = arith.mulf %1176, %1173 : vector<2x8x8xf32>
    %1178 = arith.addf %1175, %1177 : vector<2x8x8xf32>
    %1179 = vector.shape_cast %1107 : vector<2x8x8xf32> to vector<1x2x8x8xf32>
    %cst_87 = arith.constant dense<0.000000e+00> : vector<1xf32>
    %1180 = vector.multi_reduction <add>, %1179, %cst_87 [1, 2, 3] : vector<1x2x8x8xf32> to vector<1xf32>
    %1181 = vector.shape_cast %1180 : vector<1xf32> to vector<1x1x1x1xf32>
    %1182 = vector.extract %1181[0, 0, 0, 0] : f32 from vector<1x1x1x1xf32>
    %cst_88 = arith.constant 7.812500e-03 : f32
    %1183 = arith.mulf %1182, %cst_88 : f32
    %1184 = arith.mulf %1107, %1107 : vector<2x8x8xf32>
    %1185 = vector.shape_cast %1184 : vector<2x8x8xf32> to vector<1x2x8x8xf32>
    %cst_89 = arith.constant dense<0.000000e+00> : vector<1xf32>
    %1186 = vector.multi_reduction <add>, %1185, %cst_89 [1, 2, 3] : vector<1x2x8x8xf32> to vector<1xf32>
    %1187 = vector.shape_cast %1186 : vector<1xf32> to vector<1x1x1x1xf32>
    %1188 = vector.extract %1187[0, 0, 0, 0] : f32 from vector<1x1x1x1xf32>
    %cst_90 = arith.constant 7.812500e-03 : f32
    %1189 = arith.mulf %1188, %cst_90 : f32
    %1190 = arith.mulf %1183, %1183 : f32
    %1191 = arith.subf %1189, %1190 : f32
    %c1_91 = arith.constant 1 : index
    %1192 = memref.load %arg5[%c1_91] : memref<8xf32, #tpu.memory_space<smem>>
    %cst_92 = arith.constant 9.99999974E-6 : f32
    %1193 = arith.addf %1191, %cst_92 : f32
    %1194 = math.rsqrt %1193 : f32
    %1195 = arith.mulf %1192, %1194 : f32
    %c1_93 = arith.constant 1 : index
    %1196 = memref.load %arg6[%c1_93] : memref<8xf32, #tpu.memory_space<smem>>
    %1197 = arith.mulf %1183, %1195 : f32
    %1198 = arith.subf %1196, %1197 : f32
    %1199 = vector.broadcast %1195 : f32 to vector<2x8x8xf32>
    %1200 = arith.mulf %1107, %1199 : vector<2x8x8xf32>
    %1201 = vector.broadcast %1198 : f32 to vector<2x8x8xf32>
    %1202 = arith.addf %1200, %1201 : vector<2x8x8xf32>
    %cst_94 = arith.constant 5.000000e-01 : f32
    %1203 = vector.broadcast %cst_94 : f32 to vector<2x8x8xf32>
    %1204 = arith.subf %1202, %1203 : vector<2x8x8xf32>
    %cst_95 = arith.constant 5.000000e-01 : f32
    %1205 = vector.broadcast %cst_95 : f32 to vector<2x8x8xf32>
    %1206 = arith.mulf %1204, %1205 : vector<2x8x8xf32>
    %1207 = math.tanh %1206 : vector<2x8x8xf32>
    %cst_96 = arith.constant 5.000000e-01 : f32
    %1208 = vector.broadcast %cst_96 : f32 to vector<2x8x8xf32>
    %1209 = arith.mulf %1208, %1207 : vector<2x8x8xf32>
    %cst_97 = arith.constant 5.000000e-01 : f32
    %1210 = vector.broadcast %cst_97 : f32 to vector<2x8x8xf32>
    %1211 = arith.addf %1209, %1210 : vector<2x8x8xf32>
    %cst_98 = arith.constant 5.000000e-01 : f32
    %1212 = vector.broadcast %cst_98 : f32 to vector<2x8x8xf32>
    %1213 = arith.mulf %1212, %1211 : vector<2x8x8xf32>
    %cst_99 = arith.constant 2.500000e-01 : f32
    %1214 = vector.broadcast %cst_99 : f32 to vector<2x8x8xf32>
    %1215 = arith.addf %1214, %1213 : vector<2x8x8xf32>
    %1216 = arith.subf %1202, %1215 : vector<2x8x8xf32>
    %cst_100 = arith.constant 5.000000e-01 : f32
    %1217 = vector.broadcast %cst_100 : f32 to vector<2x8x8xf32>
    %1218 = arith.mulf %1216, %1217 : vector<2x8x8xf32>
    %1219 = math.tanh %1218 : vector<2x8x8xf32>
    %cst_101 = arith.constant 5.000000e-01 : f32
    %1220 = vector.broadcast %cst_101 : f32 to vector<2x8x8xf32>
    %1221 = arith.mulf %1220, %1219 : vector<2x8x8xf32>
    %cst_102 = arith.constant 5.000000e-01 : f32
    %1222 = vector.broadcast %cst_102 : f32 to vector<2x8x8xf32>
    %1223 = arith.addf %1221, %1222 : vector<2x8x8xf32>
    %cst_103 = arith.constant 5.000000e-01 : f32
    %1224 = vector.broadcast %cst_103 : f32 to vector<2x8x8xf32>
    %1225 = arith.mulf %1224, %1215 : vector<2x8x8xf32>
    %cst_104 = arith.constant 5.000000e-01 : f32
    %1226 = vector.broadcast %cst_104 : f32 to vector<2x8x8xf32>
    %1227 = arith.mulf %1226, %1223 : vector<2x8x8xf32>
    %1228 = arith.addf %1225, %1227 : vector<2x8x8xf32>
    %1229 = arith.subf %1202, %1228 : vector<2x8x8xf32>
    %cst_105 = arith.constant 5.000000e-01 : f32
    %1230 = vector.broadcast %cst_105 : f32 to vector<2x8x8xf32>
    %1231 = arith.mulf %1229, %1230 : vector<2x8x8xf32>
    %1232 = math.tanh %1231 : vector<2x8x8xf32>
    %cst_106 = arith.constant 5.000000e-01 : f32
    %1233 = vector.broadcast %cst_106 : f32 to vector<2x8x8xf32>
    %1234 = arith.mulf %1233, %1232 : vector<2x8x8xf32>
    %cst_107 = arith.constant 5.000000e-01 : f32
    %1235 = vector.broadcast %cst_107 : f32 to vector<2x8x8xf32>
    %1236 = arith.addf %1234, %1235 : vector<2x8x8xf32>
    %cst_108 = arith.constant 5.000000e-01 : f32
    %1237 = vector.broadcast %cst_108 : f32 to vector<2x8x8xf32>
    %1238 = arith.mulf %1237, %1228 : vector<2x8x8xf32>
    %cst_109 = arith.constant 5.000000e-01 : f32
    %1239 = vector.broadcast %cst_109 : f32 to vector<2x8x8xf32>
    %1240 = arith.mulf %1239, %1236 : vector<2x8x8xf32>
    %1241 = arith.addf %1238, %1240 : vector<2x8x8xf32>
    %1242 = vector.shape_cast %1111 : vector<2x8x8xf32> to vector<1x2x8x8xf32>
    %cst_110 = arith.constant dense<0.000000e+00> : vector<1xf32>
    %1243 = vector.multi_reduction <add>, %1242, %cst_110 [1, 2, 3] : vector<1x2x8x8xf32> to vector<1xf32>
    %1244 = vector.shape_cast %1243 : vector<1xf32> to vector<1x1x1x1xf32>
    %1245 = vector.extract %1244[0, 0, 0, 0] : f32 from vector<1x1x1x1xf32>
    %cst_111 = arith.constant 7.812500e-03 : f32
    %1246 = arith.mulf %1245, %cst_111 : f32
    %1247 = arith.mulf %1111, %1111 : vector<2x8x8xf32>
    %1248 = vector.shape_cast %1247 : vector<2x8x8xf32> to vector<1x2x8x8xf32>
    %cst_112 = arith.constant dense<0.000000e+00> : vector<1xf32>
    %1249 = vector.multi_reduction <add>, %1248, %cst_112 [1, 2, 3] : vector<1x2x8x8xf32> to vector<1xf32>
    %1250 = vector.shape_cast %1249 : vector<1xf32> to vector<1x1x1x1xf32>
    %1251 = vector.extract %1250[0, 0, 0, 0] : f32 from vector<1x1x1x1xf32>
    %cst_113 = arith.constant 7.812500e-03 : f32
    %1252 = arith.mulf %1251, %cst_113 : f32
    %1253 = arith.mulf %1246, %1246 : f32
    %1254 = arith.subf %1252, %1253 : f32
    %c2_114 = arith.constant 2 : index
    %1255 = memref.load %arg5[%c2_114] : memref<8xf32, #tpu.memory_space<smem>>
    %cst_115 = arith.constant 9.99999974E-6 : f32
    %1256 = arith.addf %1254, %cst_115 : f32
    %1257 = math.rsqrt %1256 : f32
    %1258 = arith.mulf %1255, %1257 : f32
    %c2_116 = arith.constant 2 : index
    %1259 = memref.load %arg6[%c2_116] : memref<8xf32, #tpu.memory_space<smem>>
    %1260 = arith.mulf %1246, %1258 : f32
    %1261 = arith.subf %1259, %1260 : f32
    %1262 = vector.broadcast %1258 : f32 to vector<2x8x8xf32>
    %1263 = arith.mulf %1111, %1262 : vector<2x8x8xf32>
    %1264 = vector.broadcast %1261 : f32 to vector<2x8x8xf32>
    %1265 = arith.addf %1263, %1264 : vector<2x8x8xf32>
    %cst_117 = arith.constant 5.000000e-01 : f32
    %1266 = vector.broadcast %cst_117 : f32 to vector<2x8x8xf32>
    %1267 = arith.subf %1265, %1266 : vector<2x8x8xf32>
    %cst_118 = arith.constant 5.000000e-01 : f32
    %1268 = vector.broadcast %cst_118 : f32 to vector<2x8x8xf32>
    %1269 = arith.mulf %1267, %1268 : vector<2x8x8xf32>
    %1270 = math.tanh %1269 : vector<2x8x8xf32>
    %cst_119 = arith.constant 5.000000e-01 : f32
    %1271 = vector.broadcast %cst_119 : f32 to vector<2x8x8xf32>
    %1272 = arith.mulf %1271, %1270 : vector<2x8x8xf32>
    %cst_120 = arith.constant 5.000000e-01 : f32
    %1273 = vector.broadcast %cst_120 : f32 to vector<2x8x8xf32>
    %1274 = arith.addf %1272, %1273 : vector<2x8x8xf32>
    %cst_121 = arith.constant 5.000000e-01 : f32
    %1275 = vector.broadcast %cst_121 : f32 to vector<2x8x8xf32>
    %1276 = arith.mulf %1275, %1274 : vector<2x8x8xf32>
    %cst_122 = arith.constant 2.500000e-01 : f32
    %1277 = vector.broadcast %cst_122 : f32 to vector<2x8x8xf32>
    %1278 = arith.addf %1277, %1276 : vector<2x8x8xf32>
    %1279 = arith.subf %1265, %1278 : vector<2x8x8xf32>
    %cst_123 = arith.constant 5.000000e-01 : f32
    %1280 = vector.broadcast %cst_123 : f32 to vector<2x8x8xf32>
    %1281 = arith.mulf %1279, %1280 : vector<2x8x8xf32>
    %1282 = math.tanh %1281 : vector<2x8x8xf32>
    %cst_124 = arith.constant 5.000000e-01 : f32
    %1283 = vector.broadcast %cst_124 : f32 to vector<2x8x8xf32>
    %1284 = arith.mulf %1283, %1282 : vector<2x8x8xf32>
    %cst_125 = arith.constant 5.000000e-01 : f32
    %1285 = vector.broadcast %cst_125 : f32 to vector<2x8x8xf32>
    %1286 = arith.addf %1284, %1285 : vector<2x8x8xf32>
    %cst_126 = arith.constant 5.000000e-01 : f32
    %1287 = vector.broadcast %cst_126 : f32 to vector<2x8x8xf32>
    %1288 = arith.mulf %1287, %1278 : vector<2x8x8xf32>
    %cst_127 = arith.constant 5.000000e-01 : f32
    %1289 = vector.broadcast %cst_127 : f32 to vector<2x8x8xf32>
    %1290 = arith.mulf %1289, %1286 : vector<2x8x8xf32>
    %1291 = arith.addf %1288, %1290 : vector<2x8x8xf32>
    %1292 = arith.subf %1265, %1291 : vector<2x8x8xf32>
    %cst_128 = arith.constant 5.000000e-01 : f32
    %1293 = vector.broadcast %cst_128 : f32 to vector<2x8x8xf32>
    %1294 = arith.mulf %1292, %1293 : vector<2x8x8xf32>
    %1295 = math.tanh %1294 : vector<2x8x8xf32>
    %cst_129 = arith.constant 5.000000e-01 : f32
    %1296 = vector.broadcast %cst_129 : f32 to vector<2x8x8xf32>
    %1297 = arith.mulf %1296, %1295 : vector<2x8x8xf32>
    %cst_130 = arith.constant 5.000000e-01 : f32
    %1298 = vector.broadcast %cst_130 : f32 to vector<2x8x8xf32>
    %1299 = arith.addf %1297, %1298 : vector<2x8x8xf32>
    %cst_131 = arith.constant 5.000000e-01 : f32
    %1300 = vector.broadcast %cst_131 : f32 to vector<2x8x8xf32>
    %1301 = arith.mulf %1300, %1291 : vector<2x8x8xf32>
    %cst_132 = arith.constant 5.000000e-01 : f32
    %1302 = vector.broadcast %cst_132 : f32 to vector<2x8x8xf32>
    %1303 = arith.mulf %1302, %1299 : vector<2x8x8xf32>
    %1304 = arith.addf %1301, %1303 : vector<2x8x8xf32>
    %1305 = vector.shape_cast %1115 : vector<2x8x8xf32> to vector<1x2x8x8xf32>
    %cst_133 = arith.constant dense<0.000000e+00> : vector<1xf32>
    %1306 = vector.multi_reduction <add>, %1305, %cst_133 [1, 2, 3] : vector<1x2x8x8xf32> to vector<1xf32>
    %1307 = vector.shape_cast %1306 : vector<1xf32> to vector<1x1x1x1xf32>
    %1308 = vector.extract %1307[0, 0, 0, 0] : f32 from vector<1x1x1x1xf32>
    %cst_134 = arith.constant 7.812500e-03 : f32
    %1309 = arith.mulf %1308, %cst_134 : f32
    %1310 = arith.mulf %1115, %1115 : vector<2x8x8xf32>
    %1311 = vector.shape_cast %1310 : vector<2x8x8xf32> to vector<1x2x8x8xf32>
    %cst_135 = arith.constant dense<0.000000e+00> : vector<1xf32>
    %1312 = vector.multi_reduction <add>, %1311, %cst_135 [1, 2, 3] : vector<1x2x8x8xf32> to vector<1xf32>
    %1313 = vector.shape_cast %1312 : vector<1xf32> to vector<1x1x1x1xf32>
    %1314 = vector.extract %1313[0, 0, 0, 0] : f32 from vector<1x1x1x1xf32>
    %cst_136 = arith.constant 7.812500e-03 : f32
    %1315 = arith.mulf %1314, %cst_136 : f32
    %1316 = arith.mulf %1309, %1309 : f32
    %1317 = arith.subf %1315, %1316 : f32
    %c3_137 = arith.constant 3 : index
    %1318 = memref.load %arg5[%c3_137] : memref<8xf32, #tpu.memory_space<smem>>
    %cst_138 = arith.constant 9.99999974E-6 : f32
    %1319 = arith.addf %1317, %cst_138 : f32
    %1320 = math.rsqrt %1319 : f32
    %1321 = arith.mulf %1318, %1320 : f32
    %c3_139 = arith.constant 3 : index
    %1322 = memref.load %arg6[%c3_139] : memref<8xf32, #tpu.memory_space<smem>>
    %1323 = arith.mulf %1309, %1321 : f32
    %1324 = arith.subf %1322, %1323 : f32
    %1325 = vector.broadcast %1321 : f32 to vector<2x8x8xf32>
    %1326 = arith.mulf %1115, %1325 : vector<2x8x8xf32>
    %1327 = vector.broadcast %1324 : f32 to vector<2x8x8xf32>
    %1328 = arith.addf %1326, %1327 : vector<2x8x8xf32>
    %cst_140 = arith.constant 5.000000e-01 : f32
    %1329 = vector.broadcast %cst_140 : f32 to vector<2x8x8xf32>
    %1330 = arith.subf %1328, %1329 : vector<2x8x8xf32>
    %cst_141 = arith.constant 5.000000e-01 : f32
    %1331 = vector.broadcast %cst_141 : f32 to vector<2x8x8xf32>
    %1332 = arith.mulf %1330, %1331 : vector<2x8x8xf32>
    %1333 = math.tanh %1332 : vector<2x8x8xf32>
    %cst_142 = arith.constant 5.000000e-01 : f32
    %1334 = vector.broadcast %cst_142 : f32 to vector<2x8x8xf32>
    %1335 = arith.mulf %1334, %1333 : vector<2x8x8xf32>
    %cst_143 = arith.constant 5.000000e-01 : f32
    %1336 = vector.broadcast %cst_143 : f32 to vector<2x8x8xf32>
    %1337 = arith.addf %1335, %1336 : vector<2x8x8xf32>
    %cst_144 = arith.constant 5.000000e-01 : f32
    %1338 = vector.broadcast %cst_144 : f32 to vector<2x8x8xf32>
    %1339 = arith.mulf %1338, %1337 : vector<2x8x8xf32>
    %cst_145 = arith.constant 2.500000e-01 : f32
    %1340 = vector.broadcast %cst_145 : f32 to vector<2x8x8xf32>
    %1341 = arith.addf %1340, %1339 : vector<2x8x8xf32>
    %1342 = arith.subf %1328, %1341 : vector<2x8x8xf32>
    %cst_146 = arith.constant 5.000000e-01 : f32
    %1343 = vector.broadcast %cst_146 : f32 to vector<2x8x8xf32>
    %1344 = arith.mulf %1342, %1343 : vector<2x8x8xf32>
    %1345 = math.tanh %1344 : vector<2x8x8xf32>
    %cst_147 = arith.constant 5.000000e-01 : f32
    %1346 = vector.broadcast %cst_147 : f32 to vector<2x8x8xf32>
    %1347 = arith.mulf %1346, %1345 : vector<2x8x8xf32>
    %cst_148 = arith.constant 5.000000e-01 : f32
    %1348 = vector.broadcast %cst_148 : f32 to vector<2x8x8xf32>
    %1349 = arith.addf %1347, %1348 : vector<2x8x8xf32>
    %cst_149 = arith.constant 5.000000e-01 : f32
    %1350 = vector.broadcast %cst_149 : f32 to vector<2x8x8xf32>
    %1351 = arith.mulf %1350, %1341 : vector<2x8x8xf32>
    %cst_150 = arith.constant 5.000000e-01 : f32
    %1352 = vector.broadcast %cst_150 : f32 to vector<2x8x8xf32>
    %1353 = arith.mulf %1352, %1349 : vector<2x8x8xf32>
    %1354 = arith.addf %1351, %1353 : vector<2x8x8xf32>
    %1355 = arith.subf %1328, %1354 : vector<2x8x8xf32>
    %cst_151 = arith.constant 5.000000e-01 : f32
    %1356 = vector.broadcast %cst_151 : f32 to vector<2x8x8xf32>
    %1357 = arith.mulf %1355, %1356 : vector<2x8x8xf32>
    %1358 = math.tanh %1357 : vector<2x8x8xf32>
    %cst_152 = arith.constant 5.000000e-01 : f32
    %1359 = vector.broadcast %cst_152 : f32 to vector<2x8x8xf32>
    %1360 = arith.mulf %1359, %1358 : vector<2x8x8xf32>
    %cst_153 = arith.constant 5.000000e-01 : f32
    %1361 = vector.broadcast %cst_153 : f32 to vector<2x8x8xf32>
    %1362 = arith.addf %1360, %1361 : vector<2x8x8xf32>
    %cst_154 = arith.constant 5.000000e-01 : f32
    %1363 = vector.broadcast %cst_154 : f32 to vector<2x8x8xf32>
    %1364 = arith.mulf %1363, %1354 : vector<2x8x8xf32>
    %cst_155 = arith.constant 5.000000e-01 : f32
    %1365 = vector.broadcast %cst_155 : f32 to vector<2x8x8xf32>
    %1366 = arith.mulf %1365, %1362 : vector<2x8x8xf32>
    %1367 = arith.addf %1364, %1366 : vector<2x8x8xf32>
    %1368 = vector.shape_cast %1178 : vector<2x8x8xf32> to vector<2x1x8x8xf32>
    %1369 = vector.shape_cast %1241 : vector<2x8x8xf32> to vector<2x1x8x8xf32>
    %1370 = vector.shape_cast %1304 : vector<2x8x8xf32> to vector<2x1x8x8xf32>
    %1371 = vector.shape_cast %1367 : vector<2x8x8xf32> to vector<2x1x8x8xf32>
    %1372 = tpu.concatenate %1368, %1369, %1370, %1371 in 1 : vector<2x1x8x8xf32>, vector<2x1x8x8xf32>, vector<2x1x8x8xf32>, vector<2x1x8x8xf32> -> vector<2x4x8x8xf32>
    %c0_156 = arith.constant 0 : index
    %c0_157 = arith.constant 0 : index
    %c1_158 = arith.constant 1 : index
    %c1_159 = arith.constant 1 : index
    %1373 = vector.load %arg8[%c0_156, %c0_157, %c1_158, %c1_159] : memref<2x7x10x10xf32, #tpu.memory_space<vmem>>, vector<2x4x8x8xf32>
    tpu.vector_store %arg8[%c0_156, %c0_157, %c1_158, %c1_159], %1372 {strides = array<i32>} : memref<2x7x10x10xf32, #tpu.memory_space<vmem>>, vector<2x4x8x8xf32>,
    %c0_160 = arith.constant 0 : index
    %c0_161 = arith.constant 0 : index
    %c0_162 = arith.constant 0 : index
    %c0_163 = arith.constant 0 : index
    %1374 = vector.load %arg8[%c0_160, %c0_161, %c0_162, %c0_163] : memref<2x7x10x10xf32, #tpu.memory_space<vmem>>, vector<2x1x10x10xf32>
    %1375 = vector.shape_cast %1374 : vector<2x1x10x10xf32> to vector<2x10x10xf32>
    %1376 = vector.extract_strided_slice %1375 {offsets = [0, 0, 0], sizes = [2, 8, 8], strides = [1, 1, 1]} : vector<2x10x10xf32> to vector<2x8x8xf32>
    %c0_164 = arith.constant 0 : index
    %1377 = memref.load %arg4[%c0_164] : memref<144xf32, #tpu.memory_space<smem>>
    %1378 = vector.broadcast %1377 : f32 to vector<2x8x8xf32>
    %1379 = arith.mulf %1376, %1378 : vector<2x8x8xf32>
    %c1_165 = arith.constant 1 : index
    %1380 = memref.load %arg4[%c1_165] : memref<144xf32, #tpu.memory_space<smem>>
    %1381 = vector.broadcast %1380 : f32 to vector<2x8x8xf32>
    %1382 = arith.mulf %1376, %1381 : vector<2x8x8xf32>
    %c2_166 = arith.constant 2 : index
    %1383 = memref.load %arg4[%c2_166] : memref<144xf32, #tpu.memory_space<smem>>
    %1384 = vector.broadcast %1383 : f32 to vector<2x8x8xf32>
    %1385 = arith.mulf %1376, %1384 : vector<2x8x8xf32>
    %c3_167 = arith.constant 3 : index
    %1386 = memref.load %arg4[%c3_167] : memref<144xf32, #tpu.memory_space<smem>>
    %1387 = vector.broadcast %1386 : f32 to vector<2x8x8xf32>
    %1388 = arith.mulf %1376, %1387 : vector<2x8x8xf32>
    %1389 = vector.extract_strided_slice %1375 {offsets = [0, 0, 1], sizes = [2, 8, 8], strides = [1, 1, 1]} : vector<2x10x10xf32> to vector<2x8x8xf32>
    %c16_168 = arith.constant 16 : index
    %1390 = memref.load %arg4[%c16_168] : memref<144xf32, #tpu.memory_space<smem>>
    %1391 = vector.broadcast %1390 : f32 to vector<2x8x8xf32>
    %1392 = arith.mulf %1389, %1391 : vector<2x8x8xf32>
    %1393 = arith.addf %1379, %1392 : vector<2x8x8xf32>
    %c17_169 = arith.constant 17 : index
    %1394 = memref.load %arg4[%c17_169] : memref<144xf32, #tpu.memory_space<smem>>
    %1395 = vector.broadcast %1394 : f32 to vector<2x8x8xf32>
    %1396 = arith.mulf %1389, %1395 : vector<2x8x8xf32>
    %1397 = arith.addf %1382, %1396 : vector<2x8x8xf32>
    %c18_170 = arith.constant 18 : index
    %1398 = memref.load %arg4[%c18_170] : memref<144xf32, #tpu.memory_space<smem>>
    %1399 = vector.broadcast %1398 : f32 to vector<2x8x8xf32>
    %1400 = arith.mulf %1389, %1399 : vector<2x8x8xf32>
    %1401 = arith.addf %1385, %1400 : vector<2x8x8xf32>
    %c19_171 = arith.constant 19 : index
    %1402 = memref.load %arg4[%c19_171] : memref<144xf32, #tpu.memory_space<smem>>
    %1403 = vector.broadcast %1402 : f32 to vector<2x8x8xf32>
    %1404 = arith.mulf %1389, %1403 : vector<2x8x8xf32>
    %1405 = arith.addf %1388, %1404 : vector<2x8x8xf32>
    %1406 = vector.extract_strided_slice %1375 {offsets = [0, 0, 2], sizes = [2, 8, 8], strides = [1, 1, 1]} : vector<2x10x10xf32> to vector<2x8x8xf32>
    %c32_172 = arith.constant 32 : index
    %1407 = memref.load %arg4[%c32_172] : memref<144xf32, #tpu.memory_space<smem>>
    %1408 = vector.broadcast %1407 : f32 to vector<2x8x8xf32>
    %1409 = arith.mulf %1406, %1408 : vector<2x8x8xf32>
    %1410 = arith.addf %1393, %1409 : vector<2x8x8xf32>
    %c33_173 = arith.constant 33 : index
    %1411 = memref.load %arg4[%c33_173] : memref<144xf32, #tpu.memory_space<smem>>
    %1412 = vector.broadcast %1411 : f32 to vector<2x8x8xf32>
    %1413 = arith.mulf %1406, %1412 : vector<2x8x8xf32>
    %1414 = arith.addf %1397, %1413 : vector<2x8x8xf32>
    %c34_174 = arith.constant 34 : index
    %1415 = memref.load %arg4[%c34_174] : memref<144xf32, #tpu.memory_space<smem>>
    %1416 = vector.broadcast %1415 : f32 to vector<2x8x8xf32>
    %1417 = arith.mulf %1406, %1416 : vector<2x8x8xf32>
    %1418 = arith.addf %1401, %1417 : vector<2x8x8xf32>
    %c35_175 = arith.constant 35 : index
    %1419 = memref.load %arg4[%c35_175] : memref<144xf32, #tpu.memory_space<smem>>
    %1420 = vector.broadcast %1419 : f32 to vector<2x8x8xf32>
    %1421 = arith.mulf %1406, %1420 : vector<2x8x8xf32>
    %1422 = arith.addf %1405, %1421 : vector<2x8x8xf32>
    %1423 = vector.extract_strided_slice %1375 {offsets = [0, 1, 0], sizes = [2, 8, 8], strides = [1, 1, 1]} : vector<2x10x10xf32> to vector<2x8x8xf32>
    %c48_176 = arith.constant 48 : index
    %1424 = memref.load %arg4[%c48_176] : memref<144xf32, #tpu.memory_space<smem>>
    %1425 = vector.broadcast %1424 : f32 to vector<2x8x8xf32>
    %1426 = arith.mulf %1423, %1425 : vector<2x8x8xf32>
    %1427 = arith.addf %1410, %1426 : vector<2x8x8xf32>
    %c49_177 = arith.constant 49 : index
    %1428 = memref.load %arg4[%c49_177] : memref<144xf32, #tpu.memory_space<smem>>
    %1429 = vector.broadcast %1428 : f32 to vector<2x8x8xf32>
    %1430 = arith.mulf %1423, %1429 : vector<2x8x8xf32>
    %1431 = arith.addf %1414, %1430 : vector<2x8x8xf32>
    %c50_178 = arith.constant 50 : index
    %1432 = memref.load %arg4[%c50_178] : memref<144xf32, #tpu.memory_space<smem>>
    %1433 = vector.broadcast %1432 : f32 to vector<2x8x8xf32>
    %1434 = arith.mulf %1423, %1433 : vector<2x8x8xf32>
    %1435 = arith.addf %1418, %1434 : vector<2x8x8xf32>
    %c51_179 = arith.constant 51 : index
    %1436 = memref.load %arg4[%c51_179] : memref<144xf32, #tpu.memory_space<smem>>
    %1437 = vector.broadcast %1436 : f32 to vector<2x8x8xf32>
    %1438 = arith.mulf %1423, %1437 : vector<2x8x8xf32>
    %1439 = arith.addf %1422, %1438 : vector<2x8x8xf32>
    %1440 = vector.extract_strided_slice %1375 {offsets = [0, 1, 1], sizes = [2, 8, 8], strides = [1, 1, 1]} : vector<2x10x10xf32> to vector<2x8x8xf32>
    %c64_180 = arith.constant 64 : index
    %1441 = memref.load %arg4[%c64_180] : memref<144xf32, #tpu.memory_space<smem>>
    %1442 = vector.broadcast %1441 : f32 to vector<2x8x8xf32>
    %1443 = arith.mulf %1440, %1442 : vector<2x8x8xf32>
    %1444 = arith.addf %1427, %1443 : vector<2x8x8xf32>
    %c65_181 = arith.constant 65 : index
    %1445 = memref.load %arg4[%c65_181] : memref<144xf32, #tpu.memory_space<smem>>
    %1446 = vector.broadcast %1445 : f32 to vector<2x8x8xf32>
    %1447 = arith.mulf %1440, %1446 : vector<2x8x8xf32>
    %1448 = arith.addf %1431, %1447 : vector<2x8x8xf32>
    %c66_182 = arith.constant 66 : index
    %1449 = memref.load %arg4[%c66_182] : memref<144xf32, #tpu.memory_space<smem>>
    %1450 = vector.broadcast %1449 : f32 to vector<2x8x8xf32>
    %1451 = arith.mulf %1440, %1450 : vector<2x8x8xf32>
    %1452 = arith.addf %1435, %1451 : vector<2x8x8xf32>
    %c67_183 = arith.constant 67 : index
    %1453 = memref.load %arg4[%c67_183] : memref<144xf32, #tpu.memory_space<smem>>
    %1454 = vector.broadcast %1453 : f32 to vector<2x8x8xf32>
    %1455 = arith.mulf %1440, %1454 : vector<2x8x8xf32>
    %1456 = arith.addf %1439, %1455 : vector<2x8x8xf32>
    %1457 = vector.extract_strided_slice %1375 {offsets = [0, 1, 2], sizes = [2, 8, 8], strides = [1, 1, 1]} : vector<2x10x10xf32> to vector<2x8x8xf32>
    %c80_184 = arith.constant 80 : index
    %1458 = memref.load %arg4[%c80_184] : memref<144xf32, #tpu.memory_space<smem>>
    %1459 = vector.broadcast %1458 : f32 to vector<2x8x8xf32>
    %1460 = arith.mulf %1457, %1459 : vector<2x8x8xf32>
    %1461 = arith.addf %1444, %1460 : vector<2x8x8xf32>
    %c81_185 = arith.constant 81 : index
    %1462 = memref.load %arg4[%c81_185] : memref<144xf32, #tpu.memory_space<smem>>
    %1463 = vector.broadcast %1462 : f32 to vector<2x8x8xf32>
    %1464 = arith.mulf %1457, %1463 : vector<2x8x8xf32>
    %1465 = arith.addf %1448, %1464 : vector<2x8x8xf32>
    %c82_186 = arith.constant 82 : index
    %1466 = memref.load %arg4[%c82_186] : memref<144xf32, #tpu.memory_space<smem>>
    %1467 = vector.broadcast %1466 : f32 to vector<2x8x8xf32>
    %1468 = arith.mulf %1457, %1467 : vector<2x8x8xf32>
    %1469 = arith.addf %1452, %1468 : vector<2x8x8xf32>
    %c83_187 = arith.constant 83 : index
    %1470 = memref.load %arg4[%c83_187] : memref<144xf32, #tpu.memory_space<smem>>
    %1471 = vector.broadcast %1470 : f32 to vector<2x8x8xf32>
    %1472 = arith.mulf %1457, %1471 : vector<2x8x8xf32>
    %1473 = arith.addf %1456, %1472 : vector<2x8x8xf32>
    %1474 = vector.extract_strided_slice %1375 {offsets = [0, 2, 0], sizes = [2, 8, 8], strides = [1, 1, 1]} : vector<2x10x10xf32> to vector<2x8x8xf32>
    %c96_188 = arith.constant 96 : index
    %1475 = memref.load %arg4[%c96_188] : memref<144xf32, #tpu.memory_space<smem>>
    %1476 = vector.broadcast %1475 : f32 to vector<2x8x8xf32>
    %1477 = arith.mulf %1474, %1476 : vector<2x8x8xf32>
    %1478 = arith.addf %1461, %1477 : vector<2x8x8xf32>
    %c97_189 = arith.constant 97 : index
    %1479 = memref.load %arg4[%c97_189] : memref<144xf32, #tpu.memory_space<smem>>
    %1480 = vector.broadcast %1479 : f32 to vector<2x8x8xf32>
    %1481 = arith.mulf %1474, %1480 : vector<2x8x8xf32>
    %1482 = arith.addf %1465, %1481 : vector<2x8x8xf32>
    %c98_190 = arith.constant 98 : index
    %1483 = memref.load %arg4[%c98_190] : memref<144xf32, #tpu.memory_space<smem>>
    %1484 = vector.broadcast %1483 : f32 to vector<2x8x8xf32>
    %1485 = arith.mulf %1474, %1484 : vector<2x8x8xf32>
    %1486 = arith.addf %1469, %1485 : vector<2x8x8xf32>
    %c99_191 = arith.constant 99 : index
    %1487 = memref.load %arg4[%c99_191] : memref<144xf32, #tpu.memory_space<smem>>
    %1488 = vector.broadcast %1487 : f32 to vector<2x8x8xf32>
    %1489 = arith.mulf %1474, %1488 : vector<2x8x8xf32>
    %1490 = arith.addf %1473, %1489 : vector<2x8x8xf32>
    %1491 = vector.extract_strided_slice %1375 {offsets = [0, 2, 1], sizes = [2, 8, 8], strides = [1, 1, 1]} : vector<2x10x10xf32> to vector<2x8x8xf32>
    %c112_192 = arith.constant 112 : index
    %1492 = memref.load %arg4[%c112_192] : memref<144xf32, #tpu.memory_space<smem>>
    %1493 = vector.broadcast %1492 : f32 to vector<2x8x8xf32>
    %1494 = arith.mulf %1491, %1493 : vector<2x8x8xf32>
    %1495 = arith.addf %1478, %1494 : vector<2x8x8xf32>
    %c113_193 = arith.constant 113 : index
    %1496 = memref.load %arg4[%c113_193] : memref<144xf32, #tpu.memory_space<smem>>
    %1497 = vector.broadcast %1496 : f32 to vector<2x8x8xf32>
    %1498 = arith.mulf %1491, %1497 : vector<2x8x8xf32>
    %1499 = arith.addf %1482, %1498 : vector<2x8x8xf32>
    %c114_194 = arith.constant 114 : index
    %1500 = memref.load %arg4[%c114_194] : memref<144xf32, #tpu.memory_space<smem>>
    %1501 = vector.broadcast %1500 : f32 to vector<2x8x8xf32>
    %1502 = arith.mulf %1491, %1501 : vector<2x8x8xf32>
    %1503 = arith.addf %1486, %1502 : vector<2x8x8xf32>
    %c115_195 = arith.constant 115 : index
    %1504 = memref.load %arg4[%c115_195] : memref<144xf32, #tpu.memory_space<smem>>
    %1505 = vector.broadcast %1504 : f32 to vector<2x8x8xf32>
    %1506 = arith.mulf %1491, %1505 : vector<2x8x8xf32>
    %1507 = arith.addf %1490, %1506 : vector<2x8x8xf32>
    %1508 = vector.extract_strided_slice %1375 {offsets = [0, 2, 2], sizes = [2, 8, 8], strides = [1, 1, 1]} : vector<2x10x10xf32> to vector<2x8x8xf32>
    %c128_196 = arith.constant 128 : index
    %1509 = memref.load %arg4[%c128_196] : memref<144xf32, #tpu.memory_space<smem>>
    %1510 = vector.broadcast %1509 : f32 to vector<2x8x8xf32>
    %1511 = arith.mulf %1508, %1510 : vector<2x8x8xf32>
    %1512 = arith.addf %1495, %1511 : vector<2x8x8xf32>
    %c129_197 = arith.constant 129 : index
    %1513 = memref.load %arg4[%c129_197] : memref<144xf32, #tpu.memory_space<smem>>
    %1514 = vector.broadcast %1513 : f32 to vector<2x8x8xf32>
    %1515 = arith.mulf %1508, %1514 : vector<2x8x8xf32>
    %1516 = arith.addf %1499, %1515 : vector<2x8x8xf32>
    %c130_198 = arith.constant 130 : index
    %1517 = memref.load %arg4[%c130_198] : memref<144xf32, #tpu.memory_space<smem>>
    %1518 = vector.broadcast %1517 : f32 to vector<2x8x8xf32>
    %1519 = arith.mulf %1508, %1518 : vector<2x8x8xf32>
    %1520 = arith.addf %1503, %1519 : vector<2x8x8xf32>
    %c131_199 = arith.constant 131 : index
    %1521 = memref.load %arg4[%c131_199] : memref<144xf32, #tpu.memory_space<smem>>
    %1522 = vector.broadcast %1521 : f32 to vector<2x8x8xf32>
    %1523 = arith.mulf %1508, %1522 : vector<2x8x8xf32>
    %1524 = arith.addf %1507, %1523 : vector<2x8x8xf32>
    %c0_200 = arith.constant 0 : index
    %c1_201 = arith.constant 1 : index
    %c0_202 = arith.constant 0 : index
    %c0_203 = arith.constant 0 : index
    %1525 = vector.load %arg8[%c0_200, %c1_201, %c0_202, %c0_203] : memref<2x7x10x10xf32, #tpu.memory_space<vmem>>, vector<2x1x10x10xf32>
    %1526 = vector.shape_cast %1525 : vector<2x1x10x10xf32> to vector<2x10x10xf32>
    %1527 = vector.extract_strided_slice %1526 {offsets = [0, 0, 0], sizes = [2, 8, 8], strides = [1, 1, 1]} : vector<2x10x10xf32> to vector<2x8x8xf32>
    %c4_204 = arith.constant 4 : index
    %1528 = memref.load %arg4[%c4_204] : memref<144xf32, #tpu.memory_space<smem>>
    %1529 = vector.broadcast %1528 : f32 to vector<2x8x8xf32>
    %1530 = arith.mulf %1527, %1529 : vector<2x8x8xf32>
    %1531 = arith.addf %1512, %1530 : vector<2x8x8xf32>
    %c5_205 = arith.constant 5 : index
    %1532 = memref.load %arg4[%c5_205] : memref<144xf32, #tpu.memory_space<smem>>
    %1533 = vector.broadcast %1532 : f32 to vector<2x8x8xf32>
    %1534 = arith.mulf %1527, %1533 : vector<2x8x8xf32>
    %1535 = arith.addf %1516, %1534 : vector<2x8x8xf32>
    %c6_206 = arith.constant 6 : index
    %1536 = memref.load %arg4[%c6_206] : memref<144xf32, #tpu.memory_space<smem>>
    %1537 = vector.broadcast %1536 : f32 to vector<2x8x8xf32>
    %1538 = arith.mulf %1527, %1537 : vector<2x8x8xf32>
    %1539 = arith.addf %1520, %1538 : vector<2x8x8xf32>
    %c7_207 = arith.constant 7 : index
    %1540 = memref.load %arg4[%c7_207] : memref<144xf32, #tpu.memory_space<smem>>
    %1541 = vector.broadcast %1540 : f32 to vector<2x8x8xf32>
    %1542 = arith.mulf %1527, %1541 : vector<2x8x8xf32>
    %1543 = arith.addf %1524, %1542 : vector<2x8x8xf32>
    %1544 = vector.extract_strided_slice %1526 {offsets = [0, 0, 1], sizes = [2, 8, 8], strides = [1, 1, 1]} : vector<2x10x10xf32> to vector<2x8x8xf32>
    %c20_208 = arith.constant 20 : index
    %1545 = memref.load %arg4[%c20_208] : memref<144xf32, #tpu.memory_space<smem>>
    %1546 = vector.broadcast %1545 : f32 to vector<2x8x8xf32>
    %1547 = arith.mulf %1544, %1546 : vector<2x8x8xf32>
    %1548 = arith.addf %1531, %1547 : vector<2x8x8xf32>
    %c21_209 = arith.constant 21 : index
    %1549 = memref.load %arg4[%c21_209] : memref<144xf32, #tpu.memory_space<smem>>
    %1550 = vector.broadcast %1549 : f32 to vector<2x8x8xf32>
    %1551 = arith.mulf %1544, %1550 : vector<2x8x8xf32>
    %1552 = arith.addf %1535, %1551 : vector<2x8x8xf32>
    %c22_210 = arith.constant 22 : index
    %1553 = memref.load %arg4[%c22_210] : memref<144xf32, #tpu.memory_space<smem>>
    %1554 = vector.broadcast %1553 : f32 to vector<2x8x8xf32>
    %1555 = arith.mulf %1544, %1554 : vector<2x8x8xf32>
    %1556 = arith.addf %1539, %1555 : vector<2x8x8xf32>
    %c23_211 = arith.constant 23 : index
    %1557 = memref.load %arg4[%c23_211] : memref<144xf32, #tpu.memory_space<smem>>
    %1558 = vector.broadcast %1557 : f32 to vector<2x8x8xf32>
    %1559 = arith.mulf %1544, %1558 : vector<2x8x8xf32>
    %1560 = arith.addf %1543, %1559 : vector<2x8x8xf32>
    %1561 = vector.extract_strided_slice %1526 {offsets = [0, 0, 2], sizes = [2, 8, 8], strides = [1, 1, 1]} : vector<2x10x10xf32> to vector<2x8x8xf32>
    %c36_212 = arith.constant 36 : index
    %1562 = memref.load %arg4[%c36_212] : memref<144xf32, #tpu.memory_space<smem>>
    %1563 = vector.broadcast %1562 : f32 to vector<2x8x8xf32>
    %1564 = arith.mulf %1561, %1563 : vector<2x8x8xf32>
    %1565 = arith.addf %1548, %1564 : vector<2x8x8xf32>
    %c37_213 = arith.constant 37 : index
    %1566 = memref.load %arg4[%c37_213] : memref<144xf32, #tpu.memory_space<smem>>
    %1567 = vector.broadcast %1566 : f32 to vector<2x8x8xf32>
    %1568 = arith.mulf %1561, %1567 : vector<2x8x8xf32>
    %1569 = arith.addf %1552, %1568 : vector<2x8x8xf32>
    %c38_214 = arith.constant 38 : index
    %1570 = memref.load %arg4[%c38_214] : memref<144xf32, #tpu.memory_space<smem>>
    %1571 = vector.broadcast %1570 : f32 to vector<2x8x8xf32>
    %1572 = arith.mulf %1561, %1571 : vector<2x8x8xf32>
    %1573 = arith.addf %1556, %1572 : vector<2x8x8xf32>
    %c39_215 = arith.constant 39 : index
    %1574 = memref.load %arg4[%c39_215] : memref<144xf32, #tpu.memory_space<smem>>
    %1575 = vector.broadcast %1574 : f32 to vector<2x8x8xf32>
    %1576 = arith.mulf %1561, %1575 : vector<2x8x8xf32>
    %1577 = arith.addf %1560, %1576 : vector<2x8x8xf32>
    %1578 = vector.extract_strided_slice %1526 {offsets = [0, 1, 0], sizes = [2, 8, 8], strides = [1, 1, 1]} : vector<2x10x10xf32> to vector<2x8x8xf32>
    %c52_216 = arith.constant 52 : index
    %1579 = memref.load %arg4[%c52_216] : memref<144xf32, #tpu.memory_space<smem>>
    %1580 = vector.broadcast %1579 : f32 to vector<2x8x8xf32>
    %1581 = arith.mulf %1578, %1580 : vector<2x8x8xf32>
    %1582 = arith.addf %1565, %1581 : vector<2x8x8xf32>
    %c53_217 = arith.constant 53 : index
    %1583 = memref.load %arg4[%c53_217] : memref<144xf32, #tpu.memory_space<smem>>
    %1584 = vector.broadcast %1583 : f32 to vector<2x8x8xf32>
    %1585 = arith.mulf %1578, %1584 : vector<2x8x8xf32>
    %1586 = arith.addf %1569, %1585 : vector<2x8x8xf32>
    %c54_218 = arith.constant 54 : index
    %1587 = memref.load %arg4[%c54_218] : memref<144xf32, #tpu.memory_space<smem>>
    %1588 = vector.broadcast %1587 : f32 to vector<2x8x8xf32>
    %1589 = arith.mulf %1578, %1588 : vector<2x8x8xf32>
    %1590 = arith.addf %1573, %1589 : vector<2x8x8xf32>
    %c55_219 = arith.constant 55 : index
    %1591 = memref.load %arg4[%c55_219] : memref<144xf32, #tpu.memory_space<smem>>
    %1592 = vector.broadcast %1591 : f32 to vector<2x8x8xf32>
    %1593 = arith.mulf %1578, %1592 : vector<2x8x8xf32>
    %1594 = arith.addf %1577, %1593 : vector<2x8x8xf32>
    %1595 = vector.extract_strided_slice %1526 {offsets = [0, 1, 1], sizes = [2, 8, 8], strides = [1, 1, 1]} : vector<2x10x10xf32> to vector<2x8x8xf32>
    %c68_220 = arith.constant 68 : index
    %1596 = memref.load %arg4[%c68_220] : memref<144xf32, #tpu.memory_space<smem>>
    %1597 = vector.broadcast %1596 : f32 to vector<2x8x8xf32>
    %1598 = arith.mulf %1595, %1597 : vector<2x8x8xf32>
    %1599 = arith.addf %1582, %1598 : vector<2x8x8xf32>
    %c69_221 = arith.constant 69 : index
    %1600 = memref.load %arg4[%c69_221] : memref<144xf32, #tpu.memory_space<smem>>
    %1601 = vector.broadcast %1600 : f32 to vector<2x8x8xf32>
    %1602 = arith.mulf %1595, %1601 : vector<2x8x8xf32>
    %1603 = arith.addf %1586, %1602 : vector<2x8x8xf32>
    %c70_222 = arith.constant 70 : index
    %1604 = memref.load %arg4[%c70_222] : memref<144xf32, #tpu.memory_space<smem>>
    %1605 = vector.broadcast %1604 : f32 to vector<2x8x8xf32>
    %1606 = arith.mulf %1595, %1605 : vector<2x8x8xf32>
    %1607 = arith.addf %1590, %1606 : vector<2x8x8xf32>
    %c71_223 = arith.constant 71 : index
    %1608 = memref.load %arg4[%c71_223] : memref<144xf32, #tpu.memory_space<smem>>
    %1609 = vector.broadcast %1608 : f32 to vector<2x8x8xf32>
    %1610 = arith.mulf %1595, %1609 : vector<2x8x8xf32>
    %1611 = arith.addf %1594, %1610 : vector<2x8x8xf32>
    %1612 = vector.extract_strided_slice %1526 {offsets = [0, 1, 2], sizes = [2, 8, 8], strides = [1, 1, 1]} : vector<2x10x10xf32> to vector<2x8x8xf32>
    %c84_224 = arith.constant 84 : index
    %1613 = memref.load %arg4[%c84_224] : memref<144xf32, #tpu.memory_space<smem>>
    %1614 = vector.broadcast %1613 : f32 to vector<2x8x8xf32>
    %1615 = arith.mulf %1612, %1614 : vector<2x8x8xf32>
    %1616 = arith.addf %1599, %1615 : vector<2x8x8xf32>
    %c85_225 = arith.constant 85 : index
    %1617 = memref.load %arg4[%c85_225] : memref<144xf32, #tpu.memory_space<smem>>
    %1618 = vector.broadcast %1617 : f32 to vector<2x8x8xf32>
    %1619 = arith.mulf %1612, %1618 : vector<2x8x8xf32>
    %1620 = arith.addf %1603, %1619 : vector<2x8x8xf32>
    %c86_226 = arith.constant 86 : index
    %1621 = memref.load %arg4[%c86_226] : memref<144xf32, #tpu.memory_space<smem>>
    %1622 = vector.broadcast %1621 : f32 to vector<2x8x8xf32>
    %1623 = arith.mulf %1612, %1622 : vector<2x8x8xf32>
    %1624 = arith.addf %1607, %1623 : vector<2x8x8xf32>
    %c87_227 = arith.constant 87 : index
    %1625 = memref.load %arg4[%c87_227] : memref<144xf32, #tpu.memory_space<smem>>
    %1626 = vector.broadcast %1625 : f32 to vector<2x8x8xf32>
    %1627 = arith.mulf %1612, %1626 : vector<2x8x8xf32>
    %1628 = arith.addf %1611, %1627 : vector<2x8x8xf32>
    %1629 = vector.extract_strided_slice %1526 {offsets = [0, 2, 0], sizes = [2, 8, 8], strides = [1, 1, 1]} : vector<2x10x10xf32> to vector<2x8x8xf32>
    %c100_228 = arith.constant 100 : index
    %1630 = memref.load %arg4[%c100_228] : memref<144xf32, #tpu.memory_space<smem>>
    %1631 = vector.broadcast %1630 : f32 to vector<2x8x8xf32>
    %1632 = arith.mulf %1629, %1631 : vector<2x8x8xf32>
    %1633 = arith.addf %1616, %1632 : vector<2x8x8xf32>
    %c101_229 = arith.constant 101 : index
    %1634 = memref.load %arg4[%c101_229] : memref<144xf32, #tpu.memory_space<smem>>
    %1635 = vector.broadcast %1634 : f32 to vector<2x8x8xf32>
    %1636 = arith.mulf %1629, %1635 : vector<2x8x8xf32>
    %1637 = arith.addf %1620, %1636 : vector<2x8x8xf32>
    %c102_230 = arith.constant 102 : index
    %1638 = memref.load %arg4[%c102_230] : memref<144xf32, #tpu.memory_space<smem>>
    %1639 = vector.broadcast %1638 : f32 to vector<2x8x8xf32>
    %1640 = arith.mulf %1629, %1639 : vector<2x8x8xf32>
    %1641 = arith.addf %1624, %1640 : vector<2x8x8xf32>
    %c103_231 = arith.constant 103 : index
    %1642 = memref.load %arg4[%c103_231] : memref<144xf32, #tpu.memory_space<smem>>
    %1643 = vector.broadcast %1642 : f32 to vector<2x8x8xf32>
    %1644 = arith.mulf %1629, %1643 : vector<2x8x8xf32>
    %1645 = arith.addf %1628, %1644 : vector<2x8x8xf32>
    %1646 = vector.extract_strided_slice %1526 {offsets = [0, 2, 1], sizes = [2, 8, 8], strides = [1, 1, 1]} : vector<2x10x10xf32> to vector<2x8x8xf32>
    %c116_232 = arith.constant 116 : index
    %1647 = memref.load %arg4[%c116_232] : memref<144xf32, #tpu.memory_space<smem>>
    %1648 = vector.broadcast %1647 : f32 to vector<2x8x8xf32>
    %1649 = arith.mulf %1646, %1648 : vector<2x8x8xf32>
    %1650 = arith.addf %1633, %1649 : vector<2x8x8xf32>
    %c117_233 = arith.constant 117 : index
    %1651 = memref.load %arg4[%c117_233] : memref<144xf32, #tpu.memory_space<smem>>
    %1652 = vector.broadcast %1651 : f32 to vector<2x8x8xf32>
    %1653 = arith.mulf %1646, %1652 : vector<2x8x8xf32>
    %1654 = arith.addf %1637, %1653 : vector<2x8x8xf32>
    %c118_234 = arith.constant 118 : index
    %1655 = memref.load %arg4[%c118_234] : memref<144xf32, #tpu.memory_space<smem>>
    %1656 = vector.broadcast %1655 : f32 to vector<2x8x8xf32>
    %1657 = arith.mulf %1646, %1656 : vector<2x8x8xf32>
    %1658 = arith.addf %1641, %1657 : vector<2x8x8xf32>
    %c119_235 = arith.constant 119 : index
    %1659 = memref.load %arg4[%c119_235] : memref<144xf32, #tpu.memory_space<smem>>
    %1660 = vector.broadcast %1659 : f32 to vector<2x8x8xf32>
    %1661 = arith.mulf %1646, %1660 : vector<2x8x8xf32>
    %1662 = arith.addf %1645, %1661 : vector<2x8x8xf32>
    %1663 = vector.extract_strided_slice %1526 {offsets = [0, 2, 2], sizes = [2, 8, 8], strides = [1, 1, 1]} : vector<2x10x10xf32> to vector<2x8x8xf32>
    %c132_236 = arith.constant 132 : index
    %1664 = memref.load %arg4[%c132_236] : memref<144xf32, #tpu.memory_space<smem>>
    %1665 = vector.broadcast %1664 : f32 to vector<2x8x8xf32>
    %1666 = arith.mulf %1663, %1665 : vector<2x8x8xf32>
    %1667 = arith.addf %1650, %1666 : vector<2x8x8xf32>
    %c133_237 = arith.constant 133 : index
    %1668 = memref.load %arg4[%c133_237] : memref<144xf32, #tpu.memory_space<smem>>
    %1669 = vector.broadcast %1668 : f32 to vector<2x8x8xf32>
    %1670 = arith.mulf %1663, %1669 : vector<2x8x8xf32>
    %1671 = arith.addf %1654, %1670 : vector<2x8x8xf32>
    %c134_238 = arith.constant 134 : index
    %1672 = memref.load %arg4[%c134_238] : memref<144xf32, #tpu.memory_space<smem>>
    %1673 = vector.broadcast %1672 : f32 to vector<2x8x8xf32>
    %1674 = arith.mulf %1663, %1673 : vector<2x8x8xf32>
    %1675 = arith.addf %1658, %1674 : vector<2x8x8xf32>
    %c135_239 = arith.constant 135 : index
    %1676 = memref.load %arg4[%c135_239] : memref<144xf32, #tpu.memory_space<smem>>
    %1677 = vector.broadcast %1676 : f32 to vector<2x8x8xf32>
    %1678 = arith.mulf %1663, %1677 : vector<2x8x8xf32>
    %1679 = arith.addf %1662, %1678 : vector<2x8x8xf32>
    %c0_240 = arith.constant 0 : index
    %c2_241 = arith.constant 2 : index
    %c0_242 = arith.constant 0 : index
    %c0_243 = arith.constant 0 : index
    %1680 = vector.load %arg8[%c0_240, %c2_241, %c0_242, %c0_243] : memref<2x7x10x10xf32, #tpu.memory_space<vmem>>, vector<2x1x10x10xf32>
    %1681 = vector.shape_cast %1680 : vector<2x1x10x10xf32> to vector<2x10x10xf32>
    %1682 = vector.extract_strided_slice %1681 {offsets = [0, 0, 0], sizes = [2, 8, 8], strides = [1, 1, 1]} : vector<2x10x10xf32> to vector<2x8x8xf32>
    %c8_244 = arith.constant 8 : index
    %1683 = memref.load %arg4[%c8_244] : memref<144xf32, #tpu.memory_space<smem>>
    %1684 = vector.broadcast %1683 : f32 to vector<2x8x8xf32>
    %1685 = arith.mulf %1682, %1684 : vector<2x8x8xf32>
    %1686 = arith.addf %1667, %1685 : vector<2x8x8xf32>
    %c9_245 = arith.constant 9 : index
    %1687 = memref.load %arg4[%c9_245] : memref<144xf32, #tpu.memory_space<smem>>
    %1688 = vector.broadcast %1687 : f32 to vector<2x8x8xf32>
    %1689 = arith.mulf %1682, %1688 : vector<2x8x8xf32>
    %1690 = arith.addf %1671, %1689 : vector<2x8x8xf32>
    %c10_246 = arith.constant 10 : index
    %1691 = memref.load %arg4[%c10_246] : memref<144xf32, #tpu.memory_space<smem>>
    %1692 = vector.broadcast %1691 : f32 to vector<2x8x8xf32>
    %1693 = arith.mulf %1682, %1692 : vector<2x8x8xf32>
    %1694 = arith.addf %1675, %1693 : vector<2x8x8xf32>
    %c11_247 = arith.constant 11 : index
    %1695 = memref.load %arg4[%c11_247] : memref<144xf32, #tpu.memory_space<smem>>
    %1696 = vector.broadcast %1695 : f32 to vector<2x8x8xf32>
    %1697 = arith.mulf %1682, %1696 : vector<2x8x8xf32>
    %1698 = arith.addf %1679, %1697 : vector<2x8x8xf32>
    %1699 = vector.extract_strided_slice %1681 {offsets = [0, 0, 1], sizes = [2, 8, 8], strides = [1, 1, 1]} : vector<2x10x10xf32> to vector<2x8x8xf32>
    %c24_248 = arith.constant 24 : index
    %1700 = memref.load %arg4[%c24_248] : memref<144xf32, #tpu.memory_space<smem>>
    %1701 = vector.broadcast %1700 : f32 to vector<2x8x8xf32>
    %1702 = arith.mulf %1699, %1701 : vector<2x8x8xf32>
    %1703 = arith.addf %1686, %1702 : vector<2x8x8xf32>
    %c25_249 = arith.constant 25 : index
    %1704 = memref.load %arg4[%c25_249] : memref<144xf32, #tpu.memory_space<smem>>
    %1705 = vector.broadcast %1704 : f32 to vector<2x8x8xf32>
    %1706 = arith.mulf %1699, %1705 : vector<2x8x8xf32>
    %1707 = arith.addf %1690, %1706 : vector<2x8x8xf32>
    %c26_250 = arith.constant 26 : index
    %1708 = memref.load %arg4[%c26_250] : memref<144xf32, #tpu.memory_space<smem>>
    %1709 = vector.broadcast %1708 : f32 to vector<2x8x8xf32>
    %1710 = arith.mulf %1699, %1709 : vector<2x8x8xf32>
    %1711 = arith.addf %1694, %1710 : vector<2x8x8xf32>
    %c27_251 = arith.constant 27 : index
    %1712 = memref.load %arg4[%c27_251] : memref<144xf32, #tpu.memory_space<smem>>
    %1713 = vector.broadcast %1712 : f32 to vector<2x8x8xf32>
    %1714 = arith.mulf %1699, %1713 : vector<2x8x8xf32>
    %1715 = arith.addf %1698, %1714 : vector<2x8x8xf32>
    %1716 = vector.extract_strided_slice %1681 {offsets = [0, 0, 2], sizes = [2, 8, 8], strides = [1, 1, 1]} : vector<2x10x10xf32> to vector<2x8x8xf32>
    %c40_252 = arith.constant 40 : index
    %1717 = memref.load %arg4[%c40_252] : memref<144xf32, #tpu.memory_space<smem>>
    %1718 = vector.broadcast %1717 : f32 to vector<2x8x8xf32>
    %1719 = arith.mulf %1716, %1718 : vector<2x8x8xf32>
    %1720 = arith.addf %1703, %1719 : vector<2x8x8xf32>
    %c41_253 = arith.constant 41 : index
    %1721 = memref.load %arg4[%c41_253] : memref<144xf32, #tpu.memory_space<smem>>
    %1722 = vector.broadcast %1721 : f32 to vector<2x8x8xf32>
    %1723 = arith.mulf %1716, %1722 : vector<2x8x8xf32>
    %1724 = arith.addf %1707, %1723 : vector<2x8x8xf32>
    %c42_254 = arith.constant 42 : index
    %1725 = memref.load %arg4[%c42_254] : memref<144xf32, #tpu.memory_space<smem>>
    %1726 = vector.broadcast %1725 : f32 to vector<2x8x8xf32>
    %1727 = arith.mulf %1716, %1726 : vector<2x8x8xf32>
    %1728 = arith.addf %1711, %1727 : vector<2x8x8xf32>
    %c43_255 = arith.constant 43 : index
    %1729 = memref.load %arg4[%c43_255] : memref<144xf32, #tpu.memory_space<smem>>
    %1730 = vector.broadcast %1729 : f32 to vector<2x8x8xf32>
    %1731 = arith.mulf %1716, %1730 : vector<2x8x8xf32>
    %1732 = arith.addf %1715, %1731 : vector<2x8x8xf32>
    %1733 = vector.extract_strided_slice %1681 {offsets = [0, 1, 0], sizes = [2, 8, 8], strides = [1, 1, 1]} : vector<2x10x10xf32> to vector<2x8x8xf32>
    %c56_256 = arith.constant 56 : index
    %1734 = memref.load %arg4[%c56_256] : memref<144xf32, #tpu.memory_space<smem>>
    %1735 = vector.broadcast %1734 : f32 to vector<2x8x8xf32>
    %1736 = arith.mulf %1733, %1735 : vector<2x8x8xf32>
    %1737 = arith.addf %1720, %1736 : vector<2x8x8xf32>
    %c57_257 = arith.constant 57 : index
    %1738 = memref.load %arg4[%c57_257] : memref<144xf32, #tpu.memory_space<smem>>
    %1739 = vector.broadcast %1738 : f32 to vector<2x8x8xf32>
    %1740 = arith.mulf %1733, %1739 : vector<2x8x8xf32>
    %1741 = arith.addf %1724, %1740 : vector<2x8x8xf32>
    %c58_258 = arith.constant 58 : index
    %1742 = memref.load %arg4[%c58_258] : memref<144xf32, #tpu.memory_space<smem>>
    %1743 = vector.broadcast %1742 : f32 to vector<2x8x8xf32>
    %1744 = arith.mulf %1733, %1743 : vector<2x8x8xf32>
    %1745 = arith.addf %1728, %1744 : vector<2x8x8xf32>
    %c59_259 = arith.constant 59 : index
    %1746 = memref.load %arg4[%c59_259] : memref<144xf32, #tpu.memory_space<smem>>
    %1747 = vector.broadcast %1746 : f32 to vector<2x8x8xf32>
    %1748 = arith.mulf %1733, %1747 : vector<2x8x8xf32>
    %1749 = arith.addf %1732, %1748 : vector<2x8x8xf32>
    %1750 = vector.extract_strided_slice %1681 {offsets = [0, 1, 1], sizes = [2, 8, 8], strides = [1, 1, 1]} : vector<2x10x10xf32> to vector<2x8x8xf32>
    %c72_260 = arith.constant 72 : index
    %1751 = memref.load %arg4[%c72_260] : memref<144xf32, #tpu.memory_space<smem>>
    %1752 = vector.broadcast %1751 : f32 to vector<2x8x8xf32>
    %1753 = arith.mulf %1750, %1752 : vector<2x8x8xf32>
    %1754 = arith.addf %1737, %1753 : vector<2x8x8xf32>
    %c73_261 = arith.constant 73 : index
    %1755 = memref.load %arg4[%c73_261] : memref<144xf32, #tpu.memory_space<smem>>
    %1756 = vector.broadcast %1755 : f32 to vector<2x8x8xf32>
    %1757 = arith.mulf %1750, %1756 : vector<2x8x8xf32>
    %1758 = arith.addf %1741, %1757 : vector<2x8x8xf32>
    %c74_262 = arith.constant 74 : index
    %1759 = memref.load %arg4[%c74_262] : memref<144xf32, #tpu.memory_space<smem>>
    %1760 = vector.broadcast %1759 : f32 to vector<2x8x8xf32>
    %1761 = arith.mulf %1750, %1760 : vector<2x8x8xf32>
    %1762 = arith.addf %1745, %1761 : vector<2x8x8xf32>
    %c75_263 = arith.constant 75 : index
    %1763 = memref.load %arg4[%c75_263] : memref<144xf32, #tpu.memory_space<smem>>
    %1764 = vector.broadcast %1763 : f32 to vector<2x8x8xf32>
    %1765 = arith.mulf %1750, %1764 : vector<2x8x8xf32>
    %1766 = arith.addf %1749, %1765 : vector<2x8x8xf32>
    %1767 = vector.extract_strided_slice %1681 {offsets = [0, 1, 2], sizes = [2, 8, 8], strides = [1, 1, 1]} : vector<2x10x10xf32> to vector<2x8x8xf32>
    %c88_264 = arith.constant 88 : index
    %1768 = memref.load %arg4[%c88_264] : memref<144xf32, #tpu.memory_space<smem>>
    %1769 = vector.broadcast %1768 : f32 to vector<2x8x8xf32>
    %1770 = arith.mulf %1767, %1769 : vector<2x8x8xf32>
    %1771 = arith.addf %1754, %1770 : vector<2x8x8xf32>
    %c89_265 = arith.constant 89 : index
    %1772 = memref.load %arg4[%c89_265] : memref<144xf32, #tpu.memory_space<smem>>
    %1773 = vector.broadcast %1772 : f32 to vector<2x8x8xf32>
    %1774 = arith.mulf %1767, %1773 : vector<2x8x8xf32>
    %1775 = arith.addf %1758, %1774 : vector<2x8x8xf32>
    %c90_266 = arith.constant 90 : index
    %1776 = memref.load %arg4[%c90_266] : memref<144xf32, #tpu.memory_space<smem>>
    %1777 = vector.broadcast %1776 : f32 to vector<2x8x8xf32>
    %1778 = arith.mulf %1767, %1777 : vector<2x8x8xf32>
    %1779 = arith.addf %1762, %1778 : vector<2x8x8xf32>
    %c91_267 = arith.constant 91 : index
    %1780 = memref.load %arg4[%c91_267] : memref<144xf32, #tpu.memory_space<smem>>
    %1781 = vector.broadcast %1780 : f32 to vector<2x8x8xf32>
    %1782 = arith.mulf %1767, %1781 : vector<2x8x8xf32>
    %1783 = arith.addf %1766, %1782 : vector<2x8x8xf32>
    %1784 = vector.extract_strided_slice %1681 {offsets = [0, 2, 0], sizes = [2, 8, 8], strides = [1, 1, 1]} : vector<2x10x10xf32> to vector<2x8x8xf32>
    %c104_268 = arith.constant 104 : index
    %1785 = memref.load %arg4[%c104_268] : memref<144xf32, #tpu.memory_space<smem>>
    %1786 = vector.broadcast %1785 : f32 to vector<2x8x8xf32>
    %1787 = arith.mulf %1784, %1786 : vector<2x8x8xf32>
    %1788 = arith.addf %1771, %1787 : vector<2x8x8xf32>
    %c105_269 = arith.constant 105 : index
    %1789 = memref.load %arg4[%c105_269] : memref<144xf32, #tpu.memory_space<smem>>
    %1790 = vector.broadcast %1789 : f32 to vector<2x8x8xf32>
    %1791 = arith.mulf %1784, %1790 : vector<2x8x8xf32>
    %1792 = arith.addf %1775, %1791 : vector<2x8x8xf32>
    %c106_270 = arith.constant 106 : index
    %1793 = memref.load %arg4[%c106_270] : memref<144xf32, #tpu.memory_space<smem>>
    %1794 = vector.broadcast %1793 : f32 to vector<2x8x8xf32>
    %1795 = arith.mulf %1784, %1794 : vector<2x8x8xf32>
    %1796 = arith.addf %1779, %1795 : vector<2x8x8xf32>
    %c107_271 = arith.constant 107 : index
    %1797 = memref.load %arg4[%c107_271] : memref<144xf32, #tpu.memory_space<smem>>
    %1798 = vector.broadcast %1797 : f32 to vector<2x8x8xf32>
    %1799 = arith.mulf %1784, %1798 : vector<2x8x8xf32>
    %1800 = arith.addf %1783, %1799 : vector<2x8x8xf32>
    %1801 = vector.extract_strided_slice %1681 {offsets = [0, 2, 1], sizes = [2, 8, 8], strides = [1, 1, 1]} : vector<2x10x10xf32> to vector<2x8x8xf32>
    %c120_272 = arith.constant 120 : index
    %1802 = memref.load %arg4[%c120_272] : memref<144xf32, #tpu.memory_space<smem>>
    %1803 = vector.broadcast %1802 : f32 to vector<2x8x8xf32>
    %1804 = arith.mulf %1801, %1803 : vector<2x8x8xf32>
    %1805 = arith.addf %1788, %1804 : vector<2x8x8xf32>
    %c121_273 = arith.constant 121 : index
    %1806 = memref.load %arg4[%c121_273] : memref<144xf32, #tpu.memory_space<smem>>
    %1807 = vector.broadcast %1806 : f32 to vector<2x8x8xf32>
    %1808 = arith.mulf %1801, %1807 : vector<2x8x8xf32>
    %1809 = arith.addf %1792, %1808 : vector<2x8x8xf32>
    %c122_274 = arith.constant 122 : index
    %1810 = memref.load %arg4[%c122_274] : memref<144xf32, #tpu.memory_space<smem>>
    %1811 = vector.broadcast %1810 : f32 to vector<2x8x8xf32>
    %1812 = arith.mulf %1801, %1811 : vector<2x8x8xf32>
    %1813 = arith.addf %1796, %1812 : vector<2x8x8xf32>
    %c123_275 = arith.constant 123 : index
    %1814 = memref.load %arg4[%c123_275] : memref<144xf32, #tpu.memory_space<smem>>
    %1815 = vector.broadcast %1814 : f32 to vector<2x8x8xf32>
    %1816 = arith.mulf %1801, %1815 : vector<2x8x8xf32>
    %1817 = arith.addf %1800, %1816 : vector<2x8x8xf32>
    %1818 = vector.extract_strided_slice %1681 {offsets = [0, 2, 2], sizes = [2, 8, 8], strides = [1, 1, 1]} : vector<2x10x10xf32> to vector<2x8x8xf32>
    %c136_276 = arith.constant 136 : index
    %1819 = memref.load %arg4[%c136_276] : memref<144xf32, #tpu.memory_space<smem>>
    %1820 = vector.broadcast %1819 : f32 to vector<2x8x8xf32>
    %1821 = arith.mulf %1818, %1820 : vector<2x8x8xf32>
    %1822 = arith.addf %1805, %1821 : vector<2x8x8xf32>
    %c137_277 = arith.constant 137 : index
    %1823 = memref.load %arg4[%c137_277] : memref<144xf32, #tpu.memory_space<smem>>
    %1824 = vector.broadcast %1823 : f32 to vector<2x8x8xf32>
    %1825 = arith.mulf %1818, %1824 : vector<2x8x8xf32>
    %1826 = arith.addf %1809, %1825 : vector<2x8x8xf32>
    %c138_278 = arith.constant 138 : index
    %1827 = memref.load %arg4[%c138_278] : memref<144xf32, #tpu.memory_space<smem>>
    %1828 = vector.broadcast %1827 : f32 to vector<2x8x8xf32>
    %1829 = arith.mulf %1818, %1828 : vector<2x8x8xf32>
    %1830 = arith.addf %1813, %1829 : vector<2x8x8xf32>
    %c139_279 = arith.constant 139 : index
    %1831 = memref.load %arg4[%c139_279] : memref<144xf32, #tpu.memory_space<smem>>
    %1832 = vector.broadcast %1831 : f32 to vector<2x8x8xf32>
    %1833 = arith.mulf %1818, %1832 : vector<2x8x8xf32>
    %1834 = arith.addf %1817, %1833 : vector<2x8x8xf32>
    %c0_280 = arith.constant 0 : index
    %c3_281 = arith.constant 3 : index
    %c0_282 = arith.constant 0 : index
    %c0_283 = arith.constant 0 : index
    %1835 = vector.load %arg8[%c0_280, %c3_281, %c0_282, %c0_283] : memref<2x7x10x10xf32, #tpu.memory_space<vmem>>, vector<2x1x10x10xf32>
    %1836 = vector.shape_cast %1835 : vector<2x1x10x10xf32> to vector<2x10x10xf32>
    %1837 = vector.extract_strided_slice %1836 {offsets = [0, 0, 0], sizes = [2, 8, 8], strides = [1, 1, 1]} : vector<2x10x10xf32> to vector<2x8x8xf32>
    %c12_284 = arith.constant 12 : index
    %1838 = memref.load %arg4[%c12_284] : memref<144xf32, #tpu.memory_space<smem>>
    %1839 = vector.broadcast %1838 : f32 to vector<2x8x8xf32>
    %1840 = arith.mulf %1837, %1839 : vector<2x8x8xf32>
    %1841 = arith.addf %1822, %1840 : vector<2x8x8xf32>
    %c13_285 = arith.constant 13 : index
    %1842 = memref.load %arg4[%c13_285] : memref<144xf32, #tpu.memory_space<smem>>
    %1843 = vector.broadcast %1842 : f32 to vector<2x8x8xf32>
    %1844 = arith.mulf %1837, %1843 : vector<2x8x8xf32>
    %1845 = arith.addf %1826, %1844 : vector<2x8x8xf32>
    %c14_286 = arith.constant 14 : index
    %1846 = memref.load %arg4[%c14_286] : memref<144xf32, #tpu.memory_space<smem>>
    %1847 = vector.broadcast %1846 : f32 to vector<2x8x8xf32>
    %1848 = arith.mulf %1837, %1847 : vector<2x8x8xf32>
    %1849 = arith.addf %1830, %1848 : vector<2x8x8xf32>
    %c15_287 = arith.constant 15 : index
    %1850 = memref.load %arg4[%c15_287] : memref<144xf32, #tpu.memory_space<smem>>
    %1851 = vector.broadcast %1850 : f32 to vector<2x8x8xf32>
    %1852 = arith.mulf %1837, %1851 : vector<2x8x8xf32>
    %1853 = arith.addf %1834, %1852 : vector<2x8x8xf32>
    %1854 = vector.extract_strided_slice %1836 {offsets = [0, 0, 1], sizes = [2, 8, 8], strides = [1, 1, 1]} : vector<2x10x10xf32> to vector<2x8x8xf32>
    %c28_288 = arith.constant 28 : index
    %1855 = memref.load %arg4[%c28_288] : memref<144xf32, #tpu.memory_space<smem>>
    %1856 = vector.broadcast %1855 : f32 to vector<2x8x8xf32>
    %1857 = arith.mulf %1854, %1856 : vector<2x8x8xf32>
    %1858 = arith.addf %1841, %1857 : vector<2x8x8xf32>
    %c29_289 = arith.constant 29 : index
    %1859 = memref.load %arg4[%c29_289] : memref<144xf32, #tpu.memory_space<smem>>
    %1860 = vector.broadcast %1859 : f32 to vector<2x8x8xf32>
    %1861 = arith.mulf %1854, %1860 : vector<2x8x8xf32>
    %1862 = arith.addf %1845, %1861 : vector<2x8x8xf32>
    %c30_290 = arith.constant 30 : index
    %1863 = memref.load %arg4[%c30_290] : memref<144xf32, #tpu.memory_space<smem>>
    %1864 = vector.broadcast %1863 : f32 to vector<2x8x8xf32>
    %1865 = arith.mulf %1854, %1864 : vector<2x8x8xf32>
    %1866 = arith.addf %1849, %1865 : vector<2x8x8xf32>
    %c31_291 = arith.constant 31 : index
    %1867 = memref.load %arg4[%c31_291] : memref<144xf32, #tpu.memory_space<smem>>
    %1868 = vector.broadcast %1867 : f32 to vector<2x8x8xf32>
    %1869 = arith.mulf %1854, %1868 : vector<2x8x8xf32>
    %1870 = arith.addf %1853, %1869 : vector<2x8x8xf32>
    %1871 = vector.extract_strided_slice %1836 {offsets = [0, 0, 2], sizes = [2, 8, 8], strides = [1, 1, 1]} : vector<2x10x10xf32> to vector<2x8x8xf32>
    %c44_292 = arith.constant 44 : index
    %1872 = memref.load %arg4[%c44_292] : memref<144xf32, #tpu.memory_space<smem>>
    %1873 = vector.broadcast %1872 : f32 to vector<2x8x8xf32>
    %1874 = arith.mulf %1871, %1873 : vector<2x8x8xf32>
    %1875 = arith.addf %1858, %1874 : vector<2x8x8xf32>
    %c45_293 = arith.constant 45 : index
    %1876 = memref.load %arg4[%c45_293] : memref<144xf32, #tpu.memory_space<smem>>
    %1877 = vector.broadcast %1876 : f32 to vector<2x8x8xf32>
    %1878 = arith.mulf %1871, %1877 : vector<2x8x8xf32>
    %1879 = arith.addf %1862, %1878 : vector<2x8x8xf32>
    %c46_294 = arith.constant 46 : index
    %1880 = memref.load %arg4[%c46_294] : memref<144xf32, #tpu.memory_space<smem>>
    %1881 = vector.broadcast %1880 : f32 to vector<2x8x8xf32>
    %1882 = arith.mulf %1871, %1881 : vector<2x8x8xf32>
    %1883 = arith.addf %1866, %1882 : vector<2x8x8xf32>
    %c47_295 = arith.constant 47 : index
    %1884 = memref.load %arg4[%c47_295] : memref<144xf32, #tpu.memory_space<smem>>
    %1885 = vector.broadcast %1884 : f32 to vector<2x8x8xf32>
    %1886 = arith.mulf %1871, %1885 : vector<2x8x8xf32>
    %1887 = arith.addf %1870, %1886 : vector<2x8x8xf32>
    %1888 = vector.extract_strided_slice %1836 {offsets = [0, 1, 0], sizes = [2, 8, 8], strides = [1, 1, 1]} : vector<2x10x10xf32> to vector<2x8x8xf32>
    %c60_296 = arith.constant 60 : index
    %1889 = memref.load %arg4[%c60_296] : memref<144xf32, #tpu.memory_space<smem>>
    %1890 = vector.broadcast %1889 : f32 to vector<2x8x8xf32>
    %1891 = arith.mulf %1888, %1890 : vector<2x8x8xf32>
    %1892 = arith.addf %1875, %1891 : vector<2x8x8xf32>
    %c61_297 = arith.constant 61 : index
    %1893 = memref.load %arg4[%c61_297] : memref<144xf32, #tpu.memory_space<smem>>
    %1894 = vector.broadcast %1893 : f32 to vector<2x8x8xf32>
    %1895 = arith.mulf %1888, %1894 : vector<2x8x8xf32>
    %1896 = arith.addf %1879, %1895 : vector<2x8x8xf32>
    %c62_298 = arith.constant 62 : index
    %1897 = memref.load %arg4[%c62_298] : memref<144xf32, #tpu.memory_space<smem>>
    %1898 = vector.broadcast %1897 : f32 to vector<2x8x8xf32>
    %1899 = arith.mulf %1888, %1898 : vector<2x8x8xf32>
    %1900 = arith.addf %1883, %1899 : vector<2x8x8xf32>
    %c63_299 = arith.constant 63 : index
    %1901 = memref.load %arg4[%c63_299] : memref<144xf32, #tpu.memory_space<smem>>
    %1902 = vector.broadcast %1901 : f32 to vector<2x8x8xf32>
    %1903 = arith.mulf %1888, %1902 : vector<2x8x8xf32>
    %1904 = arith.addf %1887, %1903 : vector<2x8x8xf32>
    %1905 = vector.extract_strided_slice %1836 {offsets = [0, 1, 1], sizes = [2, 8, 8], strides = [1, 1, 1]} : vector<2x10x10xf32> to vector<2x8x8xf32>
    %c76_300 = arith.constant 76 : index
    %1906 = memref.load %arg4[%c76_300] : memref<144xf32, #tpu.memory_space<smem>>
    %1907 = vector.broadcast %1906 : f32 to vector<2x8x8xf32>
    %1908 = arith.mulf %1905, %1907 : vector<2x8x8xf32>
    %1909 = arith.addf %1892, %1908 : vector<2x8x8xf32>
    %c77_301 = arith.constant 77 : index
    %1910 = memref.load %arg4[%c77_301] : memref<144xf32, #tpu.memory_space<smem>>
    %1911 = vector.broadcast %1910 : f32 to vector<2x8x8xf32>
    %1912 = arith.mulf %1905, %1911 : vector<2x8x8xf32>
    %1913 = arith.addf %1896, %1912 : vector<2x8x8xf32>
    %c78_302 = arith.constant 78 : index
    %1914 = memref.load %arg4[%c78_302] : memref<144xf32, #tpu.memory_space<smem>>
    %1915 = vector.broadcast %1914 : f32 to vector<2x8x8xf32>
    %1916 = arith.mulf %1905, %1915 : vector<2x8x8xf32>
    %1917 = arith.addf %1900, %1916 : vector<2x8x8xf32>
    %c79_303 = arith.constant 79 : index
    %1918 = memref.load %arg4[%c79_303] : memref<144xf32, #tpu.memory_space<smem>>
    %1919 = vector.broadcast %1918 : f32 to vector<2x8x8xf32>
    %1920 = arith.mulf %1905, %1919 : vector<2x8x8xf32>
    %1921 = arith.addf %1904, %1920 : vector<2x8x8xf32>
    %1922 = vector.extract_strided_slice %1836 {offsets = [0, 1, 2], sizes = [2, 8, 8], strides = [1, 1, 1]} : vector<2x10x10xf32> to vector<2x8x8xf32>
    %c92_304 = arith.constant 92 : index
    %1923 = memref.load %arg4[%c92_304] : memref<144xf32, #tpu.memory_space<smem>>
    %1924 = vector.broadcast %1923 : f32 to vector<2x8x8xf32>
    %1925 = arith.mulf %1922, %1924 : vector<2x8x8xf32>
    %1926 = arith.addf %1909, %1925 : vector<2x8x8xf32>
    %c93_305 = arith.constant 93 : index
    %1927 = memref.load %arg4[%c93_305] : memref<144xf32, #tpu.memory_space<smem>>
    %1928 = vector.broadcast %1927 : f32 to vector<2x8x8xf32>
    %1929 = arith.mulf %1922, %1928 : vector<2x8x8xf32>
    %1930 = arith.addf %1913, %1929 : vector<2x8x8xf32>
    %c94_306 = arith.constant 94 : index
    %1931 = memref.load %arg4[%c94_306] : memref<144xf32, #tpu.memory_space<smem>>
    %1932 = vector.broadcast %1931 : f32 to vector<2x8x8xf32>
    %1933 = arith.mulf %1922, %1932 : vector<2x8x8xf32>
    %1934 = arith.addf %1917, %1933 : vector<2x8x8xf32>
    %c95_307 = arith.constant 95 : index
    %1935 = memref.load %arg4[%c95_307] : memref<144xf32, #tpu.memory_space<smem>>
    %1936 = vector.broadcast %1935 : f32 to vector<2x8x8xf32>
    %1937 = arith.mulf %1922, %1936 : vector<2x8x8xf32>
    %1938 = arith.addf %1921, %1937 : vector<2x8x8xf32>
    %1939 = vector.extract_strided_slice %1836 {offsets = [0, 2, 0], sizes = [2, 8, 8], strides = [1, 1, 1]} : vector<2x10x10xf32> to vector<2x8x8xf32>
    %c108_308 = arith.constant 108 : index
    %1940 = memref.load %arg4[%c108_308] : memref<144xf32, #tpu.memory_space<smem>>
    %1941 = vector.broadcast %1940 : f32 to vector<2x8x8xf32>
    %1942 = arith.mulf %1939, %1941 : vector<2x8x8xf32>
    %1943 = arith.addf %1926, %1942 : vector<2x8x8xf32>
    %c109_309 = arith.constant 109 : index
    %1944 = memref.load %arg4[%c109_309] : memref<144xf32, #tpu.memory_space<smem>>
    %1945 = vector.broadcast %1944 : f32 to vector<2x8x8xf32>
    %1946 = arith.mulf %1939, %1945 : vector<2x8x8xf32>
    %1947 = arith.addf %1930, %1946 : vector<2x8x8xf32>
    %c110_310 = arith.constant 110 : index
    %1948 = memref.load %arg4[%c110_310] : memref<144xf32, #tpu.memory_space<smem>>
    %1949 = vector.broadcast %1948 : f32 to vector<2x8x8xf32>
    %1950 = arith.mulf %1939, %1949 : vector<2x8x8xf32>
    %1951 = arith.addf %1934, %1950 : vector<2x8x8xf32>
    %c111_311 = arith.constant 111 : index
    %1952 = memref.load %arg4[%c111_311] : memref<144xf32, #tpu.memory_space<smem>>
    %1953 = vector.broadcast %1952 : f32 to vector<2x8x8xf32>
    %1954 = arith.mulf %1939, %1953 : vector<2x8x8xf32>
    %1955 = arith.addf %1938, %1954 : vector<2x8x8xf32>
    %1956 = vector.extract_strided_slice %1836 {offsets = [0, 2, 1], sizes = [2, 8, 8], strides = [1, 1, 1]} : vector<2x10x10xf32> to vector<2x8x8xf32>
    %c124_312 = arith.constant 124 : index
    %1957 = memref.load %arg4[%c124_312] : memref<144xf32, #tpu.memory_space<smem>>
    %1958 = vector.broadcast %1957 : f32 to vector<2x8x8xf32>
    %1959 = arith.mulf %1956, %1958 : vector<2x8x8xf32>
    %1960 = arith.addf %1943, %1959 : vector<2x8x8xf32>
    %c125_313 = arith.constant 125 : index
    %1961 = memref.load %arg4[%c125_313] : memref<144xf32, #tpu.memory_space<smem>>
    %1962 = vector.broadcast %1961 : f32 to vector<2x8x8xf32>
    %1963 = arith.mulf %1956, %1962 : vector<2x8x8xf32>
    %1964 = arith.addf %1947, %1963 : vector<2x8x8xf32>
    %c126_314 = arith.constant 126 : index
    %1965 = memref.load %arg4[%c126_314] : memref<144xf32, #tpu.memory_space<smem>>
    %1966 = vector.broadcast %1965 : f32 to vector<2x8x8xf32>
    %1967 = arith.mulf %1956, %1966 : vector<2x8x8xf32>
    %1968 = arith.addf %1951, %1967 : vector<2x8x8xf32>
    %c127_315 = arith.constant 127 : index
    %1969 = memref.load %arg4[%c127_315] : memref<144xf32, #tpu.memory_space<smem>>
    %1970 = vector.broadcast %1969 : f32 to vector<2x8x8xf32>
    %1971 = arith.mulf %1956, %1970 : vector<2x8x8xf32>
    %1972 = arith.addf %1955, %1971 : vector<2x8x8xf32>
    %1973 = vector.extract_strided_slice %1836 {offsets = [0, 2, 2], sizes = [2, 8, 8], strides = [1, 1, 1]} : vector<2x10x10xf32> to vector<2x8x8xf32>
    %c140_316 = arith.constant 140 : index
    %1974 = memref.load %arg4[%c140_316] : memref<144xf32, #tpu.memory_space<smem>>
    %1975 = vector.broadcast %1974 : f32 to vector<2x8x8xf32>
    %1976 = arith.mulf %1973, %1975 : vector<2x8x8xf32>
    %1977 = arith.addf %1960, %1976 : vector<2x8x8xf32>
    %c141_317 = arith.constant 141 : index
    %1978 = memref.load %arg4[%c141_317] : memref<144xf32, #tpu.memory_space<smem>>
    %1979 = vector.broadcast %1978 : f32 to vector<2x8x8xf32>
    %1980 = arith.mulf %1973, %1979 : vector<2x8x8xf32>
    %1981 = arith.addf %1964, %1980 : vector<2x8x8xf32>
    %c142_318 = arith.constant 142 : index
    %1982 = memref.load %arg4[%c142_318] : memref<144xf32, #tpu.memory_space<smem>>
    %1983 = vector.broadcast %1982 : f32 to vector<2x8x8xf32>
    %1984 = arith.mulf %1973, %1983 : vector<2x8x8xf32>
    %1985 = arith.addf %1968, %1984 : vector<2x8x8xf32>
    %c143_319 = arith.constant 143 : index
    %1986 = memref.load %arg4[%c143_319] : memref<144xf32, #tpu.memory_space<smem>>
    %1987 = vector.broadcast %1986 : f32 to vector<2x8x8xf32>
    %1988 = arith.mulf %1973, %1987 : vector<2x8x8xf32>
    %1989 = arith.addf %1972, %1988 : vector<2x8x8xf32>
    %1990 = vector.shape_cast %1977 : vector<2x8x8xf32> to vector<1x2x8x8xf32>
    %cst_320 = arith.constant dense<0.000000e+00> : vector<1xf32>
    %1991 = vector.multi_reduction <add>, %1990, %cst_320 [1, 2, 3] : vector<1x2x8x8xf32> to vector<1xf32>
    %1992 = vector.shape_cast %1991 : vector<1xf32> to vector<1x1x1x1xf32>
    %1993 = vector.extract %1992[0, 0, 0, 0] : f32 from vector<1x1x1x1xf32>
    %cst_321 = arith.constant 7.812500e-03 : f32
    %1994 = arith.mulf %1993, %cst_321 : f32
    %1995 = arith.mulf %1977, %1977 : vector<2x8x8xf32>
    %1996 = vector.shape_cast %1995 : vector<2x8x8xf32> to vector<1x2x8x8xf32>
    %cst_322 = arith.constant dense<0.000000e+00> : vector<1xf32>
    %1997 = vector.multi_reduction <add>, %1996, %cst_322 [1, 2, 3] : vector<1x2x8x8xf32> to vector<1xf32>
    %1998 = vector.shape_cast %1997 : vector<1xf32> to vector<1x1x1x1xf32>
    %1999 = vector.extract %1998[0, 0, 0, 0] : f32 from vector<1x1x1x1xf32>
    %cst_323 = arith.constant 7.812500e-03 : f32
    %2000 = arith.mulf %1999, %cst_323 : f32
    %2001 = arith.mulf %1994, %1994 : f32
    %2002 = arith.subf %2000, %2001 : f32
    %c4_324 = arith.constant 4 : index
    %2003 = memref.load %arg5[%c4_324] : memref<8xf32, #tpu.memory_space<smem>>
    %cst_325 = arith.constant 9.99999974E-6 : f32
    %2004 = arith.addf %2002, %cst_325 : f32
    %2005 = math.rsqrt %2004 : f32
    %2006 = arith.mulf %2003, %2005 : f32
    %c4_326 = arith.constant 4 : index
    %2007 = memref.load %arg6[%c4_326] : memref<8xf32, #tpu.memory_space<smem>>
    %2008 = arith.mulf %1994, %2006 : f32
    %2009 = arith.subf %2007, %2008 : f32
    %2010 = vector.broadcast %2006 : f32 to vector<2x8x8xf32>
    %2011 = arith.mulf %1977, %2010 : vector<2x8x8xf32>
    %2012 = vector.broadcast %2009 : f32 to vector<2x8x8xf32>
    %2013 = arith.addf %2011, %2012 : vector<2x8x8xf32>
    %cst_327 = arith.constant 5.000000e-01 : f32
    %2014 = vector.broadcast %cst_327 : f32 to vector<2x8x8xf32>
    %2015 = arith.subf %2013, %2014 : vector<2x8x8xf32>
    %cst_328 = arith.constant 5.000000e-01 : f32
    %2016 = vector.broadcast %cst_328 : f32 to vector<2x8x8xf32>
    %2017 = arith.mulf %2015, %2016 : vector<2x8x8xf32>
    %2018 = math.tanh %2017 : vector<2x8x8xf32>
    %cst_329 = arith.constant 5.000000e-01 : f32
    %2019 = vector.broadcast %cst_329 : f32 to vector<2x8x8xf32>
    %2020 = arith.mulf %2019, %2018 : vector<2x8x8xf32>
    %cst_330 = arith.constant 5.000000e-01 : f32
    %2021 = vector.broadcast %cst_330 : f32 to vector<2x8x8xf32>
    %2022 = arith.addf %2020, %2021 : vector<2x8x8xf32>
    %cst_331 = arith.constant 5.000000e-01 : f32
    %2023 = vector.broadcast %cst_331 : f32 to vector<2x8x8xf32>
    %2024 = arith.mulf %2023, %2022 : vector<2x8x8xf32>
    %cst_332 = arith.constant 2.500000e-01 : f32
    %2025 = vector.broadcast %cst_332 : f32 to vector<2x8x8xf32>
    %2026 = arith.addf %2025, %2024 : vector<2x8x8xf32>
    %2027 = arith.subf %2013, %2026 : vector<2x8x8xf32>
    %cst_333 = arith.constant 5.000000e-01 : f32
    %2028 = vector.broadcast %cst_333 : f32 to vector<2x8x8xf32>
    %2029 = arith.mulf %2027, %2028 : vector<2x8x8xf32>
    %2030 = math.tanh %2029 : vector<2x8x8xf32>
    %cst_334 = arith.constant 5.000000e-01 : f32
    %2031 = vector.broadcast %cst_334 : f32 to vector<2x8x8xf32>
    %2032 = arith.mulf %2031, %2030 : vector<2x8x8xf32>
    %cst_335 = arith.constant 5.000000e-01 : f32
    %2033 = vector.broadcast %cst_335 : f32 to vector<2x8x8xf32>
    %2034 = arith.addf %2032, %2033 : vector<2x8x8xf32>
    %cst_336 = arith.constant 5.000000e-01 : f32
    %2035 = vector.broadcast %cst_336 : f32 to vector<2x8x8xf32>
    %2036 = arith.mulf %2035, %2026 : vector<2x8x8xf32>
    %cst_337 = arith.constant 5.000000e-01 : f32
    %2037 = vector.broadcast %cst_337 : f32 to vector<2x8x8xf32>
    %2038 = arith.mulf %2037, %2034 : vector<2x8x8xf32>
    %2039 = arith.addf %2036, %2038 : vector<2x8x8xf32>
    %2040 = arith.subf %2013, %2039 : vector<2x8x8xf32>
    %cst_338 = arith.constant 5.000000e-01 : f32
    %2041 = vector.broadcast %cst_338 : f32 to vector<2x8x8xf32>
    %2042 = arith.mulf %2040, %2041 : vector<2x8x8xf32>
    %2043 = math.tanh %2042 : vector<2x8x8xf32>
    %cst_339 = arith.constant 5.000000e-01 : f32
    %2044 = vector.broadcast %cst_339 : f32 to vector<2x8x8xf32>
    %2045 = arith.mulf %2044, %2043 : vector<2x8x8xf32>
    %cst_340 = arith.constant 5.000000e-01 : f32
    %2046 = vector.broadcast %cst_340 : f32 to vector<2x8x8xf32>
    %2047 = arith.addf %2045, %2046 : vector<2x8x8xf32>
    %cst_341 = arith.constant 5.000000e-01 : f32
    %2048 = vector.broadcast %cst_341 : f32 to vector<2x8x8xf32>
    %2049 = arith.mulf %2048, %2039 : vector<2x8x8xf32>
    %cst_342 = arith.constant 5.000000e-01 : f32
    %2050 = vector.broadcast %cst_342 : f32 to vector<2x8x8xf32>
    %2051 = arith.mulf %2050, %2047 : vector<2x8x8xf32>
    %2052 = arith.addf %2049, %2051 : vector<2x8x8xf32>
    %2053 = vector.shape_cast %1981 : vector<2x8x8xf32> to vector<1x2x8x8xf32>
    %cst_343 = arith.constant dense<0.000000e+00> : vector<1xf32>
    %2054 = vector.multi_reduction <add>, %2053, %cst_343 [1, 2, 3] : vector<1x2x8x8xf32> to vector<1xf32>
    %2055 = vector.shape_cast %2054 : vector<1xf32> to vector<1x1x1x1xf32>
    %2056 = vector.extract %2055[0, 0, 0, 0] : f32 from vector<1x1x1x1xf32>
    %cst_344 = arith.constant 7.812500e-03 : f32
    %2057 = arith.mulf %2056, %cst_344 : f32
    %2058 = arith.mulf %1981, %1981 : vector<2x8x8xf32>
    %2059 = vector.shape_cast %2058 : vector<2x8x8xf32> to vector<1x2x8x8xf32>
    %cst_345 = arith.constant dense<0.000000e+00> : vector<1xf32>
    %2060 = vector.multi_reduction <add>, %2059, %cst_345 [1, 2, 3] : vector<1x2x8x8xf32> to vector<1xf32>
    %2061 = vector.shape_cast %2060 : vector<1xf32> to vector<1x1x1x1xf32>
    %2062 = vector.extract %2061[0, 0, 0, 0] : f32 from vector<1x1x1x1xf32>
    %cst_346 = arith.constant 7.812500e-03 : f32
    %2063 = arith.mulf %2062, %cst_346 : f32
    %2064 = arith.mulf %2057, %2057 : f32
    %2065 = arith.subf %2063, %2064 : f32
    %c5_347 = arith.constant 5 : index
    %2066 = memref.load %arg5[%c5_347] : memref<8xf32, #tpu.memory_space<smem>>
    %cst_348 = arith.constant 9.99999974E-6 : f32
    %2067 = arith.addf %2065, %cst_348 : f32
    %2068 = math.rsqrt %2067 : f32
    %2069 = arith.mulf %2066, %2068 : f32
    %c5_349 = arith.constant 5 : index
    %2070 = memref.load %arg6[%c5_349] : memref<8xf32, #tpu.memory_space<smem>>
    %2071 = arith.mulf %2057, %2069 : f32
    %2072 = arith.subf %2070, %2071 : f32
    %2073 = vector.broadcast %2069 : f32 to vector<2x8x8xf32>
    %2074 = arith.mulf %1981, %2073 : vector<2x8x8xf32>
    %2075 = vector.broadcast %2072 : f32 to vector<2x8x8xf32>
    %2076 = arith.addf %2074, %2075 : vector<2x8x8xf32>
    %cst_350 = arith.constant 5.000000e-01 : f32
    %2077 = vector.broadcast %cst_350 : f32 to vector<2x8x8xf32>
    %2078 = arith.subf %2076, %2077 : vector<2x8x8xf32>
    %cst_351 = arith.constant 5.000000e-01 : f32
    %2079 = vector.broadcast %cst_351 : f32 to vector<2x8x8xf32>
    %2080 = arith.mulf %2078, %2079 : vector<2x8x8xf32>
    %2081 = math.tanh %2080 : vector<2x8x8xf32>
    %cst_352 = arith.constant 5.000000e-01 : f32
    %2082 = vector.broadcast %cst_352 : f32 to vector<2x8x8xf32>
    %2083 = arith.mulf %2082, %2081 : vector<2x8x8xf32>
    %cst_353 = arith.constant 5.000000e-01 : f32
    %2084 = vector.broadcast %cst_353 : f32 to vector<2x8x8xf32>
    %2085 = arith.addf %2083, %2084 : vector<2x8x8xf32>
    %cst_354 = arith.constant 5.000000e-01 : f32
    %2086 = vector.broadcast %cst_354 : f32 to vector<2x8x8xf32>
    %2087 = arith.mulf %2086, %2085 : vector<2x8x8xf32>
    %cst_355 = arith.constant 2.500000e-01 : f32
    %2088 = vector.broadcast %cst_355 : f32 to vector<2x8x8xf32>
    %2089 = arith.addf %2088, %2087 : vector<2x8x8xf32>
    %2090 = arith.subf %2076, %2089 : vector<2x8x8xf32>
    %cst_356 = arith.constant 5.000000e-01 : f32
    %2091 = vector.broadcast %cst_356 : f32 to vector<2x8x8xf32>
    %2092 = arith.mulf %2090, %2091 : vector<2x8x8xf32>
    %2093 = math.tanh %2092 : vector<2x8x8xf32>
    %cst_357 = arith.constant 5.000000e-01 : f32
    %2094 = vector.broadcast %cst_357 : f32 to vector<2x8x8xf32>
    %2095 = arith.mulf %2094, %2093 : vector<2x8x8xf32>
    %cst_358 = arith.constant 5.000000e-01 : f32
    %2096 = vector.broadcast %cst_358 : f32 to vector<2x8x8xf32>
    %2097 = arith.addf %2095, %2096 : vector<2x8x8xf32>
    %cst_359 = arith.constant 5.000000e-01 : f32
    %2098 = vector.broadcast %cst_359 : f32 to vector<2x8x8xf32>
    %2099 = arith.mulf %2098, %2089 : vector<2x8x8xf32>
    %cst_360 = arith.constant 5.000000e-01 : f32
    %2100 = vector.broadcast %cst_360 : f32 to vector<2x8x8xf32>
    %2101 = arith.mulf %2100, %2097 : vector<2x8x8xf32>
    %2102 = arith.addf %2099, %2101 : vector<2x8x8xf32>
    %2103 = arith.subf %2076, %2102 : vector<2x8x8xf32>
    %cst_361 = arith.constant 5.000000e-01 : f32
    %2104 = vector.broadcast %cst_361 : f32 to vector<2x8x8xf32>
    %2105 = arith.mulf %2103, %2104 : vector<2x8x8xf32>
    %2106 = math.tanh %2105 : vector<2x8x8xf32>
    %cst_362 = arith.constant 5.000000e-01 : f32
    %2107 = vector.broadcast %cst_362 : f32 to vector<2x8x8xf32>
    %2108 = arith.mulf %2107, %2106 : vector<2x8x8xf32>
    %cst_363 = arith.constant 5.000000e-01 : f32
    %2109 = vector.broadcast %cst_363 : f32 to vector<2x8x8xf32>
    %2110 = arith.addf %2108, %2109 : vector<2x8x8xf32>
    %cst_364 = arith.constant 5.000000e-01 : f32
    %2111 = vector.broadcast %cst_364 : f32 to vector<2x8x8xf32>
    %2112 = arith.mulf %2111, %2102 : vector<2x8x8xf32>
    %cst_365 = arith.constant 5.000000e-01 : f32
    %2113 = vector.broadcast %cst_365 : f32 to vector<2x8x8xf32>
    %2114 = arith.mulf %2113, %2110 : vector<2x8x8xf32>
    %2115 = arith.addf %2112, %2114 : vector<2x8x8xf32>
    %2116 = vector.shape_cast %1985 : vector<2x8x8xf32> to vector<1x2x8x8xf32>
    %cst_366 = arith.constant dense<0.000000e+00> : vector<1xf32>
    %2117 = vector.multi_reduction <add>, %2116, %cst_366 [1, 2, 3] : vector<1x2x8x8xf32> to vector<1xf32>
    %2118 = vector.shape_cast %2117 : vector<1xf32> to vector<1x1x1x1xf32>
    %2119 = vector.extract %2118[0, 0, 0, 0] : f32 from vector<1x1x1x1xf32>
    %cst_367 = arith.constant 7.812500e-03 : f32
    %2120 = arith.mulf %2119, %cst_367 : f32
    %2121 = arith.mulf %1985, %1985 : vector<2x8x8xf32>
    %2122 = vector.shape_cast %2121 : vector<2x8x8xf32> to vector<1x2x8x8xf32>
    %cst_368 = arith.constant dense<0.000000e+00> : vector<1xf32>
    %2123 = vector.multi_reduction <add>, %2122, %cst_368 [1, 2, 3] : vector<1x2x8x8xf32> to vector<1xf32>
    %2124 = vector.shape_cast %2123 : vector<1xf32> to vector<1x1x1x1xf32>
    %2125 = vector.extract %2124[0, 0, 0, 0] : f32 from vector<1x1x1x1xf32>
    %cst_369 = arith.constant 7.812500e-03 : f32
    %2126 = arith.mulf %2125, %cst_369 : f32
    %2127 = arith.mulf %2120, %2120 : f32
    %2128 = arith.subf %2126, %2127 : f32
    %c6_370 = arith.constant 6 : index
    %2129 = memref.load %arg5[%c6_370] : memref<8xf32, #tpu.memory_space<smem>>
    %cst_371 = arith.constant 9.99999974E-6 : f32
    %2130 = arith.addf %2128, %cst_371 : f32
    %2131 = math.rsqrt %2130 : f32
    %2132 = arith.mulf %2129, %2131 : f32
    %c6_372 = arith.constant 6 : index
    %2133 = memref.load %arg6[%c6_372] : memref<8xf32, #tpu.memory_space<smem>>
    %2134 = arith.mulf %2120, %2132 : f32
    %2135 = arith.subf %2133, %2134 : f32
    %2136 = vector.broadcast %2132 : f32 to vector<2x8x8xf32>
    %2137 = arith.mulf %1985, %2136 : vector<2x8x8xf32>
    %2138 = vector.broadcast %2135 : f32 to vector<2x8x8xf32>
    %2139 = arith.addf %2137, %2138 : vector<2x8x8xf32>
    %cst_373 = arith.constant 5.000000e-01 : f32
    %2140 = vector.broadcast %cst_373 : f32 to vector<2x8x8xf32>
    %2141 = arith.subf %2139, %2140 : vector<2x8x8xf32>
    %cst_374 = arith.constant 5.000000e-01 : f32
    %2142 = vector.broadcast %cst_374 : f32 to vector<2x8x8xf32>
    %2143 = arith.mulf %2141, %2142 : vector<2x8x8xf32>
    %2144 = math.tanh %2143 : vector<2x8x8xf32>
    %cst_375 = arith.constant 5.000000e-01 : f32
    %2145 = vector.broadcast %cst_375 : f32 to vector<2x8x8xf32>
    %2146 = arith.mulf %2145, %2144 : vector<2x8x8xf32>
    %cst_376 = arith.constant 5.000000e-01 : f32
    %2147 = vector.broadcast %cst_376 : f32 to vector<2x8x8xf32>
    %2148 = arith.addf %2146, %2147 : vector<2x8x8xf32>
    %cst_377 = arith.constant 5.000000e-01 : f32
    %2149 = vector.broadcast %cst_377 : f32 to vector<2x8x8xf32>
    %2150 = arith.mulf %2149, %2148 : vector<2x8x8xf32>
    %cst_378 = arith.constant 2.500000e-01 : f32
    %2151 = vector.broadcast %cst_378 : f32 to vector<2x8x8xf32>
    %2152 = arith.addf %2151, %2150 : vector<2x8x8xf32>
    %2153 = arith.subf %2139, %2152 : vector<2x8x8xf32>
    %cst_379 = arith.constant 5.000000e-01 : f32
    %2154 = vector.broadcast %cst_379 : f32 to vector<2x8x8xf32>
    %2155 = arith.mulf %2153, %2154 : vector<2x8x8xf32>
    %2156 = math.tanh %2155 : vector<2x8x8xf32>
    %cst_380 = arith.constant 5.000000e-01 : f32
    %2157 = vector.broadcast %cst_380 : f32 to vector<2x8x8xf32>
    %2158 = arith.mulf %2157, %2156 : vector<2x8x8xf32>
    %cst_381 = arith.constant 5.000000e-01 : f32
    %2159 = vector.broadcast %cst_381 : f32 to vector<2x8x8xf32>
    %2160 = arith.addf %2158, %2159 : vector<2x8x8xf32>
    %cst_382 = arith.constant 5.000000e-01 : f32
    %2161 = vector.broadcast %cst_382 : f32 to vector<2x8x8xf32>
    %2162 = arith.mulf %2161, %2152 : vector<2x8x8xf32>
    %cst_383 = arith.constant 5.000000e-01 : f32
    %2163 = vector.broadcast %cst_383 : f32 to vector<2x8x8xf32>
    %2164 = arith.mulf %2163, %2160 : vector<2x8x8xf32>
    %2165 = arith.addf %2162, %2164 : vector<2x8x8xf32>
    %2166 = arith.subf %2139, %2165 : vector<2x8x8xf32>
    %cst_384 = arith.constant 5.000000e-01 : f32
    %2167 = vector.broadcast %cst_384 : f32 to vector<2x8x8xf32>
    %2168 = arith.mulf %2166, %2167 : vector<2x8x8xf32>
    %2169 = math.tanh %2168 : vector<2x8x8xf32>
    %cst_385 = arith.constant 5.000000e-01 : f32
    %2170 = vector.broadcast %cst_385 : f32 to vector<2x8x8xf32>
    %2171 = arith.mulf %2170, %2169 : vector<2x8x8xf32>
    %cst_386 = arith.constant 5.000000e-01 : f32
    %2172 = vector.broadcast %cst_386 : f32 to vector<2x8x8xf32>
    %2173 = arith.addf %2171, %2172 : vector<2x8x8xf32>
    %cst_387 = arith.constant 5.000000e-01 : f32
    %2174 = vector.broadcast %cst_387 : f32 to vector<2x8x8xf32>
    %2175 = arith.mulf %2174, %2165 : vector<2x8x8xf32>
    %cst_388 = arith.constant 5.000000e-01 : f32
    %2176 = vector.broadcast %cst_388 : f32 to vector<2x8x8xf32>
    %2177 = arith.mulf %2176, %2173 : vector<2x8x8xf32>
    %2178 = arith.addf %2175, %2177 : vector<2x8x8xf32>
    %2179 = vector.shape_cast %1989 : vector<2x8x8xf32> to vector<1x2x8x8xf32>
    %cst_389 = arith.constant dense<0.000000e+00> : vector<1xf32>
    %2180 = vector.multi_reduction <add>, %2179, %cst_389 [1, 2, 3] : vector<1x2x8x8xf32> to vector<1xf32>
    %2181 = vector.shape_cast %2180 : vector<1xf32> to vector<1x1x1x1xf32>
    %2182 = vector.extract %2181[0, 0, 0, 0] : f32 from vector<1x1x1x1xf32>
    %cst_390 = arith.constant 7.812500e-03 : f32
    %2183 = arith.mulf %2182, %cst_390 : f32
    %2184 = arith.mulf %1989, %1989 : vector<2x8x8xf32>
    %2185 = vector.shape_cast %2184 : vector<2x8x8xf32> to vector<1x2x8x8xf32>
    %cst_391 = arith.constant dense<0.000000e+00> : vector<1xf32>
    %2186 = vector.multi_reduction <add>, %2185, %cst_391 [1, 2, 3] : vector<1x2x8x8xf32> to vector<1xf32>
    %2187 = vector.shape_cast %2186 : vector<1xf32> to vector<1x1x1x1xf32>
    %2188 = vector.extract %2187[0, 0, 0, 0] : f32 from vector<1x1x1x1xf32>
    %cst_392 = arith.constant 7.812500e-03 : f32
    %2189 = arith.mulf %2188, %cst_392 : f32
    %2190 = arith.mulf %2183, %2183 : f32
    %2191 = arith.subf %2189, %2190 : f32
    %c7_393 = arith.constant 7 : index
    %2192 = memref.load %arg5[%c7_393] : memref<8xf32, #tpu.memory_space<smem>>
    %cst_394 = arith.constant 9.99999974E-6 : f32
    %2193 = arith.addf %2191, %cst_394 : f32
    %2194 = math.rsqrt %2193 : f32
    %2195 = arith.mulf %2192, %2194 : f32
    %c7_395 = arith.constant 7 : index
    %2196 = memref.load %arg6[%c7_395] : memref<8xf32, #tpu.memory_space<smem>>
    %2197 = arith.mulf %2183, %2195 : f32
    %2198 = arith.subf %2196, %2197 : f32
    %2199 = vector.broadcast %2195 : f32 to vector<2x8x8xf32>
    %2200 = arith.mulf %1989, %2199 : vector<2x8x8xf32>
    %2201 = vector.broadcast %2198 : f32 to vector<2x8x8xf32>
    %2202 = arith.addf %2200, %2201 : vector<2x8x8xf32>
    %cst_396 = arith.constant 5.000000e-01 : f32
    %2203 = vector.broadcast %cst_396 : f32 to vector<2x8x8xf32>
    %2204 = arith.subf %2202, %2203 : vector<2x8x8xf32>
    %cst_397 = arith.constant 5.000000e-01 : f32
    %2205 = vector.broadcast %cst_397 : f32 to vector<2x8x8xf32>
    %2206 = arith.mulf %2204, %2205 : vector<2x8x8xf32>
    %2207 = math.tanh %2206 : vector<2x8x8xf32>
    %cst_398 = arith.constant 5.000000e-01 : f32
    %2208 = vector.broadcast %cst_398 : f32 to vector<2x8x8xf32>
    %2209 = arith.mulf %2208, %2207 : vector<2x8x8xf32>
    %cst_399 = arith.constant 5.000000e-01 : f32
    %2210 = vector.broadcast %cst_399 : f32 to vector<2x8x8xf32>
    %2211 = arith.addf %2209, %2210 : vector<2x8x8xf32>
    %cst_400 = arith.constant 5.000000e-01 : f32
    %2212 = vector.broadcast %cst_400 : f32 to vector<2x8x8xf32>
    %2213 = arith.mulf %2212, %2211 : vector<2x8x8xf32>
    %cst_401 = arith.constant 2.500000e-01 : f32
    %2214 = vector.broadcast %cst_401 : f32 to vector<2x8x8xf32>
    %2215 = arith.addf %2214, %2213 : vector<2x8x8xf32>
    %2216 = arith.subf %2202, %2215 : vector<2x8x8xf32>
    %cst_402 = arith.constant 5.000000e-01 : f32
    %2217 = vector.broadcast %cst_402 : f32 to vector<2x8x8xf32>
    %2218 = arith.mulf %2216, %2217 : vector<2x8x8xf32>
    %2219 = math.tanh %2218 : vector<2x8x8xf32>
    %cst_403 = arith.constant 5.000000e-01 : f32
    %2220 = vector.broadcast %cst_403 : f32 to vector<2x8x8xf32>
    %2221 = arith.mulf %2220, %2219 : vector<2x8x8xf32>
    %cst_404 = arith.constant 5.000000e-01 : f32
    %2222 = vector.broadcast %cst_404 : f32 to vector<2x8x8xf32>
    %2223 = arith.addf %2221, %2222 : vector<2x8x8xf32>
    %cst_405 = arith.constant 5.000000e-01 : f32
    %2224 = vector.broadcast %cst_405 : f32 to vector<2x8x8xf32>
    %2225 = arith.mulf %2224, %2215 : vector<2x8x8xf32>
    %cst_406 = arith.constant 5.000000e-01 : f32
    %2226 = vector.broadcast %cst_406 : f32 to vector<2x8x8xf32>
    %2227 = arith.mulf %2226, %2223 : vector<2x8x8xf32>
    %2228 = arith.addf %2225, %2227 : vector<2x8x8xf32>
    %2229 = arith.subf %2202, %2228 : vector<2x8x8xf32>
    %cst_407 = arith.constant 5.000000e-01 : f32
    %2230 = vector.broadcast %cst_407 : f32 to vector<2x8x8xf32>
    %2231 = arith.mulf %2229, %2230 : vector<2x8x8xf32>
    %2232 = math.tanh %2231 : vector<2x8x8xf32>
    %cst_408 = arith.constant 5.000000e-01 : f32
    %2233 = vector.broadcast %cst_408 : f32 to vector<2x8x8xf32>
    %2234 = arith.mulf %2233, %2232 : vector<2x8x8xf32>
    %cst_409 = arith.constant 5.000000e-01 : f32
    %2235 = vector.broadcast %cst_409 : f32 to vector<2x8x8xf32>
    %2236 = arith.addf %2234, %2235 : vector<2x8x8xf32>
    %cst_410 = arith.constant 5.000000e-01 : f32
    %2237 = vector.broadcast %cst_410 : f32 to vector<2x8x8xf32>
    %2238 = arith.mulf %2237, %2228 : vector<2x8x8xf32>
    %cst_411 = arith.constant 5.000000e-01 : f32
    %2239 = vector.broadcast %cst_411 : f32 to vector<2x8x8xf32>
    %2240 = arith.mulf %2239, %2236 : vector<2x8x8xf32>
    %2241 = arith.addf %2238, %2240 : vector<2x8x8xf32>
    %2242 = vector.shape_cast %2052 : vector<2x8x8xf32> to vector<2x1x8x8xf32>
    %2243 = vector.shape_cast %2115 : vector<2x8x8xf32> to vector<2x1x8x8xf32>
    %2244 = vector.shape_cast %2178 : vector<2x8x8xf32> to vector<2x1x8x8xf32>
    %2245 = vector.shape_cast %2241 : vector<2x8x8xf32> to vector<2x1x8x8xf32>
    %2246 = tpu.concatenate %2242, %2243, %2244, %2245 in 1 : vector<2x1x8x8xf32>, vector<2x1x8x8xf32>, vector<2x1x8x8xf32>, vector<2x1x8x8xf32> -> vector<2x4x8x8xf32>
    %c0_412 = arith.constant 0 : index
    %c0_413 = arith.constant 0 : index
    %c0_414 = arith.constant 0 : index
    %c0_415 = arith.constant 0 : index
    %2247 = vector.load %arg7[%c0_412, %c0_413, %c0_414, %c0_415] : memref<2x4x8x8xf32, #tpu.memory_space<vmem>>, vector<2x4x8x8xf32>
    tpu.vector_store %arg7[%c0_412, %c0_413, %c0_414, %c0_415], %2246 {strides = array<i32>} : memref<2x4x8x8xf32, #tpu.memory_space<vmem>>, vector<2x4x8x8xf32>,
    return
  }
  func.func @transform_0(%arg0: i32) -> (i32, i32, i32, i32) {
    %c0_i32 = arith.constant 0 : i32
    %c0_i32_0 = arith.constant 0 : i32
    %c0_i32_1 = arith.constant 0 : i32
    %c0_i32_2 = arith.constant 0 : i32
    %c0_i32_3 = arith.constant 0 : i32
    return %c0_i32, %c0_i32_0, %c0_i32_1, %c0_i32_2 : i32, i32, i32, i32
  }
  func.func @transform_1(%arg0: i32) -> (i32, i32, i32, i32) {
    %c0_i32 = arith.constant 0 : i32
    %c0_i32_0 = arith.constant 0 : i32
    %c0_i32_1 = arith.constant 0 : i32
    %c0_i32_2 = arith.constant 0 : i32
    %c0_i32_3 = arith.constant 0 : i32
    return %c0_i32, %c0_i32_0, %c0_i32_1, %c0_i32_2 : i32, i32, i32, i32
  }
  func.func @transform_2(%arg0: i32) -> i32 {
    %c0_i32 = arith.constant 0 : i32
    %c0_i32_0 = arith.constant 0 : i32
    return %c0_i32 : i32
  }
  func.func @transform_3(%arg0: i32) -> i32 {
    %c0_i32 = arith.constant 0 : i32
    %c0_i32_0 = arith.constant 0 : i32
    return %c0_i32 : i32
  }
  func.func @transform_4(%arg0: i32) -> i32 {
    %c0_i32 = arith.constant 0 : i32
    %c0_i32_0 = arith.constant 0 : i32
    return %c0_i32 : i32
  }
  func.func @transform_5(%arg0: i32) -> i32 {
    %c0_i32 = arith.constant 0 : i32
    %c0_i32_0 = arith.constant 0 : i32
    return %c0_i32 : i32
  }
  func.func @transform_6(%arg0: i32) -> (i32, i32, i32, i32) {
    %c0_i32 = arith.constant 0 : i32
    %c0_i32_0 = arith.constant 0 : i32
    %c0_i32_1 = arith.constant 0 : i32
    %c0_i32_2 = arith.constant 0 : i32
    %c0_i32_3 = arith.constant 0 : i32
    return %c0_i32, %c0_i32_0, %c0_i32_1, %c0_i32_2 : i32, i32, i32, i32
  }
}

</mosaic_0001>

<llo_original>
// kernel: _forward_impl.1
$region0: #{_forward_impl.1}
  #allocation0 [shape = 'u32[]', space=smem, size = 0x4, offset = 0x4, fixed_abs, tag = 'smem constant byte address 0x4 - core index']
  #allocation1 [shape = 'u32[144,128]{1,0:T(1,128)}', space=vmem, size = 0x12000, scoped, tag = 'internal scratch']
  #allocation2 [shape = 'f32[2,7,10,10]{3,2,1,0:T(8,128)}', space=vmem, size = 0x1c000, scoped, tag = 'scratch operand']
  %s0 = inlined_call_operand.hbm [shape: f32[2,4,16,16], index: 0, kind: input, shape index: {}]
  %s1 = inlined_call_operand.hbm [shape: f32[2,3,8,8], index: 1, kind: input, shape index: {}]
  %s2 = inlined_call_operand.vmem [shape: f32[252], index: 2, kind: input, shape index: {}]
  %s3 = inlined_call_operand.vmem [shape: f32[144], index: 3, kind: input, shape index: {}]
  %s4 = inlined_call_operand.vmem [shape: f32[8], index: 4, kind: input, shape index: {}]
  %s5 = inlined_call_operand.vmem [shape: f32[8], index: 5, kind: input, shape index: {}]
  %s6 = inlined_call_operand.hbm [shape: f32[2,4,8,8], index: 6, kind: output, shape index: {}]
  %s7 = sld [smem:[#allocation0]]
  $region58: #{_forward_impl.1} parent=0
    _
  %s9 = ssub.s32 1, %s7
  %s10 = scalar_select 0, %s9, %s7
  $region1: #{_forward_impl.1} parent=0
    #allocation3 [shape = 'u8[65536]{0}', space=vmem, size = 0x10000, scoped, tag = 'input window, operand 0, single buffered']
    #allocation4 [shape = 's32[1]{0}', space=sflag, size = 0x4, scoped, tag = 'scoped memory for _forward_impl.1']
    #allocation5 [shape = 's32[1]{0}', space=sflag, size = 0x4, scoped, tag = 'scoped memory for _forward_impl.1']
    #allocation6 [shape = 's32[1]{0}', space=sflag, size = 0x4, scoped, tag = 'scoped memory for _forward_impl.1']
    #allocation7 [shape = 'u8[24576]{0}', space=vmem, size = 0x6000, scoped, tag = 'input window, operand 1, single buffered']
    #allocation8 [shape = 's32[1]{0}', space=sflag, size = 0x4, scoped, tag = 'scoped memory for _forward_impl.1']
    #allocation9 [shape = 'u8[1024]{0}', space=smem, size = 0x400, scoped, tag = 'input window, operand 2, single buffered']
    #allocation10 [shape = 'u8[1024]{0}', space=smem, size = 0x400, scoped, tag = 'input window, operand 3, single buffered']
    #allocation11 [shape = 's32[1]{0}', space=sflag, size = 0x4, scoped, tag = 'scoped memory for _forward_impl.1']
    #allocation12 [shape = 'u8[512]{0}', space=smem, size = 0x200, scoped, tag = 'input window, operand 4, single buffered']
    #allocation13 [shape = 'u8[512]{0}', space=smem, size = 0x200, scoped, tag = 'input window, operand 5, single buffered']
    #allocation14 [shape = 's32[1]{0}', space=sflag, size = 0x4, scoped, tag = 'scoped memory for _forward_impl.1']
    #allocation15 [shape = 'u8[32768]{0}', space=vmem, size = 0x8000, scoped, tag = 'output window, operand 0, single buffered']
    %11 = vsyncpa [#allocation4], 0
    %12 = vsyncpa [#allocation8], 0
    %13 = vsyncpa [#allocation6], 0
    %14 = vsyncpa [#allocation11], 0
    %15 = vsyncpa [#allocation14], 0
    %16 = vsyncpa [#allocation5], 0
    // Predicated region
    $region2: #{_forward_impl.1} parent=1 // pred_check
      _
    $region3: #{_forward_impl.1} parent=1 // pred_check_branch
      %18 = sbr.rel (0) target = $region5
    $region4: #{_forward_impl.1} parent=1 // pred_region
      %s20 = ssub.s32 2048, 2048
      %21 = vsyncadd [#allocation4], %s20
      %s22 = sshll.u32 [#allocation3], 4
      %s23 = int_to_ptr.vmem [resolvable:$true] %s22
      %28 = dma.hbm_to_vmem [thread:$0]  %s0, 2048, %s23, [#allocation4], 128, 128, 8
    $region5: #{_forward_impl.1} parent=1 // pred_fallthru
      _
    // Predicated region
    $region6: #{_forward_impl.1} parent=1 // pred_check
      _
    $region7: #{_forward_impl.1} parent=1 // pred_check_branch
      %30 = sbr.rel (0) target = $region9
    $region8: #{_forward_impl.1} parent=1 // pred_region
      %s32 = ssub.s32 768, 768
      %33 = vsyncadd [#allocation8], %s32
      %s34 = sshll.u32 [#allocation7], 4
      %s35 = int_to_ptr.vmem [resolvable:$true] %s34
      %40 = dma.hbm_to_vmem [thread:$0]  %s1, 768, %s35, [#allocation8], 128, 128, 8
    $region9: #{_forward_impl.1} parent=1 // pred_fallthru
      _
    // Predicated region
    $region10: #{_forward_impl.1} parent=1 // pred_check
      _
    $region11: #{_forward_impl.1} parent=1 // pred_check_branch
      %42 = sbr.rel (0) target = $region13
    $region12: #{_forward_impl.1} parent=1 // pred_region
      %s44 = ssub.s32 32, 32
      %45 = vsyncadd [#allocation6], %s44
      %s47 = sshll.u32 %s2, 4
      %s48 = int_to_ptr.vmem [resolvable:$true] %s47
      %50 = dma.vmem_to_smem %s48, 32, [#allocation9], [#allocation6]
    $region13: #{_forward_impl.1} parent=1 // pred_fallthru
      _
    // Predicated region
    $region14: #{_forward_impl.1} parent=1 // pred_check
      _
    $region15: #{_forward_impl.1} parent=1 // pred_check_branch
      %52 = sbr.rel (0) target = $region17
    $region16: #{_forward_impl.1} parent=1 // pred_region
      %s54 = ssub.s32 32, 32
      %55 = vsyncadd [#allocation11], %s54
      %s57 = sshll.u32 %s3, 4
      %s58 = int_to_ptr.vmem [resolvable:$true] %s57
      %60 = dma.vmem_to_smem %s58, 32, [#allocation10], [#allocation11]
    $region17: #{_forward_impl.1} parent=1 // pred_fallthru
      _
    // Predicated region
    $region18: #{_forward_impl.1} parent=1 // pred_check
      _
    $region19: #{_forward_impl.1} parent=1 // pred_check_branch
      %62 = sbr.rel (0) target = $region21
    $region20: #{_forward_impl.1} parent=1 // pred_region
      %s64 = ssub.s32 16, 16
      %65 = vsyncadd [#allocation11], %s64
      %s67 = sshll.u32 %s4, 4
      %s68 = int_to_ptr.vmem [resolvable:$true] %s67
      %70 = dma.vmem_to_smem %s68, 16, [#allocation12], [#allocation11]
    $region21: #{_forward_impl.1} parent=1 // pred_fallthru
      _
    // Predicated region
    $region22: #{_forward_impl.1} parent=1 // pred_check
      _
    $region23: #{_forward_impl.1} parent=1 // pred_check_branch
      %72 = sbr.rel (0) target = $region25
    $region24: #{_forward_impl.1} parent=1 // pred_region
      %s74 = ssub.s32 16, 16
      %75 = vsyncadd [#allocation14], %s74
      %s77 = sshll.u32 %s5, 4
      %s78 = int_to_ptr.vmem [resolvable:$true] %s77
      %80 = dma.vmem_to_smem %s78, 16, [#allocation13], [#allocation14]
    $region25: #{_forward_impl.1} parent=1 // pred_fallthru
      _
    // Predicated region
    $region26: #{_forward_impl.1} parent=1 // pred_check
      _
    $region27: #{_forward_impl.1} parent=1 // pred_check_branch
      %82 = sbr.rel (0) target = $region29
    $region28: #{_forward_impl.1} parent=1 // pred_region
      %83 = dma.done [#allocation4], 2048
    $region29: #{_forward_impl.1} parent=1 // pred_fallthru
      _
    // Predicated region
    $region30: #{_forward_impl.1} parent=1 // pred_check
      _
    $region31: #{_forward_impl.1} parent=1 // pred_check_branch
      %85 = sbr.rel (0) target = $region33
    $region32: #{_forward_impl.1} parent=1 // pred_region
      %86 = dma.done [#allocation8], 768
    $region33: #{_forward_impl.1} parent=1 // pred_fallthru
      _
    // Predicated region
    $region34: #{_forward_impl.1} parent=1 // pred_check
      _
    $region35: #{_forward_impl.1} parent=1 // pred_check_branch
      %88 = sbr.rel (0) target = $region37
    $region36: #{_forward_impl.1} parent=1 // pred_region
      %89 = dma.done [#allocation6], 32
    $region37: #{_forward_impl.1} parent=1 // pred_fallthru
      _
    // Predicated region
    $region38: #{_forward_impl.1} parent=1 // pred_check
      _
    $region39: #{_forward_impl.1} parent=1 // pred_check_branch
      %91 = sbr.rel (0) target = $region41
    $region40: #{_forward_impl.1} parent=1 // pred_region
      %92 = dma.done [#allocation11], 32
    $region41: #{_forward_impl.1} parent=1 // pred_fallthru
      _
    // Predicated region
    $region42: #{_forward_impl.1} parent=1 // pred_check
      _
    $region43: #{_forward_impl.1} parent=1 // pred_check_branch
      %94 = sbr.rel (0) target = $region45
    $region44: #{_forward_impl.1} parent=1 // pred_region
      %95 = dma.done [#allocation11], 16
    $region45: #{_forward_impl.1} parent=1 // pred_fallthru
      _
    // Predicated region
    $region46: #{_forward_impl.1} parent=1 // pred_check
      _
    $region47: #{_forward_impl.1} parent=1 // pred_check_branch
      %97 = sbr.rel (0) target = $region49
    $region48: #{_forward_impl.1} parent=1 // pred_region
      %98 = dma.done [#allocation14], 16
    $region49: #{_forward_impl.1} parent=1 // pred_fallthru
      _
    %99 = sfence
    %v100 = vld [vmem:[#allocation3] sm:$0xff]
    %v101 = vld [vmem:[#allocation3 + $0x8] sm:$0xff]
    %v102 = vld [vmem:[#allocation3 + $0x10] sm:$0xff]
    %v103 = vld [vmem:[#allocation3 + $0x18] sm:$0xff]
    %v104 = vld [vmem:[#allocation3 + $0x20] sm:$0xff]
    %v105 = vld [vmem:[#allocation3 + $0x28] sm:$0xff]
    %v106 = vld [vmem:[#allocation3 + $0x30] sm:$0xff]
    %v107 = vld [vmem:[#allocation3 + $0x38] sm:$0xff]
    %v108 = vld [vmem:[#allocation3 + $0x40] sm:$0xff]
    %v109 = vld [vmem:[#allocation3 + $0x48] sm:$0xff]
    %v110 = vld [vmem:[#allocation3 + $0x50] sm:$0xff]
    %v111 = vld [vmem:[#allocation3 + $0x58] sm:$0xff]
    %v112 = vld [vmem:[#allocation3 + $0x60] sm:$0xff]
    %v113 = vld [vmem:[#allocation3 + $0x68] sm:$0xff]
    %v114 = vld [vmem:[#allocation3 + $0x70] sm:$0xff]
    %v115 = vld [vmem:[#allocation3 + $0x78] sm:$0xff]
    %v132 = vcombine.high %v100, %v100
    %v134 = vunpack.c.l.s4 1983009808
    %v135 = vunpack.c.0.s8 %v134
    %v136 = vlaneseq
    %v137 = vshrl.u32 %v136, 7
    %v138 = vsub.s32 %v135, %v137
    %v139 = vrot.slane %v100, %v138
    %v141 = vunpack.c.l.s4 1983009808
    %v142 = vunpack.c.0.s8 %v141
    %v143 = vlaneseq
    %v144 = vshrl.u32 %v143, 7
    %v145 = vsub.s32 %v142, %v144
    %v146 = vrot.slane %v132, %v145
    %v147 = vcombine.high %v139, %v139
    %v148 = vcombine.high %v146, %v146
    %v149 = vcombine.high %v101, %v101
    %v151 = vunpack.c.l.s4 1983009808
    %v152 = vunpack.c.0.s8 %v151
    %v153 = vlaneseq
    %v154 = vshrl.u32 %v153, 7
    %v155 = vsub.s32 %v152, %v154
    %v156 = vrot.slane %v101, %v155
    %v158 = vunpack.c.l.s4 1983009808
    %v159 = vunpack.c.0.s8 %v158
    %v160 = vlaneseq
    %v161 = vshrl.u32 %v160, 7
    %v162 = vsub.s32 %v159, %v161
    %v163 = vrot.slane %v149, %v162
    %v164 = vcombine.high %v156, %v156
    %v165 = vcombine.high %v163, %v163
    %v166 = vcombine.high %v102, %v102
    %v168 = vunpack.c.l.s4 1983009808
    %v169 = vunpack.c.0.s8 %v168
    %v170 = vlaneseq
    %v171 = vshrl.u32 %v170, 7
    %v172 = vsub.s32 %v169, %v171
    %v173 = vrot.slane %v102, %v172
    %v175 = vunpack.c.l.s4 1983009808
    %v176 = vunpack.c.0.s8 %v175
    %v177 = vlaneseq
    %v178 = vshrl.u32 %v177, 7
    %v179 = vsub.s32 %v176, %v178
    %v180 = vrot.slane %v166, %v179
    %v181 = vcombine.high %v173, %v173
    %v182 = vcombine.high %v180, %v180
    %v183 = vcombine.high %v103, %v103
    %v185 = vunpack.c.l.s4 1983009808
    %v186 = vunpack.c.0.s8 %v185
    %v187 = vlaneseq
    %v188 = vshrl.u32 %v187, 7
    %v189 = vsub.s32 %v186, %v188
    %v190 = vrot.slane %v103, %v189
    %v192 = vunpack.c.l.s4 1983009808
    %v193 = vunpack.c.0.s8 %v192
    %v194 = vlaneseq
    %v195 = vshrl.u32 %v194, 7
    %v196 = vsub.s32 %v193, %v195
    %v197 = vrot.slane %v183, %v196
    %v198 = vcombine.high %v190, %v190
    %v199 = vcombine.high %v197, %v197
    %v200 = vcombine.high %v104, %v104
    %v202 = vunpack.c.l.s4 1983009808
    %v203 = vunpack.c.0.s8 %v202
    %v204 = vlaneseq
    %v205 = vshrl.u32 %v204, 7
    %v206 = vsub.s32 %v203, %v205
    %v207 = vrot.slane %v104, %v206
    %v209 = vunpack.c.l.s4 1983009808
    %v210 = vunpack.c.0.s8 %v209
    %v211 = vlaneseq
    %v212 = vshrl.u32 %v211, 7
    %v213 = vsub.s32 %v210, %v212
    %v214 = vrot.slane %v200, %v213
    %v215 = vcombine.high %v207, %v207
    %v216 = vcombine.high %v214, %v214
    %v217 = vcombine.high %v105, %v105
    %v219 = vunpack.c.l.s4 1983009808
    %v220 = vunpack.c.0.s8 %v219
    %v221 = vlaneseq
    %v222 = vshrl.u32 %v221, 7
    %v223 = vsub.s32 %v220, %v222
    %v224 = vrot.slane %v105, %v223
    %v226 = vunpack.c.l.s4 1983009808
    %v227 = vunpack.c.0.s8 %v226
    %v228 = vlaneseq
    %v229 = vshrl.u32 %v228, 7
    %v230 = vsub.s32 %v227, %v229
    %v231 = vrot.slane %v217, %v230
    %v232 = vcombine.high %v224, %v224
    %v233 = vcombine.high %v231, %v231
    %v234 = vcombine.high %v106, %v106
    %v236 = vunpack.c.l.s4 1983009808
    %v237 = vunpack.c.0.s8 %v236
    %v238 = vlaneseq
    %v239 = vshrl.u32 %v238, 7
    %v240 = vsub.s32 %v237, %v239
    %v241 = vrot.slane %v106, %v240
    %v243 = vunpack.c.l.s4 1983009808
    %v244 = vunpack.c.0.s8 %v243
    %v245 = vlaneseq
    %v246 = vshrl.u32 %v245, 7
    %v247 = vsub.s32 %v244, %v246
    %v248 = vrot.slane %v234, %v247
    %v249 = vcombine.high %v241, %v241
    %v250 = vcombine.high %v248, %v248
    %v251 = vcombine.high %v107, %v107
    %v253 = vunpack.c.l.s4 1983009808
    %v254 = vunpack.c.0.s8 %v253
    %v255 = vlaneseq
    %v256 = vshrl.u32 %v255, 7
    %v257 = vsub.s32 %v254, %v256
    %v258 = vrot.slane %v107, %v257
    %v260 = vunpack.c.l.s4 1983009808
    %v261 = vunpack.c.0.s8 %v260
    %v262 = vlaneseq
    %v263 = vshrl.u32 %v262, 7
    %v264 = vsub.s32 %v261, %v263
    %v265 = vrot.slane %v251, %v264
    %v266 = vcombine.high %v258, %v258
    %v267 = vcombine.high %v265, %v265
    %v268 = vcombine.high %v108, %v108
    %v270 = vunpack.c.l.s4 1983009808
    %v271 = vunpack.c.0.s8 %v270
    %v272 = vlaneseq
    %v273 = vshrl.u32 %v272, 7
    %v274 = vsub.s32 %v271, %v273
    %v275 = vrot.slane %v108, %v274
    %v277 = vunpack.c.l.s4 1983009808
    %v278 = vunpack.c.0.s8 %v277
    %v279 = vlaneseq
    %v280 = vshrl.u32 %v279, 7
    %v281 = vsub.s32 %v278, %v280
    %v282 = vrot.slane %v268, %v281
    %v283 = vcombine.high %v275, %v275
    %v284 = vcombine.high %v282, %v282
    %v285 = vcombine.high %v109, %v109
    %v287 = vunpack.c.l.s4 1983009808
    %v288 = vunpack.c.0.s8 %v287
    %v289 = vlaneseq
    %v290 = vshrl.u32 %v289, 7
    %v291 = vsub.s32 %v288, %v290
    %v292 = vrot.slane %v109, %v291
    %v294 = vunpack.c.l.s4 1983009808
    %v295 = vunpack.c.0.s8 %v294
    %v296 = vlaneseq
    %v297 = vshrl.u32 %v296, 7
    %v298 = vsub.s32 %v295, %v297
    %v299 = vrot.slane %v285, %v298
    %v300 = vcombine.high %v292, %v292
    %v301 = vcombine.high %v299, %v299
    %v302 = vcombine.high %v110, %v110
    %v304 = vunpack.c.l.s4 1983009808
    %v305 = vunpack.c.0.s8 %v304
    %v306 = vlaneseq
    %v307 = vshrl.u32 %v306, 7
    %v308 = vsub.s32 %v305, %v307
    %v309 = vrot.slane %v110, %v308
    %v311 = vunpack.c.l.s4 1983009808
    %v312 = vunpack.c.0.s8 %v311
    %v313 = vlaneseq
    %v314 = vshrl.u32 %v313, 7
    %v315 = vsub.s32 %v312, %v314
    %v316 = vrot.slane %v302, %v315
    %v317 = vcombine.high %v309, %v309
    %v318 = vcombine.high %v316, %v316
    %v319 = vcombine.high %v111, %v111
    %v321 = vunpack.c.l.s4 1983009808
    %v322 = vunpack.c.0.s8 %v321
    %v323 = vlaneseq
    %v324 = vshrl.u32 %v323, 7
    %v325 = vsub.s32 %v322, %v324
    %v326 = vrot.slane %v111, %v325
    %v328 = vunpack.c.l.s4 1983009808
    %v329 = vunpack.c.0.s8 %v328
    %v330 = vlaneseq
    %v331 = vshrl.u32 %v330, 7
    %v332 = vsub.s32 %v329, %v331
    %v333 = vrot.slane %v319, %v332
    %v334 = vcombine.high %v326, %v326
    %v335 = vcombine.high %v333, %v333
    %v336 = vcombine.high %v112, %v112
    %v338 = vunpack.c.l.s4 1983009808
    %v339 = vunpack.c.0.s8 %v338
    %v340 = vlaneseq
    %v341 = vshrl.u32 %v340, 7
    %v342 = vsub.s32 %v339, %v341
    %v343 = vrot.slane %v112, %v342
    %v345 = vunpack.c.l.s4 1983009808
    %v346 = vunpack.c.0.s8 %v345
    %v347 = vlaneseq
    %v348 = vshrl.u32 %v347, 7
    %v349 = vsub.s32 %v346, %v348
    %v350 = vrot.slane %v336, %v349
    %v351 = vcombine.high %v343, %v343
    %v352 = vcombine.high %v350, %v350
    %v353 = vcombine.high %v113, %v113
    %v355 = vunpack.c.l.s4 1983009808
    %v356 = vunpack.c.0.s8 %v355
    %v357 = vlaneseq
    %v358 = vshrl.u32 %v357, 7
    %v359 = vsub.s32 %v356, %v358
    %v360 = vrot.slane %v113, %v359
    %v362 = vunpack.c.l.s4 1983009808
    %v363 = vunpack.c.0.s8 %v362
    %v364 = vlaneseq
    %v365 = vshrl.u32 %v364, 7
    %v366 = vsub.s32 %v363, %v365
    %v367 = vrot.slane %v353, %v366
    %v368 = vcombine.high %v360, %v360
    %v369 = vcombine.high %v367, %v367
    %v370 = vcombine.high %v114, %v114
    %v372 = vunpack.c.l.s4 1983009808
    %v373 = vunpack.c.0.s8 %v372
    %v374 = vlaneseq
    %v375 = vshrl.u32 %v374, 7
    %v376 = vsub.s32 %v373, %v375
    %v377 = vrot.slane %v114, %v376
    %v379 = vunpack.c.l.s4 1983009808
    %v380 = vunpack.c.0.s8 %v379
    %v381 = vlaneseq
    %v382 = vshrl.u32 %v381, 7
    %v383 = vsub.s32 %v380, %v382
    %v384 = vrot.slane %v370, %v383
    %v385 = vcombine.high %v377, %v377
    %v386 = vcombine.high %v384, %v384
    %v387 = vcombine.high %v115, %v115
    %v389 = vunpack.c.l.s4 1983009808
    %v390 = vunpack.c.0.s8 %v389
    %v391 = vlaneseq
    %v392 = vshrl.u32 %v391, 7
    %v393 = vsub.s32 %v390, %v392
    %v394 = vrot.slane %v115, %v393
    %v396 = vunpack.c.l.s4 1983009808
    %v397 = vunpack.c.0.s8 %v396
    %v398 = vlaneseq
    %v399 = vshrl.u32 %v398, 7
    %v400 = vsub.s32 %v397, %v399
    %v401 = vrot.slane %v387, %v400
    %v402 = vcombine.high %v394, %v394
    %v403 = vcombine.high %v401, %v401
    %v468 = vrot.slane %v139, 7
    %v469 = vrot.slane %v468, 2
    %v470 = vrot.slane %v147, 7
    %v471 = vrot.slane %v470, 2
    %v472 = vrot.slane %v146, 7
    %v473 = vrot.slane %v472, 2
    %v474 = vrot.slane %v148, 7
    %v475 = vrot.slane %v474, 2
    %v476 = vrot.slane %v156, 7
    %v477 = vrot.slane %v476, 2
    %v478 = vrot.slane %v164, 7
    %v479 = vrot.slane %v478, 2
    %v480 = vrot.slane %v163, 7
    %v481 = vrot.slane %v480, 2
    %v482 = vrot.slane %v165, 7
    %v483 = vrot.slane %v482, 2
    %v484 = vrot.slane %v173, 7
    %v485 = vrot.slane %v484, 2
    %v486 = vrot.slane %v181, 7
    %v487 = vrot.slane %v486, 2
    %v488 = vrot.slane %v180, 7
    %v489 = vrot.slane %v488, 2
    %v490 = vrot.slane %v182, 7
    %v491 = vrot.slane %v490, 2
    %v492 = vrot.slane %v190, 7
    %v493 = vrot.slane %v492, 2
    %v494 = vrot.slane %v198, 7
    %v495 = vrot.slane %v494, 2
    %v496 = vrot.slane %v197, 7
    %v497 = vrot.slane %v496, 2
    %v498 = vrot.slane %v199, 7
    %v499 = vrot.slane %v498, 2
    %v500 = vrot.slane %v207, 7
    %v501 = vrot.slane %v500, 2
    %v502 = vrot.slane %v215, 7
    %v503 = vrot.slane %v502, 2
    %v504 = vrot.slane %v214, 7
    %v505 = vrot.slane %v504, 2
    %v506 = vrot.slane %v216, 7
    %v507 = vrot.slane %v506, 2
    %v508 = vrot.slane %v224, 7
    %v509 = vrot.slane %v508, 2
    %v510 = vrot.slane %v232, 7
    %v511 = vrot.slane %v510, 2
    %v512 = vrot.slane %v231, 7
    %v513 = vrot.slane %v512, 2
    %v514 = vrot.slane %v233, 7
    %v515 = vrot.slane %v514, 2
    %v516 = vrot.slane %v241, 7
    %v517 = vrot.slane %v516, 2
    %v518 = vrot.slane %v249, 7
    %v519 = vrot.slane %v518, 2
    %v520 = vrot.slane %v248, 7
    %v521 = vrot.slane %v520, 2
    %v522 = vrot.slane %v250, 7
    %v523 = vrot.slane %v522, 2
    %v524 = vrot.slane %v258, 7
    %v525 = vrot.slane %v524, 2
    %v526 = vrot.slane %v266, 7
    %v527 = vrot.slane %v526, 2
    %v528 = vrot.slane %v265, 7
    %v529 = vrot.slane %v528, 2
    %v530 = vrot.slane %v267, 7
    %v531 = vrot.slane %v530, 2
    %v532 = vrot.slane %v275, 7
    %v533 = vrot.slane %v532, 2
    %v534 = vrot.slane %v283, 7
    %v535 = vrot.slane %v534, 2
    %v536 = vrot.slane %v282, 7
    %v537 = vrot.slane %v536, 2
    %v538 = vrot.slane %v284, 7
    %v539 = vrot.slane %v538, 2
    %v540 = vrot.slane %v292, 7
    %v541 = vrot.slane %v540, 2
    %v542 = vrot.slane %v300, 7
    %v543 = vrot.slane %v542, 2
    %v544 = vrot.slane %v299, 7
    %v545 = vrot.slane %v544, 2
    %v546 = vrot.slane %v301, 7
    %v547 = vrot.slane %v546, 2
    %v548 = vrot.slane %v309, 7
    %v549 = vrot.slane %v548, 2
    %v550 = vrot.slane %v317, 7
    %v551 = vrot.slane %v550, 2
    %v552 = vrot.slane %v316, 7
    %v553 = vrot.slane %v552, 2
    %v554 = vrot.slane %v318, 7
    %v555 = vrot.slane %v554, 2
    %v556 = vrot.slane %v326, 7
    %v557 = vrot.slane %v556, 2
    %v558 = vrot.slane %v334, 7
    %v559 = vrot.slane %v558, 2
    %v560 = vrot.slane %v333, 7
    %v561 = vrot.slane %v560, 2
    %v562 = vrot.slane %v335, 7
    %v563 = vrot.slane %v562, 2
    %v564 = vrot.slane %v343, 7
    %v565 = vrot.slane %v564, 2
    %v566 = vrot.slane %v351, 7
    %v567 = vrot.slane %v566, 2
    %v568 = vrot.slane %v350, 7
    %v569 = vrot.slane %v568, 2
    %v570 = vrot.slane %v352, 7
    %v571 = vrot.slane %v570, 2
    %v572 = vrot.slane %v360, 7
    %v573 = vrot.slane %v572, 2
    %v574 = vrot.slane %v368, 7
    %v575 = vrot.slane %v574, 2
    %v576 = vrot.slane %v367, 7
    %v577 = vrot.slane %v576, 2
    %v578 = vrot.slane %v369, 7
    %v579 = vrot.slane %v578, 2
    %v580 = vrot.slane %v377, 7
    %v581 = vrot.slane %v580, 2
    %v582 = vrot.slane %v385, 7
    %v583 = vrot.slane %v582, 2
    %v584 = vrot.slane %v384, 7
    %v585 = vrot.slane %v584, 2
    %v586 = vrot.slane %v386, 7
    %v587 = vrot.slane %v586, 2
    %v588 = vrot.slane %v394, 7
    %v589 = vrot.slane %v588, 2
    %v590 = vrot.slane %v402, 7
    %v591 = vrot.slane %v590, 2
    %v592 = vrot.slane %v401, 7
    %v593 = vrot.slane %v592, 2
    %v594 = vrot.slane %v403, 7
    %v595 = vrot.slane %v594, 2
    %v660 = vmax.f32 %v139, %v469
    %v661 = vmax.f32 %v147, %v471
    %v662 = vmax.f32 %v146, %v473
    %v663 = vmax.f32 %v148, %v475
    %v664 = vmax.f32 %v156, %v477
    %v665 = vmax.f32 %v164, %v479
    %v666 = vmax.f32 %v163, %v481
    %v667 = vmax.f32 %v165, %v483
    %v668 = vmax.f32 %v173, %v485
    %v669 = vmax.f32 %v181, %v487
    %v670 = vmax.f32 %v180, %v489
    %v671 = vmax.f32 %v182, %v491
    %v672 = vmax.f32 %v190, %v493
    %v673 = vmax.f32 %v198, %v495
    %v674 = vmax.f32 %v197, %v497
    %v675 = vmax.f32 %v199, %v499
    %v676 = vmax.f32 %v207, %v501
    %v677 = vmax.f32 %v215, %v503
    %v678 = vmax.f32 %v214, %v505
    %v679 = vmax.f32 %v216, %v507
    %v680 = vmax.f32 %v224, %v509
    %v681 = vmax.f32 %v232, %v511
    %v682 = vmax.f32 %v231, %v513
    %v683 = vmax.f32 %v233, %v515
    %v684 = vmax.f32 %v241, %v517
    %v685 = vmax.f32 %v249, %v519
    %v686 = vmax.f32 %v248, %v521
    %v687 = vmax.f32 %v250, %v523
    %v688 = vmax.f32 %v258, %v525
    %v689 = vmax.f32 %v266, %v527
    %v690 = vmax.f32 %v265, %v529
    %v691 = vmax.f32 %v267, %v531
    %v692 = vmax.f32 %v275, %v533
    %v693 = vmax.f32 %v283, %v535
    %v694 = vmax.f32 %v282, %v537
    %v695 = vmax.f32 %v284, %v539
    %v696 = vmax.f32 %v292, %v541
    %v697 = vmax.f32 %v300, %v543
    %v698 = vmax.f32 %v299, %v545
    %v699 = vmax.f32 %v301, %v547
    %v700 = vmax.f32 %v309, %v549
    %v701 = vmax.f32 %v317, %v551
    %v702 = vmax.f32 %v316, %v553
    %v703 = vmax.f32 %v318, %v555
    %v704 = vmax.f32 %v326, %v557
    %v705 = vmax.f32 %v334, %v559
    %v706 = vmax.f32 %v333, %v561
    %v707 = vmax.f32 %v335, %v563
    %v708 = vmax.f32 %v343, %v565
    %v709 = vmax.f32 %v351, %v567
    %v710 = vmax.f32 %v350, %v569
    %v711 = vmax.f32 %v352, %v571
    %v712 = vmax.f32 %v360, %v573
    %v713 = vmax.f32 %v368, %v575
    %v714 = vmax.f32 %v367, %v577
    %v715 = vmax.f32 %v369, %v579
    %v716 = vmax.f32 %v377, %v581
    %v717 = vmax.f32 %v385, %v583
    %v718 = vmax.f32 %v384, %v585
    %v719 = vmax.f32 %v386, %v587
    %v720 = vmax.f32 %v394, %v589
    %v721 = vmax.f32 %v402, %v591
    %v722 = vmax.f32 %v401, %v593
    %v723 = vmax.f32 %v403, %v595
    %v724 = vlaneseq
    %v725 = vshrl.u32 %v724, 7
    %v726 = vadd.s32 %v725, 8
    %v727 = vlaneseq
    %v728 = vand.u32 %v727, 127
    %v729 = vmul.u32 %v728, 2
    %vm730 = vcmp.eq.s32.totalorder %v725, %v729
    %vm731 = vcmp.eq.s32.totalorder %v726, %v729
    %v732 = vsel %vm730, 1.0, 0.0
    %v733 = vsel %vm731, 1.0, 0.0
    %v734 = vadd.s32 %v729, 1
    %vm735 = vcmp.eq.s32.totalorder %v725, %v734
    %vm736 = vcmp.eq.s32.totalorder %v726, %v734
    %v737 = vsel %vm735, 1.0, 0.0
    %v738 = vsel %vm736, 1.0, 0.0
    %v803 = vlaneseq
    %v804 = vshrl.u32 %v803, 7
    %v805 = vsub.s32 0, %v804
    %v806 = vrot.slane %v660, %v805
    %v807 = vlaneseq
    %v808 = vshrl.u32 %v807, 7
    %v809 = vsub.s32 0, %v808
    %v810 = vrot.slane %v661, %v809
    %v811 = vlaneseq
    %v812 = vshrl.u32 %v811, 7
    %v813 = vsub.s32 0, %v812
    %v814 = vrot.slane %v662, %v813
    %v815 = vlaneseq
    %v816 = vshrl.u32 %v815, 7
    %v817 = vsub.s32 0, %v816
    %v818 = vrot.slane %v663, %v817
    %v819 = vlaneseq
    %v820 = vshrl.u32 %v819, 7
    %v821 = vsub.s32 0, %v820
    %v822 = vrot.slane %v664, %v821
    %v823 = vlaneseq
    %v824 = vshrl.u32 %v823, 7
    %v825 = vsub.s32 0, %v824
    %v826 = vrot.slane %v665, %v825
    %v827 = vlaneseq
    %v828 = vshrl.u32 %v827, 7
    %v829 = vsub.s32 0, %v828
    %v830 = vrot.slane %v666, %v829
    %v831 = vlaneseq
    %v832 = vshrl.u32 %v831, 7
    %v833 = vsub.s32 0, %v832
    %v834 = vrot.slane %v667, %v833
    %v835 = vlaneseq
    %v836 = vshrl.u32 %v835, 7
    %v837 = vsub.s32 0, %v836
    %v838 = vrot.slane %v668, %v837
    %v839 = vlaneseq
    %v840 = vshrl.u32 %v839, 7
    %v841 = vsub.s32 0, %v840
    %v842 = vrot.slane %v669, %v841
    %v843 = vlaneseq
    %v844 = vshrl.u32 %v843, 7
    %v845 = vsub.s32 0, %v844
    %v846 = vrot.slane %v670, %v845
    %v847 = vlaneseq
    %v848 = vshrl.u32 %v847, 7
    %v849 = vsub.s32 0, %v848
    %v850 = vrot.slane %v671, %v849
    %v851 = vlaneseq
    %v852 = vshrl.u32 %v851, 7
    %v853 = vsub.s32 0, %v852
    %v854 = vrot.slane %v672, %v853
    %v855 = vlaneseq
    %v856 = vshrl.u32 %v855, 7
    %v857 = vsub.s32 0, %v856
    %v858 = vrot.slane %v673, %v857
    %v859 = vlaneseq
    %v860 = vshrl.u32 %v859, 7
    %v861 = vsub.s32 0, %v860
    %v862 = vrot.slane %v674, %v861
    %v863 = vlaneseq
    %v864 = vshrl.u32 %v863, 7
    %v865 = vsub.s32 0, %v864
    %v866 = vrot.slane %v675, %v865
    %v867 = vlaneseq
    %v868 = vshrl.u32 %v867, 7
    %v869 = vsub.s32 0, %v868
    %v870 = vrot.slane %v676, %v869
    %v871 = vlaneseq
    %v872 = vshrl.u32 %v871, 7
    %v873 = vsub.s32 0, %v872
    %v874 = vrot.slane %v677, %v873
    %v875 = vlaneseq
    %v876 = vshrl.u32 %v875, 7
    %v877 = vsub.s32 0, %v876
    %v878 = vrot.slane %v678, %v877
    %v879 = vlaneseq
    %v880 = vshrl.u32 %v879, 7
    %v881 = vsub.s32 0, %v880
    %v882 = vrot.slane %v679, %v881
    %v883 = vlaneseq
    %v884 = vshrl.u32 %v883, 7
    %v885 = vsub.s32 0, %v884
    %v886 = vrot.slane %v680, %v885
    %v887 = vlaneseq
    %v888 = vshrl.u32 %v887, 7
    %v889 = vsub.s32 0, %v888
    %v890 = vrot.slane %v681, %v889
    %v891 = vlaneseq
    %v892 = vshrl.u32 %v891, 7
    %v893 = vsub.s32 0, %v892
    %v894 = vrot.slane %v682, %v893
    %v895 = vlaneseq
    %v896 = vshrl.u32 %v895, 7
    %v897 = vsub.s32 0, %v896
    %v898 = vrot.slane %v683, %v897
    %v899 = vlaneseq
    %v900 = vshrl.u32 %v899, 7
    %v901 = vsub.s32 0, %v900
    %v902 = vrot.slane %v684, %v901
    %v903 = vlaneseq
    %v904 = vshrl.u32 %v903, 7
    %v905 = vsub.s32 0, %v904
    %v906 = vrot.slane %v685, %v905
    %v907 = vlaneseq
    %v908 = vshrl.u32 %v907, 7
    %v909 = vsub.s32 0, %v908
    %v910 = vrot.slane %v686, %v909
    %v911 = vlaneseq
    %v912 = vshrl.u32 %v911, 7
    %v913 = vsub.s32 0, %v912
    %v914 = vrot.slane %v687, %v913
    %v915 = vlaneseq
    %v916 = vshrl.u32 %v915, 7
    %v917 = vsub.s32 0, %v916
    %v918 = vrot.slane %v688, %v917
    %v919 = vlaneseq
    %v920 = vshrl.u32 %v919, 7
    %v921 = vsub.s32 0, %v920
    %v922 = vrot.slane %v689, %v921
    %v923 = vlaneseq
    %v924 = vshrl.u32 %v923, 7
    %v925 = vsub.s32 0, %v924
    %v926 = vrot.slane %v690, %v925
    %v927 = vlaneseq
    %v928 = vshrl.u32 %v927, 7
    %v929 = vsub.s32 0, %v928
    %v930 = vrot.slane %v691, %v929
    %v931 = vlaneseq
    %v932 = vshrl.u32 %v931, 7
    %v933 = vsub.s32 0, %v932
    %v934 = vrot.slane %v692, %v933
    %v935 = vlaneseq
    %v936 = vshrl.u32 %v935, 7
    %v937 = vsub.s32 0, %v936
    %v938 = vrot.slane %v693, %v937
    %v939 = vlaneseq
    %v940 = vshrl.u32 %v939, 7
    %v941 = vsub.s32 0, %v940
    %v942 = vrot.slane %v694, %v941
    %v943 = vlaneseq
    %v944 = vshrl.u32 %v943, 7
    %v945 = vsub.s32 0, %v944
    %v946 = vrot.slane %v695, %v945
    %v947 = vlaneseq
    %v948 = vshrl.u32 %v947, 7
    %v949 = vsub.s32 0, %v948
    %v950 = vrot.slane %v696, %v949
    %v951 = vlaneseq
    %v952 = vshrl.u32 %v951, 7
    %v953 = vsub.s32 0, %v952
    %v954 = vrot.slane %v697, %v953
    %v955 = vlaneseq
    %v956 = vshrl.u32 %v955, 7
    %v957 = vsub.s32 0, %v956
    %v958 = vrot.slane %v698, %v957
    %v959 = vlaneseq
    %v960 = vshrl.u32 %v959, 7
    %v961 = vsub.s32 0, %v960
    %v962 = vrot.slane %v699, %v961
    %v963 = vlaneseq
    %v964 = vshrl.u32 %v963, 7
    %v965 = vsub.s32 0, %v964
    %v966 = vrot.slane %v700, %v965
    %v967 = vlaneseq
    %v968 = vshrl.u32 %v967, 7
    %v969 = vsub.s32 0, %v968
    %v970 = vrot.slane %v701, %v969
    %v971 = vlaneseq
    %v972 = vshrl.u32 %v971, 7
    %v973 = vsub.s32 0, %v972
    %v974 = vrot.slane %v702, %v973
    %v975 = vlaneseq
    %v976 = vshrl.u32 %v975, 7
    %v977 = vsub.s32 0, %v976
    %v978 = vrot.slane %v703, %v977
    %v979 = vlaneseq
    %v980 = vshrl.u32 %v979, 7
    %v981 = vsub.s32 0, %v980
    %v982 = vrot.slane %v704, %v981
    %v983 = vlaneseq
    %v984 = vshrl.u32 %v983, 7
    %v985 = vsub.s32 0, %v984
    %v986 = vrot.slane %v705, %v985
    %v987 = vlaneseq
    %v988 = vshrl.u32 %v987, 7
    %v989 = vsub.s32 0, %v988
    %v990 = vrot.slane %v706, %v989
    %v991 = vlaneseq
    %v992 = vshrl.u32 %v991, 7
    %v993 = vsub.s32 0, %v992
    %v994 = vrot.slane %v707, %v993
    %v995 = vlaneseq
    %v996 = vshrl.u32 %v995, 7
    %v997 = vsub.s32 0, %v996
    %v998 = vrot.slane %v708, %v997
    %v999 = vlaneseq
    %v1000 = vshrl.u32 %v999, 7
    %v1001 = vsub.s32 0, %v1000
    %v1002 = vrot.slane %v709, %v1001
    %v1003 = vlaneseq
    %v1004 = vshrl.u32 %v1003, 7
    %v1005 = vsub.s32 0, %v1004
    %v1006 = vrot.slane %v710, %v1005
    %v1007 = vlaneseq
    %v1008 = vshrl.u32 %v1007, 7
    %v1009 = vsub.s32 0, %v1008
    %v1010 = vrot.slane %v711, %v1009
    %v1011 = vlaneseq
    %v1012 = vshrl.u32 %v1011, 7
    %v1013 = vsub.s32 0, %v1012
    %v1014 = vrot.slane %v712, %v1013
    %v1015 = vlaneseq
    %v1016 = vshrl.u32 %v1015, 7
    %v1017 = vsub.s32 0, %v1016
    %v1018 = vrot.slane %v713, %v1017
    %v1019 = vlaneseq
    %v1020 = vshrl.u32 %v1019, 7
    %v1021 = vsub.s32 0, %v1020
    %v1022 = vrot.slane %v714, %v1021
    %v1023 = vlaneseq
    %v1024 = vshrl.u32 %v1023, 7
    %v1025 = vsub.s32 0, %v1024
    %v1026 = vrot.slane %v715, %v1025
    %v1027 = vlaneseq
    %v1028 = vshrl.u32 %v1027, 7
    %v1029 = vsub.s32 0, %v1028
    %v1030 = vrot.slane %v716, %v1029
    %v1031 = vlaneseq
    %v1032 = vshrl.u32 %v1031, 7
    %v1033 = vsub.s32 0, %v1032
    %v1034 = vrot.slane %v717, %v1033
    %v1035 = vlaneseq
    %v1036 = vshrl.u32 %v1035, 7
    %v1037 = vsub.s32 0, %v1036
    %v1038 = vrot.slane %v718, %v1037
    %v1039 = vlaneseq
    %v1040 = vshrl.u32 %v1039, 7
    %v1041 = vsub.s32 0, %v1040
    %v1042 = vrot.slane %v719, %v1041
    %v1043 = vlaneseq
    %v1044 = vshrl.u32 %v1043, 7
    %v1045 = vsub.s32 0, %v1044
    %v1046 = vrot.slane %v720, %v1045
    %v1047 = vlaneseq
    %v1048 = vshrl.u32 %v1047, 7
    %v1049 = vsub.s32 0, %v1048
    %v1050 = vrot.slane %v721, %v1049
    %v1051 = vlaneseq
    %v1052 = vshrl.u32 %v1051, 7
    %v1053 = vsub.s32 0, %v1052
    %v1054 = vrot.slane %v722, %v1053
    %v1055 = vlaneseq
    %v1056 = vshrl.u32 %v1055, 7
    %v1057 = vsub.s32 0, %v1056
    %v1058 = vrot.slane %v723, %v1057
    %vm1059 = vcmask 1041409
    %v1060 = vsel %vm1059, %v810, %v806
    %vm1061 = vcmask 1042434
    %v1062 = vsel %vm1061, %v814, %v1060
    %vm1063 = vcmask 1043459
    %v1064 = vsel %vm1063, %v818, %v1062
    %vm1065 = vcmask 1044484
    %v1066 = vsel %vm1065, %v822, %v1064
    %vm1067 = vcmask 1045509
    %v1068 = vsel %vm1067, %v826, %v1066
    %vm1069 = vcmask 1046534
    %v1070 = vsel %vm1069, %v830, %v1068
    %vm1071 = vcmask 1047559
    %v1072 = vsel %vm1071, %v834, %v1070
    %v1073 = vsel %vm1059, %v842, %v838
    %v1074 = vsel %vm1061, %v846, %v1073
    %v1075 = vsel %vm1063, %v850, %v1074
    %v1076 = vsel %vm1065, %v854, %v1075
    %v1077 = vsel %vm1067, %v858, %v1076
    %v1078 = vsel %vm1069, %v862, %v1077
    %v1079 = vsel %vm1071, %v866, %v1078
    %v1080 = vsel %vm1059, %v874, %v870
    %v1081 = vsel %vm1061, %v878, %v1080
    %v1082 = vsel %vm1063, %v882, %v1081
    %v1083 = vsel %vm1065, %v886, %v1082
    %v1084 = vsel %vm1067, %v890, %v1083
    %v1085 = vsel %vm1069, %v894, %v1084
    %v1086 = vsel %vm1071, %v898, %v1085
    %v1087 = vsel %vm1059, %v906, %v902
    %v1088 = vsel %vm1061, %v910, %v1087
    %v1089 = vsel %vm1063, %v914, %v1088
    %v1090 = vsel %vm1065, %v918, %v1089
    %v1091 = vsel %vm1067, %v922, %v1090
    %v1092 = vsel %vm1069, %v926, %v1091
    %v1093 = vsel %vm1071, %v930, %v1092
    %v1094 = vsel %vm1059, %v938, %v934
    %v1095 = vsel %vm1061, %v942, %v1094
    %v1096 = vsel %vm1063, %v946, %v1095
    %v1097 = vsel %vm1065, %v950, %v1096
    %v1098 = vsel %vm1067, %v954, %v1097
    %v1099 = vsel %vm1069, %v958, %v1098
    %v1100 = vsel %vm1071, %v962, %v1099
    %v1101 = vsel %vm1059, %v970, %v966
    %v1102 = vsel %vm1061, %v974, %v1101
    %v1103 = vsel %vm1063, %v978, %v1102
    %v1104 = vsel %vm1065, %v982, %v1103
    %v1105 = vsel %vm1067, %v986, %v1104
    %v1106 = vsel %vm1069, %v990, %v1105
    %v1107 = vsel %vm1071, %v994, %v1106
    %v1108 = vsel %vm1059, %v1002, %v998
    %v1109 = vsel %vm1061, %v1006, %v1108
    %v1110 = vsel %vm1063, %v1010, %v1109
    %v1111 = vsel %vm1065, %v1014, %v1110
    %v1112 = vsel %vm1067, %v1018, %v1111
    %v1113 = vsel %vm1069, %v1022, %v1112
    %v1114 = vsel %vm1071, %v1026, %v1113
    %v1115 = vsel %vm1059, %v1034, %v1030
    %v1116 = vsel %vm1061, %v1038, %v1115
    %v1117 = vsel %vm1063, %v1042, %v1116
    %v1118 = vsel %vm1065, %v1046, %v1117
    %v1119 = vsel %vm1067, %v1050, %v1118
    %v1120 = vsel %vm1069, %v1054, %v1119
    %v1121 = vsel %vm1071, %v1058, %v1120
    %vm1122 = vcmask 130048
    %v1123 = vsel %vm1122, %v1072, 0
    %v1125 = vsel %vm1122, %v1079, 0
    %v1127 = vsel %vm1122, %v1086, 0
    %v1129 = vsel %vm1122, %v1093, 0
    %v1131 = vsel %vm1122, %v1100, 0
    %v1133 = vsel %vm1122, %v1107, 0
    %v1135 = vsel %vm1122, %v1114, 0
    %v1137 = vsel %vm1122, %v1121, 0
    %1139 = vmatprep.subr.mxu0 0.0
    %1140 = vmatpush1.msra.mxu0 %v732
    %1141 = vmatprep.subr.mxu0 0.0
    %1142 = vmatpush1.msra.mxu0 %v733
    %1143 = vmatprep.subr.mxu0 0.0
    %1144 = vmatpush1.msra.mxu0 0.0
    %1145 = vmatprep.subr.mxu0 0.0
    %1146 = vmatpush1.msra.mxu0 0.0
    %1147 = vmatprep.subr.mxu0 0.0
    %1148 = vmatpush1.msra.mxu0 0.0
    %1149 = vmatprep.subr.mxu0 0.0
    %1150 = vmatpush1.msra.mxu0 0.0
    %1151 = vmatprep.subr.mxu0 0.0
    %1152 = vmatpush1.msra.mxu0 0.0
    %1153 = vmatprep.subr.mxu0 0.0
    %1154 = vmatpush1.msra.mxu0 0.0
    %1155 = vmatprep.subr.mxu0 0.0
    %1156 = vmatpush1.msra.mxu0 0.0
    %1157 = vmatprep.subr.mxu0 0.0
    %1158 = vmatpush1.msra.mxu0 0.0
    %1159 = vmatprep.subr.mxu0 0.0
    %1160 = vmatpush1.msra.mxu0 0.0
    %1161 = vmatprep.subr.mxu0 0.0
    %1162 = vmatpush1.msra.mxu0 0.0
    %1163 = vmatprep.subr.mxu0 0.0
    %1164 = vmatpush1.msra.mxu0 0.0
    %1165 = vmatprep.subr.mxu0 0.0
    %1166 = vmatpush1.msra.mxu0 0.0
    %1167 = vmatprep.subr.mxu0 0.0
    %1168 = vmatpush1.msra.mxu0 0.0
    %1169 = vmatprep.subr.mxu0 0.0
    %1170 = vmatpush1.msra.mxu0 0.0
    %1171 = vmatprep.subr.mxu0 0.0
    %1172 = vmatpush1.msra.mxu0 0.0
    %1173 = vmatprep.subr.mxu0 0.0
    %1174 = vmatpush1.msra.mxu0 0.0
    %1175 = vmatprep.subr.mxu0 0.0
    %1176 = vmatpush1.msra.mxu0 0.0
    %1177 = vmatprep.subr.mxu0 0.0
    %1178 = vmatpush1.msra.mxu0 0.0
    %1179 = vmatprep.subr.mxu0 0.0
    %1180 = vmatpush1.msra.mxu0 0.0
    %1181 = vmatprep.subr.mxu0 0.0
    %1182 = vmatpush1.msra.mxu0 0.0
    %1183 = vmatprep.subr.mxu0 0.0
    %1184 = vmatpush1.msra.mxu0 0.0
    %1185 = vmatprep.subr.mxu0 0.0
    %1186 = vmatpush1.msra.mxu0 0.0
    %1187 = vmatprep.subr.mxu0 0.0
    %1188 = vmatpush1.msra.mxu0 0.0
    %1189 = vmatprep.subr.mxu0 0.0
    %1190 = vmatpush1.msra.mxu0 0.0
    %1191 = vmatprep.subr.mxu0 0.0
    %1192 = vmatpush1.msra.mxu0 0.0
    %1193 = vmatprep.subr.mxu0 0.0
    %1194 = vmatpush1.msra.mxu0 0.0
    %1195 = vmatprep.subr.mxu0 0.0
    %1196 = vmatpush1.msra.mxu0 0.0
    %1197 = vmatprep.subr.mxu0 0.0
    %1198 = vmatpush1.msra.mxu0 0.0
    %1199 = vmatprep.subr.mxu0 0.0
    %1200 = vmatpush1.msra.mxu0 0.0
    %1201 = vmatprep.subr.mxu0 0.0
    %1202 = vmatpush1.msra.mxu0 0.0
    %1203 = vmatprep.mubr.f32.mxu0 0.0
    %1204 = vmatmul.mubr.f32.gmra.mrb[0].mxu0 %v1123
    %v1205 = vpop.f32.mrb[0].mxu0
    %v1206 = vadd.f32 0.0, %v1205
    %v1207 = vpop.f32.mrb[0].mxu0
    %1208 = vmatprep.mubr.f32.mxu0 0.0
    %1209 = vmatmul.mubr.f32.gmra.mrb[0].mxu0 %v1125
    %v1210 = vpop.f32.mrb[0].mxu0
    %v1211 = vadd.f32 0.0, %v1210
    %v1212 = vpop.f32.mrb[0].mxu0
    %1213 = vmatprep.mubr.f32.mxu0 0.0
    %1214 = vmatmul.mubr.f32.gmra.mrb[0].mxu0 %v1127
    %v1215 = vpop.f32.mrb[0].mxu0
    %v1216 = vadd.f32 0.0, %v1215
    %v1217 = vpop.f32.mrb[0].mxu0
    %1218 = vmatprep.mubr.f32.mxu0 0.0
    %1219 = vmatmul.mubr.f32.gmra.mrb[0].mxu0 %v1129
    %v1220 = vpop.f32.mrb[0].mxu0
    %v1221 = vadd.f32 0.0, %v1220
    %v1222 = vpop.f32.mrb[0].mxu0
    %1223 = vmatprep.mubr.f32.mxu0 0.0
    %1224 = vmatmul.mubr.f32.gmra.mrb[0].mxu0 %v1131
    %v1225 = vpop.f32.mrb[0].mxu0
    %v1226 = vadd.f32 0.0, %v1225
    %v1227 = vpop.f32.mrb[0].mxu0
    %1228 = vmatprep.mubr.f32.mxu0 0.0
    %1229 = vmatmul.mubr.f32.gmra.mrb[0].mxu0 %v1133
    %v1230 = vpop.f32.mrb[0].mxu0
    %v1231 = vadd.f32 0.0, %v1230
    %v1232 = vpop.f32.mrb[0].mxu0
    %1233 = vmatprep.mubr.f32.mxu0 0.0
    %1234 = vmatmul.mubr.f32.gmra.mrb[0].mxu0 %v1135
    %v1235 = vpop.f32.mrb[0].mxu0
    %v1236 = vadd.f32 0.0, %v1235
    %v1237 = vpop.f32.mrb[0].mxu0
    %1238 = vmatprep.mubr.f32.mxu0 0.0
    %1239 = vmatmul.mubr.f32.gmra.mrb[0].mxu0 %v1137
    %v1240 = vpop.f32.mrb[0].mxu0
    %v1241 = vadd.f32 0.0, %v1240
    %v1242 = vpop.f32.mrb[0].mxu0
    %1243 = vdwg.mxu0
    %1244 = vmatprep.subr.mxu0 0.0
    %1245 = vmatpush1.msra.mxu0 %v737
    %1246 = vmatprep.subr.mxu0 0.0
    %1247 = vmatpush1.msra.mxu0 %v738
    %1248 = vmatprep.subr.mxu0 0.0
    %1249 = vmatpush1.msra.mxu0 0.0
    %1250 = vmatprep.subr.mxu0 0.0
    %1251 = vmatpush1.msra.mxu0 0.0
    %1252 = vmatprep.subr.mxu0 0.0
    %1253 = vmatpush1.msra.mxu0 0.0
    %1254 = vmatprep.subr.mxu0 0.0
    %1255 = vmatpush1.msra.mxu0 0.0
    %1256 = vmatprep.subr.mxu0 0.0
    %1257 = vmatpush1.msra.mxu0 0.0
    %1258 = vmatprep.subr.mxu0 0.0
    %1259 = vmatpush1.msra.mxu0 0.0
    %1260 = vmatprep.subr.mxu0 0.0
    %1261 = vmatpush1.msra.mxu0 0.0
    %1262 = vmatprep.subr.mxu0 0.0
    %1263 = vmatpush1.msra.mxu0 0.0
    %1264 = vmatprep.subr.mxu0 0.0
    %1265 = vmatpush1.msra.mxu0 0.0
    %1266 = vmatprep.subr.mxu0 0.0
    %1267 = vmatpush1.msra.mxu0 0.0
    %1268 = vmatprep.subr.mxu0 0.0
    %1269 = vmatpush1.msra.mxu0 0.0
    %1270 = vmatprep.subr.mxu0 0.0
    %1271 = vmatpush1.msra.mxu0 0.0
    %1272 = vmatprep.subr.mxu0 0.0
    %1273 = vmatpush1.msra.mxu0 0.0
    %1274 = vmatprep.subr.mxu0 0.0
    %1275 = vmatpush1.msra.mxu0 0.0
    %1276 = vmatprep.subr.mxu0 0.0
    %1277 = vmatpush1.msra.mxu0 0.0
    %1278 = vmatprep.subr.mxu0 0.0
    %1279 = vmatpush1.msra.mxu0 0.0
    %1280 = vmatprep.subr.mxu0 0.0
    %1281 = vmatpush1.msra.mxu0 0.0
    %1282 = vmatprep.subr.mxu0 0.0
    %1283 = vmatpush1.msra.mxu0 0.0
    %1284 = vmatprep.subr.mxu0 0.0
    %1285 = vmatpush1.msra.mxu0 0.0
    %1286 = vmatprep.subr.mxu0 0.0
    %1287 = vmatpush1.msra.mxu0 0.0
    %1288 = vmatprep.subr.mxu0 0.0
    %1289 = vmatpush1.msra.mxu0 0.0
    %1290 = vmatprep.subr.mxu0 0.0
    %1291 = vmatpush1.msra.mxu0 0.0
    %1292 = vmatprep.subr.mxu0 0.0
    %1293 = vmatpush1.msra.mxu0 0.0
    %1294 = vmatprep.subr.mxu0 0.0
    %1295 = vmatpush1.msra.mxu0 0.0
    %1296 = vmatprep.subr.mxu0 0.0
    %1297 = vmatpush1.msra.mxu0 0.0
    %1298 = vmatprep.subr.mxu0 0.0
    %1299 = vmatpush1.msra.mxu0 0.0
    %1300 = vmatprep.subr.mxu0 0.0
    %1301 = vmatpush1.msra.mxu0 0.0
    %1302 = vmatprep.subr.mxu0 0.0
    %1303 = vmatpush1.msra.mxu0 0.0
    %1304 = vmatprep.subr.mxu0 0.0
    %1305 = vmatpush1.msra.mxu0 0.0
    %1306 = vmatprep.subr.mxu0 0.0
    %1307 = vmatpush1.msra.mxu0 0.0
    %1308 = vmatprep.mubr.f32.mxu0 0.0
    %1309 = vmatmul.mubr.f32.gmra.mrb[0].mxu0 %v1123
    %v1310 = vpop.f32.mrb[0].mxu0
    %v1311 = vadd.f32 0.0, %v1310
    %v1312 = vpop.f32.mrb[0].mxu0
    %1313 = vmatprep.mubr.f32.mxu0 0.0
    %1314 = vmatmul.mubr.f32.gmra.mrb[0].mxu0 %v1125
    %v1315 = vpop.f32.mrb[0].mxu0
    %v1316 = vadd.f32 0.0, %v1315
    %v1317 = vpop.f32.mrb[0].mxu0
    %1318 = vmatprep.mubr.f32.mxu0 0.0
    %1319 = vmatmul.mubr.f32.gmra.mrb[0].mxu0 %v1127
    %v1320 = vpop.f32.mrb[0].mxu0
    %v1321 = vadd.f32 0.0, %v1320
    %v1322 = vpop.f32.mrb[0].mxu0
    %1323 = vmatprep.mubr.f32.mxu0 0.0
    %1324 = vmatmul.mubr.f32.gmra.mrb[0].mxu0 %v1129
    %v1325 = vpop.f32.mrb[0].mxu0
    %v1326 = vadd.f32 0.0, %v1325
    %v1327 = vpop.f32.mrb[0].mxu0
    %1328 = vmatprep.mubr.f32.mxu0 0.0
    %1329 = vmatmul.mubr.f32.gmra.mrb[0].mxu0 %v1131
    %v1330 = vpop.f32.mrb[0].mxu0
    %v1331 = vadd.f32 0.0, %v1330
    %v1332 = vpop.f32.mrb[0].mxu0
    %1333 = vmatprep.mubr.f32.mxu0 0.0
    %1334 = vmatmul.mubr.f32.gmra.mrb[0].mxu0 %v1133
    %v1335 = vpop.f32.mrb[0].mxu0
    %v1336 = vadd.f32 0.0, %v1335
    %v1337 = vpop.f32.mrb[0].mxu0
    %1338 = vmatprep.mubr.f32.mxu0 0.0
    %1339 = vmatmul.mubr.f32.gmra.mrb[0].mxu0 %v1135
    %v1340 = vpop.f32.mrb[0].mxu0
    %v1341 = vadd.f32 0.0, %v1340
    %v1342 = vpop.f32.mrb[0].mxu0
    %1343 = vmatprep.mubr.f32.mxu0 0.0
    %1344 = vmatmul.mubr.f32.gmra.mrb[0].mxu0 %v1137
    %v1345 = vpop.f32.mrb[0].mxu0
    %v1346 = vadd.f32 0.0, %v1345
    %v1347 = vpop.f32.mrb[0].mxu0
    %1348 = vdwg.mxu0
    %v1349 = vmax.f32 %v1206, %v1311
    %v1350 = vmax.f32 %v1211, %v1316
    %v1351 = vmax.f32 %v1216, %v1321
    %v1352 = vmax.f32 %v1221, %v1326
    %v1353 = vmax.f32 %v1226, %v1331
    %v1354 = vmax.f32 %v1231, %v1336
    %v1355 = vmax.f32 %v1236, %v1341
    %v1356 = vmax.f32 %v1241, %v1346
    %vm1357 = vcmask 73728
    %1358 = vst.msk [vmem:[#allocation2] sm:$0x1] %vm1357, 0.0
    %1359 = vst.msk [vmem:[#allocation2 + $0x10] sm:$0x1] %vm1357, 0.0
    %1360 = vst.msk [vmem:[#allocation2 + $0x20] sm:$0x1] %vm1357, 0.0
    %1361 = vst.msk [vmem:[#allocation2 + $0x30] sm:$0x1] %vm1357, 0.0
    %1362 = vst.msk [vmem:[#allocation2 + $0x40] sm:$0x1] %vm1357, 0.0
    %1363 = vst.msk [vmem:[#allocation2 + $0x50] sm:$0x1] %vm1357, 0.0
    %1364 = vst.msk [vmem:[#allocation2 + $0x60] sm:$0x1] %vm1357, 0.0
    %1365 = vst.msk [vmem:[#allocation2 + $0x70] sm:$0x1] %vm1357, 0.0
    %1366 = vst.msk [vmem:[#allocation2 + $0x80] sm:$0x1] %vm1357, 0.0
    %1367 = vst.msk [vmem:[#allocation2 + $0x90] sm:$0x1] %vm1357, 0.0
    %1368 = vst.msk [vmem:[#allocation2 + $0xa0] sm:$0x1] %vm1357, 0.0
    %1369 = vst.msk [vmem:[#allocation2 + $0xb0] sm:$0x1] %vm1357, 0.0
    %1370 = vst.msk [vmem:[#allocation2 + $0xc0] sm:$0x1] %vm1357, 0.0
    %1371 = vst.msk [vmem:[#allocation2 + $0xd0] sm:$0x1] %vm1357, 0.0
    %1372 = vst.msk [vmem:[#allocation2 + $0x9] sm:$0x1] %vm1357, 0.0
    %1373 = vst.msk [vmem:[#allocation2 + $0x19] sm:$0x1] %vm1357, 0.0
    %1374 = vst.msk [vmem:[#allocation2 + $0x29] sm:$0x1] %vm1357, 0.0
    %1375 = vst.msk [vmem:[#allocation2 + $0x39] sm:$0x1] %vm1357, 0.0
    %1376 = vst.msk [vmem:[#allocation2 + $0x49] sm:$0x1] %vm1357, 0.0
    %1377 = vst.msk [vmem:[#allocation2 + $0x59] sm:$0x1] %vm1357, 0.0
    %1378 = vst.msk [vmem:[#allocation2 + $0x69] sm:$0x1] %vm1357, 0.0
    %1379 = vst.msk [vmem:[#allocation2 + $0x79] sm:$0x1] %vm1357, 0.0
    %1380 = vst.msk [vmem:[#allocation2 + $0x89] sm:$0x1] %vm1357, 0.0
    %1381 = vst.msk [vmem:[#allocation2 + $0x99] sm:$0x1] %vm1357, 0.0
    %1382 = vst.msk [vmem:[#allocation2 + $0xa9] sm:$0x1] %vm1357, 0.0
    %1383 = vst.msk [vmem:[#allocation2 + $0xb9] sm:$0x1] %vm1357, 0.0
    %1384 = vst.msk [vmem:[#allocation2 + $0xc9] sm:$0x1] %vm1357, 0.0
    %1385 = vst.msk [vmem:[#allocation2 + $0xd9] sm:$0x1] %vm1357, 0.0
    %vm1386 = vcmask 7168
    %1387 = vst.msk [vmem:[#allocation2] sm:$0xff] %vm1386, 0.0
    %vm1388 = vcmask 1024
    %1389 = vst.msk [vmem:[#allocation2 + $0x8] sm:$0x3] %vm1388, 0.0
    %1390 = vst.msk [vmem:[#allocation2 + $0x10] sm:$0xff] %vm1386, 0.0
    %1391 = vst.msk [vmem:[#allocation2 + $0x18] sm:$0x3] %vm1388, 0.0
    %1392 = vst.msk [vmem:[#allocation2 + $0x20] sm:$0xff] %vm1386, 0.0
    %1393 = vst.msk [vmem:[#allocation2 + $0x28] sm:$0x3] %vm1388, 0.0
    %1394 = vst.msk [vmem:[#allocation2 + $0x30] sm:$0xff] %vm1386, 0.0
    %1395 = vst.msk [vmem:[#allocation2 + $0x38] sm:$0x3] %vm1388, 0.0
    %1396 = vst.msk [vmem:[#allocation2 + $0x40] sm:$0xff] %vm1386, 0.0
    %1397 = vst.msk [vmem:[#allocation2 + $0x48] sm:$0x3] %vm1388, 0.0
    %1398 = vst.msk [vmem:[#allocation2 + $0x50] sm:$0xff] %vm1386, 0.0
    %1399 = vst.msk [vmem:[#allocation2 + $0x58] sm:$0x3] %vm1388, 0.0
    %1400 = vst.msk [vmem:[#allocation2 + $0x60] sm:$0xff] %vm1386, 0.0
    %1401 = vst.msk [vmem:[#allocation2 + $0x68] sm:$0x3] %vm1388, 0.0
    %1402 = vst.msk [vmem:[#allocation2 + $0x70] sm:$0xff] %vm1386, 0.0
    %1403 = vst.msk [vmem:[#allocation2 + $0x78] sm:$0x3] %vm1388, 0.0
    %1404 = vst.msk [vmem:[#allocation2 + $0x80] sm:$0xff] %vm1386, 0.0
    %1405 = vst.msk [vmem:[#allocation2 + $0x88] sm:$0x3] %vm1388, 0.0
    %1406 = vst.msk [vmem:[#allocation2 + $0x90] sm:$0xff] %vm1386, 0.0
    %1407 = vst.msk [vmem:[#allocation2 + $0x98] sm:$0x3] %vm1388, 0.0
    %1408 = vst.msk [vmem:[#allocation2 + $0xa0] sm:$0xff] %vm1386, 0.0
    %1409 = vst.msk [vmem:[#allocation2 + $0xa8] sm:$0x3] %vm1388, 0.0
    %1410 = vst.msk [vmem:[#allocation2 + $0xb0] sm:$0xff] %vm1386, 0.0
    %1411 = vst.msk [vmem:[#allocation2 + $0xb8] sm:$0x3] %vm1388, 0.0
    %1412 = vst.msk [vmem:[#allocation2 + $0xc0] sm:$0xff] %vm1386, 0.0
    %1413 = vst.msk [vmem:[#allocation2 + $0xc8] sm:$0x3] %vm1388, 0.0
    %1414 = vst.msk [vmem:[#allocation2 + $0xd0] sm:$0xff] %vm1386, 0.0
    %1415 = vst.msk [vmem:[#allocation2 + $0xd8] sm:$0x3] %vm1388, 0.0
    %vm1416 = vcmask 80968
    %1417 = vst.msk [vmem:[#allocation2] sm:$0xff] %vm1416, 0.0
    %vm1418 = vcmask 74824
    %1419 = vst.msk [vmem:[#allocation2 + $0x8] sm:$0x3] %vm1418, 0.0
    %1420 = vst.msk [vmem:[#allocation2 + $0x10] sm:$0xff] %vm1416, 0.0
    %1421 = vst.msk [vmem:[#allocation2 + $0x18] sm:$0x3] %vm1418, 0.0
    %1422 = vst.msk [vmem:[#allocation2 + $0x20] sm:$0xff] %vm1416, 0.0
    %1423 = vst.msk [vmem:[#allocation2 + $0x28] sm:$0x3] %vm1418, 0.0
    %1424 = vst.msk [vmem:[#allocation2 + $0x30] sm:$0xff] %vm1416, 0.0
    %1425 = vst.msk [vmem:[#allocation2 + $0x38] sm:$0x3] %vm1418, 0.0
    %1426 = vst.msk [vmem:[#allocation2 + $0x40] sm:$0xff] %vm1416, 0.0
    %1427 = vst.msk [vmem:[#allocation2 + $0x48] sm:$0x3] %vm1418, 0.0
    %1428 = vst.msk [vmem:[#allocation2 + $0x50] sm:$0xff] %vm1416, 0.0
    %1429 = vst.msk [vmem:[#allocation2 + $0x58] sm:$0x3] %vm1418, 0.0
    %1430 = vst.msk [vmem:[#allocation2 + $0x60] sm:$0xff] %vm1416, 0.0
    %1431 = vst.msk [vmem:[#allocation2 + $0x68] sm:$0x3] %vm1418, 0.0
    %1432 = vst.msk [vmem:[#allocation2 + $0x70] sm:$0xff] %vm1416, 0.0
    %1433 = vst.msk [vmem:[#allocation2 + $0x78] sm:$0x3] %vm1418, 0.0
    %1434 = vst.msk [vmem:[#allocation2 + $0x80] sm:$0xff] %vm1416, 0.0
    %1435 = vst.msk [vmem:[#allocation2 + $0x88] sm:$0x3] %vm1418, 0.0
    %1436 = vst.msk [vmem:[#allocation2 + $0x90] sm:$0xff] %vm1416, 0.0
    %1437 = vst.msk [vmem:[#allocation2 + $0x98] sm:$0x3] %vm1418, 0.0
    %1438 = vst.msk [vmem:[#allocation2 + $0xa0] sm:$0xff] %vm1416, 0.0
    %1439 = vst.msk [vmem:[#allocation2 + $0xa8] sm:$0x3] %vm1418, 0.0
    %1440 = vst.msk [vmem:[#allocation2 + $0xb0] sm:$0xff] %vm1416, 0.0
    %1441 = vst.msk [vmem:[#allocation2 + $0xb8] sm:$0x3] %vm1418, 0.0
    %1442 = vst.msk [vmem:[#allocation2 + $0xc0] sm:$0xff] %vm1416, 0.0
    %1443 = vst.msk [vmem:[#allocation2 + $0xc8] sm:$0x3] %vm1418, 0.0
    %1444 = vst.msk [vmem:[#allocation2 + $0xd0] sm:$0xff] %vm1416, 0.0
    %1445 = vst.msk [vmem:[#allocation2 + $0xd8] sm:$0x3] %vm1418, 0.0
    %v1446 = vld [vmem:[#allocation7] sm:$0xff]
    %v1447 = vld [vmem:[#allocation7 + $0x8] sm:$0xff]
    %v1448 = vld [vmem:[#allocation7 + $0x10] sm:$0xff]
    %v1449 = vld [vmem:[#allocation7 + $0x18] sm:$0xff]
    %v1450 = vld [vmem:[#allocation7 + $0x20] sm:$0xff]
    %v1451 = vld [vmem:[#allocation7 + $0x28] sm:$0xff]
    %1466 = vrot.lane.b32.xlu0 %v1349, 1
    %v1467 = vpop.permute.xlu0 %1466
    %1468 = vrot.lane.b32.xlu0 %v1350, 1
    %v1469 = vpop.permute.xlu0 %1468
    %1470 = vrot.lane.b32.xlu0 %v1351, 1
    %v1471 = vpop.permute.xlu0 %1470
    %1472 = vrot.lane.b32.xlu0 %v1352, 1
    %v1473 = vpop.permute.xlu0 %1472
    %1474 = vrot.lane.b32.xlu0 %v1446, 1
    %v1475 = vpop.permute.xlu0 %1474
    %1476 = vrot.lane.b32.xlu0 %v1447, 1
    %v1477 = vpop.permute.xlu0 %1476
    %1478 = vrot.lane.b32.xlu0 %v1448, 1
    %v1479 = vpop.permute.xlu0 %1478
    %1480 = vrot.lane.b32.xlu0 %v1353, 1
    %v1481 = vpop.permute.xlu0 %1480
    %1482 = vrot.lane.b32.xlu0 %v1354, 1
    %v1483 = vpop.permute.xlu0 %1482
    %1484 = vrot.lane.b32.xlu0 %v1355, 1
    %v1485 = vpop.permute.xlu0 %1484
    %1486 = vrot.lane.b32.xlu0 %v1356, 1
    %v1487 = vpop.permute.xlu0 %1486
    %1488 = vrot.lane.b32.xlu0 %v1449, 1
    %v1489 = vpop.permute.xlu0 %1488
    %1490 = vrot.lane.b32.xlu0 %v1450, 1
    %v1491 = vpop.permute.xlu0 %1490
    %1492 = vrot.lane.b32.xlu0 %v1451, 1
    %v1493 = vpop.permute.xlu0 %1492
    %vm1508 = vcmask 72712
    %1509 = vst.msk [vmem:[#allocation2 + $0x1] sm:$0xff] %vm1508, %v1467
    %1510 = vst.msk [vmem:[#allocation2 + $0x11] sm:$0xff] %vm1508, %v1469
    %1511 = vst.msk [vmem:[#allocation2 + $0x21] sm:$0xff] %vm1508, %v1471
    %1512 = vst.msk [vmem:[#allocation2 + $0x31] sm:$0xff] %vm1508, %v1473
    %1513 = vst.msk [vmem:[#allocation2 + $0x41] sm:$0xff] %vm1508, %v1475
    %1514 = vst.msk [vmem:[#allocation2 + $0x51] sm:$0xff] %vm1508, %v1477
    %1515 = vst.msk [vmem:[#allocation2 + $0x61] sm:$0xff] %vm1508, %v1479
    %1516 = vst.msk [vmem:[#allocation2 + $0x71] sm:$0xff] %vm1508, %v1481
    %1517 = vst.msk [vmem:[#allocation2 + $0x81] sm:$0xff] %vm1508, %v1483
    %1518 = vst.msk [vmem:[#allocation2 + $0x91] sm:$0xff] %vm1508, %v1485
    %1519 = vst.msk [vmem:[#allocation2 + $0xa1] sm:$0xff] %vm1508, %v1487
    %1520 = vst.msk [vmem:[#allocation2 + $0xb1] sm:$0xff] %vm1508, %v1489
    %1521 = vst.msk [vmem:[#allocation2 + $0xc1] sm:$0xff] %vm1508, %v1491
    %1522 = vst.msk [vmem:[#allocation2 + $0xd1] sm:$0xff] %vm1508, %v1493
    %v1523 = vld [vmem:[#allocation2] sm:$0xff]
    %v1524 = vld [vmem:[#allocation2 + $0x8] sm:$0x3]
    %v1525 = vld [vmem:[#allocation2 + $0x70] sm:$0xff]
    %v1526 = vld [vmem:[#allocation2 + $0x78] sm:$0x3]
    %s1527 = sld [smem:[#allocation9]]
    %v1528 = vstv %s1527
    %v1529 = vmul.f32 %v1523, %v1528
    %v1530 = vmul.f32 %v1525, %v1528
    %s1531 = sld [smem:[#allocation9 + $0x1]]
    %v1532 = vstv %s1531
    %v1533 = vmul.f32 %v1523, %v1532
    %v1534 = vmul.f32 %v1525, %v1532
    %s1535 = sld [smem:[#allocation9 + $0x2]]
    %v1536 = vstv %s1535
    %v1537 = vmul.f32 %v1523, %v1536
    %v1538 = vmul.f32 %v1525, %v1536
    %s1539 = sld [smem:[#allocation9 + $0x3]]
    %v1540 = vstv %s1539
    %v1541 = vmul.f32 %v1523, %v1540
    %v1542 = vmul.f32 %v1525, %v1540
    %s1543 = sld [smem:[#allocation9 + $0x1c]]
    %v1544 = vstv %s1543
    %v1545 = vmul.f32 %v1523, %v1544
    %v1546 = vmul.f32 %v1525, %v1544
    %1549 = vrot.lane.b32.xlu0 %v1545, 127
    %v1550 = vpop.permute.xlu0 %1549
    %1551 = vrot.lane.b32.xlu0 %v1546, 127
    %v1552 = vpop.permute.xlu0 %1551
    %v1555 = vadd.f32 %v1529, %v1550
    %v1556 = vadd.f32 %v1530, %v1552
    %s1557 = sld [smem:[#allocation9 + $0x1d]]
    %v1558 = vstv %s1557
    %v1559 = vmul.f32 %v1523, %v1558
    %v1560 = vmul.f32 %v1525, %v1558
    %1563 = vrot.lane.b32.xlu0 %v1559, 127
    %v1564 = vpop.permute.xlu0 %1563
    %1565 = vrot.lane.b32.xlu0 %v1560, 127
    %v1566 = vpop.permute.xlu0 %1565
    %v1569 = vadd.f32 %v1533, %v1564
    %v1570 = vadd.f32 %v1534, %v1566
    %s1571 = sld [smem:[#allocation9 + $0x1e]]
    %v1572 = vstv %s1571
    %v1573 = vmul.f32 %v1523, %v1572
    %v1574 = vmul.f32 %v1525, %v1572
    %1577 = vrot.lane.b32.xlu0 %v1573, 127
    %v1578 = vpop.permute.xlu0 %1577
    %1579 = vrot.lane.b32.xlu0 %v1574, 127
    %v1580 = vpop.permute.xlu0 %1579
    %v1583 = vadd.f32 %v1537, %v1578
    %v1584 = vadd.f32 %v1538, %v1580
    %s1585 = sld [smem:[#allocation9 + $0x1f]]
    %v1586 = vstv %s1585
    %v1587 = vmul.f32 %v1523, %v1586
    %v1588 = vmul.f32 %v1525, %v1586
    %1591 = vrot.lane.b32.xlu0 %v1587, 127
    %v1592 = vpop.permute.xlu0 %1591
    %1593 = vrot.lane.b32.xlu0 %v1588, 127
    %v1594 = vpop.permute.xlu0 %1593
    %v1597 = vadd.f32 %v1541, %v1592
    %v1598 = vadd.f32 %v1542, %v1594
    %s1599 = sld [smem:[#allocation9 + $0x38]]
    %v1600 = vstv %s1599
    %v1601 = vmul.f32 %v1523, %v1600
    %v1602 = vmul.f32 %v1525, %v1600
    %1605 = vrot.lane.b32.xlu0 %v1601, 126
    %v1606 = vpop.permute.xlu0 %1605
    %1607 = vrot.lane.b32.xlu0 %v1602, 126
    %v1608 = vpop.permute.xlu0 %1607
    %v1611 = vadd.f32 %v1555, %v1606
    %v1612 = vadd.f32 %v1556, %v1608
    %s1613 = sld [smem:[#allocation9 + $0x39]]
    %v1614 = vstv %s1613
    %v1615 = vmul.f32 %v1523, %v1614
    %v1616 = vmul.f32 %v1525, %v1614
    %1619 = vrot.lane.b32.xlu0 %v1615, 126
    %v1620 = vpop.permute.xlu0 %1619
    %1621 = vrot.lane.b32.xlu0 %v1616, 126
    %v1622 = vpop.permute.xlu0 %1621
    %v1625 = vadd.f32 %v1569, %v1620
    %v1626 = vadd.f32 %v1570, %v1622
    %s1627 = sld [smem:[#allocation9 + $0x3a]]
    %v1628 = vstv %s1627
    %v1629 = vmul.f32 %v1523, %v1628
    %v1630 = vmul.f32 %v1525, %v1628
    %1633 = vrot.lane.b32.xlu0 %v1629, 126
    %v1634 = vpop.permute.xlu0 %1633
    %1635 = vrot.lane.b32.xlu0 %v1630, 126
    %v1636 = vpop.permute.xlu0 %1635
    %v1639 = vadd.f32 %v1583, %v1634
    %v1640 = vadd.f32 %v1584, %v1636
    %s1641 = sld [smem:[#allocation9 + $0x3b]]
    %v1642 = vstv %s1641
    %v1643 = vmul.f32 %v1523, %v1642
    %v1644 = vmul.f32 %v1525, %v1642
    %1647 = vrot.lane.b32.xlu0 %v1643, 126
    %v1648 = vpop.permute.xlu0 %1647
    %1649 = vrot.lane.b32.xlu0 %v1644, 126
    %v1650 = vpop.permute.xlu0 %1649
    %v1653 = vadd.f32 %v1597, %v1648
    %v1654 = vadd.f32 %v1598, %v1650
    %s1655 = sld [smem:[#allocation9 + $0x54]]
    %v1656 = vstv %s1655
    %v1657 = vmul.f32 %v1523, %v1656
    %v1658 = vmul.f32 %v1524, %v1656
    %v1659 = vmul.f32 %v1525, %v1656
    %v1660 = vmul.f32 %v1526, %v1656
    %vm1665 = vcmask 1046528
    %v1666 = vrot.slane %v1657, 1
    %v1667 = vrot.slane %v1658, 1
    %v1668 = vsel %vm1665, %v1666, %v1667
    %v1669 = vrot.slane %v1659, 1
    %v1670 = vrot.slane %v1660, 1
    %v1671 = vsel %vm1665, %v1669, %v1670
    %v1674 = vadd.f32 %v1611, %v1668
    %v1675 = vadd.f32 %v1612, %v1671
    %s1676 = sld [smem:[#allocation9 + $0x55]]
    %v1677 = vstv %s1676
    %v1678 = vmul.f32 %v1523, %v1677
    %v1679 = vmul.f32 %v1524, %v1677
    %v1680 = vmul.f32 %v1525, %v1677
    %v1681 = vmul.f32 %v1526, %v1677
    %v1686 = vrot.slane %v1678, 1
    %v1687 = vrot.slane %v1679, 1
    %v1688 = vsel %vm1665, %v1686, %v1687
    %v1689 = vrot.slane %v1680, 1
    %v1690 = vrot.slane %v1681, 1
    %v1691 = vsel %vm1665, %v1689, %v1690
    %v1694 = vadd.f32 %v1625, %v1688
    %v1695 = vadd.f32 %v1626, %v1691
    %s1696 = sld [smem:[#allocation9 + $0x56]]
    %v1697 = vstv %s1696
    %v1698 = vmul.f32 %v1523, %v1697
    %v1699 = vmul.f32 %v1524, %v1697
    %v1700 = vmul.f32 %v1525, %v1697
    %v1701 = vmul.f32 %v1526, %v1697
    %v1706 = vrot.slane %v1698, 1
    %v1707 = vrot.slane %v1699, 1
    %v1708 = vsel %vm1665, %v1706, %v1707
    %v1709 = vrot.slane %v1700, 1
    %v1710 = vrot.slane %v1701, 1
    %v1711 = vsel %vm1665, %v1709, %v1710
    %v1714 = vadd.f32 %v1639, %v1708
    %v1715 = vadd.f32 %v1640, %v1711
    %s1716 = sld [smem:[#allocation9 + $0x57]]
    %v1717 = vstv %s1716
    %v1718 = vmul.f32 %v1523, %v1717
    %v1719 = vmul.f32 %v1524, %v1717
    %v1720 = vmul.f32 %v1525, %v1717
    %v1721 = vmul.f32 %v1526, %v1717
    %v1726 = vrot.slane %v1718, 1
    %v1727 = vrot.slane %v1719, 1
    %v1728 = vsel %vm1665, %v1726, %v1727
    %v1729 = vrot.slane %v1720, 1
    %v1730 = vrot.slane %v1721, 1
    %v1731 = vsel %vm1665, %v1729, %v1730
    %v1734 = vadd.f32 %v1653, %v1728
    %v1735 = vadd.f32 %v1654, %v1731
    %s1736 = sld [smem:[#allocation9 + $0x70]]
    %v1737 = vstv %s1736
    %v1738 = vmul.f32 %v1523, %v1737
    %v1739 = vmul.f32 %v1524, %v1737
    %v1740 = vmul.f32 %v1525, %v1737
    %v1741 = vmul.f32 %v1526, %v1737
    %v1746 = vrot.slane %v1738, 1
    %v1747 = vrot.slane %v1739, 1
    %v1748 = vsel %vm1665, %v1746, %v1747
    %v1749 = vrot.slane %v1740, 1
    %v1750 = vrot.slane %v1741, 1
    %v1751 = vsel %vm1665, %v1749, %v1750
    %1752 = vrot.lane.b32.xlu0 %v1748, 127
    %v1753 = vpop.permute.xlu0 %1752
    %1754 = vrot.lane.b32.xlu0 %v1751, 127
    %v1755 = vpop.permute.xlu0 %1754
    %v1758 = vadd.f32 %v1674, %v1753
    %v1759 = vadd.f32 %v1675, %v1755
    %s1760 = sld [smem:[#allocation9 + $0x71]]
    %v1761 = vstv %s1760
    %v1762 = vmul.f32 %v1523, %v1761
    %v1763 = vmul.f32 %v1524, %v1761
    %v1764 = vmul.f32 %v1525, %v1761
    %v1765 = vmul.f32 %v1526, %v1761
    %v1770 = vrot.slane %v1762, 1
    %v1771 = vrot.slane %v1763, 1
    %v1772 = vsel %vm1665, %v1770, %v1771
    %v1773 = vrot.slane %v1764, 1
    %v1774 = vrot.slane %v1765, 1
    %v1775 = vsel %vm1665, %v1773, %v1774
    %1776 = vrot.lane.b32.xlu0 %v1772, 127
    %v1777 = vpop.permute.xlu0 %1776
    %1778 = vrot.lane.b32.xlu0 %v1775, 127
    %v1779 = vpop.permute.xlu0 %1778
    %v1782 = vadd.f32 %v1694, %v1777
    %v1783 = vadd.f32 %v1695, %v1779
    %s1784 = sld [smem:[#allocation9 + $0x72]]
    %v1785 = vstv %s1784
    %v1786 = vmul.f32 %v1523, %v1785
    %v1787 = vmul.f32 %v1524, %v1785
    %v1788 = vmul.f32 %v1525, %v1785
    %v1789 = vmul.f32 %v1526, %v1785
    %v1794 = vrot.slane %v1786, 1
    %v1795 = vrot.slane %v1787, 1
    %v1796 = vsel %vm1665, %v1794, %v1795
    %v1797 = vrot.slane %v1788, 1
    %v1798 = vrot.slane %v1789, 1
    %v1799 = vsel %vm1665, %v1797, %v1798
    %1800 = vrot.lane.b32.xlu0 %v1796, 127
    %v1801 = vpop.permute.xlu0 %1800
    %1802 = vrot.lane.b32.xlu0 %v1799, 127
    %v1803 = vpop.permute.xlu0 %1802
    %v1806 = vadd.f32 %v1714, %v1801
    %v1807 = vadd.f32 %v1715, %v1803
    %s1808 = sld [smem:[#allocation9 + $0x73]]
    %v1809 = vstv %s1808
    %v1810 = vmul.f32 %v1523, %v1809
    %v1811 = vmul.f32 %v1524, %v1809
    %v1812 = vmul.f32 %v1525, %v1809
    %v1813 = vmul.f32 %v1526, %v1809
    %v1818 = vrot.slane %v1810, 1
    %v1819 = vrot.slane %v1811, 1
    %v1820 = vsel %vm1665, %v1818, %v1819
    %v1821 = vrot.slane %v1812, 1
    %v1822 = vrot.slane %v1813, 1
    %v1823 = vsel %vm1665, %v1821, %v1822
    %1824 = vrot.lane.b32.xlu0 %v1820, 127
    %v1825 = vpop.permute.xlu0 %1824
    %1826 = vrot.lane.b32.xlu0 %v1823, 127
    %v1827 = vpop.permute.xlu0 %1826
    %v1830 = vadd.f32 %v1734, %v1825
    %v1831 = vadd.f32 %v1735, %v1827
    %s1832 = sld [smem:[#allocation9 + $0x8c]]
    %v1833 = vstv %s1832
    %v1834 = vmul.f32 %v1523, %v1833
    %v1835 = vmul.f32 %v1524, %v1833
    %v1836 = vmul.f32 %v1525, %v1833
    %v1837 = vmul.f32 %v1526, %v1833
    %v1842 = vrot.slane %v1834, 1
    %v1843 = vrot.slane %v1835, 1
    %v1844 = vsel %vm1665, %v1842, %v1843
    %v1845 = vrot.slane %v1836, 1
    %v1846 = vrot.slane %v1837, 1
    %v1847 = vsel %vm1665, %v1845, %v1846
    %1848 = vrot.lane.b32.xlu0 %v1844, 126
    %v1849 = vpop.permute.xlu0 %1848
    %1850 = vrot.lane.b32.xlu0 %v1847, 126
    %v1851 = vpop.permute.xlu0 %1850
    %v1854 = vadd.f32 %v1758, %v1849
    %v1855 = vadd.f32 %v1759, %v1851
    %s1856 = sld [smem:[#allocation9 + $0x8d]]
    %v1857 = vstv %s1856
    %v1858 = vmul.f32 %v1523, %v1857
    %v1859 = vmul.f32 %v1524, %v1857
    %v1860 = vmul.f32 %v1525, %v1857
    %v1861 = vmul.f32 %v1526, %v1857
    %v1866 = vrot.slane %v1858, 1
    %v1867 = vrot.slane %v1859, 1
    %v1868 = vsel %vm1665, %v1866, %v1867
    %v1869 = vrot.slane %v1860, 1
    %v1870 = vrot.slane %v1861, 1
    %v1871 = vsel %vm1665, %v1869, %v1870
    %1872 = vrot.lane.b32.xlu0 %v1868, 126
    %v1873 = vpop.permute.xlu0 %1872
    %1874 = vrot.lane.b32.xlu0 %v1871, 126
    %v1875 = vpop.permute.xlu0 %1874
    %v1878 = vadd.f32 %v1782, %v1873
    %v1879 = vadd.f32 %v1783, %v1875
    %s1880 = sld [smem:[#allocation9 + $0x8e]]
    %v1881 = vstv %s1880
    %v1882 = vmul.f32 %v1523, %v1881
    %v1883 = vmul.f32 %v1524, %v1881
    %v1884 = vmul.f32 %v1525, %v1881
    %v1885 = vmul.f32 %v1526, %v1881
    %v1890 = vrot.slane %v1882, 1
    %v1891 = vrot.slane %v1883, 1
    %v1892 = vsel %vm1665, %v1890, %v1891
    %v1893 = vrot.slane %v1884, 1
    %v1894 = vrot.slane %v1885, 1
    %v1895 = vsel %vm1665, %v1893, %v1894
    %1896 = vrot.lane.b32.xlu0 %v1892, 126
    %v1897 = vpop.permute.xlu0 %1896
    %1898 = vrot.lane.b32.xlu0 %v1895, 126
    %v1899 = vpop.permute.xlu0 %1898
    %v1902 = vadd.f32 %v1806, %v1897
    %v1903 = vadd.f32 %v1807, %v1899
    %s1904 = sld [smem:[#allocation9 + $0x8f]]
    %v1905 = vstv %s1904
    %v1906 = vmul.f32 %v1523, %v1905
    %v1907 = vmul.f32 %v1524, %v1905
    %v1908 = vmul.f32 %v1525, %v1905
    %v1909 = vmul.f32 %v1526, %v1905
    %v1914 = vrot.slane %v1906, 1
    %v1915 = vrot.slane %v1907, 1
    %v1916 = vsel %vm1665, %v1914, %v1915
    %v1917 = vrot.slane %v1908, 1
    %v1918 = vrot.slane %v1909, 1
    %v1919 = vsel %vm1665, %v1917, %v1918
    %1920 = vrot.lane.b32.xlu0 %v1916, 126
    %v1921 = vpop.permute.xlu0 %1920
    %1922 = vrot.lane.b32.xlu0 %v1919, 126
    %v1923 = vpop.permute.xlu0 %1922
    %v1926 = vadd.f32 %v1830, %v1921
    %v1927 = vadd.f32 %v1831, %v1923
    %s1928 = sld [smem:[#allocation9 + $0xa8]]
    %v1929 = vstv %s1928
    %v1930 = vmul.f32 %v1523, %v1929
    %v1931 = vmul.f32 %v1524, %v1929
    %v1932 = vmul.f32 %v1525, %v1929
    %v1933 = vmul.f32 %v1526, %v1929
    %vm1938 = vcmask 1045504
    %v1939 = vrot.slane %v1930, 2
    %v1940 = vrot.slane %v1931, 2
    %v1941 = vsel %vm1938, %v1939, %v1940
    %v1942 = vrot.slane %v1932, 2
    %v1943 = vrot.slane %v1933, 2
    %v1944 = vsel %vm1938, %v1942, %v1943
    %v1947 = vadd.f32 %v1854, %v1941
    %v1948 = vadd.f32 %v1855, %v1944
    %s1949 = sld [smem:[#allocation9 + $0xa9]]
    %v1950 = vstv %s1949
    %v1951 = vmul.f32 %v1523, %v1950
    %v1952 = vmul.f32 %v1524, %v1950
    %v1953 = vmul.f32 %v1525, %v1950
    %v1954 = vmul.f32 %v1526, %v1950
    %v1959 = vrot.slane %v1951, 2
    %v1960 = vrot.slane %v1952, 2
    %v1961 = vsel %vm1938, %v1959, %v1960
    %v1962 = vrot.slane %v1953, 2
    %v1963 = vrot.slane %v1954, 2
    %v1964 = vsel %vm1938, %v1962, %v1963
    %v1967 = vadd.f32 %v1878, %v1961
    %v1968 = vadd.f32 %v1879, %v1964
    %s1969 = sld [smem:[#allocation9 + $0xaa]]
    %v1970 = vstv %s1969
    %v1971 = vmul.f32 %v1523, %v1970
    %v1972 = vmul.f32 %v1524, %v1970
    %v1973 = vmul.f32 %v1525, %v1970
    %v1974 = vmul.f32 %v1526, %v1970
    %v1979 = vrot.slane %v1971, 2
    %v1980 = vrot.slane %v1972, 2
    %v1981 = vsel %vm1938, %v1979, %v1980
    %v1982 = vrot.slane %v1973, 2
    %v1983 = vrot.slane %v1974, 2
    %v1984 = vsel %vm1938, %v1982, %v1983
    %v1987 = vadd.f32 %v1902, %v1981
    %v1988 = vadd.f32 %v1903, %v1984
    %s1989 = sld [smem:[#allocation9 + $0xab]]
    %v1990 = vstv %s1989
    %v1991 = vmul.f32 %v1523, %v1990
    %v1992 = vmul.f32 %v1524, %v1990
    %v1993 = vmul.f32 %v1525, %v1990
    %v1994 = vmul.f32 %v1526, %v1990
    %v1999 = vrot.slane %v1991, 2
    %v2000 = vrot.slane %v1992, 2
    %v2001 = vsel %vm1938, %v1999, %v2000
    %v2002 = vrot.slane %v1993, 2
    %v2003 = vrot.slane %v1994, 2
    %v2004 = vsel %vm1938, %v2002, %v2003
    %v2007 = vadd.f32 %v1926, %v2001
    %v2008 = vadd.f32 %v1927, %v2004
    %s2009 = sld [smem:[#allocation9 + $0xc4]]
    %v2010 = vstv %s2009
    %v2011 = vmul.f32 %v1523, %v2010
    %v2012 = vmul.f32 %v1524, %v2010
    %v2013 = vmul.f32 %v1525, %v2010
    %v2014 = vmul.f32 %v1526, %v2010
    %v2019 = vrot.slane %v2011, 2
    %v2020 = vrot.slane %v2012, 2
    %v2021 = vsel %vm1938, %v2019, %v2020
    %v2022 = vrot.slane %v2013, 2
    %v2023 = vrot.slane %v2014, 2
    %v2024 = vsel %vm1938, %v2022, %v2023
    %2025 = vrot.lane.b32.xlu0 %v2021, 127
    %v2026 = vpop.permute.xlu0 %2025
    %2027 = vrot.lane.b32.xlu0 %v2024, 127
    %v2028 = vpop.permute.xlu0 %2027
    %v2031 = vadd.f32 %v1947, %v2026
    %v2032 = vadd.f32 %v1948, %v2028
    %s2033 = sld [smem:[#allocation9 + $0xc5]]
    %v2034 = vstv %s2033
    %v2035 = vmul.f32 %v1523, %v2034
    %v2036 = vmul.f32 %v1524, %v2034
    %v2037 = vmul.f32 %v1525, %v2034
    %v2038 = vmul.f32 %v1526, %v2034
    %v2043 = vrot.slane %v2035, 2
    %v2044 = vrot.slane %v2036, 2
    %v2045 = vsel %vm1938, %v2043, %v2044
    %v2046 = vrot.slane %v2037, 2
    %v2047 = vrot.slane %v2038, 2
    %v2048 = vsel %vm1938, %v2046, %v2047
    %2049 = vrot.lane.b32.xlu0 %v2045, 127
    %v2050 = vpop.permute.xlu0 %2049
    %2051 = vrot.lane.b32.xlu0 %v2048, 127
    %v2052 = vpop.permute.xlu0 %2051
    %v2055 = vadd.f32 %v1967, %v2050
    %v2056 = vadd.f32 %v1968, %v2052
    %s2057 = sld [smem:[#allocation9 + $0xc6]]
    %v2058 = vstv %s2057
    %v2059 = vmul.f32 %v1523, %v2058
    %v2060 = vmul.f32 %v1524, %v2058
    %v2061 = vmul.f32 %v1525, %v2058
    %v2062 = vmul.f32 %v1526, %v2058
    %v2067 = vrot.slane %v2059, 2
    %v2068 = vrot.slane %v2060, 2
    %v2069 = vsel %vm1938, %v2067, %v2068
    %v2070 = vrot.slane %v2061, 2
    %v2071 = vrot.slane %v2062, 2
    %v2072 = vsel %vm1938, %v2070, %v2071
    %2073 = vrot.lane.b32.xlu0 %v2069, 127
    %v2074 = vpop.permute.xlu0 %2073
    %2075 = vrot.lane.b32.xlu0 %v2072, 127
    %v2076 = vpop.permute.xlu0 %2075
    %v2079 = vadd.f32 %v1987, %v2074
    %v2080 = vadd.f32 %v1988, %v2076
    %s2081 = sld [smem:[#allocation9 + $0xc7]]
    %v2082 = vstv %s2081
    %v2083 = vmul.f32 %v1523, %v2082
    %v2084 = vmul.f32 %v1524, %v2082
    %v2085 = vmul.f32 %v1525, %v2082
    %v2086 = vmul.f32 %v1526, %v2082
    %v2091 = vrot.slane %v2083, 2
    %v2092 = vrot.slane %v2084, 2
    %v2093 = vsel %vm1938, %v2091, %v2092
    %v2094 = vrot.slane %v2085, 2
    %v2095 = vrot.slane %v2086, 2
    %v2096 = vsel %vm1938, %v2094, %v2095
    %2097 = vrot.lane.b32.xlu0 %v2093, 127
    %v2098 = vpop.permute.xlu0 %2097
    %2099 = vrot.lane.b32.xlu0 %v2096, 127
    %v2100 = vpop.permute.xlu0 %2099
    %v2103 = vadd.f32 %v2007, %v2098
    %v2104 = vadd.f32 %v2008, %v2100
    %s2105 = sld [smem:[#allocation9 + $0xe0]]
    %v2106 = vstv %s2105
    %v2107 = vmul.f32 %v1523, %v2106
    %v2108 = vmul.f32 %v1524, %v2106
    %v2109 = vmul.f32 %v1525, %v2106
    %v2110 = vmul.f32 %v1526, %v2106
    %v2115 = vrot.slane %v2107, 2
    %v2116 = vrot.slane %v2108, 2
    %v2117 = vsel %vm1938, %v2115, %v2116
    %v2118 = vrot.slane %v2109, 2
    %v2119 = vrot.slane %v2110, 2
    %v2120 = vsel %vm1938, %v2118, %v2119
    %2121 = vrot.lane.b32.xlu0 %v2117, 126
    %v2122 = vpop.permute.xlu0 %2121
    %2123 = vrot.lane.b32.xlu0 %v2120, 126
    %v2124 = vpop.permute.xlu0 %2123
    %v2127 = vadd.f32 %v2031, %v2122
    %v2128 = vadd.f32 %v2032, %v2124
    %s2129 = sld [smem:[#allocation9 + $0xe1]]
    %v2130 = vstv %s2129
    %v2131 = vmul.f32 %v1523, %v2130
    %v2132 = vmul.f32 %v1524, %v2130
    %v2133 = vmul.f32 %v1525, %v2130
    %v2134 = vmul.f32 %v1526, %v2130
    %v2139 = vrot.slane %v2131, 2
    %v2140 = vrot.slane %v2132, 2
    %v2141 = vsel %vm1938, %v2139, %v2140
    %v2142 = vrot.slane %v2133, 2
    %v2143 = vrot.slane %v2134, 2
    %v2144 = vsel %vm1938, %v2142, %v2143
    %2145 = vrot.lane.b32.xlu0 %v2141, 126
    %v2146 = vpop.permute.xlu0 %2145
    %2147 = vrot.lane.b32.xlu0 %v2144, 126
    %v2148 = vpop.permute.xlu0 %2147
    %v2151 = vadd.f32 %v2055, %v2146
    %v2152 = vadd.f32 %v2056, %v2148
    %s2153 = sld [smem:[#allocation9 + $0xe2]]
    %v2154 = vstv %s2153
    %v2155 = vmul.f32 %v1523, %v2154
    %v2156 = vmul.f32 %v1524, %v2154
    %v2157 = vmul.f32 %v1525, %v2154
    %v2158 = vmul.f32 %v1526, %v2154
    %v2163 = vrot.slane %v2155, 2
    %v2164 = vrot.slane %v2156, 2
    %v2165 = vsel %vm1938, %v2163, %v2164
    %v2166 = vrot.slane %v2157, 2
    %v2167 = vrot.slane %v2158, 2
    %v2168 = vsel %vm1938, %v2166, %v2167
    %2169 = vrot.lane.b32.xlu0 %v2165, 126
    %v2170 = vpop.permute.xlu0 %2169
    %2171 = vrot.lane.b32.xlu0 %v2168, 126
    %v2172 = vpop.permute.xlu0 %2171
    %v2175 = vadd.f32 %v2079, %v2170
    %v2176 = vadd.f32 %v2080, %v2172
    %s2177 = sld [smem:[#allocation9 + $0xe3]]
    %v2178 = vstv %s2177
    %v2179 = vmul.f32 %v1523, %v2178
    %v2180 = vmul.f32 %v1524, %v2178
    %v2181 = vmul.f32 %v1525, %v2178
    %v2182 = vmul.f32 %v1526, %v2178
    %v2187 = vrot.slane %v2179, 2
    %v2188 = vrot.slane %v2180, 2
    %v2189 = vsel %vm1938, %v2187, %v2188
    %v2190 = vrot.slane %v2181, 2
    %v2191 = vrot.slane %v2182, 2
    %v2192 = vsel %vm1938, %v2190, %v2191
    %2193 = vrot.lane.b32.xlu0 %v2189, 126
    %v2194 = vpop.permute.xlu0 %2193
    %2195 = vrot.lane.b32.xlu0 %v2192, 126
    %v2196 = vpop.permute.xlu0 %2195
    %v2199 = vadd.f32 %v2103, %v2194
    %v2200 = vadd.f32 %v2104, %v2196
    %s2201 = scalar_lea.vmem [#allocation2], 16
    %v2202 = vld [vmem:[%s2201] sm:$0xff]
    %v2203 = vld [vmem:[%s2201 + $0x8] sm:$0x3]
    %v2204 = vld [vmem:[%s2201 + $0x70] sm:$0xff]
    %v2205 = vld [vmem:[%s2201 + $0x78] sm:$0x3]
    %s2206 = sld [smem:[#allocation9 + $0x4]]
    %v2207 = vstv %s2206
    %v2208 = vmul.f32 %v2202, %v2207
    %v2209 = vmul.f32 %v2204, %v2207
    %v2210 = vadd.f32 %v2127, %v2208
    %v2211 = vadd.f32 %v2128, %v2209
    %s2212 = sld [smem:[#allocation9 + $0x5]]
    %v2213 = vstv %s2212
    %v2214 = vmul.f32 %v2202, %v2213
    %v2215 = vmul.f32 %v2204, %v2213
    %v2216 = vadd.f32 %v2151, %v2214
    %v2217 = vadd.f32 %v2152, %v2215
    %s2218 = sld [smem:[#allocation9 + $0x6]]
    %v2219 = vstv %s2218
    %v2220 = vmul.f32 %v2202, %v2219
    %v2221 = vmul.f32 %v2204, %v2219
    %v2222 = vadd.f32 %v2175, %v2220
    %v2223 = vadd.f32 %v2176, %v2221
    %s2224 = sld [smem:[#allocation9 + $0x7]]
    %v2225 = vstv %s2224
    %v2226 = vmul.f32 %v2202, %v2225
    %v2227 = vmul.f32 %v2204, %v2225
    %v2228 = vadd.f32 %v2199, %v2226
    %v2229 = vadd.f32 %v2200, %v2227
    %s2230 = sld [smem:[#allocation9 + $0x20]]
    %v2231 = vstv %s2230
    %v2232 = vmul.f32 %v2202, %v2231
    %v2233 = vmul.f32 %v2204, %v2231
    %2236 = vrot.lane.b32.xlu0 %v2232, 127
    %v2237 = vpop.permute.xlu0 %2236
    %2238 = vrot.lane.b32.xlu0 %v2233, 127
    %v2239 = vpop.permute.xlu0 %2238
    %v2242 = vadd.f32 %v2210, %v2237
    %v2243 = vadd.f32 %v2211, %v2239
    %s2244 = sld [smem:[#allocation9 + $0x21]]
    %v2245 = vstv %s2244
    %v2246 = vmul.f32 %v2202, %v2245
    %v2247 = vmul.f32 %v2204, %v2245
    %2250 = vrot.lane.b32.xlu0 %v2246, 127
    %v2251 = vpop.permute.xlu0 %2250
    %2252 = vrot.lane.b32.xlu0 %v2247, 127
    %v2253 = vpop.permute.xlu0 %2252
    %v2256 = vadd.f32 %v2216, %v2251
    %v2257 = vadd.f32 %v2217, %v2253
    %s2258 = sld [smem:[#allocation9 + $0x22]]
    %v2259 = vstv %s2258
    %v2260 = vmul.f32 %v2202, %v2259
    %v2261 = vmul.f32 %v2204, %v2259
    %2264 = vrot.lane.b32.xlu0 %v2260, 127
    %v2265 = vpop.permute.xlu0 %2264
    %2266 = vrot.lane.b32.xlu0 %v2261, 127
    %v2267 = vpop.permute.xlu0 %2266
    %v2270 = vadd.f32 %v2222, %v2265
    %v2271 = vadd.f32 %v2223, %v2267
    %s2272 = sld [smem:[#allocation9 + $0x23]]
    %v2273 = vstv %s2272
    %v2274 = vmul.f32 %v2202, %v2273
    %v2275 = vmul.f32 %v2204, %v2273
    %2278 = vrot.lane.b32.xlu0 %v2274, 127
    %v2279 = vpop.permute.xlu0 %2278
    %2280 = vrot.lane.b32.xlu0 %v2275, 127
    %v2281 = vpop.permute.xlu0 %2280
    %v2284 = vadd.f32 %v2228, %v2279
    %v2285 = vadd.f32 %v2229, %v2281
    %s2286 = sld [smem:[#allocation9 + $0x3c]]
    %v2287 = vstv %s2286
    %v2288 = vmul.f32 %v2202, %v2287
    %v2289 = vmul.f32 %v2204, %v2287
    %2292 = vrot.lane.b32.xlu0 %v2288, 126
    %v2293 = vpop.permute.xlu0 %2292
    %2294 = vrot.lane.b32.xlu0 %v2289, 126
    %v2295 = vpop.permute.xlu0 %2294
    %v2298 = vadd.f32 %v2242, %v2293
    %v2299 = vadd.f32 %v2243, %v2295
    %s2300 = sld [smem:[#allocation9 + $0x3d]]
    %v2301 = vstv %s2300
    %v2302 = vmul.f32 %v2202, %v2301
    %v2303 = vmul.f32 %v2204, %v2301
    %2306 = vrot.lane.b32.xlu0 %v2302, 126
    %v2307 = vpop.permute.xlu0 %2306
    %2308 = vrot.lane.b32.xlu0 %v2303, 126
    %v2309 = vpop.permute.xlu0 %2308
    %v2312 = vadd.f32 %v2256, %v2307
    %v2313 = vadd.f32 %v2257, %v2309
    %s2314 = sld [smem:[#allocation9 + $0x3e]]
    %v2315 = vstv %s2314
    %v2316 = vmul.f32 %v2202, %v2315
    %v2317 = vmul.f32 %v2204, %v2315
    %2320 = vrot.lane.b32.xlu0 %v2316, 126
    %v2321 = vpop.permute.xlu0 %2320
    %2322 = vrot.lane.b32.xlu0 %v2317, 126
    %v2323 = vpop.permute.xlu0 %2322
    %v2326 = vadd.f32 %v2270, %v2321
    %v2327 = vadd.f32 %v2271, %v2323
    %s2328 = sld [smem:[#allocation9 + $0x3f]]
    %v2329 = vstv %s2328
    %v2330 = vmul.f32 %v2202, %v2329
    %v2331 = vmul.f32 %v2204, %v2329
    %2334 = vrot.lane.b32.xlu0 %v2330, 126
    %v2335 = vpop.permute.xlu0 %2334
    %2336 = vrot.lane.b32.xlu0 %v2331, 126
    %v2337 = vpop.permute.xlu0 %2336
    %v2340 = vadd.f32 %v2284, %v2335
    %v2341 = vadd.f32 %v2285, %v2337
    %s2342 = sld [smem:[#allocation9 + $0x58]]
    %v2343 = vstv %s2342
    %v2344 = vmul.f32 %v2202, %v2343
    %v2345 = vmul.f32 %v2203, %v2343
    %v2346 = vmul.f32 %v2204, %v2343
    %v2347 = vmul.f32 %v2205, %v2343
    %v2352 = vrot.slane %v2344, 1
    %v2353 = vrot.slane %v2345, 1
    %v2354 = vsel %vm1665, %v2352, %v2353
    %v2355 = vrot.slane %v2346, 1
    %v2356 = vrot.slane %v2347, 1
    %v2357 = vsel %vm1665, %v2355, %v2356
    %v2360 = vadd.f32 %v2298, %v2354
    %v2361 = vadd.f32 %v2299, %v2357
    %s2362 = sld [smem:[#allocation9 + $0x59]]
    %v2363 = vstv %s2362
    %v2364 = vmul.f32 %v2202, %v2363
    %v2365 = vmul.f32 %v2203, %v2363
    %v2366 = vmul.f32 %v2204, %v2363
    %v2367 = vmul.f32 %v2205, %v2363
    %v2372 = vrot.slane %v2364, 1
    %v2373 = vrot.slane %v2365, 1
    %v2374 = vsel %vm1665, %v2372, %v2373
    %v2375 = vrot.slane %v2366, 1
    %v2376 = vrot.slane %v2367, 1
    %v2377 = vsel %vm1665, %v2375, %v2376
    %v2380 = vadd.f32 %v2312, %v2374
    %v2381 = vadd.f32 %v2313, %v2377
    %s2382 = sld [smem:[#allocation9 + $0x5a]]
    %v2383 = vstv %s2382
    %v2384 = vmul.f32 %v2202, %v2383
    %v2385 = vmul.f32 %v2203, %v2383
    %v2386 = vmul.f32 %v2204, %v2383
    %v2387 = vmul.f32 %v2205, %v2383
    %v2392 = vrot.slane %v2384, 1
    %v2393 = vrot.slane %v2385, 1
    %v2394 = vsel %vm1665, %v2392, %v2393
    %v2395 = vrot.slane %v2386, 1
    %v2396 = vrot.slane %v2387, 1
    %v2397 = vsel %vm1665, %v2395, %v2396
    %v2400 = vadd.f32 %v2326, %v2394
    %v2401 = vadd.f32 %v2327, %v2397
    %s2402 = sld [smem:[#allocation9 + $0x5b]]
    %v2403 = vstv %s2402
    %v2404 = vmul.f32 %v2202, %v2403
    %v2405 = vmul.f32 %v2203, %v2403
    %v2406 = vmul.f32 %v2204, %v2403
    %v2407 = vmul.f32 %v2205, %v2403
    %v2412 = vrot.slane %v2404, 1
    %v2413 = vrot.slane %v2405, 1
    %v2414 = vsel %vm1665, %v2412, %v2413
    %v2415 = vrot.slane %v2406, 1
    %v2416 = vrot.slane %v2407, 1
    %v2417 = vsel %vm1665, %v2415, %v2416
    %v2420 = vadd.f32 %v2340, %v2414
    %v2421 = vadd.f32 %v2341, %v2417
    %s2422 = sld [smem:[#allocation9 + $0x74]]
    %v2423 = vstv %s2422
    %v2424 = vmul.f32 %v2202, %v2423
    %v2425 = vmul.f32 %v2203, %v2423
    %v2426 = vmul.f32 %v2204, %v2423
    %v2427 = vmul.f32 %v2205, %v2423
    %v2432 = vrot.slane %v2424, 1
    %v2433 = vrot.slane %v2425, 1
    %v2434 = vsel %vm1665, %v2432, %v2433
    %v2435 = vrot.slane %v2426, 1
    %v2436 = vrot.slane %v2427, 1
    %v2437 = vsel %vm1665, %v2435, %v2436
    %2438 = vrot.lane.b32.xlu0 %v2434, 127
    %v2439 = vpop.permute.xlu0 %2438
    %2440 = vrot.lane.b32.xlu0 %v2437, 127
    %v2441 = vpop.permute.xlu0 %2440
    %v2444 = vadd.f32 %v2360, %v2439
    %v2445 = vadd.f32 %v2361, %v2441
    %s2446 = sld [smem:[#allocation9 + $0x75]]
    %v2447 = vstv %s2446
    %v2448 = vmul.f32 %v2202, %v2447
    %v2449 = vmul.f32 %v2203, %v2447
    %v2450 = vmul.f32 %v2204, %v2447
    %v2451 = vmul.f32 %v2205, %v2447
    %v2456 = vrot.slane %v2448, 1
    %v2457 = vrot.slane %v2449, 1
    %v2458 = vsel %vm1665, %v2456, %v2457
    %v2459 = vrot.slane %v2450, 1
    %v2460 = vrot.slane %v2451, 1
    %v2461 = vsel %vm1665, %v2459, %v2460
    %2462 = vrot.lane.b32.xlu0 %v2458, 127
    %v2463 = vpop.permute.xlu0 %2462
    %2464 = vrot.lane.b32.xlu0 %v2461, 127
    %v2465 = vpop.permute.xlu0 %2464
    %v2468 = vadd.f32 %v2380, %v2463
    %v2469 = vadd.f32 %v2381, %v2465
    %s2470 = sld [smem:[#allocation9 + $0x76]]
    %v2471 = vstv %s2470
    %v2472 = vmul.f32 %v2202, %v2471
    %v2473 = vmul.f32 %v2203, %v2471
    %v2474 = vmul.f32 %v2204, %v2471
    %v2475 = vmul.f32 %v2205, %v2471
    %v2480 = vrot.slane %v2472, 1
    %v2481 = vrot.slane %v2473, 1
    %v2482 = vsel %vm1665, %v2480, %v2481
    %v2483 = vrot.slane %v2474, 1
    %v2484 = vrot.slane %v2475, 1
    %v2485 = vsel %vm1665, %v2483, %v2484
    %2486 = vrot.lane.b32.xlu0 %v2482, 127
    %v2487 = vpop.permute.xlu0 %2486
    %2488 = vrot.lane.b32.xlu0 %v2485, 127
    %v2489 = vpop.permute.xlu0 %2488
    %v2492 = vadd.f32 %v2400, %v2487
    %v2493 = vadd.f32 %v2401, %v2489
    %s2494 = sld [smem:[#allocation9 + $0x77]]
    %v2495 = vstv %s2494
    %v2496 = vmul.f32 %v2202, %v2495
    %v2497 = vmul.f32 %v2203, %v2495
    %v2498 = vmul.f32 %v2204, %v2495
    %v2499 = vmul.f32 %v2205, %v2495
    %v2504 = vrot.slane %v2496, 1
    %v2505 = vrot.slane %v2497, 1
    %v2506 = vsel %vm1665, %v2504, %v2505
    %v2507 = vrot.slane %v2498, 1
    %v2508 = vrot.slane %v2499, 1
    %v2509 = vsel %vm1665, %v2507, %v2508
    %2510 = vrot.lane.b32.xlu0 %v2506, 127
    %v2511 = vpop.permute.xlu0 %2510
    %2512 = vrot.lane.b32.xlu0 %v2509, 127
    %v2513 = vpop.permute.xlu0 %2512
    %v2516 = vadd.f32 %v2420, %v2511
    %v2517 = vadd.f32 %v2421, %v2513
    %s2518 = sld [smem:[#allocation9 + $0x90]]
    %v2519 = vstv %s2518
    %v2520 = vmul.f32 %v2202, %v2519
    %v2521 = vmul.f32 %v2203, %v2519
    %v2522 = vmul.f32 %v2204, %v2519
    %v2523 = vmul.f32 %v2205, %v2519
    %v2528 = vrot.slane %v2520, 1
    %v2529 = vrot.slane %v2521, 1
    %v2530 = vsel %vm1665, %v2528, %v2529
    %v2531 = vrot.slane %v2522, 1
    %v2532 = vrot.slane %v2523, 1
    %v2533 = vsel %vm1665, %v2531, %v2532
    %2534 = vrot.lane.b32.xlu0 %v2530, 126
    %v2535 = vpop.permute.xlu0 %2534
    %2536 = vrot.lane.b32.xlu0 %v2533, 126
    %v2537 = vpop.permute.xlu0 %2536
    %v2540 = vadd.f32 %v2444, %v2535
    %v2541 = vadd.f32 %v2445, %v2537
    %s2542 = sld [smem:[#allocation9 + $0x91]]
    %v2543 = vstv %s2542
    %v2544 = vmul.f32 %v2202, %v2543
    %v2545 = vmul.f32 %v2203, %v2543
    %v2546 = vmul.f32 %v2204, %v2543
    %v2547 = vmul.f32 %v2205, %v2543
    %v2552 = vrot.slane %v2544, 1
    %v2553 = vrot.slane %v2545, 1
    %v2554 = vsel %vm1665, %v2552, %v2553
    %v2555 = vrot.slane %v2546, 1
    %v2556 = vrot.slane %v2547, 1
    %v2557 = vsel %vm1665, %v2555, %v2556
    %2558 = vrot.lane.b32.xlu0 %v2554, 126
    %v2559 = vpop.permute.xlu0 %2558
    %2560 = vrot.lane.b32.xlu0 %v2557, 126
    %v2561 = vpop.permute.xlu0 %2560
    %v2564 = vadd.f32 %v2468, %v2559
    %v2565 = vadd.f32 %v2469, %v2561
    %s2566 = sld [smem:[#allocation9 + $0x92]]
    %v2567 = vstv %s2566
    %v2568 = vmul.f32 %v2202, %v2567
    %v2569 = vmul.f32 %v2203, %v2567
    %v2570 = vmul.f32 %v2204, %v2567
    %v2571 = vmul.f32 %v2205, %v2567
    %v2576 = vrot.slane %v2568, 1
    %v2577 = vrot.slane %v2569, 1
    %v2578 = vsel %vm1665, %v2576, %v2577
    %v2579 = vrot.slane %v2570, 1
    %v2580 = vrot.slane %v2571, 1
    %v2581 = vsel %vm1665, %v2579, %v2580
    %2582 = vrot.lane.b32.xlu0 %v2578, 126
    %v2583 = vpop.permute.xlu0 %2582
    %2584 = vrot.lane.b32.xlu0 %v2581, 126
    %v2585 = vpop.permute.xlu0 %2584
    %v2588 = vadd.f32 %v2492, %v2583
    %v2589 = vadd.f32 %v2493, %v2585
    %s2590 = sld [smem:[#allocation9 + $0x93]]
    %v2591 = vstv %s2590
    %v2592 = vmul.f32 %v2202, %v2591
    %v2593 = vmul.f32 %v2203, %v2591
    %v2594 = vmul.f32 %v2204, %v2591
    %v2595 = vmul.f32 %v2205, %v2591
    %v2600 = vrot.slane %v2592, 1
    %v2601 = vrot.slane %v2593, 1
    %v2602 = vsel %vm1665, %v2600, %v2601
    %v2603 = vrot.slane %v2594, 1
    %v2604 = vrot.slane %v2595, 1
    %v2605 = vsel %vm1665, %v2603, %v2604
    %2606 = vrot.lane.b32.xlu0 %v2602, 126
    %v2607 = vpop.permute.xlu0 %2606
    %2608 = vrot.lane.b32.xlu0 %v2605, 126
    %v2609 = vpop.permute.xlu0 %2608
    %v2612 = vadd.f32 %v2516, %v2607
    %v2613 = vadd.f32 %v2517, %v2609
    %s2614 = sld [smem:[#allocation9 + $0xac]]
    %v2615 = vstv %s2614
    %v2616 = vmul.f32 %v2202, %v2615
    %v2617 = vmul.f32 %v2203, %v2615
    %v2618 = vmul.f32 %v2204, %v2615
    %v2619 = vmul.f32 %v2205, %v2615
    %v2624 = vrot.slane %v2616, 2
    %v2625 = vrot.slane %v2617, 2
    %v2626 = vsel %vm1938, %v2624, %v2625
    %v2627 = vrot.slane %v2618, 2
    %v2628 = vrot.slane %v2619, 2
    %v2629 = vsel %vm1938, %v2627, %v2628
    %v2632 = vadd.f32 %v2540, %v2626
    %v2633 = vadd.f32 %v2541, %v2629
    %s2634 = sld [smem:[#allocation9 + $0xad]]
    %v2635 = vstv %s2634
    %v2636 = vmul.f32 %v2202, %v2635
    %v2637 = vmul.f32 %v2203, %v2635
    %v2638 = vmul.f32 %v2204, %v2635
    %v2639 = vmul.f32 %v2205, %v2635
    %v2644 = vrot.slane %v2636, 2
    %v2645 = vrot.slane %v2637, 2
    %v2646 = vsel %vm1938, %v2644, %v2645
    %v2647 = vrot.slane %v2638, 2
    %v2648 = vrot.slane %v2639, 2
    %v2649 = vsel %vm1938, %v2647, %v2648
    %v2652 = vadd.f32 %v2564, %v2646
    %v2653 = vadd.f32 %v2565, %v2649
    %s2654 = sld [smem:[#allocation9 + $0xae]]
    %v2655 = vstv %s2654
    %v2656 = vmul.f32 %v2202, %v2655
    %v2657 = vmul.f32 %v2203, %v2655
    %v2658 = vmul.f32 %v2204, %v2655
    %v2659 = vmul.f32 %v2205, %v2655
    %v2664 = vrot.slane %v2656, 2
    %v2665 = vrot.slane %v2657, 2
    %v2666 = vsel %vm1938, %v2664, %v2665
    %v2667 = vrot.slane %v2658, 2
    %v2668 = vrot.slane %v2659, 2
    %v2669 = vsel %vm1938, %v2667, %v2668
    %v2672 = vadd.f32 %v2588, %v2666
    %v2673 = vadd.f32 %v2589, %v2669
    %s2674 = sld [smem:[#allocation9 + $0xaf]]
    %v2675 = vstv %s2674
    %v2676 = vmul.f32 %v2202, %v2675
    %v2677 = vmul.f32 %v2203, %v2675
    %v2678 = vmul.f32 %v2204, %v2675
    %v2679 = vmul.f32 %v2205, %v2675
    %v2684 = vrot.slane %v2676, 2
    %v2685 = vrot.slane %v2677, 2
    %v2686 = vsel %vm1938, %v2684, %v2685
    %v2687 = vrot.slane %v2678, 2
    %v2688 = vrot.slane %v2679, 2
    %v2689 = vsel %vm1938, %v2687, %v2688
    %v2692 = vadd.f32 %v2612, %v2686
    %v2693 = vadd.f32 %v2613, %v2689
    %s2694 = sld [smem:[#allocation9 + $0xc8]]
    %v2695 = vstv %s2694
    %v2696 = vmul.f32 %v2202, %v2695
    %v2697 = vmul.f32 %v2203, %v2695
    %v2698 = vmul.f32 %v2204, %v2695
    %v2699 = vmul.f32 %v2205, %v2695
    %v2704 = vrot.slane %v2696, 2
    %v2705 = vrot.slane %v2697, 2
    %v2706 = vsel %vm1938, %v2704, %v2705
    %v2707 = vrot.slane %v2698, 2
    %v2708 = vrot.slane %v2699, 2
    %v2709 = vsel %vm1938, %v2707, %v2708
    %2710 = vrot.lane.b32.xlu0 %v2706, 127
    %v2711 = vpop.permute.xlu0 %2710
    %2712 = vrot.lane.b32.xlu0 %v2709, 127
    %v2713 = vpop.permute.xlu0 %2712
    %v2716 = vadd.f32 %v2632, %v2711
    %v2717 = vadd.f32 %v2633, %v2713
    %s2718 = sld [smem:[#allocation9 + $0xc9]]
    %v2719 = vstv %s2718
    %v2720 = vmul.f32 %v2202, %v2719
    %v2721 = vmul.f32 %v2203, %v2719
    %v2722 = vmul.f32 %v2204, %v2719
    %v2723 = vmul.f32 %v2205, %v2719
    %v2728 = vrot.slane %v2720, 2
    %v2729 = vrot.slane %v2721, 2
    %v2730 = vsel %vm1938, %v2728, %v2729
    %v2731 = vrot.slane %v2722, 2
    %v2732 = vrot.slane %v2723, 2
    %v2733 = vsel %vm1938, %v2731, %v2732
    %2734 = vrot.lane.b32.xlu0 %v2730, 127
    %v2735 = vpop.permute.xlu0 %2734
    %2736 = vrot.lane.b32.xlu0 %v2733, 127
    %v2737 = vpop.permute.xlu0 %2736
    %v2740 = vadd.f32 %v2652, %v2735
    %v2741 = vadd.f32 %v2653, %v2737
    %s2742 = sld [smem:[#allocation9 + $0xca]]
    %v2743 = vstv %s2742
    %v2744 = vmul.f32 %v2202, %v2743
    %v2745 = vmul.f32 %v2203, %v2743
    %v2746 = vmul.f32 %v2204, %v2743
    %v2747 = vmul.f32 %v2205, %v2743
    %v2752 = vrot.slane %v2744, 2
    %v2753 = vrot.slane %v2745, 2
    %v2754 = vsel %vm1938, %v2752, %v2753
    %v2755 = vrot.slane %v2746, 2
    %v2756 = vrot.slane %v2747, 2
    %v2757 = vsel %vm1938, %v2755, %v2756
    %2758 = vrot.lane.b32.xlu0 %v2754, 127
    %v2759 = vpop.permute.xlu0 %2758
    %2760 = vrot.lane.b32.xlu0 %v2757, 127
    %v2761 = vpop.permute.xlu0 %2760
    %v2764 = vadd.f32 %v2672, %v2759
    %v2765 = vadd.f32 %v2673, %v2761
    %s2766 = sld [smem:[#allocation9 + $0xcb]]
    %v2767 = vstv %s2766
    %v2768 = vmul.f32 %v2202, %v2767
    %v2769 = vmul.f32 %v2203, %v2767
    %v2770 = vmul.f32 %v2204, %v2767
    %v2771 = vmul.f32 %v2205, %v2767
    %v2776 = vrot.slane %v2768, 2
    %v2777 = vrot.slane %v2769, 2
    %v2778 = vsel %vm1938, %v2776, %v2777
    %v2779 = vrot.slane %v2770, 2
    %v2780 = vrot.slane %v2771, 2
    %v2781 = vsel %vm1938, %v2779, %v2780
    %2782 = vrot.lane.b32.xlu0 %v2778, 127
    %v2783 = vpop.permute.xlu0 %2782
    %2784 = vrot.lane.b32.xlu0 %v2781, 127
    %v2785 = vpop.permute.xlu0 %2784
    %v2788 = vadd.f32 %v2692, %v2783
    %v2789 = vadd.f32 %v2693, %v2785
    %s2790 = sld [smem:[#allocation9 + $0xe4]]
    %v2791 = vstv %s2790
    %v2792 = vmul.f32 %v2202, %v2791
    %v2793 = vmul.f32 %v2203, %v2791
    %v2794 = vmul.f32 %v2204, %v2791
    %v2795 = vmul.f32 %v2205, %v2791
    %v2800 = vrot.slane %v2792, 2
    %v2801 = vrot.slane %v2793, 2
    %v2802 = vsel %vm1938, %v2800, %v2801
    %v2803 = vrot.slane %v2794, 2
    %v2804 = vrot.slane %v2795, 2
    %v2805 = vsel %vm1938, %v2803, %v2804
    %2806 = vrot.lane.b32.xlu0 %v2802, 126
    %v2807 = vpop.permute.xlu0 %2806
    %2808 = vrot.lane.b32.xlu0 %v2805, 126
    %v2809 = vpop.permute.xlu0 %2808
    %v2812 = vadd.f32 %v2716, %v2807
    %v2813 = vadd.f32 %v2717, %v2809
    %s2814 = sld [smem:[#allocation9 + $0xe5]]
    %v2815 = vstv %s2814
    %v2816 = vmul.f32 %v2202, %v2815
    %v2817 = vmul.f32 %v2203, %v2815
    %v2818 = vmul.f32 %v2204, %v2815
    %v2819 = vmul.f32 %v2205, %v2815
    %v2824 = vrot.slane %v2816, 2
    %v2825 = vrot.slane %v2817, 2
    %v2826 = vsel %vm1938, %v2824, %v2825
    %v2827 = vrot.slane %v2818, 2
    %v2828 = vrot.slane %v2819, 2
    %v2829 = vsel %vm1938, %v2827, %v2828
    %2830 = vrot.lane.b32.xlu0 %v2826, 126
    %v2831 = vpop.permute.xlu0 %2830
    %2832 = vrot.lane.b32.xlu0 %v2829, 126
    %v2833 = vpop.permute.xlu0 %2832
    %v2836 = vadd.f32 %v2740, %v2831
    %v2837 = vadd.f32 %v2741, %v2833
    %s2838 = sld [smem:[#allocation9 + $0xe6]]
    %v2839 = vstv %s2838
    %v2840 = vmul.f32 %v2202, %v2839
    %v2841 = vmul.f32 %v2203, %v2839
    %v2842 = vmul.f32 %v2204, %v2839
    %v2843 = vmul.f32 %v2205, %v2839
    %v2848 = vrot.slane %v2840, 2
    %v2849 = vrot.slane %v2841, 2
    %v2850 = vsel %vm1938, %v2848, %v2849
    %v2851 = vrot.slane %v2842, 2
    %v2852 = vrot.slane %v2843, 2
    %v2853 = vsel %vm1938, %v2851, %v2852
    %2854 = vrot.lane.b32.xlu0 %v2850, 126
    %v2855 = vpop.permute.xlu0 %2854
    %2856 = vrot.lane.b32.xlu0 %v2853, 126
    %v2857 = vpop.permute.xlu0 %2856
    %v2860 = vadd.f32 %v2764, %v2855
    %v2861 = vadd.f32 %v2765, %v2857
    %s2862 = sld [smem:[#allocation9 + $0xe7]]
    %v2863 = vstv %s2862
    %v2864 = vmul.f32 %v2202, %v2863
    %v2865 = vmul.f32 %v2203, %v2863
    %v2866 = vmul.f32 %v2204, %v2863
    %v2867 = vmul.f32 %v2205, %v2863
    %v2872 = vrot.slane %v2864, 2
    %v2873 = vrot.slane %v2865, 2
    %v2874 = vsel %vm1938, %v2872, %v2873
    %v2875 = vrot.slane %v2866, 2
    %v2876 = vrot.slane %v2867, 2
    %v2877 = vsel %vm1938, %v2875, %v2876
    %2878 = vrot.lane.b32.xlu0 %v2874, 126
    %v2879 = vpop.permute.xlu0 %2878
    %2880 = vrot.lane.b32.xlu0 %v2877, 126
    %v2881 = vpop.permute.xlu0 %2880
    %v2884 = vadd.f32 %v2788, %v2879
    %v2885 = vadd.f32 %v2789, %v2881
    %s2886 = scalar_lea.vmem [#allocation2], 32
    %v2887 = vld [vmem:[%s2886] sm:$0xff]
    %v2888 = vld [vmem:[%s2886 + $0x8] sm:$0x3]
    %v2889 = vld [vmem:[%s2886 + $0x70] sm:$0xff]
    %v2890 = vld [vmem:[%s2886 + $0x78] sm:$0x3]
    %s2891 = sld [smem:[#allocation9 + $0x8]]
    %v2892 = vstv %s2891
    %v2893 = vmul.f32 %v2887, %v2892
    %v2894 = vmul.f32 %v2889, %v2892
    %v2895 = vadd.f32 %v2812, %v2893
    %v2896 = vadd.f32 %v2813, %v2894
    %s2897 = sld [smem:[#allocation9 + $0x9]]
    %v2898 = vstv %s2897
    %v2899 = vmul.f32 %v2887, %v2898
    %v2900 = vmul.f32 %v2889, %v2898
    %v2901 = vadd.f32 %v2836, %v2899
    %v2902 = vadd.f32 %v2837, %v2900
    %s2903 = sld [smem:[#allocation9 + $0xa]]
    %v2904 = vstv %s2903
    %v2905 = vmul.f32 %v2887, %v2904
    %v2906 = vmul.f32 %v2889, %v2904
    %v2907 = vadd.f32 %v2860, %v2905
    %v2908 = vadd.f32 %v2861, %v2906
    %s2909 = sld [smem:[#allocation9 + $0xb]]
    %v2910 = vstv %s2909
    %v2911 = vmul.f32 %v2887, %v2910
    %v2912 = vmul.f32 %v2889, %v2910
    %v2913 = vadd.f32 %v2884, %v2911
    %v2914 = vadd.f32 %v2885, %v2912
    %s2915 = sld [smem:[#allocation9 + $0x24]]
    %v2916 = vstv %s2915
    %v2917 = vmul.f32 %v2887, %v2916
    %v2918 = vmul.f32 %v2889, %v2916
    %2921 = vrot.lane.b32.xlu0 %v2917, 127
    %v2922 = vpop.permute.xlu0 %2921
    %2923 = vrot.lane.b32.xlu0 %v2918, 127
    %v2924 = vpop.permute.xlu0 %2923
    %v2927 = vadd.f32 %v2895, %v2922
    %v2928 = vadd.f32 %v2896, %v2924
    %s2929 = sld [smem:[#allocation9 + $0x25]]
    %v2930 = vstv %s2929
    %v2931 = vmul.f32 %v2887, %v2930
    %v2932 = vmul.f32 %v2889, %v2930
    %2935 = vrot.lane.b32.xlu0 %v2931, 127
    %v2936 = vpop.permute.xlu0 %2935
    %2937 = vrot.lane.b32.xlu0 %v2932, 127
    %v2938 = vpop.permute.xlu0 %2937
    %v2941 = vadd.f32 %v2901, %v2936
    %v2942 = vadd.f32 %v2902, %v2938
    %s2943 = sld [smem:[#allocation9 + $0x26]]
    %v2944 = vstv %s2943
    %v2945 = vmul.f32 %v2887, %v2944
    %v2946 = vmul.f32 %v2889, %v2944
    %2949 = vrot.lane.b32.xlu0 %v2945, 127
    %v2950 = vpop.permute.xlu0 %2949
    %2951 = vrot.lane.b32.xlu0 %v2946, 127
    %v2952 = vpop.permute.xlu0 %2951
    %v2955 = vadd.f32 %v2907, %v2950
    %v2956 = vadd.f32 %v2908, %v2952
    %s2957 = sld [smem:[#allocation9 + $0x27]]
    %v2958 = vstv %s2957
    %v2959 = vmul.f32 %v2887, %v2958
    %v2960 = vmul.f32 %v2889, %v2958
    %2963 = vrot.lane.b32.xlu0 %v2959, 127
    %v2964 = vpop.permute.xlu0 %2963
    %2965 = vrot.lane.b32.xlu0 %v2960, 127
    %v2966 = vpop.permute.xlu0 %2965
    %v2969 = vadd.f32 %v2913, %v2964
    %v2970 = vadd.f32 %v2914, %v2966
    %s2971 = sld [smem:[#allocation9 + $0x40]]
    %v2972 = vstv %s2971
    %v2973 = vmul.f32 %v2887, %v2972
    %v2974 = vmul.f32 %v2889, %v2972
    %2977 = vrot.lane.b32.xlu0 %v2973, 126
    %v2978 = vpop.permute.xlu0 %2977
    %2979 = vrot.lane.b32.xlu0 %v2974, 126
    %v2980 = vpop.permute.xlu0 %2979
    %v2983 = vadd.f32 %v2927, %v2978
    %v2984 = vadd.f32 %v2928, %v2980
    %s2985 = sld [smem:[#allocation9 + $0x41]]
    %v2986 = vstv %s2985
    %v2987 = vmul.f32 %v2887, %v2986
    %v2988 = vmul.f32 %v2889, %v2986
    %2991 = vrot.lane.b32.xlu0 %v2987, 126
    %v2992 = vpop.permute.xlu0 %2991
    %2993 = vrot.lane.b32.xlu0 %v2988, 126
    %v2994 = vpop.permute.xlu0 %2993
    %v2997 = vadd.f32 %v2941, %v2992
    %v2998 = vadd.f32 %v2942, %v2994
    %s2999 = sld [smem:[#allocation9 + $0x42]]
    %v3000 = vstv %s2999
    %v3001 = vmul.f32 %v2887, %v3000
    %v3002 = vmul.f32 %v2889, %v3000
    %3005 = vrot.lane.b32.xlu0 %v3001, 126
    %v3006 = vpop.permute.xlu0 %3005
    %3007 = vrot.lane.b32.xlu0 %v3002, 126
    %v3008 = vpop.permute.xlu0 %3007
    %v3011 = vadd.f32 %v2955, %v3006
    %v3012 = vadd.f32 %v2956, %v3008
    %s3013 = sld [smem:[#allocation9 + $0x43]]
    %v3014 = vstv %s3013
    %v3015 = vmul.f32 %v2887, %v3014
    %v3016 = vmul.f32 %v2889, %v3014
    %3019 = vrot.lane.b32.xlu0 %v3015, 126
    %v3020 = vpop.permute.xlu0 %3019
    %3021 = vrot.lane.b32.xlu0 %v3016, 126
    %v3022 = vpop.permute.xlu0 %3021
    %v3025 = vadd.f32 %v2969, %v3020
    %v3026 = vadd.f32 %v2970, %v3022
    %s3027 = sld [smem:[#allocation9 + $0x5c]]
    %v3028 = vstv %s3027
    %v3029 = vmul.f32 %v2887, %v3028
    %v3030 = vmul.f32 %v2888, %v3028
    %v3031 = vmul.f32 %v2889, %v3028
    %v3032 = vmul.f32 %v2890, %v3028
    %v3037 = vrot.slane %v3029, 1
    %v3038 = vrot.slane %v3030, 1
    %v3039 = vsel %vm1665, %v3037, %v3038
    %v3040 = vrot.slane %v3031, 1
    %v3041 = vrot.slane %v3032, 1
    %v3042 = vsel %vm1665, %v3040, %v3041
    %v3045 = vadd.f32 %v2983, %v3039
    %v3046 = vadd.f32 %v2984, %v3042
    %s3047 = sld [smem:[#allocation9 + $0x5d]]
    %v3048 = vstv %s3047
    %v3049 = vmul.f32 %v2887, %v3048
    %v3050 = vmul.f32 %v2888, %v3048
    %v3051 = vmul.f32 %v2889, %v3048
    %v3052 = vmul.f32 %v2890, %v3048
    %v3057 = vrot.slane %v3049, 1
    %v3058 = vrot.slane %v3050, 1
    %v3059 = vsel %vm1665, %v3057, %v3058
    %v3060 = vrot.slane %v3051, 1
    %v3061 = vrot.slane %v3052, 1
    %v3062 = vsel %vm1665, %v3060, %v3061
    %v3065 = vadd.f32 %v2997, %v3059
    %v3066 = vadd.f32 %v2998, %v3062
    %s3067 = sld [smem:[#allocation9 + $0x5e]]
    %v3068 = vstv %s3067
    %v3069 = vmul.f32 %v2887, %v3068
    %v3070 = vmul.f32 %v2888, %v3068
    %v3071 = vmul.f32 %v2889, %v3068
    %v3072 = vmul.f32 %v2890, %v3068
    %v3077 = vrot.slane %v3069, 1
    %v3078 = vrot.slane %v3070, 1
    %v3079 = vsel %vm1665, %v3077, %v3078
    %v3080 = vrot.slane %v3071, 1
    %v3081 = vrot.slane %v3072, 1
    %v3082 = vsel %vm1665, %v3080, %v3081
    %v3085 = vadd.f32 %v3011, %v3079
    %v3086 = vadd.f32 %v3012, %v3082
    %s3087 = sld [smem:[#allocation9 + $0x5f]]
    %v3088 = vstv %s3087
    %v3089 = vmul.f32 %v2887, %v3088
    %v3090 = vmul.f32 %v2888, %v3088
    %v3091 = vmul.f32 %v2889, %v3088
    %v3092 = vmul.f32 %v2890, %v3088
    %v3097 = vrot.slane %v3089, 1
    %v3098 = vrot.slane %v3090, 1
    %v3099 = vsel %vm1665, %v3097, %v3098
    %v3100 = vrot.slane %v3091, 1
    %v3101 = vrot.slane %v3092, 1
    %v3102 = vsel %vm1665, %v3100, %v3101
    %v3105 = vadd.f32 %v3025, %v3099
    %v3106 = vadd.f32 %v3026, %v3102
    %s3107 = sld [smem:[#allocation9 + $0x78]]
    %v3108 = vstv %s3107
    %v3109 = vmul.f32 %v2887, %v3108
    %v3110 = vmul.f32 %v2888, %v3108
    %v3111 = vmul.f32 %v2889, %v3108
    %v3112 = vmul.f32 %v2890, %v3108
    %v3117 = vrot.slane %v3109, 1
    %v3118 = vrot.slane %v3110, 1
    %v3119 = vsel %vm1665, %v3117, %v3118
    %v3120 = vrot.slane %v3111, 1
    %v3121 = vrot.slane %v3112, 1
    %v3122 = vsel %vm1665, %v3120, %v3121
    %3123 = vrot.lane.b32.xlu0 %v3119, 127
    %v3124 = vpop.permute.xlu0 %3123
    %3125 = vrot.lane.b32.xlu0 %v3122, 127
    %v3126 = vpop.permute.xlu0 %3125
    %v3129 = vadd.f32 %v3045, %v3124
    %v3130 = vadd.f32 %v3046, %v3126
    %s3131 = sld [smem:[#allocation9 + $0x79]]
    %v3132 = vstv %s3131
    %v3133 = vmul.f32 %v2887, %v3132
    %v3134 = vmul.f32 %v2888, %v3132
    %v3135 = vmul.f32 %v2889, %v3132
    %v3136 = vmul.f32 %v2890, %v3132
    %v3141 = vrot.slane %v3133, 1
    %v3142 = vrot.slane %v3134, 1
    %v3143 = vsel %vm1665, %v3141, %v3142
    %v3144 = vrot.slane %v3135, 1
    %v3145 = vrot.slane %v3136, 1
    %v3146 = vsel %vm1665, %v3144, %v3145
    %3147 = vrot.lane.b32.xlu0 %v3143, 127
    %v3148 = vpop.permute.xlu0 %3147
    %3149 = vrot.lane.b32.xlu0 %v3146, 127
    %v3150 = vpop.permute.xlu0 %3149
    %v3153 = vadd.f32 %v3065, %v3148
    %v3154 = vadd.f32 %v3066, %v3150
    %s3155 = sld [smem:[#allocation9 + $0x7a]]
    %v3156 = vstv %s3155
    %v3157 = vmul.f32 %v2887, %v3156
    %v3158 = vmul.f32 %v2888, %v3156
    %v3159 = vmul.f32 %v2889, %v3156
    %v3160 = vmul.f32 %v2890, %v3156
    %v3165 = vrot.slane %v3157, 1
    %v3166 = vrot.slane %v3158, 1
    %v3167 = vsel %vm1665, %v3165, %v3166
    %v3168 = vrot.slane %v3159, 1
    %v3169 = vrot.slane %v3160, 1
    %v3170 = vsel %vm1665, %v3168, %v3169
    %3171 = vrot.lane.b32.xlu0 %v3167, 127
    %v3172 = vpop.permute.xlu0 %3171
    %3173 = vrot.lane.b32.xlu0 %v3170, 127
    %v3174 = vpop.permute.xlu0 %3173
    %v3177 = vadd.f32 %v3085, %v3172
    %v3178 = vadd.f32 %v3086, %v3174
    %s3179 = sld [smem:[#allocation9 + $0x7b]]
    %v3180 = vstv %s3179
    %v3181 = vmul.f32 %v2887, %v3180
    %v3182 = vmul.f32 %v2888, %v3180
    %v3183 = vmul.f32 %v2889, %v3180
    %v3184 = vmul.f32 %v2890, %v3180
    %v3189 = vrot.slane %v3181, 1
    %v3190 = vrot.slane %v3182, 1
    %v3191 = vsel %vm1665, %v3189, %v3190
    %v3192 = vrot.slane %v3183, 1
    %v3193 = vrot.slane %v3184, 1
    %v3194 = vsel %vm1665, %v3192, %v3193
    %3195 = vrot.lane.b32.xlu0 %v3191, 127
    %v3196 = vpop.permute.xlu0 %3195
    %3197 = vrot.lane.b32.xlu0 %v3194, 127
    %v3198 = vpop.permute.xlu0 %3197
    %v3201 = vadd.f32 %v3105, %v3196
    %v3202 = vadd.f32 %v3106, %v3198
    %s3203 = sld [smem:[#allocation9 + $0x94]]
    %v3204 = vstv %s3203
    %v3205 = vmul.f32 %v2887, %v3204
    %v3206 = vmul.f32 %v2888, %v3204
    %v3207 = vmul.f32 %v2889, %v3204
    %v3208 = vmul.f32 %v2890, %v3204
    %v3213 = vrot.slane %v3205, 1
    %v3214 = vrot.slane %v3206, 1
    %v3215 = vsel %vm1665, %v3213, %v3214
    %v3216 = vrot.slane %v3207, 1
    %v3217 = vrot.slane %v3208, 1
    %v3218 = vsel %vm1665, %v3216, %v3217
    %3219 = vrot.lane.b32.xlu0 %v3215, 126
    %v3220 = vpop.permute.xlu0 %3219
    %3221 = vrot.lane.b32.xlu0 %v3218, 126
    %v3222 = vpop.permute.xlu0 %3221
    %v3225 = vadd.f32 %v3129, %v3220
    %v3226 = vadd.f32 %v3130, %v3222
    %s3227 = sld [smem:[#allocation9 + $0x95]]
    %v3228 = vstv %s3227
    %v3229 = vmul.f32 %v2887, %v3228
    %v3230 = vmul.f32 %v2888, %v3228
    %v3231 = vmul.f32 %v2889, %v3228
    %v3232 = vmul.f32 %v2890, %v3228
    %v3237 = vrot.slane %v3229, 1
    %v3238 = vrot.slane %v3230, 1
    %v3239 = vsel %vm1665, %v3237, %v3238
    %v3240 = vrot.slane %v3231, 1
    %v3241 = vrot.slane %v3232, 1
    %v3242 = vsel %vm1665, %v3240, %v3241
    %3243 = vrot.lane.b32.xlu0 %v3239, 126
    %v3244 = vpop.permute.xlu0 %3243
    %3245 = vrot.lane.b32.xlu0 %v3242, 126
    %v3246 = vpop.permute.xlu0 %3245
    %v3249 = vadd.f32 %v3153, %v3244
    %v3250 = vadd.f32 %v3154, %v3246
    %s3251 = sld [smem:[#allocation9 + $0x96]]
    %v3252 = vstv %s3251
    %v3253 = vmul.f32 %v2887, %v3252
    %v3254 = vmul.f32 %v2888, %v3252
    %v3255 = vmul.f32 %v2889, %v3252
    %v3256 = vmul.f32 %v2890, %v3252
    %v3261 = vrot.slane %v3253, 1
    %v3262 = vrot.slane %v3254, 1
    %v3263 = vsel %vm1665, %v3261, %v3262
    %v3264 = vrot.slane %v3255, 1
    %v3265 = vrot.slane %v3256, 1
    %v3266 = vsel %vm1665, %v3264, %v3265
    %3267 = vrot.lane.b32.xlu0 %v3263, 126
    %v3268 = vpop.permute.xlu0 %3267
    %3269 = vrot.lane.b32.xlu0 %v3266, 126
    %v3270 = vpop.permute.xlu0 %3269
    %v3273 = vadd.f32 %v3177, %v3268
    %v3274 = vadd.f32 %v3178, %v3270
    %s3275 = sld [smem:[#allocation9 + $0x97]]
    %v3276 = vstv %s3275
    %v3277 = vmul.f32 %v2887, %v3276
    %v3278 = vmul.f32 %v2888, %v3276
    %v3279 = vmul.f32 %v2889, %v3276
    %v3280 = vmul.f32 %v2890, %v3276
    %v3285 = vrot.slane %v3277, 1
    %v3286 = vrot.slane %v3278, 1
    %v3287 = vsel %vm1665, %v3285, %v3286
    %v3288 = vrot.slane %v3279, 1
    %v3289 = vrot.slane %v3280, 1
    %v3290 = vsel %vm1665, %v3288, %v3289
    %3291 = vrot.lane.b32.xlu0 %v3287, 126
    %v3292 = vpop.permute.xlu0 %3291
    %3293 = vrot.lane.b32.xlu0 %v3290, 126
    %v3294 = vpop.permute.xlu0 %3293
    %v3297 = vadd.f32 %v3201, %v3292
    %v3298 = vadd.f32 %v3202, %v3294
    %s3299 = sld [smem:[#allocation9 + $0xb0]]
    %v3300 = vstv %s3299
    %v3301 = vmul.f32 %v2887, %v3300
    %v3302 = vmul.f32 %v2888, %v3300
    %v3303 = vmul.f32 %v2889, %v3300
    %v3304 = vmul.f32 %v2890, %v3300
    %v3309 = vrot.slane %v3301, 2
    %v3310 = vrot.slane %v3302, 2
    %v3311 = vsel %vm1938, %v3309, %v3310
    %v3312 = vrot.slane %v3303, 2
    %v3313 = vrot.slane %v3304, 2
    %v3314 = vsel %vm1938, %v3312, %v3313
    %v3317 = vadd.f32 %v3225, %v3311
    %v3318 = vadd.f32 %v3226, %v3314
    %s3319 = sld [smem:[#allocation9 + $0xb1]]
    %v3320 = vstv %s3319
    %v3321 = vmul.f32 %v2887, %v3320
    %v3322 = vmul.f32 %v2888, %v3320
    %v3323 = vmul.f32 %v2889, %v3320
    %v3324 = vmul.f32 %v2890, %v3320
    %v3329 = vrot.slane %v3321, 2
    %v3330 = vrot.slane %v3322, 2
    %v3331 = vsel %vm1938, %v3329, %v3330
    %v3332 = vrot.slane %v3323, 2
    %v3333 = vrot.slane %v3324, 2
    %v3334 = vsel %vm1938, %v3332, %v3333
    %v3337 = vadd.f32 %v3249, %v3331
    %v3338 = vadd.f32 %v3250, %v3334
    %s3339 = sld [smem:[#allocation9 + $0xb2]]
    %v3340 = vstv %s3339
    %v3341 = vmul.f32 %v2887, %v3340
    %v3342 = vmul.f32 %v2888, %v3340
    %v3343 = vmul.f32 %v2889, %v3340
    %v3344 = vmul.f32 %v2890, %v3340
    %v3349 = vrot.slane %v3341, 2
    %v3350 = vrot.slane %v3342, 2
    %v3351 = vsel %vm1938, %v3349, %v3350
    %v3352 = vrot.slane %v3343, 2
    %v3353 = vrot.slane %v3344, 2
    %v3354 = vsel %vm1938, %v3352, %v3353
    %v3357 = vadd.f32 %v3273, %v3351
    %v3358 = vadd.f32 %v3274, %v3354
    %s3359 = sld [smem:[#allocation9 + $0xb3]]
    %v3360 = vstv %s3359
    %v3361 = vmul.f32 %v2887, %v3360
    %v3362 = vmul.f32 %v2888, %v3360
    %v3363 = vmul.f32 %v2889, %v3360
    %v3364 = vmul.f32 %v2890, %v3360
    %v3369 = vrot.slane %v3361, 2
    %v3370 = vrot.slane %v3362, 2
    %v3371 = vsel %vm1938, %v3369, %v3370
    %v3372 = vrot.slane %v3363, 2
    %v3373 = vrot.slane %v3364, 2
    %v3374 = vsel %vm1938, %v3372, %v3373
    %v3377 = vadd.f32 %v3297, %v3371
    %v3378 = vadd.f32 %v3298, %v3374
    %s3379 = sld [smem:[#allocation9 + $0xcc]]
    %v3380 = vstv %s3379
    %v3381 = vmul.f32 %v2887, %v3380
    %v3382 = vmul.f32 %v2888, %v3380
    %v3383 = vmul.f32 %v2889, %v3380
    %v3384 = vmul.f32 %v2890, %v3380
    %v3389 = vrot.slane %v3381, 2
    %v3390 = vrot.slane %v3382, 2
    %v3391 = vsel %vm1938, %v3389, %v3390
    %v3392 = vrot.slane %v3383, 2
    %v3393 = vrot.slane %v3384, 2
    %v3394 = vsel %vm1938, %v3392, %v3393
    %3395 = vrot.lane.b32.xlu0 %v3391, 127
    %v3396 = vpop.permute.xlu0 %3395
    %3397 = vrot.lane.b32.xlu0 %v3394, 127
    %v3398 = vpop.permute.xlu0 %3397
    %v3401 = vadd.f32 %v3317, %v3396
    %v3402 = vadd.f32 %v3318, %v3398
    %s3403 = sld [smem:[#allocation9 + $0xcd]]
    %v3404 = vstv %s3403
    %v3405 = vmul.f32 %v2887, %v3404
    %v3406 = vmul.f32 %v2888, %v3404
    %v3407 = vmul.f32 %v2889, %v3404
    %v3408 = vmul.f32 %v2890, %v3404
    %v3413 = vrot.slane %v3405, 2
    %v3414 = vrot.slane %v3406, 2
    %v3415 = vsel %vm1938, %v3413, %v3414
    %v3416 = vrot.slane %v3407, 2
    %v3417 = vrot.slane %v3408, 2
    %v3418 = vsel %vm1938, %v3416, %v3417
    %3419 = vrot.lane.b32.xlu0 %v3415, 127
    %v3420 = vpop.permute.xlu0 %3419
    %3421 = vrot.lane.b32.xlu0 %v3418, 127
    %v3422 = vpop.permute.xlu0 %3421
    %v3425 = vadd.f32 %v3337, %v3420
    %v3426 = vadd.f32 %v3338, %v3422
    %s3427 = sld [smem:[#allocation9 + $0xce]]
    %v3428 = vstv %s3427
    %v3429 = vmul.f32 %v2887, %v3428
    %v3430 = vmul.f32 %v2888, %v3428
    %v3431 = vmul.f32 %v2889, %v3428
    %v3432 = vmul.f32 %v2890, %v3428
    %v3437 = vrot.slane %v3429, 2
    %v3438 = vrot.slane %v3430, 2
    %v3439 = vsel %vm1938, %v3437, %v3438
    %v3440 = vrot.slane %v3431, 2
    %v3441 = vrot.slane %v3432, 2
    %v3442 = vsel %vm1938, %v3440, %v3441
    %3443 = vrot.lane.b32.xlu0 %v3439, 127
    %v3444 = vpop.permute.xlu0 %3443
    %3445 = vrot.lane.b32.xlu0 %v3442, 127
    %v3446 = vpop.permute.xlu0 %3445
    %v3449 = vadd.f32 %v3357, %v3444
    %v3450 = vadd.f32 %v3358, %v3446
    %s3451 = sld [smem:[#allocation9 + $0xcf]]
    %v3452 = vstv %s3451
    %v3453 = vmul.f32 %v2887, %v3452
    %v3454 = vmul.f32 %v2888, %v3452
    %v3455 = vmul.f32 %v2889, %v3452
    %v3456 = vmul.f32 %v2890, %v3452
    %v3461 = vrot.slane %v3453, 2
    %v3462 = vrot.slane %v3454, 2
    %v3463 = vsel %vm1938, %v3461, %v3462
    %v3464 = vrot.slane %v3455, 2
    %v3465 = vrot.slane %v3456, 2
    %v3466 = vsel %vm1938, %v3464, %v3465
    %3467 = vrot.lane.b32.xlu0 %v3463, 127
    %v3468 = vpop.permute.xlu0 %3467
    %3469 = vrot.lane.b32.xlu0 %v3466, 127
    %v3470 = vpop.permute.xlu0 %3469
    %v3473 = vadd.f32 %v3377, %v3468
    %v3474 = vadd.f32 %v3378, %v3470
    %s3475 = sld [smem:[#allocation9 + $0xe8]]
    %v3476 = vstv %s3475
    %v3477 = vmul.f32 %v2887, %v3476
    %v3478 = vmul.f32 %v2888, %v3476
    %v3479 = vmul.f32 %v2889, %v3476
    %v3480 = vmul.f32 %v2890, %v3476
    %v3485 = vrot.slane %v3477, 2
    %v3486 = vrot.slane %v3478, 2
    %v3487 = vsel %vm1938, %v3485, %v3486
    %v3488 = vrot.slane %v3479, 2
    %v3489 = vrot.slane %v3480, 2
    %v3490 = vsel %vm1938, %v3488, %v3489
    %3491 = vrot.lane.b32.xlu0 %v3487, 126
    %v3492 = vpop.permute.xlu0 %3491
    %3493 = vrot.lane.b32.xlu0 %v3490, 126
    %v3494 = vpop.permute.xlu0 %3493
    %v3497 = vadd.f32 %v3401, %v3492
    %v3498 = vadd.f32 %v3402, %v3494
    %s3499 = sld [smem:[#allocation9 + $0xe9]]
    %v3500 = vstv %s3499
    %v3501 = vmul.f32 %v2887, %v3500
    %v3502 = vmul.f32 %v2888, %v3500
    %v3503 = vmul.f32 %v2889, %v3500
    %v3504 = vmul.f32 %v2890, %v3500
    %v3509 = vrot.slane %v3501, 2
    %v3510 = vrot.slane %v3502, 2
    %v3511 = vsel %vm1938, %v3509, %v3510
    %v3512 = vrot.slane %v3503, 2
    %v3513 = vrot.slane %v3504, 2
    %v3514 = vsel %vm1938, %v3512, %v3513
    %3515 = vrot.lane.b32.xlu0 %v3511, 126
    %v3516 = vpop.permute.xlu0 %3515
    %3517 = vrot.lane.b32.xlu0 %v3514, 126
    %v3518 = vpop.permute.xlu0 %3517
    %v3521 = vadd.f32 %v3425, %v3516
    %v3522 = vadd.f32 %v3426, %v3518
    %s3523 = sld [smem:[#allocation9 + $0xea]]
    %v3524 = vstv %s3523
    %v3525 = vmul.f32 %v2887, %v3524
    %v3526 = vmul.f32 %v2888, %v3524
    %v3527 = vmul.f32 %v2889, %v3524
    %v3528 = vmul.f32 %v2890, %v3524
    %v3533 = vrot.slane %v3525, 2
    %v3534 = vrot.slane %v3526, 2
    %v3535 = vsel %vm1938, %v3533, %v3534
    %v3536 = vrot.slane %v3527, 2
    %v3537 = vrot.slane %v3528, 2
    %v3538 = vsel %vm1938, %v3536, %v3537
    %3539 = vrot.lane.b32.xlu0 %v3535, 126
    %v3540 = vpop.permute.xlu0 %3539
    %3541 = vrot.lane.b32.xlu0 %v3538, 126
    %v3542 = vpop.permute.xlu0 %3541
    %v3545 = vadd.f32 %v3449, %v3540
    %v3546 = vadd.f32 %v3450, %v3542
    %s3547 = sld [smem:[#allocation9 + $0xeb]]
    %v3548 = vstv %s3547
    %v3549 = vmul.f32 %v2887, %v3548
    %v3550 = vmul.f32 %v2888, %v3548
    %v3551 = vmul.f32 %v2889, %v3548
    %v3552 = vmul.f32 %v2890, %v3548
    %v3557 = vrot.slane %v3549, 2
    %v3558 = vrot.slane %v3550, 2
    %v3559 = vsel %vm1938, %v3557, %v3558
    %v3560 = vrot.slane %v3551, 2
    %v3561 = vrot.slane %v3552, 2
    %v3562 = vsel %vm1938, %v3560, %v3561
    %3563 = vrot.lane.b32.xlu0 %v3559, 126
    %v3564 = vpop.permute.xlu0 %3563
    %3565 = vrot.lane.b32.xlu0 %v3562, 126
    %v3566 = vpop.permute.xlu0 %3565
    %v3569 = vadd.f32 %v3473, %v3564
    %v3570 = vadd.f32 %v3474, %v3566
    %s3571 = scalar_lea.vmem [#allocation2], 48
    %v3572 = vld [vmem:[%s3571] sm:$0xff]
    %v3573 = vld [vmem:[%s3571 + $0x8] sm:$0x3]
    %v3574 = vld [vmem:[%s3571 + $0x70] sm:$0xff]
    %v3575 = vld [vmem:[%s3571 + $0x78] sm:$0x3]
    %s3576 = sld [smem:[#allocation9 + $0xc]]
    %v3577 = vstv %s3576
    %v3578 = vmul.f32 %v3572, %v3577
    %v3579 = vmul.f32 %v3574, %v3577
    %v3580 = vadd.f32 %v3497, %v3578
    %v3581 = vadd.f32 %v3498, %v3579
    %s3582 = sld [smem:[#allocation9 + $0xd]]
    %v3583 = vstv %s3582
    %v3584 = vmul.f32 %v3572, %v3583
    %v3585 = vmul.f32 %v3574, %v3583
    %v3586 = vadd.f32 %v3521, %v3584
    %v3587 = vadd.f32 %v3522, %v3585
    %s3588 = sld [smem:[#allocation9 + $0xe]]
    %v3589 = vstv %s3588
    %v3590 = vmul.f32 %v3572, %v3589
    %v3591 = vmul.f32 %v3574, %v3589
    %v3592 = vadd.f32 %v3545, %v3590
    %v3593 = vadd.f32 %v3546, %v3591
    %s3594 = sld [smem:[#allocation9 + $0xf]]
    %v3595 = vstv %s3594
    %v3596 = vmul.f32 %v3572, %v3595
    %v3597 = vmul.f32 %v3574, %v3595
    %v3598 = vadd.f32 %v3569, %v3596
    %v3599 = vadd.f32 %v3570, %v3597
    %s3600 = sld [smem:[#allocation9 + $0x28]]
    %v3601 = vstv %s3600
    %v3602 = vmul.f32 %v3572, %v3601
    %v3603 = vmul.f32 %v3574, %v3601
    %3606 = vrot.lane.b32.xlu0 %v3602, 127
    %v3607 = vpop.permute.xlu0 %3606
    %3608 = vrot.lane.b32.xlu0 %v3603, 127
    %v3609 = vpop.permute.xlu0 %3608
    %v3612 = vadd.f32 %v3580, %v3607
    %v3613 = vadd.f32 %v3581, %v3609
    %s3614 = sld [smem:[#allocation9 + $0x29]]
    %v3615 = vstv %s3614
    %v3616 = vmul.f32 %v3572, %v3615
    %v3617 = vmul.f32 %v3574, %v3615
    %3620 = vrot.lane.b32.xlu0 %v3616, 127
    %v3621 = vpop.permute.xlu0 %3620
    %3622 = vrot.lane.b32.xlu0 %v3617, 127
    %v3623 = vpop.permute.xlu0 %3622
    %v3626 = vadd.f32 %v3586, %v3621
    %v3627 = vadd.f32 %v3587, %v3623
    %s3628 = sld [smem:[#allocation9 + $0x2a]]
    %v3629 = vstv %s3628
    %v3630 = vmul.f32 %v3572, %v3629
    %v3631 = vmul.f32 %v3574, %v3629
    %3634 = vrot.lane.b32.xlu0 %v3630, 127
    %v3635 = vpop.permute.xlu0 %3634
    %3636 = vrot.lane.b32.xlu0 %v3631, 127
    %v3637 = vpop.permute.xlu0 %3636
    %v3640 = vadd.f32 %v3592, %v3635
    %v3641 = vadd.f32 %v3593, %v3637
    %s3642 = sld [smem:[#allocation9 + $0x2b]]
    %v3643 = vstv %s3642
    %v3644 = vmul.f32 %v3572, %v3643
    %v3645 = vmul.f32 %v3574, %v3643
    %3648 = vrot.lane.b32.xlu0 %v3644, 127
    %v3649 = vpop.permute.xlu0 %3648
    %3650 = vrot.lane.b32.xlu0 %v3645, 127
    %v3651 = vpop.permute.xlu0 %3650
    %v3654 = vadd.f32 %v3598, %v3649
    %v3655 = vadd.f32 %v3599, %v3651
    %s3656 = sld [smem:[#allocation9 + $0x44]]
    %v3657 = vstv %s3656
    %v3658 = vmul.f32 %v3572, %v3657
    %v3659 = vmul.f32 %v3574, %v3657
    %3662 = vrot.lane.b32.xlu0 %v3658, 126
    %v3663 = vpop.permute.xlu0 %3662
    %3664 = vrot.lane.b32.xlu0 %v3659, 126
    %v3665 = vpop.permute.xlu0 %3664
    %v3668 = vadd.f32 %v3612, %v3663
    %v3669 = vadd.f32 %v3613, %v3665
    %s3670 = sld [smem:[#allocation9 + $0x45]]
    %v3671 = vstv %s3670
    %v3672 = vmul.f32 %v3572, %v3671
    %v3673 = vmul.f32 %v3574, %v3671
    %3676 = vrot.lane.b32.xlu0 %v3672, 126
    %v3677 = vpop.permute.xlu0 %3676
    %3678 = vrot.lane.b32.xlu0 %v3673, 126
    %v3679 = vpop.permute.xlu0 %3678
    %v3682 = vadd.f32 %v3626, %v3677
    %v3683 = vadd.f32 %v3627, %v3679
    %s3684 = sld [smem:[#allocation9 + $0x46]]
    %v3685 = vstv %s3684
    %v3686 = vmul.f32 %v3572, %v3685
    %v3687 = vmul.f32 %v3574, %v3685
    %3690 = vrot.lane.b32.xlu0 %v3686, 126
    %v3691 = vpop.permute.xlu0 %3690
    %3692 = vrot.lane.b32.xlu0 %v3687, 126
    %v3693 = vpop.permute.xlu0 %3692
    %v3696 = vadd.f32 %v3640, %v3691
    %v3697 = vadd.f32 %v3641, %v3693
    %s3698 = sld [smem:[#allocation9 + $0x47]]
    %v3699 = vstv %s3698
    %v3700 = vmul.f32 %v3572, %v3699
    %v3701 = vmul.f32 %v3574, %v3699
    %3704 = vrot.lane.b32.xlu0 %v3700, 126
    %v3705 = vpop.permute.xlu0 %3704
    %3706 = vrot.lane.b32.xlu0 %v3701, 126
    %v3707 = vpop.permute.xlu0 %3706
    %v3710 = vadd.f32 %v3654, %v3705
    %v3711 = vadd.f32 %v3655, %v3707
    %s3712 = sld [smem:[#allocation9 + $0x60]]
    %v3713 = vstv %s3712
    %v3714 = vmul.f32 %v3572, %v3713
    %v3715 = vmul.f32 %v3573, %v3713
    %v3716 = vmul.f32 %v3574, %v3713
    %v3717 = vmul.f32 %v3575, %v3713
    %v3722 = vrot.slane %v3714, 1
    %v3723 = vrot.slane %v3715, 1
    %v3724 = vsel %vm1665, %v3722, %v3723
    %v3725 = vrot.slane %v3716, 1
    %v3726 = vrot.slane %v3717, 1
    %v3727 = vsel %vm1665, %v3725, %v3726
    %v3730 = vadd.f32 %v3668, %v3724
    %v3731 = vadd.f32 %v3669, %v3727
    %s3732 = sld [smem:[#allocation9 + $0x61]]
    %v3733 = vstv %s3732
    %v3734 = vmul.f32 %v3572, %v3733
    %v3735 = vmul.f32 %v3573, %v3733
    %v3736 = vmul.f32 %v3574, %v3733
    %v3737 = vmul.f32 %v3575, %v3733
    %v3742 = vrot.slane %v3734, 1
    %v3743 = vrot.slane %v3735, 1
    %v3744 = vsel %vm1665, %v3742, %v3743
    %v3745 = vrot.slane %v3736, 1
    %v3746 = vrot.slane %v3737, 1
    %v3747 = vsel %vm1665, %v3745, %v3746
    %v3750 = vadd.f32 %v3682, %v3744
    %v3751 = vadd.f32 %v3683, %v3747
    %s3752 = sld [smem:[#allocation9 + $0x62]]
    %v3753 = vstv %s3752
    %v3754 = vmul.f32 %v3572, %v3753
    %v3755 = vmul.f32 %v3573, %v3753
    %v3756 = vmul.f32 %v3574, %v3753
    %v3757 = vmul.f32 %v3575, %v3753
    %v3762 = vrot.slane %v3754, 1
    %v3763 = vrot.slane %v3755, 1
    %v3764 = vsel %vm1665, %v3762, %v3763
    %v3765 = vrot.slane %v3756, 1
    %v3766 = vrot.slane %v3757, 1
    %v3767 = vsel %vm1665, %v3765, %v3766
    %v3770 = vadd.f32 %v3696, %v3764
    %v3771 = vadd.f32 %v3697, %v3767
    %s3772 = sld [smem:[#allocation9 + $0x63]]
    %v3773 = vstv %s3772
    %v3774 = vmul.f32 %v3572, %v3773
    %v3775 = vmul.f32 %v3573, %v3773
    %v3776 = vmul.f32 %v3574, %v3773
    %v3777 = vmul.f32 %v3575, %v3773
    %v3782 = vrot.slane %v3774, 1
    %v3783 = vrot.slane %v3775, 1
    %v3784 = vsel %vm1665, %v3782, %v3783
    %v3785 = vrot.slane %v3776, 1
    %v3786 = vrot.slane %v3777, 1
    %v3787 = vsel %vm1665, %v3785, %v3786
    %v3790 = vadd.f32 %v3710, %v3784
    %v3791 = vadd.f32 %v3711, %v3787
    %s3792 = sld [smem:[#allocation9 + $0x7c]]
    %v3793 = vstv %s3792
    %v3794 = vmul.f32 %v3572, %v3793
    %v3795 = vmul.f32 %v3573, %v3793
    %v3796 = vmul.f32 %v3574, %v3793
    %v3797 = vmul.f32 %v3575, %v3793
    %v3802 = vrot.slane %v3794, 1
    %v3803 = vrot.slane %v3795, 1
    %v3804 = vsel %vm1665, %v3802, %v3803
    %v3805 = vrot.slane %v3796, 1
    %v3806 = vrot.slane %v3797, 1
    %v3807 = vsel %vm1665, %v3805, %v3806
    %3808 = vrot.lane.b32.xlu0 %v3804, 127
    %v3809 = vpop.permute.xlu0 %3808
    %3810 = vrot.lane.b32.xlu0 %v3807, 127
    %v3811 = vpop.permute.xlu0 %3810
    %v3814 = vadd.f32 %v3730, %v3809
    %v3815 = vadd.f32 %v3731, %v3811
    %s3816 = sld [smem:[#allocation9 + $0x7d]]
    %v3817 = vstv %s3816
    %v3818 = vmul.f32 %v3572, %v3817
    %v3819 = vmul.f32 %v3573, %v3817
    %v3820 = vmul.f32 %v3574, %v3817
    %v3821 = vmul.f32 %v3575, %v3817
    %v3826 = vrot.slane %v3818, 1
    %v3827 = vrot.slane %v3819, 1
    %v3828 = vsel %vm1665, %v3826, %v3827
    %v3829 = vrot.slane %v3820, 1
    %v3830 = vrot.slane %v3821, 1
    %v3831 = vsel %vm1665, %v3829, %v3830
    %3832 = vrot.lane.b32.xlu0 %v3828, 127
    %v3833 = vpop.permute.xlu0 %3832
    %3834 = vrot.lane.b32.xlu0 %v3831, 127
    %v3835 = vpop.permute.xlu0 %3834
    %v3838 = vadd.f32 %v3750, %v3833
    %v3839 = vadd.f32 %v3751, %v3835
    %s3840 = sld [smem:[#allocation9 + $0x7e]]
    %v3841 = vstv %s3840
    %v3842 = vmul.f32 %v3572, %v3841
    %v3843 = vmul.f32 %v3573, %v3841
    %v3844 = vmul.f32 %v3574, %v3841
    %v3845 = vmul.f32 %v3575, %v3841
    %v3850 = vrot.slane %v3842, 1
    %v3851 = vrot.slane %v3843, 1
    %v3852 = vsel %vm1665, %v3850, %v3851
    %v3853 = vrot.slane %v3844, 1
    %v3854 = vrot.slane %v3845, 1
    %v3855 = vsel %vm1665, %v3853, %v3854
    %3856 = vrot.lane.b32.xlu0 %v3852, 127
    %v3857 = vpop.permute.xlu0 %3856
    %3858 = vrot.lane.b32.xlu0 %v3855, 127
    %v3859 = vpop.permute.xlu0 %3858
    %v3862 = vadd.f32 %v3770, %v3857
    %v3863 = vadd.f32 %v3771, %v3859
    %s3864 = sld [smem:[#allocation9 + $0x7f]]
    %v3865 = vstv %s3864
    %v3866 = vmul.f32 %v3572, %v3865
    %v3867 = vmul.f32 %v3573, %v3865
    %v3868 = vmul.f32 %v3574, %v3865
    %v3869 = vmul.f32 %v3575, %v3865
    %v3874 = vrot.slane %v3866, 1
    %v3875 = vrot.slane %v3867, 1
    %v3876 = vsel %vm1665, %v3874, %v3875
    %v3877 = vrot.slane %v3868, 1
    %v3878 = vrot.slane %v3869, 1
    %v3879 = vsel %vm1665, %v3877, %v3878
    %3880 = vrot.lane.b32.xlu0 %v3876, 127
    %v3881 = vpop.permute.xlu0 %3880
    %3882 = vrot.lane.b32.xlu0 %v3879, 127
    %v3883 = vpop.permute.xlu0 %3882
    %v3886 = vadd.f32 %v3790, %v3881
    %v3887 = vadd.f32 %v3791, %v3883
    %s3888 = sld [smem:[#allocation9 + $0x98]]
    %v3889 = vstv %s3888
    %v3890 = vmul.f32 %v3572, %v3889
    %v3891 = vmul.f32 %v3573, %v3889
    %v3892 = vmul.f32 %v3574, %v3889
    %v3893 = vmul.f32 %v3575, %v3889
    %v3898 = vrot.slane %v3890, 1
    %v3899 = vrot.slane %v3891, 1
    %v3900 = vsel %vm1665, %v3898, %v3899
    %v3901 = vrot.slane %v3892, 1
    %v3902 = vrot.slane %v3893, 1
    %v3903 = vsel %vm1665, %v3901, %v3902
    %3904 = vrot.lane.b32.xlu0 %v3900, 126
    %v3905 = vpop.permute.xlu0 %3904
    %3906 = vrot.lane.b32.xlu0 %v3903, 126
    %v3907 = vpop.permute.xlu0 %3906
    %v3910 = vadd.f32 %v3814, %v3905
    %v3911 = vadd.f32 %v3815, %v3907
    %s3912 = sld [smem:[#allocation9 + $0x99]]
    %v3913 = vstv %s3912
    %v3914 = vmul.f32 %v3572, %v3913
    %v3915 = vmul.f32 %v3573, %v3913
    %v3916 = vmul.f32 %v3574, %v3913
    %v3917 = vmul.f32 %v3575, %v3913
    %v3922 = vrot.slane %v3914, 1
    %v3923 = vrot.slane %v3915, 1
    %v3924 = vsel %vm1665, %v3922, %v3923
    %v3925 = vrot.slane %v3916, 1
    %v3926 = vrot.slane %v3917, 1
    %v3927 = vsel %vm1665, %v3925, %v3926
    %3928 = vrot.lane.b32.xlu0 %v3924, 126
    %v3929 = vpop.permute.xlu0 %3928
    %3930 = vrot.lane.b32.xlu0 %v3927, 126
    %v3931 = vpop.permute.xlu0 %3930
    %v3934 = vadd.f32 %v3838, %v3929
    %v3935 = vadd.f32 %v3839, %v3931
    %s3936 = sld [smem:[#allocation9 + $0x9a]]
    %v3937 = vstv %s3936
    %v3938 = vmul.f32 %v3572, %v3937
    %v3939 = vmul.f32 %v3573, %v3937
    %v3940 = vmul.f32 %v3574, %v3937
    %v3941 = vmul.f32 %v3575, %v3937
    %v3946 = vrot.slane %v3938, 1
    %v3947 = vrot.slane %v3939, 1
    %v3948 = vsel %vm1665, %v3946, %v3947
    %v3949 = vrot.slane %v3940, 1
    %v3950 = vrot.slane %v3941, 1
    %v3951 = vsel %vm1665, %v3949, %v3950
    %3952 = vrot.lane.b32.xlu0 %v3948, 126
    %v3953 = vpop.permute.xlu0 %3952
    %3954 = vrot.lane.b32.xlu0 %v3951, 126
    %v3955 = vpop.permute.xlu0 %3954
    %v3958 = vadd.f32 %v3862, %v3953
    %v3959 = vadd.f32 %v3863, %v3955
    %s3960 = sld [smem:[#allocation9 + $0x9b]]
    %v3961 = vstv %s3960
    %v3962 = vmul.f32 %v3572, %v3961
    %v3963 = vmul.f32 %v3573, %v3961
    %v3964 = vmul.f32 %v3574, %v3961
    %v3965 = vmul.f32 %v3575, %v3961
    %v3970 = vrot.slane %v3962, 1
    %v3971 = vrot.slane %v3963, 1
    %v3972 = vsel %vm1665, %v3970, %v3971
    %v3973 = vrot.slane %v3964, 1
    %v3974 = vrot.slane %v3965, 1
    %v3975 = vsel %vm1665, %v3973, %v3974
    %3976 = vrot.lane.b32.xlu0 %v3972, 126
    %v3977 = vpop.permute.xlu0 %3976
    %3978 = vrot.lane.b32.xlu0 %v3975, 126
    %v3979 = vpop.permute.xlu0 %3978
    %v3982 = vadd.f32 %v3886, %v3977
    %v3983 = vadd.f32 %v3887, %v3979
    %s3984 = sld [smem:[#allocation9 + $0xb4]]
    %v3985 = vstv %s3984
    %v3986 = vmul.f32 %v3572, %v3985
    %v3987 = vmul.f32 %v3573, %v3985
    %v3988 = vmul.f32 %v3574, %v3985
    %v3989 = vmul.f32 %v3575, %v3985
    %v3994 = vrot.slane %v3986, 2
    %v3995 = vrot.slane %v3987, 2
    %v3996 = vsel %vm1938, %v3994, %v3995
    %v3997 = vrot.slane %v3988, 2
    %v3998 = vrot.slane %v3989, 2
    %v3999 = vsel %vm1938, %v3997, %v3998
    %v4002 = vadd.f32 %v3910, %v3996
    %v4003 = vadd.f32 %v3911, %v3999
    %s4004 = sld [smem:[#allocation9 + $0xb5]]
    %v4005 = vstv %s4004
    %v4006 = vmul.f32 %v3572, %v4005
    %v4007 = vmul.f32 %v3573, %v4005
    %v4008 = vmul.f32 %v3574, %v4005
    %v4009 = vmul.f32 %v3575, %v4005
    %v4014 = vrot.slane %v4006, 2
    %v4015 = vrot.slane %v4007, 2
    %v4016 = vsel %vm1938, %v4014, %v4015
    %v4017 = vrot.slane %v4008, 2
    %v4018 = vrot.slane %v4009, 2
    %v4019 = vsel %vm1938, %v4017, %v4018
    %v4022 = vadd.f32 %v3934, %v4016
    %v4023 = vadd.f32 %v3935, %v4019
    %s4024 = sld [smem:[#allocation9 + $0xb6]]
    %v4025 = vstv %s4024
    %v4026 = vmul.f32 %v3572, %v4025
    %v4027 = vmul.f32 %v3573, %v4025
    %v4028 = vmul.f32 %v3574, %v4025
    %v4029 = vmul.f32 %v3575, %v4025
    %v4034 = vrot.slane %v4026, 2
    %v4035 = vrot.slane %v4027, 2
    %v4036 = vsel %vm1938, %v4034, %v4035
    %v4037 = vrot.slane %v4028, 2
    %v4038 = vrot.slane %v4029, 2
    %v4039 = vsel %vm1938, %v4037, %v4038
    %v4042 = vadd.f32 %v3958, %v4036
    %v4043 = vadd.f32 %v3959, %v4039
    %s4044 = sld [smem:[#allocation9 + $0xb7]]
    %v4045 = vstv %s4044
    %v4046 = vmul.f32 %v3572, %v4045
    %v4047 = vmul.f32 %v3573, %v4045
    %v4048 = vmul.f32 %v3574, %v4045
    %v4049 = vmul.f32 %v3575, %v4045
    %v4054 = vrot.slane %v4046, 2
    %v4055 = vrot.slane %v4047, 2
    %v4056 = vsel %vm1938, %v4054, %v4055
    %v4057 = vrot.slane %v4048, 2
    %v4058 = vrot.slane %v4049, 2
    %v4059 = vsel %vm1938, %v4057, %v4058
    %v4062 = vadd.f32 %v3982, %v4056
    %v4063 = vadd.f32 %v3983, %v4059
    %s4064 = sld [smem:[#allocation9 + $0xd0]]
    %v4065 = vstv %s4064
    %v4066 = vmul.f32 %v3572, %v4065
    %v4067 = vmul.f32 %v3573, %v4065
    %v4068 = vmul.f32 %v3574, %v4065
    %v4069 = vmul.f32 %v3575, %v4065
    %v4074 = vrot.slane %v4066, 2
    %v4075 = vrot.slane %v4067, 2
    %v4076 = vsel %vm1938, %v4074, %v4075
    %v4077 = vrot.slane %v4068, 2
    %v4078 = vrot.slane %v4069, 2
    %v4079 = vsel %vm1938, %v4077, %v4078
    %4080 = vrot.lane.b32.xlu0 %v4076, 127
    %v4081 = vpop.permute.xlu0 %4080
    %4082 = vrot.lane.b32.xlu0 %v4079, 127
    %v4083 = vpop.permute.xlu0 %4082
    %v4086 = vadd.f32 %v4002, %v4081
    %v4087 = vadd.f32 %v4003, %v4083
    %s4088 = sld [smem:[#allocation9 + $0xd1]]
    %v4089 = vstv %s4088
    %v4090 = vmul.f32 %v3572, %v4089
    %v4091 = vmul.f32 %v3573, %v4089
    %v4092 = vmul.f32 %v3574, %v4089
    %v4093 = vmul.f32 %v3575, %v4089
    %v4098 = vrot.slane %v4090, 2
    %v4099 = vrot.slane %v4091, 2
    %v4100 = vsel %vm1938, %v4098, %v4099
    %v4101 = vrot.slane %v4092, 2
    %v4102 = vrot.slane %v4093, 2
    %v4103 = vsel %vm1938, %v4101, %v4102
    %4104 = vrot.lane.b32.xlu0 %v4100, 127
    %v4105 = vpop.permute.xlu0 %4104
    %4106 = vrot.lane.b32.xlu0 %v4103, 127
    %v4107 = vpop.permute.xlu0 %4106
    %v4110 = vadd.f32 %v4022, %v4105
    %v4111 = vadd.f32 %v4023, %v4107
    %s4112 = sld [smem:[#allocation9 + $0xd2]]
    %v4113 = vstv %s4112
    %v4114 = vmul.f32 %v3572, %v4113
    %v4115 = vmul.f32 %v3573, %v4113
    %v4116 = vmul.f32 %v3574, %v4113
    %v4117 = vmul.f32 %v3575, %v4113
    %v4122 = vrot.slane %v4114, 2
    %v4123 = vrot.slane %v4115, 2
    %v4124 = vsel %vm1938, %v4122, %v4123
    %v4125 = vrot.slane %v4116, 2
    %v4126 = vrot.slane %v4117, 2
    %v4127 = vsel %vm1938, %v4125, %v4126
    %4128 = vrot.lane.b32.xlu0 %v4124, 127
    %v4129 = vpop.permute.xlu0 %4128
    %4130 = vrot.lane.b32.xlu0 %v4127, 127
    %v4131 = vpop.permute.xlu0 %4130
    %v4134 = vadd.f32 %v4042, %v4129
    %v4135 = vadd.f32 %v4043, %v4131
    %s4136 = sld [smem:[#allocation9 + $0xd3]]
    %v4137 = vstv %s4136
    %v4138 = vmul.f32 %v3572, %v4137
    %v4139 = vmul.f32 %v3573, %v4137
    %v4140 = vmul.f32 %v3574, %v4137
    %v4141 = vmul.f32 %v3575, %v4137
    %v4146 = vrot.slane %v4138, 2
    %v4147 = vrot.slane %v4139, 2
    %v4148 = vsel %vm1938, %v4146, %v4147
    %v4149 = vrot.slane %v4140, 2
    %v4150 = vrot.slane %v4141, 2
    %v4151 = vsel %vm1938, %v4149, %v4150
    %4152 = vrot.lane.b32.xlu0 %v4148, 127
    %v4153 = vpop.permute.xlu0 %4152
    %4154 = vrot.lane.b32.xlu0 %v4151, 127
    %v4155 = vpop.permute.xlu0 %4154
    %v4158 = vadd.f32 %v4062, %v4153
    %v4159 = vadd.f32 %v4063, %v4155
    %s4160 = sld [smem:[#allocation9 + $0xec]]
    %v4161 = vstv %s4160
    %v4162 = vmul.f32 %v3572, %v4161
    %v4163 = vmul.f32 %v3573, %v4161
    %v4164 = vmul.f32 %v3574, %v4161
    %v4165 = vmul.f32 %v3575, %v4161
    %v4170 = vrot.slane %v4162, 2
    %v4171 = vrot.slane %v4163, 2
    %v4172 = vsel %vm1938, %v4170, %v4171
    %v4173 = vrot.slane %v4164, 2
    %v4174 = vrot.slane %v4165, 2
    %v4175 = vsel %vm1938, %v4173, %v4174
    %4176 = vrot.lane.b32.xlu0 %v4172, 126
    %v4177 = vpop.permute.xlu0 %4176
    %4178 = vrot.lane.b32.xlu0 %v4175, 126
    %v4179 = vpop.permute.xlu0 %4178
    %v4182 = vadd.f32 %v4086, %v4177
    %v4183 = vadd.f32 %v4087, %v4179
    %s4184 = sld [smem:[#allocation9 + $0xed]]
    %v4185 = vstv %s4184
    %v4186 = vmul.f32 %v3572, %v4185
    %v4187 = vmul.f32 %v3573, %v4185
    %v4188 = vmul.f32 %v3574, %v4185
    %v4189 = vmul.f32 %v3575, %v4185
    %v4194 = vrot.slane %v4186, 2
    %v4195 = vrot.slane %v4187, 2
    %v4196 = vsel %vm1938, %v4194, %v4195
    %v4197 = vrot.slane %v4188, 2
    %v4198 = vrot.slane %v4189, 2
    %v4199 = vsel %vm1938, %v4197, %v4198
    %4200 = vrot.lane.b32.xlu0 %v4196, 126
    %v4201 = vpop.permute.xlu0 %4200
    %4202 = vrot.lane.b32.xlu0 %v4199, 126
    %v4203 = vpop.permute.xlu0 %4202
    %v4206 = vadd.f32 %v4110, %v4201
    %v4207 = vadd.f32 %v4111, %v4203
    %s4208 = sld [smem:[#allocation9 + $0xee]]
    %v4209 = vstv %s4208
    %v4210 = vmul.f32 %v3572, %v4209
    %v4211 = vmul.f32 %v3573, %v4209
    %v4212 = vmul.f32 %v3574, %v4209
    %v4213 = vmul.f32 %v3575, %v4209
    %v4218 = vrot.slane %v4210, 2
    %v4219 = vrot.slane %v4211, 2
    %v4220 = vsel %vm1938, %v4218, %v4219
    %v4221 = vrot.slane %v4212, 2
    %v4222 = vrot.slane %v4213, 2
    %v4223 = vsel %vm1938, %v4221, %v4222
    %4224 = vrot.lane.b32.xlu0 %v4220, 126
    %v4225 = vpop.permute.xlu0 %4224
    %4226 = vrot.lane.b32.xlu0 %v4223, 126
    %v4227 = vpop.permute.xlu0 %4226
    %v4230 = vadd.f32 %v4134, %v4225
    %v4231 = vadd.f32 %v4135, %v4227
    %s4232 = sld [smem:[#allocation9 + $0xef]]
    %v4233 = vstv %s4232
    %v4234 = vmul.f32 %v3572, %v4233
    %v4235 = vmul.f32 %v3573, %v4233
    %v4236 = vmul.f32 %v3574, %v4233
    %v4237 = vmul.f32 %v3575, %v4233
    %v4242 = vrot.slane %v4234, 2
    %v4243 = vrot.slane %v4235, 2
    %v4244 = vsel %vm1938, %v4242, %v4243
    %v4245 = vrot.slane %v4236, 2
    %v4246 = vrot.slane %v4237, 2
    %v4247 = vsel %vm1938, %v4245, %v4246
    %4248 = vrot.lane.b32.xlu0 %v4244, 126
    %v4249 = vpop.permute.xlu0 %4248
    %4250 = vrot.lane.b32.xlu0 %v4247, 126
    %v4251 = vpop.permute.xlu0 %4250
    %v4254 = vadd.f32 %v4158, %v4249
    %v4255 = vadd.f32 %v4159, %v4251
    %s4256 = scalar_lea.vmem [#allocation2], 64
    %v4257 = vld [vmem:[%s4256] sm:$0xff]
    %v4258 = vld [vmem:[%s4256 + $0x8] sm:$0x3]
    %v4259 = vld [vmem:[%s4256 + $0x70] sm:$0xff]
    %v4260 = vld [vmem:[%s4256 + $0x78] sm:$0x3]
    %s4261 = sld [smem:[#allocation9 + $0x10]]
    %v4262 = vstv %s4261
    %v4263 = vmul.f32 %v4257, %v4262
    %v4264 = vmul.f32 %v4259, %v4262
    %v4265 = vadd.f32 %v4182, %v4263
    %v4266 = vadd.f32 %v4183, %v4264
    %s4267 = sld [smem:[#allocation9 + $0x11]]
    %v4268 = vstv %s4267
    %v4269 = vmul.f32 %v4257, %v4268
    %v4270 = vmul.f32 %v4259, %v4268
    %v4271 = vadd.f32 %v4206, %v4269
    %v4272 = vadd.f32 %v4207, %v4270
    %s4273 = sld [smem:[#allocation9 + $0x12]]
    %v4274 = vstv %s4273
    %v4275 = vmul.f32 %v4257, %v4274
    %v4276 = vmul.f32 %v4259, %v4274
    %v4277 = vadd.f32 %v4230, %v4275
    %v4278 = vadd.f32 %v4231, %v4276
    %s4279 = sld [smem:[#allocation9 + $0x13]]
    %v4280 = vstv %s4279
    %v4281 = vmul.f32 %v4257, %v4280
    %v4282 = vmul.f32 %v4259, %v4280
    %v4283 = vadd.f32 %v4254, %v4281
    %v4284 = vadd.f32 %v4255, %v4282
    %s4285 = sld [smem:[#allocation9 + $0x2c]]
    %v4286 = vstv %s4285
    %v4287 = vmul.f32 %v4257, %v4286
    %v4288 = vmul.f32 %v4259, %v4286
    %4291 = vrot.lane.b32.xlu0 %v4287, 127
    %v4292 = vpop.permute.xlu0 %4291
    %4293 = vrot.lane.b32.xlu0 %v4288, 127
    %v4294 = vpop.permute.xlu0 %4293
    %v4297 = vadd.f32 %v4265, %v4292
    %v4298 = vadd.f32 %v4266, %v4294
    %s4299 = sld [smem:[#allocation9 + $0x2d]]
    %v4300 = vstv %s4299
    %v4301 = vmul.f32 %v4257, %v4300
    %v4302 = vmul.f32 %v4259, %v4300
    %4305 = vrot.lane.b32.xlu0 %v4301, 127
    %v4306 = vpop.permute.xlu0 %4305
    %4307 = vrot.lane.b32.xlu0 %v4302, 127
    %v4308 = vpop.permute.xlu0 %4307
    %v4311 = vadd.f32 %v4271, %v4306
    %v4312 = vadd.f32 %v4272, %v4308
    %s4313 = sld [smem:[#allocation9 + $0x2e]]
    %v4314 = vstv %s4313
    %v4315 = vmul.f32 %v4257, %v4314
    %v4316 = vmul.f32 %v4259, %v4314
    %4319 = vrot.lane.b32.xlu0 %v4315, 127
    %v4320 = vpop.permute.xlu0 %4319
    %4321 = vrot.lane.b32.xlu0 %v4316, 127
    %v4322 = vpop.permute.xlu0 %4321
    %v4325 = vadd.f32 %v4277, %v4320
    %v4326 = vadd.f32 %v4278, %v4322
    %s4327 = sld [smem:[#allocation9 + $0x2f]]
    %v4328 = vstv %s4327
    %v4329 = vmul.f32 %v4257, %v4328
    %v4330 = vmul.f32 %v4259, %v4328
    %4333 = vrot.lane.b32.xlu0 %v4329, 127
    %v4334 = vpop.permute.xlu0 %4333
    %4335 = vrot.lane.b32.xlu0 %v4330, 127
    %v4336 = vpop.permute.xlu0 %4335
    %v4339 = vadd.f32 %v4283, %v4334
    %v4340 = vadd.f32 %v4284, %v4336
    %s4341 = sld [smem:[#allocation9 + $0x48]]
    %v4342 = vstv %s4341
    %v4343 = vmul.f32 %v4257, %v4342
    %v4344 = vmul.f32 %v4259, %v4342
    %4347 = vrot.lane.b32.xlu0 %v4343, 126
    %v4348 = vpop.permute.xlu0 %4347
    %4349 = vrot.lane.b32.xlu0 %v4344, 126
    %v4350 = vpop.permute.xlu0 %4349
    %v4353 = vadd.f32 %v4297, %v4348
    %v4354 = vadd.f32 %v4298, %v4350
    %s4355 = sld [smem:[#allocation9 + $0x49]]
    %v4356 = vstv %s4355
    %v4357 = vmul.f32 %v4257, %v4356
    %v4358 = vmul.f32 %v4259, %v4356
    %4361 = vrot.lane.b32.xlu0 %v4357, 126
    %v4362 = vpop.permute.xlu0 %4361
    %4363 = vrot.lane.b32.xlu0 %v4358, 126
    %v4364 = vpop.permute.xlu0 %4363
    %v4367 = vadd.f32 %v4311, %v4362
    %v4368 = vadd.f32 %v4312, %v4364
    %s4369 = sld [smem:[#allocation9 + $0x4a]]
    %v4370 = vstv %s4369
    %v4371 = vmul.f32 %v4257, %v4370
    %v4372 = vmul.f32 %v4259, %v4370
    %4375 = vrot.lane.b32.xlu0 %v4371, 126
    %v4376 = vpop.permute.xlu0 %4375
    %4377 = vrot.lane.b32.xlu0 %v4372, 126
    %v4378 = vpop.permute.xlu0 %4377
    %v4381 = vadd.f32 %v4325, %v4376
    %v4382 = vadd.f32 %v4326, %v4378
    %s4383 = sld [smem:[#allocation9 + $0x4b]]
    %v4384 = vstv %s4383
    %v4385 = vmul.f32 %v4257, %v4384
    %v4386 = vmul.f32 %v4259, %v4384
    %4389 = vrot.lane.b32.xlu0 %v4385, 126
    %v4390 = vpop.permute.xlu0 %4389
    %4391 = vrot.lane.b32.xlu0 %v4386, 126
    %v4392 = vpop.permute.xlu0 %4391
    %v4395 = vadd.f32 %v4339, %v4390
    %v4396 = vadd.f32 %v4340, %v4392
    %s4397 = sld [smem:[#allocation9 + $0x64]]
    %v4398 = vstv %s4397
    %v4399 = vmul.f32 %v4257, %v4398
    %v4400 = vmul.f32 %v4258, %v4398
    %v4401 = vmul.f32 %v4259, %v4398
    %v4402 = vmul.f32 %v4260, %v4398
    %v4407 = vrot.slane %v4399, 1
    %v4408 = vrot.slane %v4400, 1
    %v4409 = vsel %vm1665, %v4407, %v4408
    %v4410 = vrot.slane %v4401, 1
    %v4411 = vrot.slane %v4402, 1
    %v4412 = vsel %vm1665, %v4410, %v4411
    %v4415 = vadd.f32 %v4353, %v4409
    %v4416 = vadd.f32 %v4354, %v4412
    %s4417 = sld [smem:[#allocation9 + $0x65]]
    %v4418 = vstv %s4417
    %v4419 = vmul.f32 %v4257, %v4418
    %v4420 = vmul.f32 %v4258, %v4418
    %v4421 = vmul.f32 %v4259, %v4418
    %v4422 = vmul.f32 %v4260, %v4418
    %v4427 = vrot.slane %v4419, 1
    %v4428 = vrot.slane %v4420, 1
    %v4429 = vsel %vm1665, %v4427, %v4428
    %v4430 = vrot.slane %v4421, 1
    %v4431 = vrot.slane %v4422, 1
    %v4432 = vsel %vm1665, %v4430, %v4431
    %v4435 = vadd.f32 %v4367, %v4429
    %v4436 = vadd.f32 %v4368, %v4432
    %s4437 = sld [smem:[#allocation9 + $0x66]]
    %v4438 = vstv %s4437
    %v4439 = vmul.f32 %v4257, %v4438
    %v4440 = vmul.f32 %v4258, %v4438
    %v4441 = vmul.f32 %v4259, %v4438
    %v4442 = vmul.f32 %v4260, %v4438
    %v4447 = vrot.slane %v4439, 1
    %v4448 = vrot.slane %v4440, 1
    %v4449 = vsel %vm1665, %v4447, %v4448
    %v4450 = vrot.slane %v4441, 1
    %v4451 = vrot.slane %v4442, 1
    %v4452 = vsel %vm1665, %v4450, %v4451
    %v4455 = vadd.f32 %v4381, %v4449
    %v4456 = vadd.f32 %v4382, %v4452
    %s4457 = sld [smem:[#allocation9 + $0x67]]
    %v4458 = vstv %s4457
    %v4459 = vmul.f32 %v4257, %v4458
    %v4460 = vmul.f32 %v4258, %v4458
    %v4461 = vmul.f32 %v4259, %v4458
    %v4462 = vmul.f32 %v4260, %v4458
    %v4467 = vrot.slane %v4459, 1
    %v4468 = vrot.slane %v4460, 1
    %v4469 = vsel %vm1665, %v4467, %v4468
    %v4470 = vrot.slane %v4461, 1
    %v4471 = vrot.slane %v4462, 1
    %v4472 = vsel %vm1665, %v4470, %v4471
    %v4475 = vadd.f32 %v4395, %v4469
    %v4476 = vadd.f32 %v4396, %v4472
    %s4477 = sld [smem:[#allocation9 + $0x80]]
    %v4478 = vstv %s4477
    %v4479 = vmul.f32 %v4257, %v4478
    %v4480 = vmul.f32 %v4258, %v4478
    %v4481 = vmul.f32 %v4259, %v4478
    %v4482 = vmul.f32 %v4260, %v4478
    %v4487 = vrot.slane %v4479, 1
    %v4488 = vrot.slane %v4480, 1
    %v4489 = vsel %vm1665, %v4487, %v4488
    %v4490 = vrot.slane %v4481, 1
    %v4491 = vrot.slane %v4482, 1
    %v4492 = vsel %vm1665, %v4490, %v4491
    %4493 = vrot.lane.b32.xlu0 %v4489, 127
    %v4494 = vpop.permute.xlu0 %4493
    %4495 = vrot.lane.b32.xlu0 %v4492, 127
    %v4496 = vpop.permute.xlu0 %4495
    %v4499 = vadd.f32 %v4415, %v4494
    %v4500 = vadd.f32 %v4416, %v4496
    %s4501 = sld [smem:[#allocation9 + $0x81]]
    %v4502 = vstv %s4501
    %v4503 = vmul.f32 %v4257, %v4502
    %v4504 = vmul.f32 %v4258, %v4502
    %v4505 = vmul.f32 %v4259, %v4502
    %v4506 = vmul.f32 %v4260, %v4502
    %v4511 = vrot.slane %v4503, 1
    %v4512 = vrot.slane %v4504, 1
    %v4513 = vsel %vm1665, %v4511, %v4512
    %v4514 = vrot.slane %v4505, 1
    %v4515 = vrot.slane %v4506, 1
    %v4516 = vsel %vm1665, %v4514, %v4515
    %4517 = vrot.lane.b32.xlu0 %v4513, 127
    %v4518 = vpop.permute.xlu0 %4517
    %4519 = vrot.lane.b32.xlu0 %v4516, 127
    %v4520 = vpop.permute.xlu0 %4519
    %v4523 = vadd.f32 %v4435, %v4518
    %v4524 = vadd.f32 %v4436, %v4520
    %s4525 = sld [smem:[#allocation9 + $0x82]]
    %v4526 = vstv %s4525
    %v4527 = vmul.f32 %v4257, %v4526
    %v4528 = vmul.f32 %v4258, %v4526
    %v4529 = vmul.f32 %v4259, %v4526
    %v4530 = vmul.f32 %v4260, %v4526
    %v4535 = vrot.slane %v4527, 1
    %v4536 = vrot.slane %v4528, 1
    %v4537 = vsel %vm1665, %v4535, %v4536
    %v4538 = vrot.slane %v4529, 1
    %v4539 = vrot.slane %v4530, 1
    %v4540 = vsel %vm1665, %v4538, %v4539
    %4541 = vrot.lane.b32.xlu0 %v4537, 127
    %v4542 = vpop.permute.xlu0 %4541
    %4543 = vrot.lane.b32.xlu0 %v4540, 127
    %v4544 = vpop.permute.xlu0 %4543
    %v4547 = vadd.f32 %v4455, %v4542
    %v4548 = vadd.f32 %v4456, %v4544
    %s4549 = sld [smem:[#allocation9 + $0x83]]
    %v4550 = vstv %s4549
    %v4551 = vmul.f32 %v4257, %v4550
    %v4552 = vmul.f32 %v4258, %v4550
    %v4553 = vmul.f32 %v4259, %v4550
    %v4554 = vmul.f32 %v4260, %v4550
    %v4559 = vrot.slane %v4551, 1
    %v4560 = vrot.slane %v4552, 1
    %v4561 = vsel %vm1665, %v4559, %v4560
    %v4562 = vrot.slane %v4553, 1
    %v4563 = vrot.slane %v4554, 1
    %v4564 = vsel %vm1665, %v4562, %v4563
    %4565 = vrot.lane.b32.xlu0 %v4561, 127
    %v4566 = vpop.permute.xlu0 %4565
    %4567 = vrot.lane.b32.xlu0 %v4564, 127
    %v4568 = vpop.permute.xlu0 %4567
    %v4571 = vadd.f32 %v4475, %v4566
    %v4572 = vadd.f32 %v4476, %v4568
    %s4573 = sld [smem:[#allocation9 + $0x9c]]
    %v4574 = vstv %s4573
    %v4575 = vmul.f32 %v4257, %v4574
    %v4576 = vmul.f32 %v4258, %v4574
    %v4577 = vmul.f32 %v4259, %v4574
    %v4578 = vmul.f32 %v4260, %v4574
    %v4583 = vrot.slane %v4575, 1
    %v4584 = vrot.slane %v4576, 1
    %v4585 = vsel %vm1665, %v4583, %v4584
    %v4586 = vrot.slane %v4577, 1
    %v4587 = vrot.slane %v4578, 1
    %v4588 = vsel %vm1665, %v4586, %v4587
    %4589 = vrot.lane.b32.xlu0 %v4585, 126
    %v4590 = vpop.permute.xlu0 %4589
    %4591 = vrot.lane.b32.xlu0 %v4588, 126
    %v4592 = vpop.permute.xlu0 %4591
    %v4595 = vadd.f32 %v4499, %v4590
    %v4596 = vadd.f32 %v4500, %v4592
    %s4597 = sld [smem:[#allocation9 + $0x9d]]
    %v4598 = vstv %s4597
    %v4599 = vmul.f32 %v4257, %v4598
    %v4600 = vmul.f32 %v4258, %v4598
    %v4601 = vmul.f32 %v4259, %v4598
    %v4602 = vmul.f32 %v4260, %v4598
    %v4607 = vrot.slane %v4599, 1
    %v4608 = vrot.slane %v4600, 1
    %v4609 = vsel %vm1665, %v4607, %v4608
    %v4610 = vrot.slane %v4601, 1
    %v4611 = vrot.slane %v4602, 1
    %v4612 = vsel %vm1665, %v4610, %v4611
    %4613 = vrot.lane.b32.xlu0 %v4609, 126
    %v4614 = vpop.permute.xlu0 %4613
    %4615 = vrot.lane.b32.xlu0 %v4612, 126
    %v4616 = vpop.permute.xlu0 %4615
    %v4619 = vadd.f32 %v4523, %v4614
    %v4620 = vadd.f32 %v4524, %v4616
    %s4621 = sld [smem:[#allocation9 + $0x9e]]
    %v4622 = vstv %s4621
    %v4623 = vmul.f32 %v4257, %v4622
    %v4624 = vmul.f32 %v4258, %v4622
    %v4625 = vmul.f32 %v4259, %v4622
    %v4626 = vmul.f32 %v4260, %v4622
    %v4631 = vrot.slane %v4623, 1
    %v4632 = vrot.slane %v4624, 1
    %v4633 = vsel %vm1665, %v4631, %v4632
    %v4634 = vrot.slane %v4625, 1
    %v4635 = vrot.slane %v4626, 1
    %v4636 = vsel %vm1665, %v4634, %v4635
    %4637 = vrot.lane.b32.xlu0 %v4633, 126
    %v4638 = vpop.permute.xlu0 %4637
    %4639 = vrot.lane.b32.xlu0 %v4636, 126
    %v4640 = vpop.permute.xlu0 %4639
    %v4643 = vadd.f32 %v4547, %v4638
    %v4644 = vadd.f32 %v4548, %v4640
    %s4645 = sld [smem:[#allocation9 + $0x9f]]
    %v4646 = vstv %s4645
    %v4647 = vmul.f32 %v4257, %v4646
    %v4648 = vmul.f32 %v4258, %v4646
    %v4649 = vmul.f32 %v4259, %v4646
    %v4650 = vmul.f32 %v4260, %v4646
    %v4655 = vrot.slane %v4647, 1
    %v4656 = vrot.slane %v4648, 1
    %v4657 = vsel %vm1665, %v4655, %v4656
    %v4658 = vrot.slane %v4649, 1
    %v4659 = vrot.slane %v4650, 1
    %v4660 = vsel %vm1665, %v4658, %v4659
    %4661 = vrot.lane.b32.xlu0 %v4657, 126
    %v4662 = vpop.permute.xlu0 %4661
    %4663 = vrot.lane.b32.xlu0 %v4660, 126
    %v4664 = vpop.permute.xlu0 %4663
    %v4667 = vadd.f32 %v4571, %v4662
    %v4668 = vadd.f32 %v4572, %v4664
    %s4669 = sld [smem:[#allocation9 + $0xb8]]
    %v4670 = vstv %s4669
    %v4671 = vmul.f32 %v4257, %v4670
    %v4672 = vmul.f32 %v4258, %v4670
    %v4673 = vmul.f32 %v4259, %v4670
    %v4674 = vmul.f32 %v4260, %v4670
    %v4679 = vrot.slane %v4671, 2
    %v4680 = vrot.slane %v4672, 2
    %v4681 = vsel %vm1938, %v4679, %v4680
    %v4682 = vrot.slane %v4673, 2
    %v4683 = vrot.slane %v4674, 2
    %v4684 = vsel %vm1938, %v4682, %v4683
    %v4687 = vadd.f32 %v4595, %v4681
    %v4688 = vadd.f32 %v4596, %v4684
    %s4689 = sld [smem:[#allocation9 + $0xb9]]
    %v4690 = vstv %s4689
    %v4691 = vmul.f32 %v4257, %v4690
    %v4692 = vmul.f32 %v4258, %v4690
    %v4693 = vmul.f32 %v4259, %v4690
    %v4694 = vmul.f32 %v4260, %v4690
    %v4699 = vrot.slane %v4691, 2
    %v4700 = vrot.slane %v4692, 2
    %v4701 = vsel %vm1938, %v4699, %v4700
    %v4702 = vrot.slane %v4693, 2
    %v4703 = vrot.slane %v4694, 2
    %v4704 = vsel %vm1938, %v4702, %v4703
    %v4707 = vadd.f32 %v4619, %v4701
    %v4708 = vadd.f32 %v4620, %v4704
    %s4709 = sld [smem:[#allocation9 + $0xba]]
    %v4710 = vstv %s4709
    %v4711 = vmul.f32 %v4257, %v4710
    %v4712 = vmul.f32 %v4258, %v4710
    %v4713 = vmul.f32 %v4259, %v4710
    %v4714 = vmul.f32 %v4260, %v4710
    %v4719 = vrot.slane %v4711, 2
    %v4720 = vrot.slane %v4712, 2
    %v4721 = vsel %vm1938, %v4719, %v4720
    %v4722 = vrot.slane %v4713, 2
    %v4723 = vrot.slane %v4714, 2
    %v4724 = vsel %vm1938, %v4722, %v4723
    %v4727 = vadd.f32 %v4643, %v4721
    %v4728 = vadd.f32 %v4644, %v4724
    %s4729 = sld [smem:[#allocation9 + $0xbb]]
    %v4730 = vstv %s4729
    %v4731 = vmul.f32 %v4257, %v4730
    %v4732 = vmul.f32 %v4258, %v4730
    %v4733 = vmul.f32 %v4259, %v4730
    %v4734 = vmul.f32 %v4260, %v4730
    %v4739 = vrot.slane %v4731, 2
    %v4740 = vrot.slane %v4732, 2
    %v4741 = vsel %vm1938, %v4739, %v4740
    %v4742 = vrot.slane %v4733, 2
    %v4743 = vrot.slane %v4734, 2
    %v4744 = vsel %vm1938, %v4742, %v4743
    %v4747 = vadd.f32 %v4667, %v4741
    %v4748 = vadd.f32 %v4668, %v4744
    %s4749 = sld [smem:[#allocation9 + $0xd4]]
    %v4750 = vstv %s4749
    %v4751 = vmul.f32 %v4257, %v4750
    %v4752 = vmul.f32 %v4258, %v4750
    %v4753 = vmul.f32 %v4259, %v4750
    %v4754 = vmul.f32 %v4260, %v4750
    %v4759 = vrot.slane %v4751, 2
    %v4760 = vrot.slane %v4752, 2
    %v4761 = vsel %vm1938, %v4759, %v4760
    %v4762 = vrot.slane %v4753, 2
    %v4763 = vrot.slane %v4754, 2
    %v4764 = vsel %vm1938, %v4762, %v4763
    %4765 = vrot.lane.b32.xlu0 %v4761, 127
    %v4766 = vpop.permute.xlu0 %4765
    %4767 = vrot.lane.b32.xlu0 %v4764, 127
    %v4768 = vpop.permute.xlu0 %4767
    %v4771 = vadd.f32 %v4687, %v4766
    %v4772 = vadd.f32 %v4688, %v4768
    %s4773 = sld [smem:[#allocation9 + $0xd5]]
    %v4774 = vstv %s4773
    %v4775 = vmul.f32 %v4257, %v4774
    %v4776 = vmul.f32 %v4258, %v4774
    %v4777 = vmul.f32 %v4259, %v4774
    %v4778 = vmul.f32 %v4260, %v4774
    %v4783 = vrot.slane %v4775, 2
    %v4784 = vrot.slane %v4776, 2
    %v4785 = vsel %vm1938, %v4783, %v4784
    %v4786 = vrot.slane %v4777, 2
    %v4787 = vrot.slane %v4778, 2
    %v4788 = vsel %vm1938, %v4786, %v4787
    %4789 = vrot.lane.b32.xlu0 %v4785, 127
    %v4790 = vpop.permute.xlu0 %4789
    %4791 = vrot.lane.b32.xlu0 %v4788, 127
    %v4792 = vpop.permute.xlu0 %4791
    %v4795 = vadd.f32 %v4707, %v4790
    %v4796 = vadd.f32 %v4708, %v4792
    %s4797 = sld [smem:[#allocation9 + $0xd6]]
    %v4798 = vstv %s4797
    %v4799 = vmul.f32 %v4257, %v4798
    %v4800 = vmul.f32 %v4258, %v4798
    %v4801 = vmul.f32 %v4259, %v4798
    %v4802 = vmul.f32 %v4260, %v4798
    %v4807 = vrot.slane %v4799, 2
    %v4808 = vrot.slane %v4800, 2
    %v4809 = vsel %vm1938, %v4807, %v4808
    %v4810 = vrot.slane %v4801, 2
    %v4811 = vrot.slane %v4802, 2
    %v4812 = vsel %vm1938, %v4810, %v4811
    %4813 = vrot.lane.b32.xlu0 %v4809, 127
    %v4814 = vpop.permute.xlu0 %4813
    %4815 = vrot.lane.b32.xlu0 %v4812, 127
    %v4816 = vpop.permute.xlu0 %4815
    %v4819 = vadd.f32 %v4727, %v4814
    %v4820 = vadd.f32 %v4728, %v4816
    %s4821 = sld [smem:[#allocation9 + $0xd7]]
    %v4822 = vstv %s4821
    %v4823 = vmul.f32 %v4257, %v4822
    %v4824 = vmul.f32 %v4258, %v4822
    %v4825 = vmul.f32 %v4259, %v4822
    %v4826 = vmul.f32 %v4260, %v4822
    %v4831 = vrot.slane %v4823, 2
    %v4832 = vrot.slane %v4824, 2
    %v4833 = vsel %vm1938, %v4831, %v4832
    %v4834 = vrot.slane %v4825, 2
    %v4835 = vrot.slane %v4826, 2
    %v4836 = vsel %vm1938, %v4834, %v4835
    %4837 = vrot.lane.b32.xlu0 %v4833, 127
    %v4838 = vpop.permute.xlu0 %4837
    %4839 = vrot.lane.b32.xlu0 %v4836, 127
    %v4840 = vpop.permute.xlu0 %4839
    %v4843 = vadd.f32 %v4747, %v4838
    %v4844 = vadd.f32 %v4748, %v4840
    %s4845 = sld [smem:[#allocation9 + $0xf0]]
    %v4846 = vstv %s4845
    %v4847 = vmul.f32 %v4257, %v4846
    %v4848 = vmul.f32 %v4258, %v4846
    %v4849 = vmul.f32 %v4259, %v4846
    %v4850 = vmul.f32 %v4260, %v4846
    %v4855 = vrot.slane %v4847, 2
    %v4856 = vrot.slane %v4848, 2
    %v4857 = vsel %vm1938, %v4855, %v4856
    %v4858 = vrot.slane %v4849, 2
    %v4859 = vrot.slane %v4850, 2
    %v4860 = vsel %vm1938, %v4858, %v4859
    %4861 = vrot.lane.b32.xlu0 %v4857, 126
    %v4862 = vpop.permute.xlu0 %4861
    %4863 = vrot.lane.b32.xlu0 %v4860, 126
    %v4864 = vpop.permute.xlu0 %4863
    %v4867 = vadd.f32 %v4771, %v4862
    %v4868 = vadd.f32 %v4772, %v4864
    %s4869 = sld [smem:[#allocation9 + $0xf1]]
    %v4870 = vstv %s4869
    %v4871 = vmul.f32 %v4257, %v4870
    %v4872 = vmul.f32 %v4258, %v4870
    %v4873 = vmul.f32 %v4259, %v4870
    %v4874 = vmul.f32 %v4260, %v4870
    %v4879 = vrot.slane %v4871, 2
    %v4880 = vrot.slane %v4872, 2
    %v4881 = vsel %vm1938, %v4879, %v4880
    %v4882 = vrot.slane %v4873, 2
    %v4883 = vrot.slane %v4874, 2
    %v4884 = vsel %vm1938, %v4882, %v4883
    %4885 = vrot.lane.b32.xlu0 %v4881, 126
    %v4886 = vpop.permute.xlu0 %4885
    %4887 = vrot.lane.b32.xlu0 %v4884, 126
    %v4888 = vpop.permute.xlu0 %4887
    %v4891 = vadd.f32 %v4795, %v4886
    %v4892 = vadd.f32 %v4796, %v4888
    %s4893 = sld [smem:[#allocation9 + $0xf2]]
    %v4894 = vstv %s4893
    %v4895 = vmul.f32 %v4257, %v4894
    %v4896 = vmul.f32 %v4258, %v4894
    %v4897 = vmul.f32 %v4259, %v4894
    %v4898 = vmul.f32 %v4260, %v4894
    %v4903 = vrot.slane %v4895, 2
    %v4904 = vrot.slane %v4896, 2
    %v4905 = vsel %vm1938, %v4903, %v4904
    %v4906 = vrot.slane %v4897, 2
    %v4907 = vrot.slane %v4898, 2
    %v4908 = vsel %vm1938, %v4906, %v4907
    %4909 = vrot.lane.b32.xlu0 %v4905, 126
    %v4910 = vpop.permute.xlu0 %4909
    %4911 = vrot.lane.b32.xlu0 %v4908, 126
    %v4912 = vpop.permute.xlu0 %4911
    %v4915 = vadd.f32 %v4819, %v4910
    %v4916 = vadd.f32 %v4820, %v4912
    %s4917 = sld [smem:[#allocation9 + $0xf3]]
    %v4918 = vstv %s4917
    %v4919 = vmul.f32 %v4257, %v4918
    %v4920 = vmul.f32 %v4258, %v4918
    %v4921 = vmul.f32 %v4259, %v4918
    %v4922 = vmul.f32 %v4260, %v4918
    %v4927 = vrot.slane %v4919, 2
    %v4928 = vrot.slane %v4920, 2
    %v4929 = vsel %vm1938, %v4927, %v4928
    %v4930 = vrot.slane %v4921, 2
    %v4931 = vrot.slane %v4922, 2
    %v4932 = vsel %vm1938, %v4930, %v4931
    %4933 = vrot.lane.b32.xlu0 %v4929, 126
    %v4934 = vpop.permute.xlu0 %4933
    %4935 = vrot.lane.b32.xlu0 %v4932, 126
    %v4936 = vpop.permute.xlu0 %4935
    %v4939 = vadd.f32 %v4843, %v4934
    %v4940 = vadd.f32 %v4844, %v4936
    %s4941 = scalar_lea.vmem [#allocation2], 80
    %v4942 = vld [vmem:[%s4941] sm:$0xff]
    %v4943 = vld [vmem:[%s4941 + $0x8] sm:$0x3]
    %v4944 = vld [vmem:[%s4941 + $0x70] sm:$0xff]
    %v4945 = vld [vmem:[%s4941 + $0x78] sm:$0x3]
    %s4946 = sld [smem:[#allocation9 + $0x14]]
    %v4947 = vstv %s4946
    %v4948 = vmul.f32 %v4942, %v4947
    %v4949 = vmul.f32 %v4944, %v4947
    %v4950 = vadd.f32 %v4867, %v4948
    %v4951 = vadd.f32 %v4868, %v4949
    %s4952 = sld [smem:[#allocation9 + $0x15]]
    %v4953 = vstv %s4952
    %v4954 = vmul.f32 %v4942, %v4953
    %v4955 = vmul.f32 %v4944, %v4953
    %v4956 = vadd.f32 %v4891, %v4954
    %v4957 = vadd.f32 %v4892, %v4955
    %s4958 = sld [smem:[#allocation9 + $0x16]]
    %v4959 = vstv %s4958
    %v4960 = vmul.f32 %v4942, %v4959
    %v4961 = vmul.f32 %v4944, %v4959
    %v4962 = vadd.f32 %v4915, %v4960
    %v4963 = vadd.f32 %v4916, %v4961
    %s4964 = sld [smem:[#allocation9 + $0x17]]
    %v4965 = vstv %s4964
    %v4966 = vmul.f32 %v4942, %v4965
    %v4967 = vmul.f32 %v4944, %v4965
    %v4968 = vadd.f32 %v4939, %v4966
    %v4969 = vadd.f32 %v4940, %v4967
    %s4970 = sld [smem:[#allocation9 + $0x30]]
    %v4971 = vstv %s4970
    %v4972 = vmul.f32 %v4942, %v4971
    %v4973 = vmul.f32 %v4944, %v4971
    %4976 = vrot.lane.b32.xlu0 %v4972, 127
    %v4977 = vpop.permute.xlu0 %4976
    %4978 = vrot.lane.b32.xlu0 %v4973, 127
    %v4979 = vpop.permute.xlu0 %4978
    %v4982 = vadd.f32 %v4950, %v4977
    %v4983 = vadd.f32 %v4951, %v4979
    %s4984 = sld [smem:[#allocation9 + $0x31]]
    %v4985 = vstv %s4984
    %v4986 = vmul.f32 %v4942, %v4985
    %v4987 = vmul.f32 %v4944, %v4985
    %4990 = vrot.lane.b32.xlu0 %v4986, 127
    %v4991 = vpop.permute.xlu0 %4990
    %4992 = vrot.lane.b32.xlu0 %v4987, 127
    %v4993 = vpop.permute.xlu0 %4992
    %v4996 = vadd.f32 %v4956, %v4991
    %v4997 = vadd.f32 %v4957, %v4993
    %s4998 = sld [smem:[#allocation9 + $0x32]]
    %v4999 = vstv %s4998
    %v5000 = vmul.f32 %v4942, %v4999
    %v5001 = vmul.f32 %v4944, %v4999
    %5004 = vrot.lane.b32.xlu0 %v5000, 127
    %v5005 = vpop.permute.xlu0 %5004
    %5006 = vrot.lane.b32.xlu0 %v5001, 127
    %v5007 = vpop.permute.xlu0 %5006
    %v5010 = vadd.f32 %v4962, %v5005
    %v5011 = vadd.f32 %v4963, %v5007
    %s5012 = sld [smem:[#allocation9 + $0x33]]
    %v5013 = vstv %s5012
    %v5014 = vmul.f32 %v4942, %v5013
    %v5015 = vmul.f32 %v4944, %v5013
    %5018 = vrot.lane.b32.xlu0 %v5014, 127
    %v5019 = vpop.permute.xlu0 %5018
    %5020 = vrot.lane.b32.xlu0 %v5015, 127
    %v5021 = vpop.permute.xlu0 %5020
    %v5024 = vadd.f32 %v4968, %v5019
    %v5025 = vadd.f32 %v4969, %v5021
    %s5026 = sld [smem:[#allocation9 + $0x4c]]
    %v5027 = vstv %s5026
    %v5028 = vmul.f32 %v4942, %v5027
    %v5029 = vmul.f32 %v4944, %v5027
    %5032 = vrot.lane.b32.xlu0 %v5028, 126
    %v5033 = vpop.permute.xlu0 %5032
    %5034 = vrot.lane.b32.xlu0 %v5029, 126
    %v5035 = vpop.permute.xlu0 %5034
    %v5038 = vadd.f32 %v4982, %v5033
    %v5039 = vadd.f32 %v4983, %v5035
    %s5040 = sld [smem:[#allocation9 + $0x4d]]
    %v5041 = vstv %s5040
    %v5042 = vmul.f32 %v4942, %v5041
    %v5043 = vmul.f32 %v4944, %v5041
    %5046 = vrot.lane.b32.xlu0 %v5042, 126
    %v5047 = vpop.permute.xlu0 %5046
    %5048 = vrot.lane.b32.xlu0 %v5043, 126
    %v5049 = vpop.permute.xlu0 %5048
    %v5052 = vadd.f32 %v4996, %v5047
    %v5053 = vadd.f32 %v4997, %v5049
    %s5054 = sld [smem:[#allocation9 + $0x4e]]
    %v5055 = vstv %s5054
    %v5056 = vmul.f32 %v4942, %v5055
    %v5057 = vmul.f32 %v4944, %v5055
    %5060 = vrot.lane.b32.xlu0 %v5056, 126
    %v5061 = vpop.permute.xlu0 %5060
    %5062 = vrot.lane.b32.xlu0 %v5057, 126
    %v5063 = vpop.permute.xlu0 %5062
    %v5066 = vadd.f32 %v5010, %v5061
    %v5067 = vadd.f32 %v5011, %v5063
    %s5068 = sld [smem:[#allocation9 + $0x4f]]
    %v5069 = vstv %s5068
    %v5070 = vmul.f32 %v4942, %v5069
    %v5071 = vmul.f32 %v4944, %v5069
    %5074 = vrot.lane.b32.xlu0 %v5070, 126
    %v5075 = vpop.permute.xlu0 %5074
    %5076 = vrot.lane.b32.xlu0 %v5071, 126
    %v5077 = vpop.permute.xlu0 %5076
    %v5080 = vadd.f32 %v5024, %v5075
    %v5081 = vadd.f32 %v5025, %v5077
    %s5082 = sld [smem:[#allocation9 + $0x68]]
    %v5083 = vstv %s5082
    %v5084 = vmul.f32 %v4942, %v5083
    %v5085 = vmul.f32 %v4943, %v5083
    %v5086 = vmul.f32 %v4944, %v5083
    %v5087 = vmul.f32 %v4945, %v5083
    %v5092 = vrot.slane %v5084, 1
    %v5093 = vrot.slane %v5085, 1
    %v5094 = vsel %vm1665, %v5092, %v5093
    %v5095 = vrot.slane %v5086, 1
    %v5096 = vrot.slane %v5087, 1
    %v5097 = vsel %vm1665, %v5095, %v5096
    %v5100 = vadd.f32 %v5038, %v5094
    %v5101 = vadd.f32 %v5039, %v5097
    %s5102 = sld [smem:[#allocation9 + $0x69]]
    %v5103 = vstv %s5102
    %v5104 = vmul.f32 %v4942, %v5103
    %v5105 = vmul.f32 %v4943, %v5103
    %v5106 = vmul.f32 %v4944, %v5103
    %v5107 = vmul.f32 %v4945, %v5103
    %v5112 = vrot.slane %v5104, 1
    %v5113 = vrot.slane %v5105, 1
    %v5114 = vsel %vm1665, %v5112, %v5113
    %v5115 = vrot.slane %v5106, 1
    %v5116 = vrot.slane %v5107, 1
    %v5117 = vsel %vm1665, %v5115, %v5116
    %v5120 = vadd.f32 %v5052, %v5114
    %v5121 = vadd.f32 %v5053, %v5117
    %s5122 = sld [smem:[#allocation9 + $0x6a]]
    %v5123 = vstv %s5122
    %v5124 = vmul.f32 %v4942, %v5123
    %v5125 = vmul.f32 %v4943, %v5123
    %v5126 = vmul.f32 %v4944, %v5123
    %v5127 = vmul.f32 %v4945, %v5123
    %v5132 = vrot.slane %v5124, 1
    %v5133 = vrot.slane %v5125, 1
    %v5134 = vsel %vm1665, %v5132, %v5133
    %v5135 = vrot.slane %v5126, 1
    %v5136 = vrot.slane %v5127, 1
    %v5137 = vsel %vm1665, %v5135, %v5136
    %v5140 = vadd.f32 %v5066, %v5134
    %v5141 = vadd.f32 %v5067, %v5137
    %s5142 = sld [smem:[#allocation9 + $0x6b]]
    %v5143 = vstv %s5142
    %v5144 = vmul.f32 %v4942, %v5143
    %v5145 = vmul.f32 %v4943, %v5143
    %v5146 = vmul.f32 %v4944, %v5143
    %v5147 = vmul.f32 %v4945, %v5143
    %v5152 = vrot.slane %v5144, 1
    %v5153 = vrot.slane %v5145, 1
    %v5154 = vsel %vm1665, %v5152, %v5153
    %v5155 = vrot.slane %v5146, 1
    %v5156 = vrot.slane %v5147, 1
    %v5157 = vsel %vm1665, %v5155, %v5156
    %v5160 = vadd.f32 %v5080, %v5154
    %v5161 = vadd.f32 %v5081, %v5157
    %s5162 = sld [smem:[#allocation9 + $0x84]]
    %v5163 = vstv %s5162
    %v5164 = vmul.f32 %v4942, %v5163
    %v5165 = vmul.f32 %v4943, %v5163
    %v5166 = vmul.f32 %v4944, %v5163
    %v5167 = vmul.f32 %v4945, %v5163
    %v5172 = vrot.slane %v5164, 1
    %v5173 = vrot.slane %v5165, 1
    %v5174 = vsel %vm1665, %v5172, %v5173
    %v5175 = vrot.slane %v5166, 1
    %v5176 = vrot.slane %v5167, 1
    %v5177 = vsel %vm1665, %v5175, %v5176
    %5178 = vrot.lane.b32.xlu0 %v5174, 127
    %v5179 = vpop.permute.xlu0 %5178
    %5180 = vrot.lane.b32.xlu0 %v5177, 127
    %v5181 = vpop.permute.xlu0 %5180
    %v5184 = vadd.f32 %v5100, %v5179
    %v5185 = vadd.f32 %v5101, %v5181
    %s5186 = sld [smem:[#allocation9 + $0x85]]
    %v5187 = vstv %s5186
    %v5188 = vmul.f32 %v4942, %v5187
    %v5189 = vmul.f32 %v4943, %v5187
    %v5190 = vmul.f32 %v4944, %v5187
    %v5191 = vmul.f32 %v4945, %v5187
    %v5196 = vrot.slane %v5188, 1
    %v5197 = vrot.slane %v5189, 1
    %v5198 = vsel %vm1665, %v5196, %v5197
    %v5199 = vrot.slane %v5190, 1
    %v5200 = vrot.slane %v5191, 1
    %v5201 = vsel %vm1665, %v5199, %v5200
    %5202 = vrot.lane.b32.xlu0 %v5198, 127
    %v5203 = vpop.permute.xlu0 %5202
    %5204 = vrot.lane.b32.xlu0 %v5201, 127
    %v5205 = vpop.permute.xlu0 %5204
    %v5208 = vadd.f32 %v5120, %v5203
    %v5209 = vadd.f32 %v5121, %v5205
    %s5210 = sld [smem:[#allocation9 + $0x86]]
    %v5211 = vstv %s5210
    %v5212 = vmul.f32 %v4942, %v5211
    %v5213 = vmul.f32 %v4943, %v5211
    %v5214 = vmul.f32 %v4944, %v5211
    %v5215 = vmul.f32 %v4945, %v5211
    %v5220 = vrot.slane %v5212, 1
    %v5221 = vrot.slane %v5213, 1
    %v5222 = vsel %vm1665, %v5220, %v5221
    %v5223 = vrot.slane %v5214, 1
    %v5224 = vrot.slane %v5215, 1
    %v5225 = vsel %vm1665, %v5223, %v5224
    %5226 = vrot.lane.b32.xlu0 %v5222, 127
    %v5227 = vpop.permute.xlu0 %5226
    %5228 = vrot.lane.b32.xlu0 %v5225, 127
    %v5229 = vpop.permute.xlu0 %5228
    %v5232 = vadd.f32 %v5140, %v5227
    %v5233 = vadd.f32 %v5141, %v5229
    %s5234 = sld [smem:[#allocation9 + $0x87]]
    %v5235 = vstv %s5234
    %v5236 = vmul.f32 %v4942, %v5235
    %v5237 = vmul.f32 %v4943, %v5235
    %v5238 = vmul.f32 %v4944, %v5235
    %v5239 = vmul.f32 %v4945, %v5235
    %v5244 = vrot.slane %v5236, 1
    %v5245 = vrot.slane %v5237, 1
    %v5246 = vsel %vm1665, %v5244, %v5245
    %v5247 = vrot.slane %v5238, 1
    %v5248 = vrot.slane %v5239, 1
    %v5249 = vsel %vm1665, %v5247, %v5248
    %5250 = vrot.lane.b32.xlu0 %v5246, 127
    %v5251 = vpop.permute.xlu0 %5250
    %5252 = vrot.lane.b32.xlu0 %v5249, 127
    %v5253 = vpop.permute.xlu0 %5252
    %v5256 = vadd.f32 %v5160, %v5251
    %v5257 = vadd.f32 %v5161, %v5253
    %s5258 = sld [smem:[#allocation9 + $0xa0]]
    %v5259 = vstv %s5258
    %v5260 = vmul.f32 %v4942, %v5259
    %v5261 = vmul.f32 %v4943, %v5259
    %v5262 = vmul.f32 %v4944, %v5259
    %v5263 = vmul.f32 %v4945, %v5259
    %v5268 = vrot.slane %v5260, 1
    %v5269 = vrot.slane %v5261, 1
    %v5270 = vsel %vm1665, %v5268, %v5269
    %v5271 = vrot.slane %v5262, 1
    %v5272 = vrot.slane %v5263, 1
    %v5273 = vsel %vm1665, %v5271, %v5272
    %5274 = vrot.lane.b32.xlu0 %v5270, 126
    %v5275 = vpop.permute.xlu0 %5274
    %5276 = vrot.lane.b32.xlu0 %v5273, 126
    %v5277 = vpop.permute.xlu0 %5276
    %v5280 = vadd.f32 %v5184, %v5275
    %v5281 = vadd.f32 %v5185, %v5277
    %s5282 = sld [smem:[#allocation9 + $0xa1]]
    %v5283 = vstv %s5282
    %v5284 = vmul.f32 %v4942, %v5283
    %v5285 = vmul.f32 %v4943, %v5283
    %v5286 = vmul.f32 %v4944, %v5283
    %v5287 = vmul.f32 %v4945, %v5283
    %v5292 = vrot.slane %v5284, 1
    %v5293 = vrot.slane %v5285, 1
    %v5294 = vsel %vm1665, %v5292, %v5293
    %v5295 = vrot.slane %v5286, 1
    %v5296 = vrot.slane %v5287, 1
    %v5297 = vsel %vm1665, %v5295, %v5296
    %5298 = vrot.lane.b32.xlu0 %v5294, 126
    %v5299 = vpop.permute.xlu0 %5298
    %5300 = vrot.lane.b32.xlu0 %v5297, 126
    %v5301 = vpop.permute.xlu0 %5300
    %v5304 = vadd.f32 %v5208, %v5299
    %v5305 = vadd.f32 %v5209, %v5301
    %s5306 = sld [smem:[#allocation9 + $0xa2]]
    %v5307 = vstv %s5306
    %v5308 = vmul.f32 %v4942, %v5307
    %v5309 = vmul.f32 %v4943, %v5307
    %v5310 = vmul.f32 %v4944, %v5307
    %v5311 = vmul.f32 %v4945, %v5307
    %v5316 = vrot.slane %v5308, 1
    %v5317 = vrot.slane %v5309, 1
    %v5318 = vsel %vm1665, %v5316, %v5317
    %v5319 = vrot.slane %v5310, 1
    %v5320 = vrot.slane %v5311, 1
    %v5321 = vsel %vm1665, %v5319, %v5320
    %5322 = vrot.lane.b32.xlu0 %v5318, 126
    %v5323 = vpop.permute.xlu0 %5322
    %5324 = vrot.lane.b32.xlu0 %v5321, 126
    %v5325 = vpop.permute.xlu0 %5324
    %v5328 = vadd.f32 %v5232, %v5323
    %v5329 = vadd.f32 %v5233, %v5325
    %s5330 = sld [smem:[#allocation9 + $0xa3]]
    %v5331 = vstv %s5330
    %v5332 = vmul.f32 %v4942, %v5331
    %v5333 = vmul.f32 %v4943, %v5331
    %v5334 = vmul.f32 %v4944, %v5331
    %v5335 = vmul.f32 %v4945, %v5331
    %v5340 = vrot.slane %v5332, 1
    %v5341 = vrot.slane %v5333, 1
    %v5342 = vsel %vm1665, %v5340, %v5341
    %v5343 = vrot.slane %v5334, 1
    %v5344 = vrot.slane %v5335, 1
    %v5345 = vsel %vm1665, %v5343, %v5344
    %5346 = vrot.lane.b32.xlu0 %v5342, 126
    %v5347 = vpop.permute.xlu0 %5346
    %5348 = vrot.lane.b32.xlu0 %v5345, 126
    %v5349 = vpop.permute.xlu0 %5348
    %v5352 = vadd.f32 %v5256, %v5347
    %v5353 = vadd.f32 %v5257, %v5349
    %s5354 = sld [smem:[#allocation9 + $0xbc]]
    %v5355 = vstv %s5354
    %v5356 = vmul.f32 %v4942, %v5355
    %v5357 = vmul.f32 %v4943, %v5355
    %v5358 = vmul.f32 %v4944, %v5355
    %v5359 = vmul.f32 %v4945, %v5355
    %v5364 = vrot.slane %v5356, 2
    %v5365 = vrot.slane %v5357, 2
    %v5366 = vsel %vm1938, %v5364, %v5365
    %v5367 = vrot.slane %v5358, 2
    %v5368 = vrot.slane %v5359, 2
    %v5369 = vsel %vm1938, %v5367, %v5368
    %v5372 = vadd.f32 %v5280, %v5366
    %v5373 = vadd.f32 %v5281, %v5369
    %s5374 = sld [smem:[#allocation9 + $0xbd]]
    %v5375 = vstv %s5374
    %v5376 = vmul.f32 %v4942, %v5375
    %v5377 = vmul.f32 %v4943, %v5375
    %v5378 = vmul.f32 %v4944, %v5375
    %v5379 = vmul.f32 %v4945, %v5375
    %v5384 = vrot.slane %v5376, 2
    %v5385 = vrot.slane %v5377, 2
    %v5386 = vsel %vm1938, %v5384, %v5385
    %v5387 = vrot.slane %v5378, 2
    %v5388 = vrot.slane %v5379, 2
    %v5389 = vsel %vm1938, %v5387, %v5388
    %v5392 = vadd.f32 %v5304, %v5386
    %v5393 = vadd.f32 %v5305, %v5389
    %s5394 = sld [smem:[#allocation9 + $0xbe]]
    %v5395 = vstv %s5394
    %v5396 = vmul.f32 %v4942, %v5395
    %v5397 = vmul.f32 %v4943, %v5395
    %v5398 = vmul.f32 %v4944, %v5395
    %v5399 = vmul.f32 %v4945, %v5395
    %v5404 = vrot.slane %v5396, 2
    %v5405 = vrot.slane %v5397, 2
    %v5406 = vsel %vm1938, %v5404, %v5405
    %v5407 = vrot.slane %v5398, 2
    %v5408 = vrot.slane %v5399, 2
    %v5409 = vsel %vm1938, %v5407, %v5408
    %v5412 = vadd.f32 %v5328, %v5406
    %v5413 = vadd.f32 %v5329, %v5409
    %s5414 = sld [smem:[#allocation9 + $0xbf]]
    %v5415 = vstv %s5414
    %v5416 = vmul.f32 %v4942, %v5415
    %v5417 = vmul.f32 %v4943, %v5415
    %v5418 = vmul.f32 %v4944, %v5415
    %v5419 = vmul.f32 %v4945, %v5415
    %v5424 = vrot.slane %v5416, 2
    %v5425 = vrot.slane %v5417, 2
    %v5426 = vsel %vm1938, %v5424, %v5425
    %v5427 = vrot.slane %v5418, 2
    %v5428 = vrot.slane %v5419, 2
    %v5429 = vsel %vm1938, %v5427, %v5428
    %v5432 = vadd.f32 %v5352, %v5426
    %v5433 = vadd.f32 %v5353, %v5429
    %s5434 = sld [smem:[#allocation9 + $0xd8]]
    %v5435 = vstv %s5434
    %v5436 = vmul.f32 %v4942, %v5435
    %v5437 = vmul.f32 %v4943, %v5435
    %v5438 = vmul.f32 %v4944, %v5435
    %v5439 = vmul.f32 %v4945, %v5435
    %v5444 = vrot.slane %v5436, 2
    %v5445 = vrot.slane %v5437, 2
    %v5446 = vsel %vm1938, %v5444, %v5445
    %v5447 = vrot.slane %v5438, 2
    %v5448 = vrot.slane %v5439, 2
    %v5449 = vsel %vm1938, %v5447, %v5448
    %5450 = vrot.lane.b32.xlu0 %v5446, 127
    %v5451 = vpop.permute.xlu0 %5450
    %5452 = vrot.lane.b32.xlu0 %v5449, 127
    %v5453 = vpop.permute.xlu0 %5452
    %v5456 = vadd.f32 %v5372, %v5451
    %v5457 = vadd.f32 %v5373, %v5453
    %s5458 = sld [smem:[#allocation9 + $0xd9]]
    %v5459 = vstv %s5458
    %v5460 = vmul.f32 %v4942, %v5459
    %v5461 = vmul.f32 %v4943, %v5459
    %v5462 = vmul.f32 %v4944, %v5459
    %v5463 = vmul.f32 %v4945, %v5459
    %v5468 = vrot.slane %v5460, 2
    %v5469 = vrot.slane %v5461, 2
    %v5470 = vsel %vm1938, %v5468, %v5469
    %v5471 = vrot.slane %v5462, 2
    %v5472 = vrot.slane %v5463, 2
    %v5473 = vsel %vm1938, %v5471, %v5472
    %5474 = vrot.lane.b32.xlu0 %v5470, 127
    %v5475 = vpop.permute.xlu0 %5474
    %5476 = vrot.lane.b32.xlu0 %v5473, 127
    %v5477 = vpop.permute.xlu0 %5476
    %v5480 = vadd.f32 %v5392, %v5475
    %v5481 = vadd.f32 %v5393, %v5477
    %s5482 = sld [smem:[#allocation9 + $0xda]]
    %v5483 = vstv %s5482
    %v5484 = vmul.f32 %v4942, %v5483
    %v5485 = vmul.f32 %v4943, %v5483
    %v5486 = vmul.f32 %v4944, %v5483
    %v5487 = vmul.f32 %v4945, %v5483
    %v5492 = vrot.slane %v5484, 2
    %v5493 = vrot.slane %v5485, 2
    %v5494 = vsel %vm1938, %v5492, %v5493
    %v5495 = vrot.slane %v5486, 2
    %v5496 = vrot.slane %v5487, 2
    %v5497 = vsel %vm1938, %v5495, %v5496
    %5498 = vrot.lane.b32.xlu0 %v5494, 127
    %v5499 = vpop.permute.xlu0 %5498
    %5500 = vrot.lane.b32.xlu0 %v5497, 127
    %v5501 = vpop.permute.xlu0 %5500
    %v5504 = vadd.f32 %v5412, %v5499
    %v5505 = vadd.f32 %v5413, %v5501
    %s5506 = sld [smem:[#allocation9 + $0xdb]]
    %v5507 = vstv %s5506
    %v5508 = vmul.f32 %v4942, %v5507
    %v5509 = vmul.f32 %v4943, %v5507
    %v5510 = vmul.f32 %v4944, %v5507
    %v5511 = vmul.f32 %v4945, %v5507
    %v5516 = vrot.slane %v5508, 2
    %v5517 = vrot.slane %v5509, 2
    %v5518 = vsel %vm1938, %v5516, %v5517
    %v5519 = vrot.slane %v5510, 2
    %v5520 = vrot.slane %v5511, 2
    %v5521 = vsel %vm1938, %v5519, %v5520
    %5522 = vrot.lane.b32.xlu0 %v5518, 127
    %v5523 = vpop.permute.xlu0 %5522
    %5524 = vrot.lane.b32.xlu0 %v5521, 127
    %v5525 = vpop.permute.xlu0 %5524
    %v5528 = vadd.f32 %v5432, %v5523
    %v5529 = vadd.f32 %v5433, %v5525
    %s5530 = sld [smem:[#allocation9 + $0xf4]]
    %v5531 = vstv %s5530
    %v5532 = vmul.f32 %v4942, %v5531
    %v5533 = vmul.f32 %v4943, %v5531
    %v5534 = vmul.f32 %v4944, %v5531
    %v5535 = vmul.f32 %v4945, %v5531
    %v5540 = vrot.slane %v5532, 2
    %v5541 = vrot.slane %v5533, 2
    %v5542 = vsel %vm1938, %v5540, %v5541
    %v5543 = vrot.slane %v5534, 2
    %v5544 = vrot.slane %v5535, 2
    %v5545 = vsel %vm1938, %v5543, %v5544
    %5546 = vrot.lane.b32.xlu0 %v5542, 126
    %v5547 = vpop.permute.xlu0 %5546
    %5548 = vrot.lane.b32.xlu0 %v5545, 126
    %v5549 = vpop.permute.xlu0 %5548
    %v5552 = vadd.f32 %v5456, %v5547
    %v5553 = vadd.f32 %v5457, %v5549
    %s5554 = sld [smem:[#allocation9 + $0xf5]]
    %v5555 = vstv %s5554
    %v5556 = vmul.f32 %v4942, %v5555
    %v5557 = vmul.f32 %v4943, %v5555
    %v5558 = vmul.f32 %v4944, %v5555
    %v5559 = vmul.f32 %v4945, %v5555
    %v5564 = vrot.slane %v5556, 2
    %v5565 = vrot.slane %v5557, 2
    %v5566 = vsel %vm1938, %v5564, %v5565
    %v5567 = vrot.slane %v5558, 2
    %v5568 = vrot.slane %v5559, 2
    %v5569 = vsel %vm1938, %v5567, %v5568
    %5570 = vrot.lane.b32.xlu0 %v5566, 126
    %v5571 = vpop.permute.xlu0 %5570
    %5572 = vrot.lane.b32.xlu0 %v5569, 126
    %v5573 = vpop.permute.xlu0 %5572
    %v5576 = vadd.f32 %v5480, %v5571
    %v5577 = vadd.f32 %v5481, %v5573
    %s5578 = sld [smem:[#allocation9 + $0xf6]]
    %v5579 = vstv %s5578
    %v5580 = vmul.f32 %v4942, %v5579
    %v5581 = vmul.f32 %v4943, %v5579
    %v5582 = vmul.f32 %v4944, %v5579
    %v5583 = vmul.f32 %v4945, %v5579
    %v5588 = vrot.slane %v5580, 2
    %v5589 = vrot.slane %v5581, 2
    %v5590 = vsel %vm1938, %v5588, %v5589
    %v5591 = vrot.slane %v5582, 2
    %v5592 = vrot.slane %v5583, 2
    %v5593 = vsel %vm1938, %v5591, %v5592
    %5594 = vrot.lane.b32.xlu0 %v5590, 126
    %v5595 = vpop.permute.xlu0 %5594
    %5596 = vrot.lane.b32.xlu0 %v5593, 126
    %v5597 = vpop.permute.xlu0 %5596
    %v5600 = vadd.f32 %v5504, %v5595
    %v5601 = vadd.f32 %v5505, %v5597
    %s5602 = sld [smem:[#allocation9 + $0xf7]]
    %v5603 = vstv %s5602
    %v5604 = vmul.f32 %v4942, %v5603
    %v5605 = vmul.f32 %v4943, %v5603
    %v5606 = vmul.f32 %v4944, %v5603
    %v5607 = vmul.f32 %v4945, %v5603
    %v5612 = vrot.slane %v5604, 2
    %v5613 = vrot.slane %v5605, 2
    %v5614 = vsel %vm1938, %v5612, %v5613
    %v5615 = vrot.slane %v5606, 2
    %v5616 = vrot.slane %v5607, 2
    %v5617 = vsel %vm1938, %v5615, %v5616
    %5618 = vrot.lane.b32.xlu0 %v5614, 126
    %v5619 = vpop.permute.xlu0 %5618
    %5620 = vrot.lane.b32.xlu0 %v5617, 126
    %v5621 = vpop.permute.xlu0 %5620
    %v5624 = vadd.f32 %v5528, %v5619
    %v5625 = vadd.f32 %v5529, %v5621
    %s5626 = scalar_lea.vmem [#allocation2], 96
    %v5627 = vld [vmem:[%s5626] sm:$0xff]
    %v5628 = vld [vmem:[%s5626 + $0x8] sm:$0x3]
    %v5629 = vld [vmem:[%s5626 + $0x70] sm:$0xff]
    %v5630 = vld [vmem:[%s5626 + $0x78] sm:$0x3]
    %s5631 = sld [smem:[#allocation9 + $0x18]]
    %v5632 = vstv %s5631
    %v5633 = vmul.f32 %v5627, %v5632
    %v5634 = vmul.f32 %v5629, %v5632
    %v5635 = vadd.f32 %v5552, %v5633
    %v5636 = vadd.f32 %v5553, %v5634
    %s5637 = sld [smem:[#allocation9 + $0x19]]
    %v5638 = vstv %s5637
    %v5639 = vmul.f32 %v5627, %v5638
    %v5640 = vmul.f32 %v5629, %v5638
    %v5641 = vadd.f32 %v5576, %v5639
    %v5642 = vadd.f32 %v5577, %v5640
    %s5643 = sld [smem:[#allocation9 + $0x1a]]
    %v5644 = vstv %s5643
    %v5645 = vmul.f32 %v5627, %v5644
    %v5646 = vmul.f32 %v5629, %v5644
    %v5647 = vadd.f32 %v5600, %v5645
    %v5648 = vadd.f32 %v5601, %v5646
    %s5649 = sld [smem:[#allocation9 + $0x1b]]
    %v5650 = vstv %s5649
    %v5651 = vmul.f32 %v5627, %v5650
    %v5652 = vmul.f32 %v5629, %v5650
    %v5653 = vadd.f32 %v5624, %v5651
    %v5654 = vadd.f32 %v5625, %v5652
    %s5655 = sld [smem:[#allocation9 + $0x34]]
    %v5656 = vstv %s5655
    %v5657 = vmul.f32 %v5627, %v5656
    %v5658 = vmul.f32 %v5629, %v5656
    %5661 = vrot.lane.b32.xlu0 %v5657, 127
    %v5662 = vpop.permute.xlu0 %5661
    %5663 = vrot.lane.b32.xlu0 %v5658, 127
    %v5664 = vpop.permute.xlu0 %5663
    %v5667 = vadd.f32 %v5635, %v5662
    %v5668 = vadd.f32 %v5636, %v5664
    %s5669 = sld [smem:[#allocation9 + $0x35]]
    %v5670 = vstv %s5669
    %v5671 = vmul.f32 %v5627, %v5670
    %v5672 = vmul.f32 %v5629, %v5670
    %5675 = vrot.lane.b32.xlu0 %v5671, 127
    %v5676 = vpop.permute.xlu0 %5675
    %5677 = vrot.lane.b32.xlu0 %v5672, 127
    %v5678 = vpop.permute.xlu0 %5677
    %v5681 = vadd.f32 %v5641, %v5676
    %v5682 = vadd.f32 %v5642, %v5678
    %s5683 = sld [smem:[#allocation9 + $0x36]]
    %v5684 = vstv %s5683
    %v5685 = vmul.f32 %v5627, %v5684
    %v5686 = vmul.f32 %v5629, %v5684
    %5689 = vrot.lane.b32.xlu0 %v5685, 127
    %v5690 = vpop.permute.xlu0 %5689
    %5691 = vrot.lane.b32.xlu0 %v5686, 127
    %v5692 = vpop.permute.xlu0 %5691
    %v5695 = vadd.f32 %v5647, %v5690
    %v5696 = vadd.f32 %v5648, %v5692
    %s5697 = sld [smem:[#allocation9 + $0x37]]
    %v5698 = vstv %s5697
    %v5699 = vmul.f32 %v5627, %v5698
    %v5700 = vmul.f32 %v5629, %v5698
    %5703 = vrot.lane.b32.xlu0 %v5699, 127
    %v5704 = vpop.permute.xlu0 %5703
    %5705 = vrot.lane.b32.xlu0 %v5700, 127
    %v5706 = vpop.permute.xlu0 %5705
    %v5709 = vadd.f32 %v5653, %v5704
    %v5710 = vadd.f32 %v5654, %v5706
    %s5711 = sld [smem:[#allocation9 + $0x50]]
    %v5712 = vstv %s5711
    %v5713 = vmul.f32 %v5627, %v5712
    %v5714 = vmul.f32 %v5629, %v5712
    %5717 = vrot.lane.b32.xlu0 %v5713, 126
    %v5718 = vpop.permute.xlu0 %5717
    %5719 = vrot.lane.b32.xlu0 %v5714, 126
    %v5720 = vpop.permute.xlu0 %5719
    %v5723 = vadd.f32 %v5667, %v5718
    %v5724 = vadd.f32 %v5668, %v5720
    %s5725 = sld [smem:[#allocation9 + $0x51]]
    %v5726 = vstv %s5725
    %v5727 = vmul.f32 %v5627, %v5726
    %v5728 = vmul.f32 %v5629, %v5726
    %5731 = vrot.lane.b32.xlu0 %v5727, 126
    %v5732 = vpop.permute.xlu0 %5731
    %5733 = vrot.lane.b32.xlu0 %v5728, 126
    %v5734 = vpop.permute.xlu0 %5733
    %v5737 = vadd.f32 %v5681, %v5732
    %v5738 = vadd.f32 %v5682, %v5734
    %s5739 = sld [smem:[#allocation9 + $0x52]]
    %v5740 = vstv %s5739
    %v5741 = vmul.f32 %v5627, %v5740
    %v5742 = vmul.f32 %v5629, %v5740
    %5745 = vrot.lane.b32.xlu0 %v5741, 126
    %v5746 = vpop.permute.xlu0 %5745
    %5747 = vrot.lane.b32.xlu0 %v5742, 126
    %v5748 = vpop.permute.xlu0 %5747
    %v5751 = vadd.f32 %v5695, %v5746
    %v5752 = vadd.f32 %v5696, %v5748
    %s5753 = sld [smem:[#allocation9 + $0x53]]
    %v5754 = vstv %s5753
    %v5755 = vmul.f32 %v5627, %v5754
    %v5756 = vmul.f32 %v5629, %v5754
    %5759 = vrot.lane.b32.xlu0 %v5755, 126
    %v5760 = vpop.permute.xlu0 %5759
    %5761 = vrot.lane.b32.xlu0 %v5756, 126
    %v5762 = vpop.permute.xlu0 %5761
    %v5765 = vadd.f32 %v5709, %v5760
    %v5766 = vadd.f32 %v5710, %v5762
    %s5767 = sld [smem:[#allocation9 + $0x6c]]
    %v5768 = vstv %s5767
    %v5769 = vmul.f32 %v5627, %v5768
    %v5770 = vmul.f32 %v5628, %v5768
    %v5771 = vmul.f32 %v5629, %v5768
    %v5772 = vmul.f32 %v5630, %v5768
    %v5777 = vrot.slane %v5769, 1
    %v5778 = vrot.slane %v5770, 1
    %v5779 = vsel %vm1665, %v5777, %v5778
    %v5780 = vrot.slane %v5771, 1
    %v5781 = vrot.slane %v5772, 1
    %v5782 = vsel %vm1665, %v5780, %v5781
    %v5785 = vadd.f32 %v5723, %v5779
    %v5786 = vadd.f32 %v5724, %v5782
    %s5787 = sld [smem:[#allocation9 + $0x6d]]
    %v5788 = vstv %s5787
    %v5789 = vmul.f32 %v5627, %v5788
    %v5790 = vmul.f32 %v5628, %v5788
    %v5791 = vmul.f32 %v5629, %v5788
    %v5792 = vmul.f32 %v5630, %v5788
    %v5797 = vrot.slane %v5789, 1
    %v5798 = vrot.slane %v5790, 1
    %v5799 = vsel %vm1665, %v5797, %v5798
    %v5800 = vrot.slane %v5791, 1
    %v5801 = vrot.slane %v5792, 1
    %v5802 = vsel %vm1665, %v5800, %v5801
    %v5805 = vadd.f32 %v5737, %v5799
    %v5806 = vadd.f32 %v5738, %v5802
    %s5807 = sld [smem:[#allocation9 + $0x6e]]
    %v5808 = vstv %s5807
    %v5809 = vmul.f32 %v5627, %v5808
    %v5810 = vmul.f32 %v5628, %v5808
    %v5811 = vmul.f32 %v5629, %v5808
    %v5812 = vmul.f32 %v5630, %v5808
    %v5817 = vrot.slane %v5809, 1
    %v5818 = vrot.slane %v5810, 1
    %v5819 = vsel %vm1665, %v5817, %v5818
    %v5820 = vrot.slane %v5811, 1
    %v5821 = vrot.slane %v5812, 1
    %v5822 = vsel %vm1665, %v5820, %v5821
    %v5825 = vadd.f32 %v5751, %v5819
    %v5826 = vadd.f32 %v5752, %v5822
    %s5827 = sld [smem:[#allocation9 + $0x6f]]
    %v5828 = vstv %s5827
    %v5829 = vmul.f32 %v5627, %v5828
    %v5830 = vmul.f32 %v5628, %v5828
    %v5831 = vmul.f32 %v5629, %v5828
    %v5832 = vmul.f32 %v5630, %v5828
    %v5837 = vrot.slane %v5829, 1
    %v5838 = vrot.slane %v5830, 1
    %v5839 = vsel %vm1665, %v5837, %v5838
    %v5840 = vrot.slane %v5831, 1
    %v5841 = vrot.slane %v5832, 1
    %v5842 = vsel %vm1665, %v5840, %v5841
    %v5845 = vadd.f32 %v5765, %v5839
    %v5846 = vadd.f32 %v5766, %v5842
    %s5847 = sld [smem:[#allocation9 + $0x88]]
    %v5848 = vstv %s5847
    %v5849 = vmul.f32 %v5627, %v5848
    %v5850 = vmul.f32 %v5628, %v5848
    %v5851 = vmul.f32 %v5629, %v5848
    %v5852 = vmul.f32 %v5630, %v5848
    %v5857 = vrot.slane %v5849, 1
    %v5858 = vrot.slane %v5850, 1
    %v5859 = vsel %vm1665, %v5857, %v5858
    %v5860 = vrot.slane %v5851, 1
    %v5861 = vrot.slane %v5852, 1
    %v5862 = vsel %vm1665, %v5860, %v5861
    %5863 = vrot.lane.b32.xlu0 %v5859, 127
    %v5864 = vpop.permute.xlu0 %5863
    %5865 = vrot.lane.b32.xlu0 %v5862, 127
    %v5866 = vpop.permute.xlu0 %5865
    %v5869 = vadd.f32 %v5785, %v5864
    %v5870 = vadd.f32 %v5786, %v5866
    %s5871 = sld [smem:[#allocation9 + $0x89]]
    %v5872 = vstv %s5871
    %v5873 = vmul.f32 %v5627, %v5872
    %v5874 = vmul.f32 %v5628, %v5872
    %v5875 = vmul.f32 %v5629, %v5872
    %v5876 = vmul.f32 %v5630, %v5872
    %v5881 = vrot.slane %v5873, 1
    %v5882 = vrot.slane %v5874, 1
    %v5883 = vsel %vm1665, %v5881, %v5882
    %v5884 = vrot.slane %v5875, 1
    %v5885 = vrot.slane %v5876, 1
    %v5886 = vsel %vm1665, %v5884, %v5885
    %5887 = vrot.lane.b32.xlu0 %v5883, 127
    %v5888 = vpop.permute.xlu0 %5887
    %5889 = vrot.lane.b32.xlu0 %v5886, 127
    %v5890 = vpop.permute.xlu0 %5889
    %v5893 = vadd.f32 %v5805, %v5888
    %v5894 = vadd.f32 %v5806, %v5890
    %s5895 = sld [smem:[#allocation9 + $0x8a]]
    %v5896 = vstv %s5895
    %v5897 = vmul.f32 %v5627, %v5896
    %v5898 = vmul.f32 %v5628, %v5896
    %v5899 = vmul.f32 %v5629, %v5896
    %v5900 = vmul.f32 %v5630, %v5896
    %v5905 = vrot.slane %v5897, 1
    %v5906 = vrot.slane %v5898, 1
    %v5907 = vsel %vm1665, %v5905, %v5906
    %v5908 = vrot.slane %v5899, 1
    %v5909 = vrot.slane %v5900, 1
    %v5910 = vsel %vm1665, %v5908, %v5909
    %5911 = vrot.lane.b32.xlu0 %v5907, 127
    %v5912 = vpop.permute.xlu0 %5911
    %5913 = vrot.lane.b32.xlu0 %v5910, 127
    %v5914 = vpop.permute.xlu0 %5913
    %v5917 = vadd.f32 %v5825, %v5912
    %v5918 = vadd.f32 %v5826, %v5914
    %s5919 = sld [smem:[#allocation9 + $0x8b]]
    %v5920 = vstv %s5919
    %v5921 = vmul.f32 %v5627, %v5920
    %v5922 = vmul.f32 %v5628, %v5920
    %v5923 = vmul.f32 %v5629, %v5920
    %v5924 = vmul.f32 %v5630, %v5920
    %v5929 = vrot.slane %v5921, 1
    %v5930 = vrot.slane %v5922, 1
    %v5931 = vsel %vm1665, %v5929, %v5930
    %v5932 = vrot.slane %v5923, 1
    %v5933 = vrot.slane %v5924, 1
    %v5934 = vsel %vm1665, %v5932, %v5933
    %5935 = vrot.lane.b32.xlu0 %v5931, 127
    %v5936 = vpop.permute.xlu0 %5935
    %5937 = vrot.lane.b32.xlu0 %v5934, 127
    %v5938 = vpop.permute.xlu0 %5937
    %v5941 = vadd.f32 %v5845, %v5936
    %v5942 = vadd.f32 %v5846, %v5938
    %s5943 = sld [smem:[#allocation9 + $0xa4]]
    %v5944 = vstv %s5943
    %v5945 = vmul.f32 %v5627, %v5944
    %v5946 = vmul.f32 %v5628, %v5944
    %v5947 = vmul.f32 %v5629, %v5944
    %v5948 = vmul.f32 %v5630, %v5944
    %v5953 = vrot.slane %v5945, 1
    %v5954 = vrot.slane %v5946, 1
    %v5955 = vsel %vm1665, %v5953, %v5954
    %v5956 = vrot.slane %v5947, 1
    %v5957 = vrot.slane %v5948, 1
    %v5958 = vsel %vm1665, %v5956, %v5957
    %5959 = vrot.lane.b32.xlu0 %v5955, 126
    %v5960 = vpop.permute.xlu0 %5959
    %5961 = vrot.lane.b32.xlu0 %v5958, 126
    %v5962 = vpop.permute.xlu0 %5961
    %v5965 = vadd.f32 %v5869, %v5960
    %v5966 = vadd.f32 %v5870, %v5962
    %s5967 = sld [smem:[#allocation9 + $0xa5]]
    %v5968 = vstv %s5967
    %v5969 = vmul.f32 %v5627, %v5968
    %v5970 = vmul.f32 %v5628, %v5968
    %v5971 = vmul.f32 %v5629, %v5968
    %v5972 = vmul.f32 %v5630, %v5968
    %v5977 = vrot.slane %v5969, 1
    %v5978 = vrot.slane %v5970, 1
    %v5979 = vsel %vm1665, %v5977, %v5978
    %v5980 = vrot.slane %v5971, 1
    %v5981 = vrot.slane %v5972, 1
    %v5982 = vsel %vm1665, %v5980, %v5981
    %5983 = vrot.lane.b32.xlu0 %v5979, 126
    %v5984 = vpop.permute.xlu0 %5983
    %5985 = vrot.lane.b32.xlu0 %v5982, 126
    %v5986 = vpop.permute.xlu0 %5985
    %v5989 = vadd.f32 %v5893, %v5984
    %v5990 = vadd.f32 %v5894, %v5986
    %s5991 = sld [smem:[#allocation9 + $0xa6]]
    %v5992 = vstv %s5991
    %v5993 = vmul.f32 %v5627, %v5992
    %v5994 = vmul.f32 %v5628, %v5992
    %v5995 = vmul.f32 %v5629, %v5992
    %v5996 = vmul.f32 %v5630, %v5992
    %v6001 = vrot.slane %v5993, 1
    %v6002 = vrot.slane %v5994, 1
    %v6003 = vsel %vm1665, %v6001, %v6002
    %v6004 = vrot.slane %v5995, 1
    %v6005 = vrot.slane %v5996, 1
    %v6006 = vsel %vm1665, %v6004, %v6005
    %6007 = vrot.lane.b32.xlu0 %v6003, 126
    %v6008 = vpop.permute.xlu0 %6007
    %6009 = vrot.lane.b32.xlu0 %v6006, 126
    %v6010 = vpop.permute.xlu0 %6009
    %v6013 = vadd.f32 %v5917, %v6008
    %v6014 = vadd.f32 %v5918, %v6010
    %s6015 = sld [smem:[#allocation9 + $0xa7]]
    %v6016 = vstv %s6015
    %v6017 = vmul.f32 %v5627, %v6016
    %v6018 = vmul.f32 %v5628, %v6016
    %v6019 = vmul.f32 %v5629, %v6016
    %v6020 = vmul.f32 %v5630, %v6016
    %v6025 = vrot.slane %v6017, 1
    %v6026 = vrot.slane %v6018, 1
    %v6027 = vsel %vm1665, %v6025, %v6026
    %v6028 = vrot.slane %v6019, 1
    %v6029 = vrot.slane %v6020, 1
    %v6030 = vsel %vm1665, %v6028, %v6029
    %6031 = vrot.lane.b32.xlu0 %v6027, 126
    %v6032 = vpop.permute.xlu0 %6031
    %6033 = vrot.lane.b32.xlu0 %v6030, 126
    %v6034 = vpop.permute.xlu0 %6033
    %v6037 = vadd.f32 %v5941, %v6032
    %v6038 = vadd.f32 %v5942, %v6034
    %s6039 = sld [smem:[#allocation9 + $0xc0]]
    %v6040 = vstv %s6039
    %v6041 = vmul.f32 %v5627, %v6040
    %v6042 = vmul.f32 %v5628, %v6040
    %v6043 = vmul.f32 %v5629, %v6040
    %v6044 = vmul.f32 %v5630, %v6040
    %v6049 = vrot.slane %v6041, 2
    %v6050 = vrot.slane %v6042, 2
    %v6051 = vsel %vm1938, %v6049, %v6050
    %v6052 = vrot.slane %v6043, 2
    %v6053 = vrot.slane %v6044, 2
    %v6054 = vsel %vm1938, %v6052, %v6053
    %v6057 = vadd.f32 %v5965, %v6051
    %v6058 = vadd.f32 %v5966, %v6054
    %s6059 = sld [smem:[#allocation9 + $0xc1]]
    %v6060 = vstv %s6059
    %v6061 = vmul.f32 %v5627, %v6060
    %v6062 = vmul.f32 %v5628, %v6060
    %v6063 = vmul.f32 %v5629, %v6060
    %v6064 = vmul.f32 %v5630, %v6060
    %v6069 = vrot.slane %v6061, 2
    %v6070 = vrot.slane %v6062, 2
    %v6071 = vsel %vm1938, %v6069, %v6070
    %v6072 = vrot.slane %v6063, 2
    %v6073 = vrot.slane %v6064, 2
    %v6074 = vsel %vm1938, %v6072, %v6073
    %v6077 = vadd.f32 %v5989, %v6071
    %v6078 = vadd.f32 %v5990, %v6074
    %s6079 = sld [smem:[#allocation9 + $0xc2]]
    %v6080 = vstv %s6079
    %v6081 = vmul.f32 %v5627, %v6080
    %v6082 = vmul.f32 %v5628, %v6080
    %v6083 = vmul.f32 %v5629, %v6080
    %v6084 = vmul.f32 %v5630, %v6080
    %v6089 = vrot.slane %v6081, 2
    %v6090 = vrot.slane %v6082, 2
    %v6091 = vsel %vm1938, %v6089, %v6090
    %v6092 = vrot.slane %v6083, 2
    %v6093 = vrot.slane %v6084, 2
    %v6094 = vsel %vm1938, %v6092, %v6093
    %v6097 = vadd.f32 %v6013, %v6091
    %v6098 = vadd.f32 %v6014, %v6094
    %s6099 = sld [smem:[#allocation9 + $0xc3]]
    %v6100 = vstv %s6099
    %v6101 = vmul.f32 %v5627, %v6100
    %v6102 = vmul.f32 %v5628, %v6100
    %v6103 = vmul.f32 %v5629, %v6100
    %v6104 = vmul.f32 %v5630, %v6100
    %v6109 = vrot.slane %v6101, 2
    %v6110 = vrot.slane %v6102, 2
    %v6111 = vsel %vm1938, %v6109, %v6110
    %v6112 = vrot.slane %v6103, 2
    %v6113 = vrot.slane %v6104, 2
    %v6114 = vsel %vm1938, %v6112, %v6113
    %v6117 = vadd.f32 %v6037, %v6111
    %v6118 = vadd.f32 %v6038, %v6114
    %s6119 = sld [smem:[#allocation9 + $0xdc]]
    %v6120 = vstv %s6119
    %v6121 = vmul.f32 %v5627, %v6120
    %v6122 = vmul.f32 %v5628, %v6120
    %v6123 = vmul.f32 %v5629, %v6120
    %v6124 = vmul.f32 %v5630, %v6120
    %v6129 = vrot.slane %v6121, 2
    %v6130 = vrot.slane %v6122, 2
    %v6131 = vsel %vm1938, %v6129, %v6130
    %v6132 = vrot.slane %v6123, 2
    %v6133 = vrot.slane %v6124, 2
    %v6134 = vsel %vm1938, %v6132, %v6133
    %6135 = vrot.lane.b32.xlu0 %v6131, 127
    %v6136 = vpop.permute.xlu0 %6135
    %6137 = vrot.lane.b32.xlu0 %v6134, 127
    %v6138 = vpop.permute.xlu0 %6137
    %v6141 = vadd.f32 %v6057, %v6136
    %v6142 = vadd.f32 %v6058, %v6138
    %s6143 = sld [smem:[#allocation9 + $0xdd]]
    %v6144 = vstv %s6143
    %v6145 = vmul.f32 %v5627, %v6144
    %v6146 = vmul.f32 %v5628, %v6144
    %v6147 = vmul.f32 %v5629, %v6144
    %v6148 = vmul.f32 %v5630, %v6144
    %v6153 = vrot.slane %v6145, 2
    %v6154 = vrot.slane %v6146, 2
    %v6155 = vsel %vm1938, %v6153, %v6154
    %v6156 = vrot.slane %v6147, 2
    %v6157 = vrot.slane %v6148, 2
    %v6158 = vsel %vm1938, %v6156, %v6157
    %6159 = vrot.lane.b32.xlu0 %v6155, 127
    %v6160 = vpop.permute.xlu0 %6159
    %6161 = vrot.lane.b32.xlu0 %v6158, 127
    %v6162 = vpop.permute.xlu0 %6161
    %v6165 = vadd.f32 %v6077, %v6160
    %v6166 = vadd.f32 %v6078, %v6162
    %s6167 = sld [smem:[#allocation9 + $0xde]]
    %v6168 = vstv %s6167
    %v6169 = vmul.f32 %v5627, %v6168
    %v6170 = vmul.f32 %v5628, %v6168
    %v6171 = vmul.f32 %v5629, %v6168
    %v6172 = vmul.f32 %v5630, %v6168
    %v6177 = vrot.slane %v6169, 2
    %v6178 = vrot.slane %v6170, 2
    %v6179 = vsel %vm1938, %v6177, %v6178
    %v6180 = vrot.slane %v6171, 2
    %v6181 = vrot.slane %v6172, 2
    %v6182 = vsel %vm1938, %v6180, %v6181
    %6183 = vrot.lane.b32.xlu0 %v6179, 127
    %v6184 = vpop.permute.xlu0 %6183
    %6185 = vrot.lane.b32.xlu0 %v6182, 127
    %v6186 = vpop.permute.xlu0 %6185
    %v6189 = vadd.f32 %v6097, %v6184
    %v6190 = vadd.f32 %v6098, %v6186
    %s6191 = sld [smem:[#allocation9 + $0xdf]]
    %v6192 = vstv %s6191
    %v6193 = vmul.f32 %v5627, %v6192
    %v6194 = vmul.f32 %v5628, %v6192
    %v6195 = vmul.f32 %v5629, %v6192
    %v6196 = vmul.f32 %v5630, %v6192
    %v6201 = vrot.slane %v6193, 2
    %v6202 = vrot.slane %v6194, 2
    %v6203 = vsel %vm1938, %v6201, %v6202
    %v6204 = vrot.slane %v6195, 2
    %v6205 = vrot.slane %v6196, 2
    %v6206 = vsel %vm1938, %v6204, %v6205
    %6207 = vrot.lane.b32.xlu0 %v6203, 127
    %v6208 = vpop.permute.xlu0 %6207
    %6209 = vrot.lane.b32.xlu0 %v6206, 127
    %v6210 = vpop.permute.xlu0 %6209
    %v6213 = vadd.f32 %v6117, %v6208
    %v6214 = vadd.f32 %v6118, %v6210
    %s6215 = sld [smem:[#allocation9 + $0xf8]]
    %v6216 = vstv %s6215
    %v6217 = vmul.f32 %v5627, %v6216
    %v6218 = vmul.f32 %v5628, %v6216
    %v6219 = vmul.f32 %v5629, %v6216
    %v6220 = vmul.f32 %v5630, %v6216
    %v6225 = vrot.slane %v6217, 2
    %v6226 = vrot.slane %v6218, 2
    %v6227 = vsel %vm1938, %v6225, %v6226
    %v6228 = vrot.slane %v6219, 2
    %v6229 = vrot.slane %v6220, 2
    %v6230 = vsel %vm1938, %v6228, %v6229
    %6231 = vrot.lane.b32.xlu0 %v6227, 126
    %v6232 = vpop.permute.xlu0 %6231
    %6233 = vrot.lane.b32.xlu0 %v6230, 126
    %v6234 = vpop.permute.xlu0 %6233
    %v6237 = vadd.f32 %v6141, %v6232
    %v6238 = vadd.f32 %v6142, %v6234
    %s6239 = sld [smem:[#allocation9 + $0xf9]]
    %v6240 = vstv %s6239
    %v6241 = vmul.f32 %v5627, %v6240
    %v6242 = vmul.f32 %v5628, %v6240
    %v6243 = vmul.f32 %v5629, %v6240
    %v6244 = vmul.f32 %v5630, %v6240
    %v6249 = vrot.slane %v6241, 2
    %v6250 = vrot.slane %v6242, 2
    %v6251 = vsel %vm1938, %v6249, %v6250
    %v6252 = vrot.slane %v6243, 2
    %v6253 = vrot.slane %v6244, 2
    %v6254 = vsel %vm1938, %v6252, %v6253
    %6255 = vrot.lane.b32.xlu0 %v6251, 126
    %v6256 = vpop.permute.xlu0 %6255
    %6257 = vrot.lane.b32.xlu0 %v6254, 126
    %v6258 = vpop.permute.xlu0 %6257
    %v6261 = vadd.f32 %v6165, %v6256
    %v6262 = vadd.f32 %v6166, %v6258
    %s6263 = sld [smem:[#allocation9 + $0xfa]]
    %v6264 = vstv %s6263
    %v6265 = vmul.f32 %v5627, %v6264
    %v6266 = vmul.f32 %v5628, %v6264
    %v6267 = vmul.f32 %v5629, %v6264
    %v6268 = vmul.f32 %v5630, %v6264
    %v6273 = vrot.slane %v6265, 2
    %v6274 = vrot.slane %v6266, 2
    %v6275 = vsel %vm1938, %v6273, %v6274
    %v6276 = vrot.slane %v6267, 2
    %v6277 = vrot.slane %v6268, 2
    %v6278 = vsel %vm1938, %v6276, %v6277
    %6279 = vrot.lane.b32.xlu0 %v6275, 126
    %v6280 = vpop.permute.xlu0 %6279
    %6281 = vrot.lane.b32.xlu0 %v6278, 126
    %v6282 = vpop.permute.xlu0 %6281
    %v6285 = vadd.f32 %v6189, %v6280
    %v6286 = vadd.f32 %v6190, %v6282
    %s6287 = sld [smem:[#allocation9 + $0xfb]]
    %v6288 = vstv %s6287
    %v6289 = vmul.f32 %v5627, %v6288
    %v6290 = vmul.f32 %v5628, %v6288
    %v6291 = vmul.f32 %v5629, %v6288
    %v6292 = vmul.f32 %v5630, %v6288
    %v6297 = vrot.slane %v6289, 2
    %v6298 = vrot.slane %v6290, 2
    %v6299 = vsel %vm1938, %v6297, %v6298
    %v6300 = vrot.slane %v6291, 2
    %v6301 = vrot.slane %v6292, 2
    %v6302 = vsel %vm1938, %v6300, %v6301
    %6303 = vrot.lane.b32.xlu0 %v6299, 126
    %v6304 = vpop.permute.xlu0 %6303
    %6305 = vrot.lane.b32.xlu0 %v6302, 126
    %v6306 = vpop.permute.xlu0 %6305
    %v6309 = vadd.f32 %v6213, %v6304
    %v6310 = vadd.f32 %v6214, %v6306
    %vm6311 = vcmask 64512
    %v6312 = vsel %vm6311, %v6237, 0.0
    %v6313 = vsel %vm6311, %v6238, 0.0
    %v6314 = vadd.f32 %v6312, %v6313
    %6315 = vadd.xlane.f32.xlu0 %v6314
    %v6316 = vpop.xlane.xlu0 %6315
    %v6317 = vrot.slane %v6316, 4
    %v6318 = vadd.f32 %v6316, %v6317
    %v6319 = vrot.slane %v6318, 2
    %v6320 = vadd.f32 %v6318, %v6319
    %v6321 = vrot.slane %v6320, 1
    %v6322 = vadd.f32 %v6320, %v6321
    %s6323 = vtos %v6322
    %s6324 = smul.f32 %s6323, 0.0078125
    %v6325 = vmul.f32 %v6237, %v6237
    %v6326 = vmul.f32 %v6238, %v6238
    %v6327 = vsel %vm6311, %v6325, 0.0
    %v6328 = vsel %vm6311, %v6326, 0.0
    %v6329 = vadd.f32 %v6327, %v6328
    %6330 = vadd.xlane.f32.xlu0 %v6329
    %v6331 = vpop.xlane.xlu0 %6330
    %v6332 = vrot.slane %v6331, 4
    %v6333 = vadd.f32 %v6331, %v6332
    %v6334 = vrot.slane %v6333, 2
    %v6335 = vadd.f32 %v6333, %v6334
    %v6336 = vrot.slane %v6335, 1
    %v6337 = vadd.f32 %v6335, %v6336
    %s6338 = vtos %v6337
    %s6339 = smul.f32 %s6338, 0.0078125
    %s6340 = smul.f32 %s6324, %s6324
    %s6341 = ssub.f32 %s6339, %s6340
    %s6342 = sld [smem:[#allocation12]]
    %s6343 = sadd.f32 %s6341, 1e-05
    %v6344 = vstv %s6343
    %v6345 = vrsqrt.pop %v6344
    %s6346 = vtos %v6345
    %s6347 = smul.f32 %s6342, %s6346
    %s6348 = sld [smem:[#allocation13]]
    %s6349 = smul.f32 %s6324, %s6347
    %s6350 = ssub.f32 %s6348, %s6349
    %v6351 = vstv %s6347
    %v6352 = vmul.f32 %v6237, %v6351
    %v6353 = vmul.f32 %v6238, %v6351
    %v6354 = vstv %s6350
    %v6355 = vadd.f32 %v6352, %v6354
    %v6356 = vadd.f32 %v6353, %v6354
    %v6357 = vsub.f32 %v6355, 0.5
    %v6358 = vsub.f32 %v6356, 0.5
    %v6359 = vmul.f32 %v6357, 0.5
    %v6360 = vmul.f32 %v6358, 0.5
    %v6361 = vtanh.pop %v6359
    %v6362 = vtanh.pop %v6360
    %v6363 = vmul.f32 %v6361, 0.5
    %v6364 = vmul.f32 %v6362, 0.5
    %v6365 = vadd.f32 %v6363, 0.5
    %v6366 = vadd.f32 %v6364, 0.5
    %v6367 = vmul.f32 %v6365, 0.5
    %v6368 = vmul.f32 %v6366, 0.5
    %v6369 = vadd.f32 %v6367, 0.25
    %v6370 = vadd.f32 %v6368, 0.25
    %v6371 = vsub.f32 %v6355, %v6369
    %v6372 = vsub.f32 %v6356, %v6370
    %v6373 = vmul.f32 %v6371, 0.5
    %v6374 = vmul.f32 %v6372, 0.5
    %v6375 = vtanh.pop %v6373
    %v6376 = vtanh.pop %v6374
    %v6377 = vmul.f32 %v6375, 0.5
    %v6378 = vmul.f32 %v6376, 0.5
    %v6379 = vadd.f32 %v6377, 0.5
    %v6380 = vadd.f32 %v6378, 0.5
    %v6381 = vmul.f32 %v6369, 0.5
    %v6382 = vmul.f32 %v6370, 0.5
    %v6383 = vmul.f32 %v6379, 0.5
    %v6384 = vmul.f32 %v6380, 0.5
    %v6385 = vadd.f32 %v6381, %v6383
    %v6386 = vadd.f32 %v6382, %v6384
    %v6387 = vsub.f32 %v6355, %v6385
    %v6388 = vsub.f32 %v6356, %v6386
    %v6389 = vmul.f32 %v6387, 0.5
    %v6390 = vmul.f32 %v6388, 0.5
    %v6391 = vtanh.pop %v6389
    %v6392 = vtanh.pop %v6390
    %v6393 = vmul.f32 %v6391, 0.5
    %v6394 = vmul.f32 %v6392, 0.5
    %v6395 = vadd.f32 %v6393, 0.5
    %v6396 = vadd.f32 %v6394, 0.5
    %v6397 = vmul.f32 %v6385, 0.5
    %v6398 = vmul.f32 %v6386, 0.5
    %v6399 = vmul.f32 %v6395, 0.5
    %v6400 = vmul.f32 %v6396, 0.5
    %v6401 = vadd.f32 %v6397, %v6399
    %v6402 = vadd.f32 %v6398, %v6400
    %v6403 = vsel %vm6311, %v6261, 0.0
    %v6404 = vsel %vm6311, %v6262, 0.0
    %v6405 = vadd.f32 %v6403, %v6404
    %6406 = vadd.xlane.f32.xlu0 %v6405
    %v6407 = vpop.xlane.xlu0 %6406
    %v6408 = vrot.slane %v6407, 4
    %v6409 = vadd.f32 %v6407, %v6408
    %v6410 = vrot.slane %v6409, 2
    %v6411 = vadd.f32 %v6409, %v6410
    %v6412 = vrot.slane %v6411, 1
    %v6413 = vadd.f32 %v6411, %v6412
    %s6414 = vtos %v6413
    %s6415 = smul.f32 %s6414, 0.0078125
    %v6416 = vmul.f32 %v6261, %v6261
    %v6417 = vmul.f32 %v6262, %v6262
    %v6418 = vsel %vm6311, %v6416, 0.0
    %v6419 = vsel %vm6311, %v6417, 0.0
    %v6420 = vadd.f32 %v6418, %v6419
    %6421 = vadd.xlane.f32.xlu0 %v6420
    %v6422 = vpop.xlane.xlu0 %6421
    %v6423 = vrot.slane %v6422, 4
    %v6424 = vadd.f32 %v6422, %v6423
    %v6425 = vrot.slane %v6424, 2
    %v6426 = vadd.f32 %v6424, %v6425
    %v6427 = vrot.slane %v6426, 1
    %v6428 = vadd.f32 %v6426, %v6427
    %s6429 = vtos %v6428
    %s6430 = smul.f32 %s6429, 0.0078125
    %s6431 = smul.f32 %s6415, %s6415
    %s6432 = ssub.f32 %s6430, %s6431
    %s6433 = sld [smem:[#allocation12 + $0x1]]
    %s6434 = sadd.f32 %s6432, 1e-05
    %v6435 = vstv %s6434
    %v6436 = vrsqrt.pop %v6435
    %s6437 = vtos %v6436
    %s6438 = smul.f32 %s6433, %s6437
    %s6439 = sld [smem:[#allocation13 + $0x1]]
    %s6440 = smul.f32 %s6415, %s6438
    %s6441 = ssub.f32 %s6439, %s6440
    %v6442 = vstv %s6438
    %v6443 = vmul.f32 %v6261, %v6442
    %v6444 = vmul.f32 %v6262, %v6442
    %v6445 = vstv %s6441
    %v6446 = vadd.f32 %v6443, %v6445
    %v6447 = vadd.f32 %v6444, %v6445
    %v6448 = vsub.f32 %v6446, 0.5
    %v6449 = vsub.f32 %v6447, 0.5
    %v6450 = vmul.f32 %v6448, 0.5
    %v6451 = vmul.f32 %v6449, 0.5
    %v6452 = vtanh.pop %v6450
    %v6453 = vtanh.pop %v6451
    %v6454 = vmul.f32 %v6452, 0.5
    %v6455 = vmul.f32 %v6453, 0.5
    %v6456 = vadd.f32 %v6454, 0.5
    %v6457 = vadd.f32 %v6455, 0.5
    %v6458 = vmul.f32 %v6456, 0.5
    %v6459 = vmul.f32 %v6457, 0.5
    %v6460 = vadd.f32 %v6458, 0.25
    %v6461 = vadd.f32 %v6459, 0.25
    %v6462 = vsub.f32 %v6446, %v6460
    %v6463 = vsub.f32 %v6447, %v6461
    %v6464 = vmul.f32 %v6462, 0.5
    %v6465 = vmul.f32 %v6463, 0.5
    %v6466 = vtanh.pop %v6464
    %v6467 = vtanh.pop %v6465
    %v6468 = vmul.f32 %v6466, 0.5
    %v6469 = vmul.f32 %v6467, 0.5
    %v6470 = vadd.f32 %v6468, 0.5
    %v6471 = vadd.f32 %v6469, 0.5
    %v6472 = vmul.f32 %v6460, 0.5
    %v6473 = vmul.f32 %v6461, 0.5
    %v6474 = vmul.f32 %v6470, 0.5
    %v6475 = vmul.f32 %v6471, 0.5
    %v6476 = vadd.f32 %v6472, %v6474
    %v6477 = vadd.f32 %v6473, %v6475
    %v6478 = vsub.f32 %v6446, %v6476
    %v6479 = vsub.f32 %v6447, %v6477
    %v6480 = vmul.f32 %v6478, 0.5
    %v6481 = vmul.f32 %v6479, 0.5
    %v6482 = vtanh.pop %v6480
    %v6483 = vtanh.pop %v6481
    %v6484 = vmul.f32 %v6482, 0.5
    %v6485 = vmul.f32 %v6483, 0.5
    %v6486 = vadd.f32 %v6484, 0.5
    %v6487 = vadd.f32 %v6485, 0.5
    %v6488 = vmul.f32 %v6476, 0.5
    %v6489 = vmul.f32 %v6477, 0.5
    %v6490 = vmul.f32 %v6486, 0.5
    %v6491 = vmul.f32 %v6487, 0.5
    %v6492 = vadd.f32 %v6488, %v6490
    %v6493 = vadd.f32 %v6489, %v6491
    %v6494 = vsel %vm6311, %v6285, 0.0
    %v6495 = vsel %vm6311, %v6286, 0.0
    %v6496 = vadd.f32 %v6494, %v6495
    %6497 = vadd.xlane.f32.xlu0 %v6496
    %v6498 = vpop.xlane.xlu0 %6497
    %v6499 = vrot.slane %v6498, 4
    %v6500 = vadd.f32 %v6498, %v6499
    %v6501 = vrot.slane %v6500, 2
    %v6502 = vadd.f32 %v6500, %v6501
    %v6503 = vrot.slane %v6502, 1
    %v6504 = vadd.f32 %v6502, %v6503
    %s6505 = vtos %v6504
    %s6506 = smul.f32 %s6505, 0.0078125
    %v6507 = vmul.f32 %v6285, %v6285
    %v6508 = vmul.f32 %v6286, %v6286
    %v6509 = vsel %vm6311, %v6507, 0.0
    %v6510 = vsel %vm6311, %v6508, 0.0
    %v6511 = vadd.f32 %v6509, %v6510
    %6512 = vadd.xlane.f32.xlu0 %v6511
    %v6513 = vpop.xlane.xlu0 %6512
    %v6514 = vrot.slane %v6513, 4
    %v6515 = vadd.f32 %v6513, %v6514
    %v6516 = vrot.slane %v6515, 2
    %v6517 = vadd.f32 %v6515, %v6516
    %v6518 = vrot.slane %v6517, 1
    %v6519 = vadd.f32 %v6517, %v6518
    %s6520 = vtos %v6519
    %s6521 = smul.f32 %s6520, 0.0078125
    %s6522 = smul.f32 %s6506, %s6506
    %s6523 = ssub.f32 %s6521, %s6522
    %s6524 = sld [smem:[#allocation12 + $0x2]]
    %s6525 = sadd.f32 %s6523, 1e-05
    %v6526 = vstv %s6525
    %v6527 = vrsqrt.pop %v6526
    %s6528 = vtos %v6527
    %s6529 = smul.f32 %s6524, %s6528
    %s6530 = sld [smem:[#allocation13 + $0x2]]
    %s6531 = smul.f32 %s6506, %s6529
    %s6532 = ssub.f32 %s6530, %s6531
    %v6533 = vstv %s6529
    %v6534 = vmul.f32 %v6285, %v6533
    %v6535 = vmul.f32 %v6286, %v6533
    %v6536 = vstv %s6532
    %v6537 = vadd.f32 %v6534, %v6536
    %v6538 = vadd.f32 %v6535, %v6536
    %v6539 = vsub.f32 %v6537, 0.5
    %v6540 = vsub.f32 %v6538, 0.5
    %v6541 = vmul.f32 %v6539, 0.5
    %v6542 = vmul.f32 %v6540, 0.5
    %v6543 = vtanh.pop %v6541
    %v6544 = vtanh.pop %v6542
    %v6545 = vmul.f32 %v6543, 0.5
    %v6546 = vmul.f32 %v6544, 0.5
    %v6547 = vadd.f32 %v6545, 0.5
    %v6548 = vadd.f32 %v6546, 0.5
    %v6549 = vmul.f32 %v6547, 0.5
    %v6550 = vmul.f32 %v6548, 0.5
    %v6551 = vadd.f32 %v6549, 0.25
    %v6552 = vadd.f32 %v6550, 0.25
    %v6553 = vsub.f32 %v6537, %v6551
    %v6554 = vsub.f32 %v6538, %v6552
    %v6555 = vmul.f32 %v6553, 0.5
    %v6556 = vmul.f32 %v6554, 0.5
    %v6557 = vtanh.pop %v6555
    %v6558 = vtanh.pop %v6556
    %v6559 = vmul.f32 %v6557, 0.5
    %v6560 = vmul.f32 %v6558, 0.5
    %v6561 = vadd.f32 %v6559, 0.5
    %v6562 = vadd.f32 %v6560, 0.5
    %v6563 = vmul.f32 %v6551, 0.5
    %v6564 = vmul.f32 %v6552, 0.5
    %v6565 = vmul.f32 %v6561, 0.5
    %v6566 = vmul.f32 %v6562, 0.5
    %v6567 = vadd.f32 %v6563, %v6565
    %v6568 = vadd.f32 %v6564, %v6566
    %v6569 = vsub.f32 %v6537, %v6567
    %v6570 = vsub.f32 %v6538, %v6568
    %v6571 = vmul.f32 %v6569, 0.5
    %v6572 = vmul.f32 %v6570, 0.5
    %v6573 = vtanh.pop %v6571
    %v6574 = vtanh.pop %v6572
    %v6575 = vmul.f32 %v6573, 0.5
    %v6576 = vmul.f32 %v6574, 0.5
    %v6577 = vadd.f32 %v6575, 0.5
    %v6578 = vadd.f32 %v6576, 0.5
    %v6579 = vmul.f32 %v6567, 0.5
    %v6580 = vmul.f32 %v6568, 0.5
    %v6581 = vmul.f32 %v6577, 0.5
    %v6582 = vmul.f32 %v6578, 0.5
    %v6583 = vadd.f32 %v6579, %v6581
    %v6584 = vadd.f32 %v6580, %v6582
    %v6585 = vsel %vm6311, %v6309, 0.0
    %v6586 = vsel %vm6311, %v6310, 0.0
    %v6587 = vadd.f32 %v6585, %v6586
    %6588 = vadd.xlane.f32.xlu0 %v6587
    %v6589 = vpop.xlane.xlu0 %6588
    %v6590 = vrot.slane %v6589, 4
    %v6591 = vadd.f32 %v6589, %v6590
    %v6592 = vrot.slane %v6591, 2
    %v6593 = vadd.f32 %v6591, %v6592
    %v6594 = vrot.slane %v6593, 1
    %v6595 = vadd.f32 %v6593, %v6594
    %s6596 = vtos %v6595
    %s6597 = smul.f32 %s6596, 0.0078125
    %v6598 = vmul.f32 %v6309, %v6309
    %v6599 = vmul.f32 %v6310, %v6310
    %v6600 = vsel %vm6311, %v6598, 0.0
    %v6601 = vsel %vm6311, %v6599, 0.0
    %v6602 = vadd.f32 %v6600, %v6601
    %6603 = vadd.xlane.f32.xlu0 %v6602
    %v6604 = vpop.xlane.xlu0 %6603
    %v6605 = vrot.slane %v6604, 4
    %v6606 = vadd.f32 %v6604, %v6605
    %v6607 = vrot.slane %v6606, 2
    %v6608 = vadd.f32 %v6606, %v6607
    %v6609 = vrot.slane %v6608, 1
    %v6610 = vadd.f32 %v6608, %v6609
    %s6611 = vtos %v6610
    %s6612 = smul.f32 %s6611, 0.0078125
    %s6613 = smul.f32 %s6597, %s6597
    %s6614 = ssub.f32 %s6612, %s6613
    %s6615 = sld [smem:[#allocation12 + $0x3]]
    %s6616 = sadd.f32 %s6614, 1e-05
    %v6617 = vstv %s6616
    %v6618 = vrsqrt.pop %v6617
    %s6619 = vtos %v6618
    %s6620 = smul.f32 %s6615, %s6619
    %s6621 = sld [smem:[#allocation13 + $0x3]]
    %s6622 = smul.f32 %s6597, %s6620
    %s6623 = ssub.f32 %s6621, %s6622
    %v6624 = vstv %s6620
    %v6625 = vmul.f32 %v6309, %v6624
    %v6626 = vmul.f32 %v6310, %v6624
    %v6627 = vstv %s6623
    %v6628 = vadd.f32 %v6625, %v6627
    %v6629 = vadd.f32 %v6626, %v6627
    %v6630 = vsub.f32 %v6628, 0.5
    %v6631 = vsub.f32 %v6629, 0.5
    %v6632 = vmul.f32 %v6630, 0.5
    %v6633 = vmul.f32 %v6631, 0.5
    %v6634 = vtanh.pop %v6632
    %v6635 = vtanh.pop %v6633
    %v6636 = vmul.f32 %v6634, 0.5
    %v6637 = vmul.f32 %v6635, 0.5
    %v6638 = vadd.f32 %v6636, 0.5
    %v6639 = vadd.f32 %v6637, 0.5
    %v6640 = vmul.f32 %v6638, 0.5
    %v6641 = vmul.f32 %v6639, 0.5
    %v6642 = vadd.f32 %v6640, 0.25
    %v6643 = vadd.f32 %v6641, 0.25
    %v6644 = vsub.f32 %v6628, %v6642
    %v6645 = vsub.f32 %v6629, %v6643
    %v6646 = vmul.f32 %v6644, 0.5
    %v6647 = vmul.f32 %v6645, 0.5
    %v6648 = vtanh.pop %v6646
    %v6649 = vtanh.pop %v6647
    %v6650 = vmul.f32 %v6648, 0.5
    %v6651 = vmul.f32 %v6649, 0.5
    %v6652 = vadd.f32 %v6650, 0.5
    %v6653 = vadd.f32 %v6651, 0.5
    %v6654 = vmul.f32 %v6642, 0.5
    %v6655 = vmul.f32 %v6643, 0.5
    %v6656 = vmul.f32 %v6652, 0.5
    %v6657 = vmul.f32 %v6653, 0.5
    %v6658 = vadd.f32 %v6654, %v6656
    %v6659 = vadd.f32 %v6655, %v6657
    %v6660 = vsub.f32 %v6628, %v6658
    %v6661 = vsub.f32 %v6629, %v6659
    %v6662 = vmul.f32 %v6660, 0.5
    %v6663 = vmul.f32 %v6661, 0.5
    %v6664 = vtanh.pop %v6662
    %v6665 = vtanh.pop %v6663
    %v6666 = vmul.f32 %v6664, 0.5
    %v6667 = vmul.f32 %v6665, 0.5
    %v6668 = vadd.f32 %v6666, 0.5
    %v6669 = vadd.f32 %v6667, 0.5
    %v6670 = vmul.f32 %v6658, 0.5
    %v6671 = vmul.f32 %v6659, 0.5
    %v6672 = vmul.f32 %v6668, 0.5
    %v6673 = vmul.f32 %v6669, 0.5
    %v6674 = vadd.f32 %v6670, %v6672
    %v6675 = vadd.f32 %v6671, %v6673
    %6684 = vrot.lane.b32.xlu0 %v6401, 1
    %v6685 = vpop.permute.xlu0 %6684
    %6686 = vrot.lane.b32.xlu0 %v6492, 1
    %v6687 = vpop.permute.xlu0 %6686
    %6688 = vrot.lane.b32.xlu0 %v6583, 1
    %v6689 = vpop.permute.xlu0 %6688
    %6690 = vrot.lane.b32.xlu0 %v6674, 1
    %v6691 = vpop.permute.xlu0 %6690
    %6692 = vrot.lane.b32.xlu0 %v6402, 1
    %v6693 = vpop.permute.xlu0 %6692
    %6694 = vrot.lane.b32.xlu0 %v6493, 1
    %v6695 = vpop.permute.xlu0 %6694
    %6696 = vrot.lane.b32.xlu0 %v6584, 1
    %v6697 = vpop.permute.xlu0 %6696
    %6698 = vrot.lane.b32.xlu0 %v6675, 1
    %v6699 = vpop.permute.xlu0 %6698
    %6708 = vst.msk [vmem:[#allocation2 + $0x1] sm:$0xff] %vm1508, %v6685
    %6709 = vst.msk [vmem:[#allocation2 + $0x11] sm:$0xff] %vm1508, %v6687
    %6710 = vst.msk [vmem:[#allocation2 + $0x21] sm:$0xff] %vm1508, %v6689
    %6711 = vst.msk [vmem:[#allocation2 + $0x31] sm:$0xff] %vm1508, %v6691
    %6712 = vst.msk [vmem:[#allocation2 + $0x71] sm:$0xff] %vm1508, %v6693
    %6713 = vst.msk [vmem:[#allocation2 + $0x81] sm:$0xff] %vm1508, %v6695
    %6714 = vst.msk [vmem:[#allocation2 + $0x91] sm:$0xff] %vm1508, %v6697
    %6715 = vst.msk [vmem:[#allocation2 + $0xa1] sm:$0xff] %vm1508, %v6699
    %v6716 = vld [vmem:[#allocation2] sm:$0xff]
    %v6717 = vld [vmem:[#allocation2 + $0x8] sm:$0x3]
    %v6718 = vld [vmem:[#allocation2 + $0x70] sm:$0xff]
    %v6719 = vld [vmem:[#allocation2 + $0x78] sm:$0x3]
    %s6720 = sld [smem:[#allocation10]]
    %v6721 = vstv %s6720
    %v6722 = vmul.f32 %v6716, %v6721
    %v6723 = vmul.f32 %v6718, %v6721
    %s6724 = sld [smem:[#allocation10 + $0x1]]
    %v6725 = vstv %s6724
    %v6726 = vmul.f32 %v6716, %v6725
    %v6727 = vmul.f32 %v6718, %v6725
    %s6728 = sld [smem:[#allocation10 + $0x2]]
    %v6729 = vstv %s6728
    %v6730 = vmul.f32 %v6716, %v6729
    %v6731 = vmul.f32 %v6718, %v6729
    %s6732 = sld [smem:[#allocation10 + $0x3]]
    %v6733 = vstv %s6732
    %v6734 = vmul.f32 %v6716, %v6733
    %v6735 = vmul.f32 %v6718, %v6733
    %s6736 = sld [smem:[#allocation10 + $0x10]]
    %v6737 = vstv %s6736
    %v6738 = vmul.f32 %v6716, %v6737
    %v6739 = vmul.f32 %v6718, %v6737
    %6742 = vrot.lane.b32.xlu0 %v6738, 127
    %v6743 = vpop.permute.xlu0 %6742
    %6744 = vrot.lane.b32.xlu0 %v6739, 127
    %v6745 = vpop.permute.xlu0 %6744
    %v6748 = vadd.f32 %v6722, %v6743
    %v6749 = vadd.f32 %v6723, %v6745
    %s6750 = sld [smem:[#allocation10 + $0x11]]
    %v6751 = vstv %s6750
    %v6752 = vmul.f32 %v6716, %v6751
    %v6753 = vmul.f32 %v6718, %v6751
    %6756 = vrot.lane.b32.xlu0 %v6752, 127
    %v6757 = vpop.permute.xlu0 %6756
    %6758 = vrot.lane.b32.xlu0 %v6753, 127
    %v6759 = vpop.permute.xlu0 %6758
    %v6762 = vadd.f32 %v6726, %v6757
    %v6763 = vadd.f32 %v6727, %v6759
    %s6764 = sld [smem:[#allocation10 + $0x12]]
    %v6765 = vstv %s6764
    %v6766 = vmul.f32 %v6716, %v6765
    %v6767 = vmul.f32 %v6718, %v6765
    %6770 = vrot.lane.b32.xlu0 %v6766, 127
    %v6771 = vpop.permute.xlu0 %6770
    %6772 = vrot.lane.b32.xlu0 %v6767, 127
    %v6773 = vpop.permute.xlu0 %6772
    %v6776 = vadd.f32 %v6730, %v6771
    %v6777 = vadd.f32 %v6731, %v6773
    %s6778 = sld [smem:[#allocation10 + $0x13]]
    %v6779 = vstv %s6778
    %v6780 = vmul.f32 %v6716, %v6779
    %v6781 = vmul.f32 %v6718, %v6779
    %6784 = vrot.lane.b32.xlu0 %v6780, 127
    %v6785 = vpop.permute.xlu0 %6784
    %6786 = vrot.lane.b32.xlu0 %v6781, 127
    %v6787 = vpop.permute.xlu0 %6786
    %v6790 = vadd.f32 %v6734, %v6785
    %v6791 = vadd.f32 %v6735, %v6787
    %s6792 = sld [smem:[#allocation10 + $0x20]]
    %v6793 = vstv %s6792
    %v6794 = vmul.f32 %v6716, %v6793
    %v6795 = vmul.f32 %v6718, %v6793
    %6798 = vrot.lane.b32.xlu0 %v6794, 126
    %v6799 = vpop.permute.xlu0 %6798
    %6800 = vrot.lane.b32.xlu0 %v6795, 126
    %v6801 = vpop.permute.xlu0 %6800
    %v6804 = vadd.f32 %v6748, %v6799
    %v6805 = vadd.f32 %v6749, %v6801
    %s6806 = sld [smem:[#allocation10 + $0x21]]
    %v6807 = vstv %s6806
    %v6808 = vmul.f32 %v6716, %v6807
    %v6809 = vmul.f32 %v6718, %v6807
    %6812 = vrot.lane.b32.xlu0 %v6808, 126
    %v6813 = vpop.permute.xlu0 %6812
    %6814 = vrot.lane.b32.xlu0 %v6809, 126
    %v6815 = vpop.permute.xlu0 %6814
    %v6818 = vadd.f32 %v6762, %v6813
    %v6819 = vadd.f32 %v6763, %v6815
    %s6820 = sld [smem:[#allocation10 + $0x22]]
    %v6821 = vstv %s6820
    %v6822 = vmul.f32 %v6716, %v6821
    %v6823 = vmul.f32 %v6718, %v6821
    %6826 = vrot.lane.b32.xlu0 %v6822, 126
    %v6827 = vpop.permute.xlu0 %6826
    %6828 = vrot.lane.b32.xlu0 %v6823, 126
    %v6829 = vpop.permute.xlu0 %6828
    %v6832 = vadd.f32 %v6776, %v6827
    %v6833 = vadd.f32 %v6777, %v6829
    %s6834 = sld [smem:[#allocation10 + $0x23]]
    %v6835 = vstv %s6834
    %v6836 = vmul.f32 %v6716, %v6835
    %v6837 = vmul.f32 %v6718, %v6835
    %6840 = vrot.lane.b32.xlu0 %v6836, 126
    %v6841 = vpop.permute.xlu0 %6840
    %6842 = vrot.lane.b32.xlu0 %v6837, 126
    %v6843 = vpop.permute.xlu0 %6842
    %v6846 = vadd.f32 %v6790, %v6841
    %v6847 = vadd.f32 %v6791, %v6843
    %s6848 = sld [smem:[#allocation10 + $0x30]]
    %v6849 = vstv %s6848
    %v6850 = vmul.f32 %v6716, %v6849
    %v6851 = vmul.f32 %v6717, %v6849
    %v6852 = vmul.f32 %v6718, %v6849
    %v6853 = vmul.f32 %v6719, %v6849
    %v6858 = vrot.slane %v6850, 1
    %v6859 = vrot.slane %v6851, 1
    %v6860 = vsel %vm1665, %v6858, %v6859
    %v6861 = vrot.slane %v6852, 1
    %v6862 = vrot.slane %v6853, 1
    %v6863 = vsel %vm1665, %v6861, %v6862
    %v6866 = vadd.f32 %v6804, %v6860
    %v6867 = vadd.f32 %v6805, %v6863
    %s6868 = sld [smem:[#allocation10 + $0x31]]
    %v6869 = vstv %s6868
    %v6870 = vmul.f32 %v6716, %v6869
    %v6871 = vmul.f32 %v6717, %v6869
    %v6872 = vmul.f32 %v6718, %v6869
    %v6873 = vmul.f32 %v6719, %v6869
    %v6878 = vrot.slane %v6870, 1
    %v6879 = vrot.slane %v6871, 1
    %v6880 = vsel %vm1665, %v6878, %v6879
    %v6881 = vrot.slane %v6872, 1
    %v6882 = vrot.slane %v6873, 1
    %v6883 = vsel %vm1665, %v6881, %v6882
    %v6886 = vadd.f32 %v6818, %v6880
    %v6887 = vadd.f32 %v6819, %v6883
    %s6888 = sld [smem:[#allocation10 + $0x32]]
    %v6889 = vstv %s6888
    %v6890 = vmul.f32 %v6716, %v6889
    %v6891 = vmul.f32 %v6717, %v6889
    %v6892 = vmul.f32 %v6718, %v6889
    %v6893 = vmul.f32 %v6719, %v6889
    %v6898 = vrot.slane %v6890, 1
    %v6899 = vrot.slane %v6891, 1
    %v6900 = vsel %vm1665, %v6898, %v6899
    %v6901 = vrot.slane %v6892, 1
    %v6902 = vrot.slane %v6893, 1
    %v6903 = vsel %vm1665, %v6901, %v6902
    %v6906 = vadd.f32 %v6832, %v6900
    %v6907 = vadd.f32 %v6833, %v6903
    %s6908 = sld [smem:[#allocation10 + $0x33]]
    %v6909 = vstv %s6908
    %v6910 = vmul.f32 %v6716, %v6909
    %v6911 = vmul.f32 %v6717, %v6909
    %v6912 = vmul.f32 %v6718, %v6909
    %v6913 = vmul.f32 %v6719, %v6909
    %v6918 = vrot.slane %v6910, 1
    %v6919 = vrot.slane %v6911, 1
    %v6920 = vsel %vm1665, %v6918, %v6919
    %v6921 = vrot.slane %v6912, 1
    %v6922 = vrot.slane %v6913, 1
    %v6923 = vsel %vm1665, %v6921, %v6922
    %v6926 = vadd.f32 %v6846, %v6920
    %v6927 = vadd.f32 %v6847, %v6923
    %s6928 = sld [smem:[#allocation10 + $0x40]]
    %v6929 = vstv %s6928
    %v6930 = vmul.f32 %v6716, %v6929
    %v6931 = vmul.f32 %v6717, %v6929
    %v6932 = vmul.f32 %v6718, %v6929
    %v6933 = vmul.f32 %v6719, %v6929
    %v6938 = vrot.slane %v6930, 1
    %v6939 = vrot.slane %v6931, 1
    %v6940 = vsel %vm1665, %v6938, %v6939
    %v6941 = vrot.slane %v6932, 1
    %v6942 = vrot.slane %v6933, 1
    %v6943 = vsel %vm1665, %v6941, %v6942
    %6944 = vrot.lane.b32.xlu0 %v6940, 127
    %v6945 = vpop.permute.xlu0 %6944
    %6946 = vrot.lane.b32.xlu0 %v6943, 127
    %v6947 = vpop.permute.xlu0 %6946
    %v6950 = vadd.f32 %v6866, %v6945
    %v6951 = vadd.f32 %v6867, %v6947
    %s6952 = sld [smem:[#allocation10 + $0x41]]
    %v6953 = vstv %s6952
    %v6954 = vmul.f32 %v6716, %v6953
    %v6955 = vmul.f32 %v6717, %v6953
    %v6956 = vmul.f32 %v6718, %v6953
    %v6957 = vmul.f32 %v6719, %v6953
    %v6962 = vrot.slane %v6954, 1
    %v6963 = vrot.slane %v6955, 1
    %v6964 = vsel %vm1665, %v6962, %v6963
    %v6965 = vrot.slane %v6956, 1
    %v6966 = vrot.slane %v6957, 1
    %v6967 = vsel %vm1665, %v6965, %v6966
    %6968 = vrot.lane.b32.xlu0 %v6964, 127
    %v6969 = vpop.permute.xlu0 %6968
    %6970 = vrot.lane.b32.xlu0 %v6967, 127
    %v6971 = vpop.permute.xlu0 %6970
    %v6974 = vadd.f32 %v6886, %v6969
    %v6975 = vadd.f32 %v6887, %v6971
    %s6976 = sld [smem:[#allocation10 + $0x42]]
    %v6977 = vstv %s6976
    %v6978 = vmul.f32 %v6716, %v6977
    %v6979 = vmul.f32 %v6717, %v6977
    %v6980 = vmul.f32 %v6718, %v6977
    %v6981 = vmul.f32 %v6719, %v6977
    %v6986 = vrot.slane %v6978, 1
    %v6987 = vrot.slane %v6979, 1
    %v6988 = vsel %vm1665, %v6986, %v6987
    %v6989 = vrot.slane %v6980, 1
    %v6990 = vrot.slane %v6981, 1
    %v6991 = vsel %vm1665, %v6989, %v6990
    %6992 = vrot.lane.b32.xlu0 %v6988, 127
    %v6993 = vpop.permute.xlu0 %6992
    %6994 = vrot.lane.b32.xlu0 %v6991, 127
    %v6995 = vpop.permute.xlu0 %6994
    %v6998 = vadd.f32 %v6906, %v6993
    %v6999 = vadd.f32 %v6907, %v6995
    %s7000 = sld [smem:[#allocation10 + $0x43]]
    %v7001 = vstv %s7000
    %v7002 = vmul.f32 %v6716, %v7001
    %v7003 = vmul.f32 %v6717, %v7001
    %v7004 = vmul.f32 %v6718, %v7001
    %v7005 = vmul.f32 %v6719, %v7001
    %v7010 = vrot.slane %v7002, 1
    %v7011 = vrot.slane %v7003, 1
    %v7012 = vsel %vm1665, %v7010, %v7011
    %v7013 = vrot.slane %v7004, 1
    %v7014 = vrot.slane %v7005, 1
    %v7015 = vsel %vm1665, %v7013, %v7014
    %7016 = vrot.lane.b32.xlu0 %v7012, 127
    %v7017 = vpop.permute.xlu0 %7016
    %7018 = vrot.lane.b32.xlu0 %v7015, 127
    %v7019 = vpop.permute.xlu0 %7018
    %v7022 = vadd.f32 %v6926, %v7017
    %v7023 = vadd.f32 %v6927, %v7019
    %s7024 = sld [smem:[#allocation10 + $0x50]]
    %v7025 = vstv %s7024
    %v7026 = vmul.f32 %v6716, %v7025
    %v7027 = vmul.f32 %v6717, %v7025
    %v7028 = vmul.f32 %v6718, %v7025
    %v7029 = vmul.f32 %v6719, %v7025
    %v7034 = vrot.slane %v7026, 1
    %v7035 = vrot.slane %v7027, 1
    %v7036 = vsel %vm1665, %v7034, %v7035
    %v7037 = vrot.slane %v7028, 1
    %v7038 = vrot.slane %v7029, 1
    %v7039 = vsel %vm1665, %v7037, %v7038
    %7040 = vrot.lane.b32.xlu0 %v7036, 126
    %v7041 = vpop.permute.xlu0 %7040
    %7042 = vrot.lane.b32.xlu0 %v7039, 126
    %v7043 = vpop.permute.xlu0 %7042
    %v7046 = vadd.f32 %v6950, %v7041
    %v7047 = vadd.f32 %v6951, %v7043
    %s7048 = sld [smem:[#allocation10 + $0x51]]
    %v7049 = vstv %s7048
    %v7050 = vmul.f32 %v6716, %v7049
    %v7051 = vmul.f32 %v6717, %v7049
    %v7052 = vmul.f32 %v6718, %v7049
    %v7053 = vmul.f32 %v6719, %v7049
    %v7058 = vrot.slane %v7050, 1
    %v7059 = vrot.slane %v7051, 1
    %v7060 = vsel %vm1665, %v7058, %v7059
    %v7061 = vrot.slane %v7052, 1
    %v7062 = vrot.slane %v7053, 1
    %v7063 = vsel %vm1665, %v7061, %v7062
    %7064 = vrot.lane.b32.xlu0 %v7060, 126
    %v7065 = vpop.permute.xlu0 %7064
    %7066 = vrot.lane.b32.xlu0 %v7063, 126
    %v7067 = vpop.permute.xlu0 %7066
    %v7070 = vadd.f32 %v6974, %v7065
    %v7071 = vadd.f32 %v6975, %v7067
    %s7072 = sld [smem:[#allocation10 + $0x52]]
    %v7073 = vstv %s7072
    %v7074 = vmul.f32 %v6716, %v7073
    %v7075 = vmul.f32 %v6717, %v7073
    %v7076 = vmul.f32 %v6718, %v7073
    %v7077 = vmul.f32 %v6719, %v7073
    %v7082 = vrot.slane %v7074, 1
    %v7083 = vrot.slane %v7075, 1
    %v7084 = vsel %vm1665, %v7082, %v7083
    %v7085 = vrot.slane %v7076, 1
    %v7086 = vrot.slane %v7077, 1
    %v7087 = vsel %vm1665, %v7085, %v7086
    %7088 = vrot.lane.b32.xlu0 %v7084, 126
    %v7089 = vpop.permute.xlu0 %7088
    %7090 = vrot.lane.b32.xlu0 %v7087, 126
    %v7091 = vpop.permute.xlu0 %7090
    %v7094 = vadd.f32 %v6998, %v7089
    %v7095 = vadd.f32 %v6999, %v7091
    %s7096 = sld [smem:[#allocation10 + $0x53]]
    %v7097 = vstv %s7096
    %v7098 = vmul.f32 %v6716, %v7097
    %v7099 = vmul.f32 %v6717, %v7097
    %v7100 = vmul.f32 %v6718, %v7097
    %v7101 = vmul.f32 %v6719, %v7097
    %v7106 = vrot.slane %v7098, 1
    %v7107 = vrot.slane %v7099, 1
    %v7108 = vsel %vm1665, %v7106, %v7107
    %v7109 = vrot.slane %v7100, 1
    %v7110 = vrot.slane %v7101, 1
    %v7111 = vsel %vm1665, %v7109, %v7110
    %7112 = vrot.lane.b32.xlu0 %v7108, 126
    %v7113 = vpop.permute.xlu0 %7112
    %7114 = vrot.lane.b32.xlu0 %v7111, 126
    %v7115 = vpop.permute.xlu0 %7114
    %v7118 = vadd.f32 %v7022, %v7113
    %v7119 = vadd.f32 %v7023, %v7115
    %s7120 = sld [smem:[#allocation10 + $0x60]]
    %v7121 = vstv %s7120
    %v7122 = vmul.f32 %v6716, %v7121
    %v7123 = vmul.f32 %v6717, %v7121
    %v7124 = vmul.f32 %v6718, %v7121
    %v7125 = vmul.f32 %v6719, %v7121
    %v7130 = vrot.slane %v7122, 2
    %v7131 = vrot.slane %v7123, 2
    %v7132 = vsel %vm1938, %v7130, %v7131
    %v7133 = vrot.slane %v7124, 2
    %v7134 = vrot.slane %v7125, 2
    %v7135 = vsel %vm1938, %v7133, %v7134
    %v7138 = vadd.f32 %v7046, %v7132
    %v7139 = vadd.f32 %v7047, %v7135
    %s7140 = sld [smem:[#allocation10 + $0x61]]
    %v7141 = vstv %s7140
    %v7142 = vmul.f32 %v6716, %v7141
    %v7143 = vmul.f32 %v6717, %v7141
    %v7144 = vmul.f32 %v6718, %v7141
    %v7145 = vmul.f32 %v6719, %v7141
    %v7150 = vrot.slane %v7142, 2
    %v7151 = vrot.slane %v7143, 2
    %v7152 = vsel %vm1938, %v7150, %v7151
    %v7153 = vrot.slane %v7144, 2
    %v7154 = vrot.slane %v7145, 2
    %v7155 = vsel %vm1938, %v7153, %v7154
    %v7158 = vadd.f32 %v7070, %v7152
    %v7159 = vadd.f32 %v7071, %v7155
    %s7160 = sld [smem:[#allocation10 + $0x62]]
    %v7161 = vstv %s7160
    %v7162 = vmul.f32 %v6716, %v7161
    %v7163 = vmul.f32 %v6717, %v7161
    %v7164 = vmul.f32 %v6718, %v7161
    %v7165 = vmul.f32 %v6719, %v7161
    %v7170 = vrot.slane %v7162, 2
    %v7171 = vrot.slane %v7163, 2
    %v7172 = vsel %vm1938, %v7170, %v7171
    %v7173 = vrot.slane %v7164, 2
    %v7174 = vrot.slane %v7165, 2
    %v7175 = vsel %vm1938, %v7173, %v7174
    %v7178 = vadd.f32 %v7094, %v7172
    %v7179 = vadd.f32 %v7095, %v7175
    %s7180 = sld [smem:[#allocation10 + $0x63]]
    %v7181 = vstv %s7180
    %v7182 = vmul.f32 %v6716, %v7181
    %v7183 = vmul.f32 %v6717, %v7181
    %v7184 = vmul.f32 %v6718, %v7181
    %v7185 = vmul.f32 %v6719, %v7181
    %v7190 = vrot.slane %v7182, 2
    %v7191 = vrot.slane %v7183, 2
    %v7192 = vsel %vm1938, %v7190, %v7191
    %v7193 = vrot.slane %v7184, 2
    %v7194 = vrot.slane %v7185, 2
    %v7195 = vsel %vm1938, %v7193, %v7194
    %v7198 = vadd.f32 %v7118, %v7192
    %v7199 = vadd.f32 %v7119, %v7195
    %s7200 = sld [smem:[#allocation10 + $0x70]]
    %v7201 = vstv %s7200
    %v7202 = vmul.f32 %v6716, %v7201
    %v7203 = vmul.f32 %v6717, %v7201
    %v7204 = vmul.f32 %v6718, %v7201
    %v7205 = vmul.f32 %v6719, %v7201
    %v7210 = vrot.slane %v7202, 2
    %v7211 = vrot.slane %v7203, 2
    %v7212 = vsel %vm1938, %v7210, %v7211
    %v7213 = vrot.slane %v7204, 2
    %v7214 = vrot.slane %v7205, 2
    %v7215 = vsel %vm1938, %v7213, %v7214
    %7216 = vrot.lane.b32.xlu0 %v7212, 127
    %v7217 = vpop.permute.xlu0 %7216
    %7218 = vrot.lane.b32.xlu0 %v7215, 127
    %v7219 = vpop.permute.xlu0 %7218
    %v7222 = vadd.f32 %v7138, %v7217
    %v7223 = vadd.f32 %v7139, %v7219
    %s7224 = sld [smem:[#allocation10 + $0x71]]
    %v7225 = vstv %s7224
    %v7226 = vmul.f32 %v6716, %v7225
    %v7227 = vmul.f32 %v6717, %v7225
    %v7228 = vmul.f32 %v6718, %v7225
    %v7229 = vmul.f32 %v6719, %v7225
    %v7234 = vrot.slane %v7226, 2
    %v7235 = vrot.slane %v7227, 2
    %v7236 = vsel %vm1938, %v7234, %v7235
    %v7237 = vrot.slane %v7228, 2
    %v7238 = vrot.slane %v7229, 2
    %v7239 = vsel %vm1938, %v7237, %v7238
    %7240 = vrot.lane.b32.xlu0 %v7236, 127
    %v7241 = vpop.permute.xlu0 %7240
    %7242 = vrot.lane.b32.xlu0 %v7239, 127
    %v7243 = vpop.permute.xlu0 %7242
    %v7246 = vadd.f32 %v7158, %v7241
    %v7247 = vadd.f32 %v7159, %v7243
    %s7248 = sld [smem:[#allocation10 + $0x72]]
    %v7249 = vstv %s7248
    %v7250 = vmul.f32 %v6716, %v7249
    %v7251 = vmul.f32 %v6717, %v7249
    %v7252 = vmul.f32 %v6718, %v7249
    %v7253 = vmul.f32 %v6719, %v7249
    %v7258 = vrot.slane %v7250, 2
    %v7259 = vrot.slane %v7251, 2
    %v7260 = vsel %vm1938, %v7258, %v7259
    %v7261 = vrot.slane %v7252, 2
    %v7262 = vrot.slane %v7253, 2
    %v7263 = vsel %vm1938, %v7261, %v7262
    %7264 = vrot.lane.b32.xlu0 %v7260, 127
    %v7265 = vpop.permute.xlu0 %7264
    %7266 = vrot.lane.b32.xlu0 %v7263, 127
    %v7267 = vpop.permute.xlu0 %7266
    %v7270 = vadd.f32 %v7178, %v7265
    %v7271 = vadd.f32 %v7179, %v7267
    %s7272 = sld [smem:[#allocation10 + $0x73]]
    %v7273 = vstv %s7272
    %v7274 = vmul.f32 %v6716, %v7273
    %v7275 = vmul.f32 %v6717, %v7273
    %v7276 = vmul.f32 %v6718, %v7273
    %v7277 = vmul.f32 %v6719, %v7273
    %v7282 = vrot.slane %v7274, 2
    %v7283 = vrot.slane %v7275, 2
    %v7284 = vsel %vm1938, %v7282, %v7283
    %v7285 = vrot.slane %v7276, 2
    %v7286 = vrot.slane %v7277, 2
    %v7287 = vsel %vm1938, %v7285, %v7286
    %7288 = vrot.lane.b32.xlu0 %v7284, 127
    %v7289 = vpop.permute.xlu0 %7288
    %7290 = vrot.lane.b32.xlu0 %v7287, 127
    %v7291 = vpop.permute.xlu0 %7290
    %v7294 = vadd.f32 %v7198, %v7289
    %v7295 = vadd.f32 %v7199, %v7291
    %s7296 = sld [smem:[#allocation10 + $0x80]]
    %v7297 = vstv %s7296
    %v7298 = vmul.f32 %v6716, %v7297
    %v7299 = vmul.f32 %v6717, %v7297
    %v7300 = vmul.f32 %v6718, %v7297
    %v7301 = vmul.f32 %v6719, %v7297
    %v7306 = vrot.slane %v7298, 2
    %v7307 = vrot.slane %v7299, 2
    %v7308 = vsel %vm1938, %v7306, %v7307
    %v7309 = vrot.slane %v7300, 2
    %v7310 = vrot.slane %v7301, 2
    %v7311 = vsel %vm1938, %v7309, %v7310
    %7312 = vrot.lane.b32.xlu0 %v7308, 126
    %v7313 = vpop.permute.xlu0 %7312
    %7314 = vrot.lane.b32.xlu0 %v7311, 126
    %v7315 = vpop.permute.xlu0 %7314
    %v7318 = vadd.f32 %v7222, %v7313
    %v7319 = vadd.f32 %v7223, %v7315
    %s7320 = sld [smem:[#allocation10 + $0x81]]
    %v7321 = vstv %s7320
    %v7322 = vmul.f32 %v6716, %v7321
    %v7323 = vmul.f32 %v6717, %v7321
    %v7324 = vmul.f32 %v6718, %v7321
    %v7325 = vmul.f32 %v6719, %v7321
    %v7330 = vrot.slane %v7322, 2
    %v7331 = vrot.slane %v7323, 2
    %v7332 = vsel %vm1938, %v7330, %v7331
    %v7333 = vrot.slane %v7324, 2
    %v7334 = vrot.slane %v7325, 2
    %v7335 = vsel %vm1938, %v7333, %v7334
    %7336 = vrot.lane.b32.xlu0 %v7332, 126
    %v7337 = vpop.permute.xlu0 %7336
    %7338 = vrot.lane.b32.xlu0 %v7335, 126
    %v7339 = vpop.permute.xlu0 %7338
    %v7342 = vadd.f32 %v7246, %v7337
    %v7343 = vadd.f32 %v7247, %v7339
    %s7344 = sld [smem:[#allocation10 + $0x82]]
    %v7345 = vstv %s7344
    %v7346 = vmul.f32 %v6716, %v7345
    %v7347 = vmul.f32 %v6717, %v7345
    %v7348 = vmul.f32 %v6718, %v7345
    %v7349 = vmul.f32 %v6719, %v7345
    %v7354 = vrot.slane %v7346, 2
    %v7355 = vrot.slane %v7347, 2
    %v7356 = vsel %vm1938, %v7354, %v7355
    %v7357 = vrot.slane %v7348, 2
    %v7358 = vrot.slane %v7349, 2
    %v7359 = vsel %vm1938, %v7357, %v7358
    %7360 = vrot.lane.b32.xlu0 %v7356, 126
    %v7361 = vpop.permute.xlu0 %7360
    %7362 = vrot.lane.b32.xlu0 %v7359, 126
    %v7363 = vpop.permute.xlu0 %7362
    %v7366 = vadd.f32 %v7270, %v7361
    %v7367 = vadd.f32 %v7271, %v7363
    %s7368 = sld [smem:[#allocation10 + $0x83]]
    %v7369 = vstv %s7368
    %v7370 = vmul.f32 %v6716, %v7369
    %v7371 = vmul.f32 %v6717, %v7369
    %v7372 = vmul.f32 %v6718, %v7369
    %v7373 = vmul.f32 %v6719, %v7369
    %v7378 = vrot.slane %v7370, 2
    %v7379 = vrot.slane %v7371, 2
    %v7380 = vsel %vm1938, %v7378, %v7379
    %v7381 = vrot.slane %v7372, 2
    %v7382 = vrot.slane %v7373, 2
    %v7383 = vsel %vm1938, %v7381, %v7382
    %7384 = vrot.lane.b32.xlu0 %v7380, 126
    %v7385 = vpop.permute.xlu0 %7384
    %7386 = vrot.lane.b32.xlu0 %v7383, 126
    %v7387 = vpop.permute.xlu0 %7386
    %v7390 = vadd.f32 %v7294, %v7385
    %v7391 = vadd.f32 %v7295, %v7387
    %v7392 = vld [vmem:[%s2201] sm:$0xff]
    %v7393 = vld [vmem:[%s2201 + $0x8] sm:$0x3]
    %v7394 = vld [vmem:[%s2201 + $0x70] sm:$0xff]
    %v7395 = vld [vmem:[%s2201 + $0x78] sm:$0x3]
    %s7396 = sld [smem:[#allocation10 + $0x4]]
    %v7397 = vstv %s7396
    %v7398 = vmul.f32 %v7392, %v7397
    %v7399 = vmul.f32 %v7394, %v7397
    %v7400 = vadd.f32 %v7318, %v7398
    %v7401 = vadd.f32 %v7319, %v7399
    %s7402 = sld [smem:[#allocation10 + $0x5]]
    %v7403 = vstv %s7402
    %v7404 = vmul.f32 %v7392, %v7403
    %v7405 = vmul.f32 %v7394, %v7403
    %v7406 = vadd.f32 %v7342, %v7404
    %v7407 = vadd.f32 %v7343, %v7405
    %s7408 = sld [smem:[#allocation10 + $0x6]]
    %v7409 = vstv %s7408
    %v7410 = vmul.f32 %v7392, %v7409
    %v7411 = vmul.f32 %v7394, %v7409
    %v7412 = vadd.f32 %v7366, %v7410
    %v7413 = vadd.f32 %v7367, %v7411
    %s7414 = sld [smem:[#allocation10 + $0x7]]
    %v7415 = vstv %s7414
    %v7416 = vmul.f32 %v7392, %v7415
    %v7417 = vmul.f32 %v7394, %v7415
    %v7418 = vadd.f32 %v7390, %v7416
    %v7419 = vadd.f32 %v7391, %v7417
    %s7420 = sld [smem:[#allocation10 + $0x14]]
    %v7421 = vstv %s7420
    %v7422 = vmul.f32 %v7392, %v7421
    %v7423 = vmul.f32 %v7394, %v7421
    %7426 = vrot.lane.b32.xlu0 %v7422, 127
    %v7427 = vpop.permute.xlu0 %7426
    %7428 = vrot.lane.b32.xlu0 %v7423, 127
    %v7429 = vpop.permute.xlu0 %7428
    %v7432 = vadd.f32 %v7400, %v7427
    %v7433 = vadd.f32 %v7401, %v7429
    %s7434 = sld [smem:[#allocation10 + $0x15]]
    %v7435 = vstv %s7434
    %v7436 = vmul.f32 %v7392, %v7435
    %v7437 = vmul.f32 %v7394, %v7435
    %7440 = vrot.lane.b32.xlu0 %v7436, 127
    %v7441 = vpop.permute.xlu0 %7440
    %7442 = vrot.lane.b32.xlu0 %v7437, 127
    %v7443 = vpop.permute.xlu0 %7442
    %v7446 = vadd.f32 %v7406, %v7441
    %v7447 = vadd.f32 %v7407, %v7443
    %s7448 = sld [smem:[#allocation10 + $0x16]]
    %v7449 = vstv %s7448
    %v7450 = vmul.f32 %v7392, %v7449
    %v7451 = vmul.f32 %v7394, %v7449
    %7454 = vrot.lane.b32.xlu0 %v7450, 127
    %v7455 = vpop.permute.xlu0 %7454
    %7456 = vrot.lane.b32.xlu0 %v7451, 127
    %v7457 = vpop.permute.xlu0 %7456
    %v7460 = vadd.f32 %v7412, %v7455
    %v7461 = vadd.f32 %v7413, %v7457
    %s7462 = sld [smem:[#allocation10 + $0x17]]
    %v7463 = vstv %s7462
    %v7464 = vmul.f32 %v7392, %v7463
    %v7465 = vmul.f32 %v7394, %v7463
    %7468 = vrot.lane.b32.xlu0 %v7464, 127
    %v7469 = vpop.permute.xlu0 %7468
    %7470 = vrot.lane.b32.xlu0 %v7465, 127
    %v7471 = vpop.permute.xlu0 %7470
    %v7474 = vadd.f32 %v7418, %v7469
    %v7475 = vadd.f32 %v7419, %v7471
    %s7476 = sld [smem:[#allocation10 + $0x24]]
    %v7477 = vstv %s7476
    %v7478 = vmul.f32 %v7392, %v7477
    %v7479 = vmul.f32 %v7394, %v7477
    %7482 = vrot.lane.b32.xlu0 %v7478, 126
    %v7483 = vpop.permute.xlu0 %7482
    %7484 = vrot.lane.b32.xlu0 %v7479, 126
    %v7485 = vpop.permute.xlu0 %7484
    %v7488 = vadd.f32 %v7432, %v7483
    %v7489 = vadd.f32 %v7433, %v7485
    %s7490 = sld [smem:[#allocation10 + $0x25]]
    %v7491 = vstv %s7490
    %v7492 = vmul.f32 %v7392, %v7491
    %v7493 = vmul.f32 %v7394, %v7491
    %7496 = vrot.lane.b32.xlu0 %v7492, 126
    %v7497 = vpop.permute.xlu0 %7496
    %7498 = vrot.lane.b32.xlu0 %v7493, 126
    %v7499 = vpop.permute.xlu0 %7498
    %v7502 = vadd.f32 %v7446, %v7497
    %v7503 = vadd.f32 %v7447, %v7499
    %s7504 = sld [smem:[#allocation10 + $0x26]]
    %v7505 = vstv %s7504
    %v7506 = vmul.f32 %v7392, %v7505
    %v7507 = vmul.f32 %v7394, %v7505
    %7510 = vrot.lane.b32.xlu0 %v7506, 126
    %v7511 = vpop.permute.xlu0 %7510
    %7512 = vrot.lane.b32.xlu0 %v7507, 126
    %v7513 = vpop.permute.xlu0 %7512
    %v7516 = vadd.f32 %v7460, %v7511
    %v7517 = vadd.f32 %v7461, %v7513
    %s7518 = sld [smem:[#allocation10 + $0x27]]
    %v7519 = vstv %s7518
    %v7520 = vmul.f32 %v7392, %v7519
    %v7521 = vmul.f32 %v7394, %v7519
    %7524 = vrot.lane.b32.xlu0 %v7520, 126
    %v7525 = vpop.permute.xlu0 %7524
    %7526 = vrot.lane.b32.xlu0 %v7521, 126
    %v7527 = vpop.permute.xlu0 %7526
    %v7530 = vadd.f32 %v7474, %v7525
    %v7531 = vadd.f32 %v7475, %v7527
    %s7532 = sld [smem:[#allocation10 + $0x34]]
    %v7533 = vstv %s7532
    %v7534 = vmul.f32 %v7392, %v7533
    %v7535 = vmul.f32 %v7393, %v7533
    %v7536 = vmul.f32 %v7394, %v7533
    %v7537 = vmul.f32 %v7395, %v7533
    %v7542 = vrot.slane %v7534, 1
    %v7543 = vrot.slane %v7535, 1
    %v7544 = vsel %vm1665, %v7542, %v7543
    %v7545 = vrot.slane %v7536, 1
    %v7546 = vrot.slane %v7537, 1
    %v7547 = vsel %vm1665, %v7545, %v7546
    %v7550 = vadd.f32 %v7488, %v7544
    %v7551 = vadd.f32 %v7489, %v7547
    %s7552 = sld [smem:[#allocation10 + $0x35]]
    %v7553 = vstv %s7552
    %v7554 = vmul.f32 %v7392, %v7553
    %v7555 = vmul.f32 %v7393, %v7553
    %v7556 = vmul.f32 %v7394, %v7553
    %v7557 = vmul.f32 %v7395, %v7553
    %v7562 = vrot.slane %v7554, 1
    %v7563 = vrot.slane %v7555, 1
    %v7564 = vsel %vm1665, %v7562, %v7563
    %v7565 = vrot.slane %v7556, 1
    %v7566 = vrot.slane %v7557, 1
    %v7567 = vsel %vm1665, %v7565, %v7566
    %v7570 = vadd.f32 %v7502, %v7564
    %v7571 = vadd.f32 %v7503, %v7567
    %s7572 = sld [smem:[#allocation10 + $0x36]]
    %v7573 = vstv %s7572
    %v7574 = vmul.f32 %v7392, %v7573
    %v7575 = vmul.f32 %v7393, %v7573
    %v7576 = vmul.f32 %v7394, %v7573
    %v7577 = vmul.f32 %v7395, %v7573
    %v7582 = vrot.slane %v7574, 1
    %v7583 = vrot.slane %v7575, 1
    %v7584 = vsel %vm1665, %v7582, %v7583
    %v7585 = vrot.slane %v7576, 1
    %v7586 = vrot.slane %v7577, 1
    %v7587 = vsel %vm1665, %v7585, %v7586
    %v7590 = vadd.f32 %v7516, %v7584
    %v7591 = vadd.f32 %v7517, %v7587
    %s7592 = sld [smem:[#allocation10 + $0x37]]
    %v7593 = vstv %s7592
    %v7594 = vmul.f32 %v7392, %v7593
    %v7595 = vmul.f32 %v7393, %v7593
    %v7596 = vmul.f32 %v7394, %v7593
    %v7597 = vmul.f32 %v7395, %v7593
    %v7602 = vrot.slane %v7594, 1
    %v7603 = vrot.slane %v7595, 1
    %v7604 = vsel %vm1665, %v7602, %v7603
    %v7605 = vrot.slane %v7596, 1
    %v7606 = vrot.slane %v7597, 1
    %v7607 = vsel %vm1665, %v7605, %v7606
    %v7610 = vadd.f32 %v7530, %v7604
    %v7611 = vadd.f32 %v7531, %v7607
    %s7612 = sld [smem:[#allocation10 + $0x44]]
    %v7613 = vstv %s7612
    %v7614 = vmul.f32 %v7392, %v7613
    %v7615 = vmul.f32 %v7393, %v7613
    %v7616 = vmul.f32 %v7394, %v7613
    %v7617 = vmul.f32 %v7395, %v7613
    %v7622 = vrot.slane %v7614, 1
    %v7623 = vrot.slane %v7615, 1
    %v7624 = vsel %vm1665, %v7622, %v7623
    %v7625 = vrot.slane %v7616, 1
    %v7626 = vrot.slane %v7617, 1
    %v7627 = vsel %vm1665, %v7625, %v7626
    %7628 = vrot.lane.b32.xlu0 %v7624, 127
    %v7629 = vpop.permute.xlu0 %7628
    %7630 = vrot.lane.b32.xlu0 %v7627, 127
    %v7631 = vpop.permute.xlu0 %7630
    %v7634 = vadd.f32 %v7550, %v7629
    %v7635 = vadd.f32 %v7551, %v7631
    %s7636 = sld [smem:[#allocation10 + $0x45]]
    %v7637 = vstv %s7636
    %v7638 = vmul.f32 %v7392, %v7637
    %v7639 = vmul.f32 %v7393, %v7637
    %v7640 = vmul.f32 %v7394, %v7637
    %v7641 = vmul.f32 %v7395, %v7637
    %v7646 = vrot.slane %v7638, 1
    %v7647 = vrot.slane %v7639, 1
    %v7648 = vsel %vm1665, %v7646, %v7647
    %v7649 = vrot.slane %v7640, 1
    %v7650 = vrot.slane %v7641, 1
    %v7651 = vsel %vm1665, %v7649, %v7650
    %7652 = vrot.lane.b32.xlu0 %v7648, 127
    %v7653 = vpop.permute.xlu0 %7652
    %7654 = vrot.lane.b32.xlu0 %v7651, 127
    %v7655 = vpop.permute.xlu0 %7654
    %v7658 = vadd.f32 %v7570, %v7653
    %v7659 = vadd.f32 %v7571, %v7655
    %s7660 = sld [smem:[#allocation10 + $0x46]]
    %v7661 = vstv %s7660
    %v7662 = vmul.f32 %v7392, %v7661
    %v7663 = vmul.f32 %v7393, %v7661
    %v7664 = vmul.f32 %v7394, %v7661
    %v7665 = vmul.f32 %v7395, %v7661
    %v7670 = vrot.slane %v7662, 1
    %v7671 = vrot.slane %v7663, 1
    %v7672 = vsel %vm1665, %v7670, %v7671
    %v7673 = vrot.slane %v7664, 1
    %v7674 = vrot.slane %v7665, 1
    %v7675 = vsel %vm1665, %v7673, %v7674
    %7676 = vrot.lane.b32.xlu0 %v7672, 127
    %v7677 = vpop.permute.xlu0 %7676
    %7678 = vrot.lane.b32.xlu0 %v7675, 127
    %v7679 = vpop.permute.xlu0 %7678
    %v7682 = vadd.f32 %v7590, %v7677
    %v7683 = vadd.f32 %v7591, %v7679
    %s7684 = sld [smem:[#allocation10 + $0x47]]
    %v7685 = vstv %s7684
    %v7686 = vmul.f32 %v7392, %v7685
    %v7687 = vmul.f32 %v7393, %v7685
    %v7688 = vmul.f32 %v7394, %v7685
    %v7689 = vmul.f32 %v7395, %v7685
    %v7694 = vrot.slane %v7686, 1
    %v7695 = vrot.slane %v7687, 1
    %v7696 = vsel %vm1665, %v7694, %v7695
    %v7697 = vrot.slane %v7688, 1
    %v7698 = vrot.slane %v7689, 1
    %v7699 = vsel %vm1665, %v7697, %v7698
    %7700 = vrot.lane.b32.xlu0 %v7696, 127
    %v7701 = vpop.permute.xlu0 %7700
    %7702 = vrot.lane.b32.xlu0 %v7699, 127
    %v7703 = vpop.permute.xlu0 %7702
    %v7706 = vadd.f32 %v7610, %v7701
    %v7707 = vadd.f32 %v7611, %v7703
    %s7708 = sld [smem:[#allocation10 + $0x54]]
    %v7709 = vstv %s7708
    %v7710 = vmul.f32 %v7392, %v7709
    %v7711 = vmul.f32 %v7393, %v7709
    %v7712 = vmul.f32 %v7394, %v7709
    %v7713 = vmul.f32 %v7395, %v7709
    %v7718 = vrot.slane %v7710, 1
    %v7719 = vrot.slane %v7711, 1
    %v7720 = vsel %vm1665, %v7718, %v7719
    %v7721 = vrot.slane %v7712, 1
    %v7722 = vrot.slane %v7713, 1
    %v7723 = vsel %vm1665, %v7721, %v7722
    %7724 = vrot.lane.b32.xlu0 %v7720, 126
    %v7725 = vpop.permute.xlu0 %7724
    %7726 = vrot.lane.b32.xlu0 %v7723, 126
    %v7727 = vpop.permute.xlu0 %7726
    %v7730 = vadd.f32 %v7634, %v7725
    %v7731 = vadd.f32 %v7635, %v7727
    %s7732 = sld [smem:[#allocation10 + $0x55]]
    %v7733 = vstv %s7732
    %v7734 = vmul.f32 %v7392, %v7733
    %v7735 = vmul.f32 %v7393, %v7733
    %v7736 = vmul.f32 %v7394, %v7733
    %v7737 = vmul.f32 %v7395, %v7733
    %v7742 = vrot.slane %v7734, 1
    %v7743 = vrot.slane %v7735, 1
    %v7744 = vsel %vm1665, %v7742, %v7743
    %v7745 = vrot.slane %v7736, 1
    %v7746 = vrot.slane %v7737, 1
    %v7747 = vsel %vm1665, %v7745, %v7746
    %7748 = vrot.lane.b32.xlu0 %v7744, 126
    %v7749 = vpop.permute.xlu0 %7748
    %7750 = vrot.lane.b32.xlu0 %v7747, 126
    %v7751 = vpop.permute.xlu0 %7750
    %v7754 = vadd.f32 %v7658, %v7749
    %v7755 = vadd.f32 %v7659, %v7751
    %s7756 = sld [smem:[#allocation10 + $0x56]]
    %v7757 = vstv %s7756
    %v7758 = vmul.f32 %v7392, %v7757
    %v7759 = vmul.f32 %v7393, %v7757
    %v7760 = vmul.f32 %v7394, %v7757
    %v7761 = vmul.f32 %v7395, %v7757
    %v7766 = vrot.slane %v7758, 1
    %v7767 = vrot.slane %v7759, 1
    %v7768 = vsel %vm1665, %v7766, %v7767
    %v7769 = vrot.slane %v7760, 1
    %v7770 = vrot.slane %v7761, 1
    %v7771 = vsel %vm1665, %v7769, %v7770
    %7772 = vrot.lane.b32.xlu0 %v7768, 126
    %v7773 = vpop.permute.xlu0 %7772
    %7774 = vrot.lane.b32.xlu0 %v7771, 126
    %v7775 = vpop.permute.xlu0 %7774
    %v7778 = vadd.f32 %v7682, %v7773
    %v7779 = vadd.f32 %v7683, %v7775
    %s7780 = sld [smem:[#allocation10 + $0x57]]
    %v7781 = vstv %s7780
    %v7782 = vmul.f32 %v7392, %v7781
    %v7783 = vmul.f32 %v7393, %v7781
    %v7784 = vmul.f32 %v7394, %v7781
    %v7785 = vmul.f32 %v7395, %v7781
    %v7790 = vrot.slane %v7782, 1
    %v7791 = vrot.slane %v7783, 1
    %v7792 = vsel %vm1665, %v7790, %v7791
    %v7793 = vrot.slane %v7784, 1
    %v7794 = vrot.slane %v7785, 1
    %v7795 = vsel %vm1665, %v7793, %v7794
    %7796 = vrot.lane.b32.xlu0 %v7792, 126
    %v7797 = vpop.permute.xlu0 %7796
    %7798 = vrot.lane.b32.xlu0 %v7795, 126
    %v7799 = vpop.permute.xlu0 %7798
    %v7802 = vadd.f32 %v7706, %v7797
    %v7803 = vadd.f32 %v7707, %v7799
    %s7804 = sld [smem:[#allocation10 + $0x64]]
    %v7805 = vstv %s7804
    %v7806 = vmul.f32 %v7392, %v7805
    %v7807 = vmul.f32 %v7393, %v7805
    %v7808 = vmul.f32 %v7394, %v7805
    %v7809 = vmul.f32 %v7395, %v7805
    %v7814 = vrot.slane %v7806, 2
    %v7815 = vrot.slane %v7807, 2
    %v7816 = vsel %vm1938, %v7814, %v7815
    %v7817 = vrot.slane %v7808, 2
    %v7818 = vrot.slane %v7809, 2
    %v7819 = vsel %vm1938, %v7817, %v7818
    %v7822 = vadd.f32 %v7730, %v7816
    %v7823 = vadd.f32 %v7731, %v7819
    %s7824 = sld [smem:[#allocation10 + $0x65]]
    %v7825 = vstv %s7824
    %v7826 = vmul.f32 %v7392, %v7825
    %v7827 = vmul.f32 %v7393, %v7825
    %v7828 = vmul.f32 %v7394, %v7825
    %v7829 = vmul.f32 %v7395, %v7825
    %v7834 = vrot.slane %v7826, 2
    %v7835 = vrot.slane %v7827, 2
    %v7836 = vsel %vm1938, %v7834, %v7835
    %v7837 = vrot.slane %v7828, 2
    %v7838 = vrot.slane %v7829, 2
    %v7839 = vsel %vm1938, %v7837, %v7838
    %v7842 = vadd.f32 %v7754, %v7836
    %v7843 = vadd.f32 %v7755, %v7839
    %s7844 = sld [smem:[#allocation10 + $0x66]]
    %v7845 = vstv %s7844
    %v7846 = vmul.f32 %v7392, %v7845
    %v7847 = vmul.f32 %v7393, %v7845
    %v7848 = vmul.f32 %v7394, %v7845
    %v7849 = vmul.f32 %v7395, %v7845
    %v7854 = vrot.slane %v7846, 2
    %v7855 = vrot.slane %v7847, 2
    %v7856 = vsel %vm1938, %v7854, %v7855
    %v7857 = vrot.slane %v7848, 2
    %v7858 = vrot.slane %v7849, 2
    %v7859 = vsel %vm1938, %v7857, %v7858
    %v7862 = vadd.f32 %v7778, %v7856
    %v7863 = vadd.f32 %v7779, %v7859
    %s7864 = sld [smem:[#allocation10 + $0x67]]
    %v7865 = vstv %s7864
    %v7866 = vmul.f32 %v7392, %v7865
    %v7867 = vmul.f32 %v7393, %v7865
    %v7868 = vmul.f32 %v7394, %v7865
    %v7869 = vmul.f32 %v7395, %v7865
    %v7874 = vrot.slane %v7866, 2
    %v7875 = vrot.slane %v7867, 2
    %v7876 = vsel %vm1938, %v7874, %v7875
    %v7877 = vrot.slane %v7868, 2
    %v7878 = vrot.slane %v7869, 2
    %v7879 = vsel %vm1938, %v7877, %v7878
    %v7882 = vadd.f32 %v7802, %v7876
    %v7883 = vadd.f32 %v7803, %v7879
    %s7884 = sld [smem:[#allocation10 + $0x74]]
    %v7885 = vstv %s7884
    %v7886 = vmul.f32 %v7392, %v7885
    %v7887 = vmul.f32 %v7393, %v7885
    %v7888 = vmul.f32 %v7394, %v7885
    %v7889 = vmul.f32 %v7395, %v7885
    %v7894 = vrot.slane %v7886, 2
    %v7895 = vrot.slane %v7887, 2
    %v7896 = vsel %vm1938, %v7894, %v7895
    %v7897 = vrot.slane %v7888, 2
    %v7898 = vrot.slane %v7889, 2
    %v7899 = vsel %vm1938, %v7897, %v7898
    %7900 = vrot.lane.b32.xlu0 %v7896, 127
    %v7901 = vpop.permute.xlu0 %7900
    %7902 = vrot.lane.b32.xlu0 %v7899, 127
    %v7903 = vpop.permute.xlu0 %7902
    %v7906 = vadd.f32 %v7822, %v7901
    %v7907 = vadd.f32 %v7823, %v7903
    %s7908 = sld [smem:[#allocation10 + $0x75]]
    %v7909 = vstv %s7908
    %v7910 = vmul.f32 %v7392, %v7909
    %v7911 = vmul.f32 %v7393, %v7909
    %v7912 = vmul.f32 %v7394, %v7909
    %v7913 = vmul.f32 %v7395, %v7909
    %v7918 = vrot.slane %v7910, 2
    %v7919 = vrot.slane %v7911, 2
    %v7920 = vsel %vm1938, %v7918, %v7919
    %v7921 = vrot.slane %v7912, 2
    %v7922 = vrot.slane %v7913, 2
    %v7923 = vsel %vm1938, %v7921, %v7922
    %7924 = vrot.lane.b32.xlu0 %v7920, 127
    %v7925 = vpop.permute.xlu0 %7924
    %7926 = vrot.lane.b32.xlu0 %v7923, 127
    %v7927 = vpop.permute.xlu0 %7926
    %v7930 = vadd.f32 %v7842, %v7925
    %v7931 = vadd.f32 %v7843, %v7927
    %s7932 = sld [smem:[#allocation10 + $0x76]]
    %v7933 = vstv %s7932
    %v7934 = vmul.f32 %v7392, %v7933
    %v7935 = vmul.f32 %v7393, %v7933
    %v7936 = vmul.f32 %v7394, %v7933
    %v7937 = vmul.f32 %v7395, %v7933
    %v7942 = vrot.slane %v7934, 2
    %v7943 = vrot.slane %v7935, 2
    %v7944 = vsel %vm1938, %v7942, %v7943
    %v7945 = vrot.slane %v7936, 2
    %v7946 = vrot.slane %v7937, 2
    %v7947 = vsel %vm1938, %v7945, %v7946
    %7948 = vrot.lane.b32.xlu0 %v7944, 127
    %v7949 = vpop.permute.xlu0 %7948
    %7950 = vrot.lane.b32.xlu0 %v7947, 127
    %v7951 = vpop.permute.xlu0 %7950
    %v7954 = vadd.f32 %v7862, %v7949
    %v7955 = vadd.f32 %v7863, %v7951
    %s7956 = sld [smem:[#allocation10 + $0x77]]
    %v7957 = vstv %s7956
    %v7958 = vmul.f32 %v7392, %v7957
    %v7959 = vmul.f32 %v7393, %v7957
    %v7960 = vmul.f32 %v7394, %v7957
    %v7961 = vmul.f32 %v7395, %v7957
    %v7966 = vrot.slane %v7958, 2
    %v7967 = vrot.slane %v7959, 2
    %v7968 = vsel %vm1938, %v7966, %v7967
    %v7969 = vrot.slane %v7960, 2
    %v7970 = vrot.slane %v7961, 2
    %v7971 = vsel %vm1938, %v7969, %v7970
    %7972 = vrot.lane.b32.xlu0 %v7968, 127
    %v7973 = vpop.permute.xlu0 %7972
    %7974 = vrot.lane.b32.xlu0 %v7971, 127
    %v7975 = vpop.permute.xlu0 %7974
    %v7978 = vadd.f32 %v7882, %v7973
    %v7979 = vadd.f32 %v7883, %v7975
    %s7980 = sld [smem:[#allocation10 + $0x84]]
    %v7981 = vstv %s7980
    %v7982 = vmul.f32 %v7392, %v7981
    %v7983 = vmul.f32 %v7393, %v7981
    %v7984 = vmul.f32 %v7394, %v7981
    %v7985 = vmul.f32 %v7395, %v7981
    %v7990 = vrot.slane %v7982, 2
    %v7991 = vrot.slane %v7983, 2
    %v7992 = vsel %vm1938, %v7990, %v7991
    %v7993 = vrot.slane %v7984, 2
    %v7994 = vrot.slane %v7985, 2
    %v7995 = vsel %vm1938, %v7993, %v7994
    %7996 = vrot.lane.b32.xlu0 %v7992, 126
    %v7997 = vpop.permute.xlu0 %7996
    %7998 = vrot.lane.b32.xlu0 %v7995, 126
    %v7999 = vpop.permute.xlu0 %7998
    %v8002 = vadd.f32 %v7906, %v7997
    %v8003 = vadd.f32 %v7907, %v7999
    %s8004 = sld [smem:[#allocation10 + $0x85]]
    %v8005 = vstv %s8004
    %v8006 = vmul.f32 %v7392, %v8005
    %v8007 = vmul.f32 %v7393, %v8005
    %v8008 = vmul.f32 %v7394, %v8005
    %v8009 = vmul.f32 %v7395, %v8005
    %v8014 = vrot.slane %v8006, 2
    %v8015 = vrot.slane %v8007, 2
    %v8016 = vsel %vm1938, %v8014, %v8015
    %v8017 = vrot.slane %v8008, 2
    %v8018 = vrot.slane %v8009, 2
    %v8019 = vsel %vm1938, %v8017, %v8018
    %8020 = vrot.lane.b32.xlu0 %v8016, 126
    %v8021 = vpop.permute.xlu0 %8020
    %8022 = vrot.lane.b32.xlu0 %v8019, 126
    %v8023 = vpop.permute.xlu0 %8022
    %v8026 = vadd.f32 %v7930, %v8021
    %v8027 = vadd.f32 %v7931, %v8023
    %s8028 = sld [smem:[#allocation10 + $0x86]]
    %v8029 = vstv %s8028
    %v8030 = vmul.f32 %v7392, %v8029
    %v8031 = vmul.f32 %v7393, %v8029
    %v8032 = vmul.f32 %v7394, %v8029
    %v8033 = vmul.f32 %v7395, %v8029
    %v8038 = vrot.slane %v8030, 2
    %v8039 = vrot.slane %v8031, 2
    %v8040 = vsel %vm1938, %v8038, %v8039
    %v8041 = vrot.slane %v8032, 2
    %v8042 = vrot.slane %v8033, 2
    %v8043 = vsel %vm1938, %v8041, %v8042
    %8044 = vrot.lane.b32.xlu0 %v8040, 126
    %v8045 = vpop.permute.xlu0 %8044
    %8046 = vrot.lane.b32.xlu0 %v8043, 126
    %v8047 = vpop.permute.xlu0 %8046
    %v8050 = vadd.f32 %v7954, %v8045
    %v8051 = vadd.f32 %v7955, %v8047
    %s8052 = sld [smem:[#allocation10 + $0x87]]
    %v8053 = vstv %s8052
    %v8054 = vmul.f32 %v7392, %v8053
    %v8055 = vmul.f32 %v7393, %v8053
    %v8056 = vmul.f32 %v7394, %v8053
    %v8057 = vmul.f32 %v7395, %v8053
    %v8062 = vrot.slane %v8054, 2
    %v8063 = vrot.slane %v8055, 2
    %v8064 = vsel %vm1938, %v8062, %v8063
    %v8065 = vrot.slane %v8056, 2
    %v8066 = vrot.slane %v8057, 2
    %v8067 = vsel %vm1938, %v8065, %v8066
    %8068 = vrot.lane.b32.xlu0 %v8064, 126
    %v8069 = vpop.permute.xlu0 %8068
    %8070 = vrot.lane.b32.xlu0 %v8067, 126
    %v8071 = vpop.permute.xlu0 %8070
    %v8074 = vadd.f32 %v7978, %v8069
    %v8075 = vadd.f32 %v7979, %v8071
    %v8076 = vld [vmem:[%s2886] sm:$0xff]
    %v8077 = vld [vmem:[%s2886 + $0x8] sm:$0x3]
    %v8078 = vld [vmem:[%s2886 + $0x70] sm:$0xff]
    %v8079 = vld [vmem:[%s2886 + $0x78] sm:$0x3]
    %s8080 = sld [smem:[#allocation10 + $0x8]]
    %v8081 = vstv %s8080
    %v8082 = vmul.f32 %v8076, %v8081
    %v8083 = vmul.f32 %v8078, %v8081
    %v8084 = vadd.f32 %v8002, %v8082
    %v8085 = vadd.f32 %v8003, %v8083
    %s8086 = sld [smem:[#allocation10 + $0x9]]
    %v8087 = vstv %s8086
    %v8088 = vmul.f32 %v8076, %v8087
    %v8089 = vmul.f32 %v8078, %v8087
    %v8090 = vadd.f32 %v8026, %v8088
    %v8091 = vadd.f32 %v8027, %v8089
    %s8092 = sld [smem:[#allocation10 + $0xa]]
    %v8093 = vstv %s8092
    %v8094 = vmul.f32 %v8076, %v8093
    %v8095 = vmul.f32 %v8078, %v8093
    %v8096 = vadd.f32 %v8050, %v8094
    %v8097 = vadd.f32 %v8051, %v8095
    %s8098 = sld [smem:[#allocation10 + $0xb]]
    %v8099 = vstv %s8098
    %v8100 = vmul.f32 %v8076, %v8099
    %v8101 = vmul.f32 %v8078, %v8099
    %v8102 = vadd.f32 %v8074, %v8100
    %v8103 = vadd.f32 %v8075, %v8101
    %s8104 = sld [smem:[#allocation10 + $0x18]]
    %v8105 = vstv %s8104
    %v8106 = vmul.f32 %v8076, %v8105
    %v8107 = vmul.f32 %v8078, %v8105
    %8110 = vrot.lane.b32.xlu0 %v8106, 127
    %v8111 = vpop.permute.xlu0 %8110
    %8112 = vrot.lane.b32.xlu0 %v8107, 127
    %v8113 = vpop.permute.xlu0 %8112
    %v8116 = vadd.f32 %v8084, %v8111
    %v8117 = vadd.f32 %v8085, %v8113
    %s8118 = sld [smem:[#allocation10 + $0x19]]
    %v8119 = vstv %s8118
    %v8120 = vmul.f32 %v8076, %v8119
    %v8121 = vmul.f32 %v8078, %v8119
    %8124 = vrot.lane.b32.xlu0 %v8120, 127
    %v8125 = vpop.permute.xlu0 %8124
    %8126 = vrot.lane.b32.xlu0 %v8121, 127
    %v8127 = vpop.permute.xlu0 %8126
    %v8130 = vadd.f32 %v8090, %v8125
    %v8131 = vadd.f32 %v8091, %v8127
    %s8132 = sld [smem:[#allocation10 + $0x1a]]
    %v8133 = vstv %s8132
    %v8134 = vmul.f32 %v8076, %v8133
    %v8135 = vmul.f32 %v8078, %v8133
    %8138 = vrot.lane.b32.xlu0 %v8134, 127
    %v8139 = vpop.permute.xlu0 %8138
    %8140 = vrot.lane.b32.xlu0 %v8135, 127
    %v8141 = vpop.permute.xlu0 %8140
    %v8144 = vadd.f32 %v8096, %v8139
    %v8145 = vadd.f32 %v8097, %v8141
    %s8146 = sld [smem:[#allocation10 + $0x1b]]
    %v8147 = vstv %s8146
    %v8148 = vmul.f32 %v8076, %v8147
    %v8149 = vmul.f32 %v8078, %v8147
    %8152 = vrot.lane.b32.xlu0 %v8148, 127
    %v8153 = vpop.permute.xlu0 %8152
    %8154 = vrot.lane.b32.xlu0 %v8149, 127
    %v8155 = vpop.permute.xlu0 %8154
    %v8158 = vadd.f32 %v8102, %v8153
    %v8159 = vadd.f32 %v8103, %v8155
    %s8160 = sld [smem:[#allocation10 + $0x28]]
    %v8161 = vstv %s8160
    %v8162 = vmul.f32 %v8076, %v8161
    %v8163 = vmul.f32 %v8078, %v8161
    %8166 = vrot.lane.b32.xlu0 %v8162, 126
    %v8167 = vpop.permute.xlu0 %8166
    %8168 = vrot.lane.b32.xlu0 %v8163, 126
    %v8169 = vpop.permute.xlu0 %8168
    %v8172 = vadd.f32 %v8116, %v8167
    %v8173 = vadd.f32 %v8117, %v8169
    %s8174 = sld [smem:[#allocation10 + $0x29]]
    %v8175 = vstv %s8174
    %v8176 = vmul.f32 %v8076, %v8175
    %v8177 = vmul.f32 %v8078, %v8175
    %8180 = vrot.lane.b32.xlu0 %v8176, 126
    %v8181 = vpop.permute.xlu0 %8180
    %8182 = vrot.lane.b32.xlu0 %v8177, 126
    %v8183 = vpop.permute.xlu0 %8182
    %v8186 = vadd.f32 %v8130, %v8181
    %v8187 = vadd.f32 %v8131, %v8183
    %s8188 = sld [smem:[#allocation10 + $0x2a]]
    %v8189 = vstv %s8188
    %v8190 = vmul.f32 %v8076, %v8189
    %v8191 = vmul.f32 %v8078, %v8189
    %8194 = vrot.lane.b32.xlu0 %v8190, 126
    %v8195 = vpop.permute.xlu0 %8194
    %8196 = vrot.lane.b32.xlu0 %v8191, 126
    %v8197 = vpop.permute.xlu0 %8196
    %v8200 = vadd.f32 %v8144, %v8195
    %v8201 = vadd.f32 %v8145, %v8197
    %s8202 = sld [smem:[#allocation10 + $0x2b]]
    %v8203 = vstv %s8202
    %v8204 = vmul.f32 %v8076, %v8203
    %v8205 = vmul.f32 %v8078, %v8203
    %8208 = vrot.lane.b32.xlu0 %v8204, 126
    %v8209 = vpop.permute.xlu0 %8208
    %8210 = vrot.lane.b32.xlu0 %v8205, 126
    %v8211 = vpop.permute.xlu0 %8210
    %v8214 = vadd.f32 %v8158, %v8209
    %v8215 = vadd.f32 %v8159, %v8211
    %s8216 = sld [smem:[#allocation10 + $0x38]]
    %v8217 = vstv %s8216
    %v8218 = vmul.f32 %v8076, %v8217
    %v8219 = vmul.f32 %v8077, %v8217
    %v8220 = vmul.f32 %v8078, %v8217
    %v8221 = vmul.f32 %v8079, %v8217
    %v8226 = vrot.slane %v8218, 1
    %v8227 = vrot.slane %v8219, 1
    %v8228 = vsel %vm1665, %v8226, %v8227
    %v8229 = vrot.slane %v8220, 1
    %v8230 = vrot.slane %v8221, 1
    %v8231 = vsel %vm1665, %v8229, %v8230
    %v8234 = vadd.f32 %v8172, %v8228
    %v8235 = vadd.f32 %v8173, %v8231
    %s8236 = sld [smem:[#allocation10 + $0x39]]
    %v8237 = vstv %s8236
    %v8238 = vmul.f32 %v8076, %v8237
    %v8239 = vmul.f32 %v8077, %v8237
    %v8240 = vmul.f32 %v8078, %v8237
    %v8241 = vmul.f32 %v8079, %v8237
    %v8246 = vrot.slane %v8238, 1
    %v8247 = vrot.slane %v8239, 1
    %v8248 = vsel %vm1665, %v8246, %v8247
    %v8249 = vrot.slane %v8240, 1
    %v8250 = vrot.slane %v8241, 1
    %v8251 = vsel %vm1665, %v8249, %v8250
    %v8254 = vadd.f32 %v8186, %v8248
    %v8255 = vadd.f32 %v8187, %v8251
    %s8256 = sld [smem:[#allocation10 + $0x3a]]
    %v8257 = vstv %s8256
    %v8258 = vmul.f32 %v8076, %v8257
    %v8259 = vmul.f32 %v8077, %v8257
    %v8260 = vmul.f32 %v8078, %v8257
    %v8261 = vmul.f32 %v8079, %v8257
    %v8266 = vrot.slane %v8258, 1
    %v8267 = vrot.slane %v8259, 1
    %v8268 = vsel %vm1665, %v8266, %v8267
    %v8269 = vrot.slane %v8260, 1
    %v8270 = vrot.slane %v8261, 1
    %v8271 = vsel %vm1665, %v8269, %v8270
    %v8274 = vadd.f32 %v8200, %v8268
    %v8275 = vadd.f32 %v8201, %v8271
    %s8276 = sld [smem:[#allocation10 + $0x3b]]
    %v8277 = vstv %s8276
    %v8278 = vmul.f32 %v8076, %v8277
    %v8279 = vmul.f32 %v8077, %v8277
    %v8280 = vmul.f32 %v8078, %v8277
    %v8281 = vmul.f32 %v8079, %v8277
    %v8286 = vrot.slane %v8278, 1
    %v8287 = vrot.slane %v8279, 1
    %v8288 = vsel %vm1665, %v8286, %v8287
    %v8289 = vrot.slane %v8280, 1
    %v8290 = vrot.slane %v8281, 1
    %v8291 = vsel %vm1665, %v8289, %v8290
    %v8294 = vadd.f32 %v8214, %v8288
    %v8295 = vadd.f32 %v8215, %v8291
    %s8296 = sld [smem:[#allocation10 + $0x48]]
    %v8297 = vstv %s8296
    %v8298 = vmul.f32 %v8076, %v8297
    %v8299 = vmul.f32 %v8077, %v8297
    %v8300 = vmul.f32 %v8078, %v8297
    %v8301 = vmul.f32 %v8079, %v8297
    %v8306 = vrot.slane %v8298, 1
    %v8307 = vrot.slane %v8299, 1
    %v8308 = vsel %vm1665, %v8306, %v8307
    %v8309 = vrot.slane %v8300, 1
    %v8310 = vrot.slane %v8301, 1
    %v8311 = vsel %vm1665, %v8309, %v8310
    %8312 = vrot.lane.b32.xlu0 %v8308, 127
    %v8313 = vpop.permute.xlu0 %8312
    %8314 = vrot.lane.b32.xlu0 %v8311, 127
    %v8315 = vpop.permute.xlu0 %8314
    %v8318 = vadd.f32 %v8234, %v8313
    %v8319 = vadd.f32 %v8235, %v8315
    %s8320 = sld [smem:[#allocation10 + $0x49]]
    %v8321 = vstv %s8320
    %v8322 = vmul.f32 %v8076, %v8321
    %v8323 = vmul.f32 %v8077, %v8321
    %v8324 = vmul.f32 %v8078, %v8321
    %v8325 = vmul.f32 %v8079, %v8321
    %v8330 = vrot.slane %v8322, 1
    %v8331 = vrot.slane %v8323, 1
    %v8332 = vsel %vm1665, %v8330, %v8331
    %v8333 = vrot.slane %v8324, 1
    %v8334 = vrot.slane %v8325, 1
    %v8335 = vsel %vm1665, %v8333, %v8334
    %8336 = vrot.lane.b32.xlu0 %v8332, 127
    %v8337 = vpop.permute.xlu0 %8336
    %8338 = vrot.lane.b32.xlu0 %v8335, 127
    %v8339 = vpop.permute.xlu0 %8338
    %v8342 = vadd.f32 %v8254, %v8337
    %v8343 = vadd.f32 %v8255, %v8339
    %s8344 = sld [smem:[#allocation10 + $0x4a]]
    %v8345 = vstv %s8344
    %v8346 = vmul.f32 %v8076, %v8345
    %v8347 = vmul.f32 %v8077, %v8345
    %v8348 = vmul.f32 %v8078, %v8345
    %v8349 = vmul.f32 %v8079, %v8345
    %v8354 = vrot.slane %v8346, 1
    %v8355 = vrot.slane %v8347, 1
    %v8356 = vsel %vm1665, %v8354, %v8355
    %v8357 = vrot.slane %v8348, 1
    %v8358 = vrot.slane %v8349, 1
    %v8359 = vsel %vm1665, %v8357, %v8358
    %8360 = vrot.lane.b32.xlu0 %v8356, 127
    %v8361 = vpop.permute.xlu0 %8360
    %8362 = vrot.lane.b32.xlu0 %v8359, 127
    %v8363 = vpop.permute.xlu0 %8362
    %v8366 = vadd.f32 %v8274, %v8361
    %v8367 = vadd.f32 %v8275, %v8363
    %s8368 = sld [smem:[#allocation10 + $0x4b]]
    %v8369 = vstv %s8368
    %v8370 = vmul.f32 %v8076, %v8369
    %v8371 = vmul.f32 %v8077, %v8369
    %v8372 = vmul.f32 %v8078, %v8369
    %v8373 = vmul.f32 %v8079, %v8369
    %v8378 = vrot.slane %v8370, 1
    %v8379 = vrot.slane %v8371, 1
    %v8380 = vsel %vm1665, %v8378, %v8379
    %v8381 = vrot.slane %v8372, 1
    %v8382 = vrot.slane %v8373, 1
    %v8383 = vsel %vm1665, %v8381, %v8382
    %8384 = vrot.lane.b32.xlu0 %v8380, 127
    %v8385 = vpop.permute.xlu0 %8384
    %8386 = vrot.lane.b32.xlu0 %v8383, 127
    %v8387 = vpop.permute.xlu0 %8386
    %v8390 = vadd.f32 %v8294, %v8385
    %v8391 = vadd.f32 %v8295, %v8387
    %s8392 = sld [smem:[#allocation10 + $0x58]]
    %v8393 = vstv %s8392
    %v8394 = vmul.f32 %v8076, %v8393
    %v8395 = vmul.f32 %v8077, %v8393
    %v8396 = vmul.f32 %v8078, %v8393
    %v8397 = vmul.f32 %v8079, %v8393
    %v8402 = vrot.slane %v8394, 1
    %v8403 = vrot.slane %v8395, 1
    %v8404 = vsel %vm1665, %v8402, %v8403
    %v8405 = vrot.slane %v8396, 1
    %v8406 = vrot.slane %v8397, 1
    %v8407 = vsel %vm1665, %v8405, %v8406
    %8408 = vrot.lane.b32.xlu0 %v8404, 126
    %v8409 = vpop.permute.xlu0 %8408
    %8410 = vrot.lane.b32.xlu0 %v8407, 126
    %v8411 = vpop.permute.xlu0 %8410
    %v8414 = vadd.f32 %v8318, %v8409
    %v8415 = vadd.f32 %v8319, %v8411
    %s8416 = sld [smem:[#allocation10 + $0x59]]
    %v8417 = vstv %s8416
    %v8418 = vmul.f32 %v8076, %v8417
    %v8419 = vmul.f32 %v8077, %v8417
    %v8420 = vmul.f32 %v8078, %v8417
    %v8421 = vmul.f32 %v8079, %v8417
    %v8426 = vrot.slane %v8418, 1
    %v8427 = vrot.slane %v8419, 1
    %v8428 = vsel %vm1665, %v8426, %v8427
    %v8429 = vrot.slane %v8420, 1
    %v8430 = vrot.slane %v8421, 1
    %v8431 = vsel %vm1665, %v8429, %v8430
    %8432 = vrot.lane.b32.xlu0 %v8428, 126
    %v8433 = vpop.permute.xlu0 %8432
    %8434 = vrot.lane.b32.xlu0 %v8431, 126
    %v8435 = vpop.permute.xlu0 %8434
    %v8438 = vadd.f32 %v8342, %v8433
    %v8439 = vadd.f32 %v8343, %v8435
    %s8440 = sld [smem:[#allocation10 + $0x5a]]
    %v8441 = vstv %s8440
    %v8442 = vmul.f32 %v8076, %v8441
    %v8443 = vmul.f32 %v8077, %v8441
    %v8444 = vmul.f32 %v8078, %v8441
    %v8445 = vmul.f32 %v8079, %v8441
    %v8450 = vrot.slane %v8442, 1
    %v8451 = vrot.slane %v8443, 1
    %v8452 = vsel %vm1665, %v8450, %v8451
    %v8453 = vrot.slane %v8444, 1
    %v8454 = vrot.slane %v8445, 1
    %v8455 = vsel %vm1665, %v8453, %v8454
    %8456 = vrot.lane.b32.xlu0 %v8452, 126
    %v8457 = vpop.permute.xlu0 %8456
    %8458 = vrot.lane.b32.xlu0 %v8455, 126
    %v8459 = vpop.permute.xlu0 %8458
    %v8462 = vadd.f32 %v8366, %v8457
    %v8463 = vadd.f32 %v8367, %v8459
    %s8464 = sld [smem:[#allocation10 + $0x5b]]
    %v8465 = vstv %s8464
    %v8466 = vmul.f32 %v8076, %v8465
    %v8467 = vmul.f32 %v8077, %v8465
    %v8468 = vmul.f32 %v8078, %v8465
    %v8469 = vmul.f32 %v8079, %v8465
    %v8474 = vrot.slane %v8466, 1
    %v8475 = vrot.slane %v8467, 1
    %v8476 = vsel %vm1665, %v8474, %v8475
    %v8477 = vrot.slane %v8468, 1
    %v8478 = vrot.slane %v8469, 1
    %v8479 = vsel %vm1665, %v8477, %v8478
    %8480 = vrot.lane.b32.xlu0 %v8476, 126
    %v8481 = vpop.permute.xlu0 %8480
    %8482 = vrot.lane.b32.xlu0 %v8479, 126
    %v8483 = vpop.permute.xlu0 %8482
    %v8486 = vadd.f32 %v8390, %v8481
    %v8487 = vadd.f32 %v8391, %v8483
    %s8488 = sld [smem:[#allocation10 + $0x68]]
    %v8489 = vstv %s8488
    %v8490 = vmul.f32 %v8076, %v8489
    %v8491 = vmul.f32 %v8077, %v8489
    %v8492 = vmul.f32 %v8078, %v8489
    %v8493 = vmul.f32 %v8079, %v8489
    %v8498 = vrot.slane %v8490, 2
    %v8499 = vrot.slane %v8491, 2
    %v8500 = vsel %vm1938, %v8498, %v8499
    %v8501 = vrot.slane %v8492, 2
    %v8502 = vrot.slane %v8493, 2
    %v8503 = vsel %vm1938, %v8501, %v8502
    %v8506 = vadd.f32 %v8414, %v8500
    %v8507 = vadd.f32 %v8415, %v8503
    %s8508 = sld [smem:[#allocation10 + $0x69]]
    %v8509 = vstv %s8508
    %v8510 = vmul.f32 %v8076, %v8509
    %v8511 = vmul.f32 %v8077, %v8509
    %v8512 = vmul.f32 %v8078, %v8509
    %v8513 = vmul.f32 %v8079, %v8509
    %v8518 = vrot.slane %v8510, 2
    %v8519 = vrot.slane %v8511, 2
    %v8520 = vsel %vm1938, %v8518, %v8519
    %v8521 = vrot.slane %v8512, 2
    %v8522 = vrot.slane %v8513, 2
    %v8523 = vsel %vm1938, %v8521, %v8522
    %v8526 = vadd.f32 %v8438, %v8520
    %v8527 = vadd.f32 %v8439, %v8523
    %s8528 = sld [smem:[#allocation10 + $0x6a]]
    %v8529 = vstv %s8528
    %v8530 = vmul.f32 %v8076, %v8529
    %v8531 = vmul.f32 %v8077, %v8529
    %v8532 = vmul.f32 %v8078, %v8529
    %v8533 = vmul.f32 %v8079, %v8529
    %v8538 = vrot.slane %v8530, 2
    %v8539 = vrot.slane %v8531, 2
    %v8540 = vsel %vm1938, %v8538, %v8539
    %v8541 = vrot.slane %v8532, 2
    %v8542 = vrot.slane %v8533, 2
    %v8543 = vsel %vm1938, %v8541, %v8542
    %v8546 = vadd.f32 %v8462, %v8540
    %v8547 = vadd.f32 %v8463, %v8543
    %s8548 = sld [smem:[#allocation10 + $0x6b]]
    %v8549 = vstv %s8548
    %v8550 = vmul.f32 %v8076, %v8549
    %v8551 = vmul.f32 %v8077, %v8549
    %v8552 = vmul.f32 %v8078, %v8549
    %v8553 = vmul.f32 %v8079, %v8549
    %v8558 = vrot.slane %v8550, 2
    %v8559 = vrot.slane %v8551, 2
    %v8560 = vsel %vm1938, %v8558, %v8559
    %v8561 = vrot.slane %v8552, 2
    %v8562 = vrot.slane %v8553, 2
    %v8563 = vsel %vm1938, %v8561, %v8562
    %v8566 = vadd.f32 %v8486, %v8560
    %v8567 = vadd.f32 %v8487, %v8563
    %s8568 = sld [smem:[#allocation10 + $0x78]]
    %v8569 = vstv %s8568
    %v8570 = vmul.f32 %v8076, %v8569
    %v8571 = vmul.f32 %v8077, %v8569
    %v8572 = vmul.f32 %v8078, %v8569
    %v8573 = vmul.f32 %v8079, %v8569
    %v8578 = vrot.slane %v8570, 2
    %v8579 = vrot.slane %v8571, 2
    %v8580 = vsel %vm1938, %v8578, %v8579
    %v8581 = vrot.slane %v8572, 2
    %v8582 = vrot.slane %v8573, 2
    %v8583 = vsel %vm1938, %v8581, %v8582
    %8584 = vrot.lane.b32.xlu0 %v8580, 127
    %v8585 = vpop.permute.xlu0 %8584
    %8586 = vrot.lane.b32.xlu0 %v8583, 127
    %v8587 = vpop.permute.xlu0 %8586
    %v8590 = vadd.f32 %v8506, %v8585
    %v8591 = vadd.f32 %v8507, %v8587
    %s8592 = sld [smem:[#allocation10 + $0x79]]
    %v8593 = vstv %s8592
    %v8594 = vmul.f32 %v8076, %v8593
    %v8595 = vmul.f32 %v8077, %v8593
    %v8596 = vmul.f32 %v8078, %v8593
    %v8597 = vmul.f32 %v8079, %v8593
    %v8602 = vrot.slane %v8594, 2
    %v8603 = vrot.slane %v8595, 2
    %v8604 = vsel %vm1938, %v8602, %v8603
    %v8605 = vrot.slane %v8596, 2
    %v8606 = vrot.slane %v8597, 2
    %v8607 = vsel %vm1938, %v8605, %v8606
    %8608 = vrot.lane.b32.xlu0 %v8604, 127
    %v8609 = vpop.permute.xlu0 %8608
    %8610 = vrot.lane.b32.xlu0 %v8607, 127
    %v8611 = vpop.permute.xlu0 %8610
    %v8614 = vadd.f32 %v8526, %v8609
    %v8615 = vadd.f32 %v8527, %v8611
    %s8616 = sld [smem:[#allocation10 + $0x7a]]
    %v8617 = vstv %s8616
    %v8618 = vmul.f32 %v8076, %v8617
    %v8619 = vmul.f32 %v8077, %v8617
    %v8620 = vmul.f32 %v8078, %v8617
    %v8621 = vmul.f32 %v8079, %v8617
    %v8626 = vrot.slane %v8618, 2
    %v8627 = vrot.slane %v8619, 2
    %v8628 = vsel %vm1938, %v8626, %v8627
    %v8629 = vrot.slane %v8620, 2
    %v8630 = vrot.slane %v8621, 2
    %v8631 = vsel %vm1938, %v8629, %v8630
    %8632 = vrot.lane.b32.xlu0 %v8628, 127
    %v8633 = vpop.permute.xlu0 %8632
    %8634 = vrot.lane.b32.xlu0 %v8631, 127
    %v8635 = vpop.permute.xlu0 %8634
    %v8638 = vadd.f32 %v8546, %v8633
    %v8639 = vadd.f32 %v8547, %v8635
    %s8640 = sld [smem:[#allocation10 + $0x7b]]
    %v8641 = vstv %s8640
    %v8642 = vmul.f32 %v8076, %v8641
    %v8643 = vmul.f32 %v8077, %v8641
    %v8644 = vmul.f32 %v8078, %v8641
    %v8645 = vmul.f32 %v8079, %v8641
    %v8650 = vrot.slane %v8642, 2
    %v8651 = vrot.slane %v8643, 2
    %v8652 = vsel %vm1938, %v8650, %v8651
    %v8653 = vrot.slane %v8644, 2
    %v8654 = vrot.slane %v8645, 2
    %v8655 = vsel %vm1938, %v8653, %v8654
    %8656 = vrot.lane.b32.xlu0 %v8652, 127
    %v8657 = vpop.permute.xlu0 %8656
    %8658 = vrot.lane.b32.xlu0 %v8655, 127
    %v8659 = vpop.permute.xlu0 %8658
    %v8662 = vadd.f32 %v8566, %v8657
    %v8663 = vadd.f32 %v8567, %v8659
    %s8664 = sld [smem:[#allocation10 + $0x88]]
    %v8665 = vstv %s8664
    %v8666 = vmul.f32 %v8076, %v8665
    %v8667 = vmul.f32 %v8077, %v8665
    %v8668 = vmul.f32 %v8078, %v8665
    %v8669 = vmul.f32 %v8079, %v8665
    %v8674 = vrot.slane %v8666, 2
    %v8675 = vrot.slane %v8667, 2
    %v8676 = vsel %vm1938, %v8674, %v8675
    %v8677 = vrot.slane %v8668, 2
    %v8678 = vrot.slane %v8669, 2
    %v8679 = vsel %vm1938, %v8677, %v8678
    %8680 = vrot.lane.b32.xlu0 %v8676, 126
    %v8681 = vpop.permute.xlu0 %8680
    %8682 = vrot.lane.b32.xlu0 %v8679, 126
    %v8683 = vpop.permute.xlu0 %8682
    %v8686 = vadd.f32 %v8590, %v8681
    %v8687 = vadd.f32 %v8591, %v8683
    %s8688 = sld [smem:[#allocation10 + $0x89]]
    %v8689 = vstv %s8688
    %v8690 = vmul.f32 %v8076, %v8689
    %v8691 = vmul.f32 %v8077, %v8689
    %v8692 = vmul.f32 %v8078, %v8689
    %v8693 = vmul.f32 %v8079, %v8689
    %v8698 = vrot.slane %v8690, 2
    %v8699 = vrot.slane %v8691, 2
    %v8700 = vsel %vm1938, %v8698, %v8699
    %v8701 = vrot.slane %v8692, 2
    %v8702 = vrot.slane %v8693, 2
    %v8703 = vsel %vm1938, %v8701, %v8702
    %8704 = vrot.lane.b32.xlu0 %v8700, 126
    %v8705 = vpop.permute.xlu0 %8704
    %8706 = vrot.lane.b32.xlu0 %v8703, 126
    %v8707 = vpop.permute.xlu0 %8706
    %v8710 = vadd.f32 %v8614, %v8705
    %v8711 = vadd.f32 %v8615, %v8707
    %s8712 = sld [smem:[#allocation10 + $0x8a]]
    %v8713 = vstv %s8712
    %v8714 = vmul.f32 %v8076, %v8713
    %v8715 = vmul.f32 %v8077, %v8713
    %v8716 = vmul.f32 %v8078, %v8713
    %v8717 = vmul.f32 %v8079, %v8713
    %v8722 = vrot.slane %v8714, 2
    %v8723 = vrot.slane %v8715, 2
    %v8724 = vsel %vm1938, %v8722, %v8723
    %v8725 = vrot.slane %v8716, 2
    %v8726 = vrot.slane %v8717, 2
    %v8727 = vsel %vm1938, %v8725, %v8726
    %8728 = vrot.lane.b32.xlu0 %v8724, 126
    %v8729 = vpop.permute.xlu0 %8728
    %8730 = vrot.lane.b32.xlu0 %v8727, 126
    %v8731 = vpop.permute.xlu0 %8730
    %v8734 = vadd.f32 %v8638, %v8729
    %v8735 = vadd.f32 %v8639, %v8731
    %s8736 = sld [smem:[#allocation10 + $0x8b]]
    %v8737 = vstv %s8736
    %v8738 = vmul.f32 %v8076, %v8737
    %v8739 = vmul.f32 %v8077, %v8737
    %v8740 = vmul.f32 %v8078, %v8737
    %v8741 = vmul.f32 %v8079, %v8737
    %v8746 = vrot.slane %v8738, 2
    %v8747 = vrot.slane %v8739, 2
    %v8748 = vsel %vm1938, %v8746, %v8747
    %v8749 = vrot.slane %v8740, 2
    %v8750 = vrot.slane %v8741, 2
    %v8751 = vsel %vm1938, %v8749, %v8750
    %8752 = vrot.lane.b32.xlu0 %v8748, 126
    %v8753 = vpop.permute.xlu0 %8752
    %8754 = vrot.lane.b32.xlu0 %v8751, 126
    %v8755 = vpop.permute.xlu0 %8754
    %v8758 = vadd.f32 %v8662, %v8753
    %v8759 = vadd.f32 %v8663, %v8755
    %v8760 = vld [vmem:[%s3571] sm:$0xff]
    %v8761 = vld [vmem:[%s3571 + $0x8] sm:$0x3]
    %v8762 = vld [vmem:[%s3571 + $0x70] sm:$0xff]
    %v8763 = vld [vmem:[%s3571 + $0x78] sm:$0x3]
    %s8764 = sld [smem:[#allocation10 + $0xc]]
    %v8765 = vstv %s8764
    %v8766 = vmul.f32 %v8760, %v8765
    %v8767 = vmul.f32 %v8762, %v8765
    %v8768 = vadd.f32 %v8686, %v8766
    %v8769 = vadd.f32 %v8687, %v8767
    %s8770 = sld [smem:[#allocation10 + $0xd]]
    %v8771 = vstv %s8770
    %v8772 = vmul.f32 %v8760, %v8771
    %v8773 = vmul.f32 %v8762, %v8771
    %v8774 = vadd.f32 %v8710, %v8772
    %v8775 = vadd.f32 %v8711, %v8773
    %s8776 = sld [smem:[#allocation10 + $0xe]]
    %v8777 = vstv %s8776
    %v8778 = vmul.f32 %v8760, %v8777
    %v8779 = vmul.f32 %v8762, %v8777
    %v8780 = vadd.f32 %v8734, %v8778
    %v8781 = vadd.f32 %v8735, %v8779
    %s8782 = sld [smem:[#allocation10 + $0xf]]
    %v8783 = vstv %s8782
    %v8784 = vmul.f32 %v8760, %v8783
    %v8785 = vmul.f32 %v8762, %v8783
    %v8786 = vadd.f32 %v8758, %v8784
    %v8787 = vadd.f32 %v8759, %v8785
    %s8788 = sld [smem:[#allocation10 + $0x1c]]
    %v8789 = vstv %s8788
    %v8790 = vmul.f32 %v8760, %v8789
    %v8791 = vmul.f32 %v8762, %v8789
    %8794 = vrot.lane.b32.xlu0 %v8790, 127
    %v8795 = vpop.permute.xlu0 %8794
    %8796 = vrot.lane.b32.xlu0 %v8791, 127
    %v8797 = vpop.permute.xlu0 %8796
    %v8800 = vadd.f32 %v8768, %v8795
    %v8801 = vadd.f32 %v8769, %v8797
    %s8802 = sld [smem:[#allocation10 + $0x1d]]
    %v8803 = vstv %s8802
    %v8804 = vmul.f32 %v8760, %v8803
    %v8805 = vmul.f32 %v8762, %v8803
    %8808 = vrot.lane.b32.xlu0 %v8804, 127
    %v8809 = vpop.permute.xlu0 %8808
    %8810 = vrot.lane.b32.xlu0 %v8805, 127
    %v8811 = vpop.permute.xlu0 %8810
    %v8814 = vadd.f32 %v8774, %v8809
    %v8815 = vadd.f32 %v8775, %v8811
    %s8816 = sld [smem:[#allocation10 + $0x1e]]
    %v8817 = vstv %s8816
    %v8818 = vmul.f32 %v8760, %v8817
    %v8819 = vmul.f32 %v8762, %v8817
    %8822 = vrot.lane.b32.xlu0 %v8818, 127
    %v8823 = vpop.permute.xlu0 %8822
    %8824 = vrot.lane.b32.xlu0 %v8819, 127
    %v8825 = vpop.permute.xlu0 %8824
    %v8828 = vadd.f32 %v8780, %v8823
    %v8829 = vadd.f32 %v8781, %v8825
    %s8830 = sld [smem:[#allocation10 + $0x1f]]
    %v8831 = vstv %s8830
    %v8832 = vmul.f32 %v8760, %v8831
    %v8833 = vmul.f32 %v8762, %v8831
    %8836 = vrot.lane.b32.xlu0 %v8832, 127
    %v8837 = vpop.permute.xlu0 %8836
    %8838 = vrot.lane.b32.xlu0 %v8833, 127
    %v8839 = vpop.permute.xlu0 %8838
    %v8842 = vadd.f32 %v8786, %v8837
    %v8843 = vadd.f32 %v8787, %v8839
    %s8844 = sld [smem:[#allocation10 + $0x2c]]
    %v8845 = vstv %s8844
    %v8846 = vmul.f32 %v8760, %v8845
    %v8847 = vmul.f32 %v8762, %v8845
    %8850 = vrot.lane.b32.xlu0 %v8846, 126
    %v8851 = vpop.permute.xlu0 %8850
    %8852 = vrot.lane.b32.xlu0 %v8847, 126
    %v8853 = vpop.permute.xlu0 %8852
    %v8856 = vadd.f32 %v8800, %v8851
    %v8857 = vadd.f32 %v8801, %v8853
    %s8858 = sld [smem:[#allocation10 + $0x2d]]
    %v8859 = vstv %s8858
    %v8860 = vmul.f32 %v8760, %v8859
    %v8861 = vmul.f32 %v8762, %v8859
    %8864 = vrot.lane.b32.xlu0 %v8860, 126
    %v8865 = vpop.permute.xlu0 %8864
    %8866 = vrot.lane.b32.xlu0 %v8861, 126
    %v8867 = vpop.permute.xlu0 %8866
    %v8870 = vadd.f32 %v8814, %v8865
    %v8871 = vadd.f32 %v8815, %v8867
    %s8872 = sld [smem:[#allocation10 + $0x2e]]
    %v8873 = vstv %s8872
    %v8874 = vmul.f32 %v8760, %v8873
    %v8875 = vmul.f32 %v8762, %v8873
    %8878 = vrot.lane.b32.xlu0 %v8874, 126
    %v8879 = vpop.permute.xlu0 %8878
    %8880 = vrot.lane.b32.xlu0 %v8875, 126
    %v8881 = vpop.permute.xlu0 %8880
    %v8884 = vadd.f32 %v8828, %v8879
    %v8885 = vadd.f32 %v8829, %v8881
    %s8886 = sld [smem:[#allocation10 + $0x2f]]
    %v8887 = vstv %s8886
    %v8888 = vmul.f32 %v8760, %v8887
    %v8889 = vmul.f32 %v8762, %v8887
    %8892 = vrot.lane.b32.xlu0 %v8888, 126
    %v8893 = vpop.permute.xlu0 %8892
    %8894 = vrot.lane.b32.xlu0 %v8889, 126
    %v8895 = vpop.permute.xlu0 %8894
    %v8898 = vadd.f32 %v8842, %v8893
    %v8899 = vadd.f32 %v8843, %v8895
    %s8900 = sld [smem:[#allocation10 + $0x3c]]
    %v8901 = vstv %s8900
    %v8902 = vmul.f32 %v8760, %v8901
    %v8903 = vmul.f32 %v8761, %v8901
    %v8904 = vmul.f32 %v8762, %v8901
    %v8905 = vmul.f32 %v8763, %v8901
    %v8910 = vrot.slane %v8902, 1
    %v8911 = vrot.slane %v8903, 1
    %v8912 = vsel %vm1665, %v8910, %v8911
    %v8913 = vrot.slane %v8904, 1
    %v8914 = vrot.slane %v8905, 1
    %v8915 = vsel %vm1665, %v8913, %v8914
    %v8918 = vadd.f32 %v8856, %v8912
    %v8919 = vadd.f32 %v8857, %v8915
    %s8920 = sld [smem:[#allocation10 + $0x3d]]
    %v8921 = vstv %s8920
    %v8922 = vmul.f32 %v8760, %v8921
    %v8923 = vmul.f32 %v8761, %v8921
    %v8924 = vmul.f32 %v8762, %v8921
    %v8925 = vmul.f32 %v8763, %v8921
    %v8930 = vrot.slane %v8922, 1
    %v8931 = vrot.slane %v8923, 1
    %v8932 = vsel %vm1665, %v8930, %v8931
    %v8933 = vrot.slane %v8924, 1
    %v8934 = vrot.slane %v8925, 1
    %v8935 = vsel %vm1665, %v8933, %v8934
    %v8938 = vadd.f32 %v8870, %v8932
    %v8939 = vadd.f32 %v8871, %v8935
    %s8940 = sld [smem:[#allocation10 + $0x3e]]
    %v8941 = vstv %s8940
    %v8942 = vmul.f32 %v8760, %v8941
    %v8943 = vmul.f32 %v8761, %v8941
    %v8944 = vmul.f32 %v8762, %v8941
    %v8945 = vmul.f32 %v8763, %v8941
    %v8950 = vrot.slane %v8942, 1
    %v8951 = vrot.slane %v8943, 1
    %v8952 = vsel %vm1665, %v8950, %v8951
    %v8953 = vrot.slane %v8944, 1
    %v8954 = vrot.slane %v8945, 1
    %v8955 = vsel %vm1665, %v8953, %v8954
    %v8958 = vadd.f32 %v8884, %v8952
    %v8959 = vadd.f32 %v8885, %v8955
    %s8960 = sld [smem:[#allocation10 + $0x3f]]
    %v8961 = vstv %s8960
    %v8962 = vmul.f32 %v8760, %v8961
    %v8963 = vmul.f32 %v8761, %v8961
    %v8964 = vmul.f32 %v8762, %v8961
    %v8965 = vmul.f32 %v8763, %v8961
    %v8970 = vrot.slane %v8962, 1
    %v8971 = vrot.slane %v8963, 1
    %v8972 = vsel %vm1665, %v8970, %v8971
    %v8973 = vrot.slane %v8964, 1
    %v8974 = vrot.slane %v8965, 1
    %v8975 = vsel %vm1665, %v8973, %v8974
    %v8978 = vadd.f32 %v8898, %v8972
    %v8979 = vadd.f32 %v8899, %v8975
    %s8980 = sld [smem:[#allocation10 + $0x4c]]
    %v8981 = vstv %s8980
    %v8982 = vmul.f32 %v8760, %v8981
    %v8983 = vmul.f32 %v8761, %v8981
    %v8984 = vmul.f32 %v8762, %v8981
    %v8985 = vmul.f32 %v8763, %v8981
    %v8990 = vrot.slane %v8982, 1
    %v8991 = vrot.slane %v8983, 1
    %v8992 = vsel %vm1665, %v8990, %v8991
    %v8993 = vrot.slane %v8984, 1
    %v8994 = vrot.slane %v8985, 1
    %v8995 = vsel %vm1665, %v8993, %v8994
    %8996 = vrot.lane.b32.xlu0 %v8992, 127
    %v8997 = vpop.permute.xlu0 %8996
    %8998 = vrot.lane.b32.xlu0 %v8995, 127
    %v8999 = vpop.permute.xlu0 %8998
    %v9002 = vadd.f32 %v8918, %v8997
    %v9003 = vadd.f32 %v8919, %v8999
    %s9004 = sld [smem:[#allocation10 + $0x4d]]
    %v9005 = vstv %s9004
    %v9006 = vmul.f32 %v8760, %v9005
    %v9007 = vmul.f32 %v8761, %v9005
    %v9008 = vmul.f32 %v8762, %v9005
    %v9009 = vmul.f32 %v8763, %v9005
    %v9014 = vrot.slane %v9006, 1
    %v9015 = vrot.slane %v9007, 1
    %v9016 = vsel %vm1665, %v9014, %v9015
    %v9017 = vrot.slane %v9008, 1
    %v9018 = vrot.slane %v9009, 1
    %v9019 = vsel %vm1665, %v9017, %v9018
    %9020 = vrot.lane.b32.xlu0 %v9016, 127
    %v9021 = vpop.permute.xlu0 %9020
    %9022 = vrot.lane.b32.xlu0 %v9019, 127
    %v9023 = vpop.permute.xlu0 %9022
    %v9026 = vadd.f32 %v8938, %v9021
    %v9027 = vadd.f32 %v8939, %v9023
    %s9028 = sld [smem:[#allocation10 + $0x4e]]
    %v9029 = vstv %s9028
    %v9030 = vmul.f32 %v8760, %v9029
    %v9031 = vmul.f32 %v8761, %v9029
    %v9032 = vmul.f32 %v8762, %v9029
    %v9033 = vmul.f32 %v8763, %v9029
    %v9038 = vrot.slane %v9030, 1
    %v9039 = vrot.slane %v9031, 1
    %v9040 = vsel %vm1665, %v9038, %v9039
    %v9041 = vrot.slane %v9032, 1
    %v9042 = vrot.slane %v9033, 1
    %v9043 = vsel %vm1665, %v9041, %v9042
    %9044 = vrot.lane.b32.xlu0 %v9040, 127
    %v9045 = vpop.permute.xlu0 %9044
    %9046 = vrot.lane.b32.xlu0 %v9043, 127
    %v9047 = vpop.permute.xlu0 %9046
    %v9050 = vadd.f32 %v8958, %v9045
    %v9051 = vadd.f32 %v8959, %v9047
    %s9052 = sld [smem:[#allocation10 + $0x4f]]
    %v9053 = vstv %s9052
    %v9054 = vmul.f32 %v8760, %v9053
    %v9055 = vmul.f32 %v8761, %v9053
    %v9056 = vmul.f32 %v8762, %v9053
    %v9057 = vmul.f32 %v8763, %v9053
    %v9062 = vrot.slane %v9054, 1
    %v9063 = vrot.slane %v9055, 1
    %v9064 = vsel %vm1665, %v9062, %v9063
    %v9065 = vrot.slane %v9056, 1
    %v9066 = vrot.slane %v9057, 1
    %v9067 = vsel %vm1665, %v9065, %v9066
    %9068 = vrot.lane.b32.xlu0 %v9064, 127
    %v9069 = vpop.permute.xlu0 %9068
    %9070 = vrot.lane.b32.xlu0 %v9067, 127
    %v9071 = vpop.permute.xlu0 %9070
    %v9074 = vadd.f32 %v8978, %v9069
    %v9075 = vadd.f32 %v8979, %v9071
    %s9076 = sld [smem:[#allocation10 + $0x5c]]
    %v9077 = vstv %s9076
    %v9078 = vmul.f32 %v8760, %v9077
    %v9079 = vmul.f32 %v8761, %v9077
    %v9080 = vmul.f32 %v8762, %v9077
    %v9081 = vmul.f32 %v8763, %v9077
    %v9086 = vrot.slane %v9078, 1
    %v9087 = vrot.slane %v9079, 1
    %v9088 = vsel %vm1665, %v9086, %v9087
    %v9089 = vrot.slane %v9080, 1
    %v9090 = vrot.slane %v9081, 1
    %v9091 = vsel %vm1665, %v9089, %v9090
    %9092 = vrot.lane.b32.xlu0 %v9088, 126
    %v9093 = vpop.permute.xlu0 %9092
    %9094 = vrot.lane.b32.xlu0 %v9091, 126
    %v9095 = vpop.permute.xlu0 %9094
    %v9098 = vadd.f32 %v9002, %v9093
    %v9099 = vadd.f32 %v9003, %v9095
    %s9100 = sld [smem:[#allocation10 + $0x5d]]
    %v9101 = vstv %s9100
    %v9102 = vmul.f32 %v8760, %v9101
    %v9103 = vmul.f32 %v8761, %v9101
    %v9104 = vmul.f32 %v8762, %v9101
    %v9105 = vmul.f32 %v8763, %v9101
    %v9110 = vrot.slane %v9102, 1
    %v9111 = vrot.slane %v9103, 1
    %v9112 = vsel %vm1665, %v9110, %v9111
    %v9113 = vrot.slane %v9104, 1
    %v9114 = vrot.slane %v9105, 1
    %v9115 = vsel %vm1665, %v9113, %v9114
    %9116 = vrot.lane.b32.xlu0 %v9112, 126
    %v9117 = vpop.permute.xlu0 %9116
    %9118 = vrot.lane.b32.xlu0 %v9115, 126
    %v9119 = vpop.permute.xlu0 %9118
    %v9122 = vadd.f32 %v9026, %v9117
    %v9123 = vadd.f32 %v9027, %v9119
    %s9124 = sld [smem:[#allocation10 + $0x5e]]
    %v9125 = vstv %s9124
    %v9126 = vmul.f32 %v8760, %v9125
    %v9127 = vmul.f32 %v8761, %v9125
    %v9128 = vmul.f32 %v8762, %v9125
    %v9129 = vmul.f32 %v8763, %v9125
    %v9134 = vrot.slane %v9126, 1
    %v9135 = vrot.slane %v9127, 1
    %v9136 = vsel %vm1665, %v9134, %v9135
    %v9137 = vrot.slane %v9128, 1
    %v9138 = vrot.slane %v9129, 1
    %v9139 = vsel %vm1665, %v9137, %v9138
    %9140 = vrot.lane.b32.xlu0 %v9136, 126
    %v9141 = vpop.permute.xlu0 %9140
    %9142 = vrot.lane.b32.xlu0 %v9139, 126
    %v9143 = vpop.permute.xlu0 %9142
    %v9146 = vadd.f32 %v9050, %v9141
    %v9147 = vadd.f32 %v9051, %v9143
    %s9148 = sld [smem:[#allocation10 + $0x5f]]
    %v9149 = vstv %s9148
    %v9150 = vmul.f32 %v8760, %v9149
    %v9151 = vmul.f32 %v8761, %v9149
    %v9152 = vmul.f32 %v8762, %v9149
    %v9153 = vmul.f32 %v8763, %v9149
    %v9158 = vrot.slane %v9150, 1
    %v9159 = vrot.slane %v9151, 1
    %v9160 = vsel %vm1665, %v9158, %v9159
    %v9161 = vrot.slane %v9152, 1
    %v9162 = vrot.slane %v9153, 1
    %v9163 = vsel %vm1665, %v9161, %v9162
    %9164 = vrot.lane.b32.xlu0 %v9160, 126
    %v9165 = vpop.permute.xlu0 %9164
    %9166 = vrot.lane.b32.xlu0 %v9163, 126
    %v9167 = vpop.permute.xlu0 %9166
    %v9170 = vadd.f32 %v9074, %v9165
    %v9171 = vadd.f32 %v9075, %v9167
    %s9172 = sld [smem:[#allocation10 + $0x6c]]
    %v9173 = vstv %s9172
    %v9174 = vmul.f32 %v8760, %v9173
    %v9175 = vmul.f32 %v8761, %v9173
    %v9176 = vmul.f32 %v8762, %v9173
    %v9177 = vmul.f32 %v8763, %v9173
    %v9182 = vrot.slane %v9174, 2
    %v9183 = vrot.slane %v9175, 2
    %v9184 = vsel %vm1938, %v9182, %v9183
    %v9185 = vrot.slane %v9176, 2
    %v9186 = vrot.slane %v9177, 2
    %v9187 = vsel %vm1938, %v9185, %v9186
    %v9190 = vadd.f32 %v9098, %v9184
    %v9191 = vadd.f32 %v9099, %v9187
    %s9192 = sld [smem:[#allocation10 + $0x6d]]
    %v9193 = vstv %s9192
    %v9194 = vmul.f32 %v8760, %v9193
    %v9195 = vmul.f32 %v8761, %v9193
    %v9196 = vmul.f32 %v8762, %v9193
    %v9197 = vmul.f32 %v8763, %v9193
    %v9202 = vrot.slane %v9194, 2
    %v9203 = vrot.slane %v9195, 2
    %v9204 = vsel %vm1938, %v9202, %v9203
    %v9205 = vrot.slane %v9196, 2
    %v9206 = vrot.slane %v9197, 2
    %v9207 = vsel %vm1938, %v9205, %v9206
    %v9210 = vadd.f32 %v9122, %v9204
    %v9211 = vadd.f32 %v9123, %v9207
    %s9212 = sld [smem:[#allocation10 + $0x6e]]
    %v9213 = vstv %s9212
    %v9214 = vmul.f32 %v8760, %v9213
    %v9215 = vmul.f32 %v8761, %v9213
    %v9216 = vmul.f32 %v8762, %v9213
    %v9217 = vmul.f32 %v8763, %v9213
    %v9222 = vrot.slane %v9214, 2
    %v9223 = vrot.slane %v9215, 2
    %v9224 = vsel %vm1938, %v9222, %v9223
    %v9225 = vrot.slane %v9216, 2
    %v9226 = vrot.slane %v9217, 2
    %v9227 = vsel %vm1938, %v9225, %v9226
    %v9230 = vadd.f32 %v9146, %v9224
    %v9231 = vadd.f32 %v9147, %v9227
    %s9232 = sld [smem:[#allocation10 + $0x6f]]
    %v9233 = vstv %s9232
    %v9234 = vmul.f32 %v8760, %v9233
    %v9235 = vmul.f32 %v8761, %v9233
    %v9236 = vmul.f32 %v8762, %v9233
    %v9237 = vmul.f32 %v8763, %v9233
    %v9242 = vrot.slane %v9234, 2
    %v9243 = vrot.slane %v9235, 2
    %v9244 = vsel %vm1938, %v9242, %v9243
    %v9245 = vrot.slane %v9236, 2
    %v9246 = vrot.slane %v9237, 2
    %v9247 = vsel %vm1938, %v9245, %v9246
    %v9250 = vadd.f32 %v9170, %v9244
    %v9251 = vadd.f32 %v9171, %v9247
    %s9252 = sld [smem:[#allocation10 + $0x7c]]
    %v9253 = vstv %s9252
    %v9254 = vmul.f32 %v8760, %v9253
    %v9255 = vmul.f32 %v8761, %v9253
    %v9256 = vmul.f32 %v8762, %v9253
    %v9257 = vmul.f32 %v8763, %v9253
    %v9262 = vrot.slane %v9254, 2
    %v9263 = vrot.slane %v9255, 2
    %v9264 = vsel %vm1938, %v9262, %v9263
    %v9265 = vrot.slane %v9256, 2
    %v9266 = vrot.slane %v9257, 2
    %v9267 = vsel %vm1938, %v9265, %v9266
    %9268 = vrot.lane.b32.xlu0 %v9264, 127
    %v9269 = vpop.permute.xlu0 %9268
    %9270 = vrot.lane.b32.xlu0 %v9267, 127
    %v9271 = vpop.permute.xlu0 %9270
    %v9274 = vadd.f32 %v9190, %v9269
    %v9275 = vadd.f32 %v9191, %v9271
    %s9276 = sld [smem:[#allocation10 + $0x7d]]
    %v9277 = vstv %s9276
    %v9278 = vmul.f32 %v8760, %v9277
    %v9279 = vmul.f32 %v8761, %v9277
    %v9280 = vmul.f32 %v8762, %v9277
    %v9281 = vmul.f32 %v8763, %v9277
    %v9286 = vrot.slane %v9278, 2
    %v9287 = vrot.slane %v9279, 2
    %v9288 = vsel %vm1938, %v9286, %v9287
    %v9289 = vrot.slane %v9280, 2
    %v9290 = vrot.slane %v9281, 2
    %v9291 = vsel %vm1938, %v9289, %v9290
    %9292 = vrot.lane.b32.xlu0 %v9288, 127
    %v9293 = vpop.permute.xlu0 %9292
    %9294 = vrot.lane.b32.xlu0 %v9291, 127
    %v9295 = vpop.permute.xlu0 %9294
    %v9298 = vadd.f32 %v9210, %v9293
    %v9299 = vadd.f32 %v9211, %v9295
    %s9300 = sld [smem:[#allocation10 + $0x7e]]
    %v9301 = vstv %s9300
    %v9302 = vmul.f32 %v8760, %v9301
    %v9303 = vmul.f32 %v8761, %v9301
    %v9304 = vmul.f32 %v8762, %v9301
    %v9305 = vmul.f32 %v8763, %v9301
    %v9310 = vrot.slane %v9302, 2
    %v9311 = vrot.slane %v9303, 2
    %v9312 = vsel %vm1938, %v9310, %v9311
    %v9313 = vrot.slane %v9304, 2
    %v9314 = vrot.slane %v9305, 2
    %v9315 = vsel %vm1938, %v9313, %v9314
    %9316 = vrot.lane.b32.xlu0 %v9312, 127
    %v9317 = vpop.permute.xlu0 %9316
    %9318 = vrot.lane.b32.xlu0 %v9315, 127
    %v9319 = vpop.permute.xlu0 %9318
    %v9322 = vadd.f32 %v9230, %v9317
    %v9323 = vadd.f32 %v9231, %v9319
    %s9324 = sld [smem:[#allocation10 + $0x7f]]
    %v9325 = vstv %s9324
    %v9326 = vmul.f32 %v8760, %v9325
    %v9327 = vmul.f32 %v8761, %v9325
    %v9328 = vmul.f32 %v8762, %v9325
    %v9329 = vmul.f32 %v8763, %v9325
    %v9334 = vrot.slane %v9326, 2
    %v9335 = vrot.slane %v9327, 2
    %v9336 = vsel %vm1938, %v9334, %v9335
    %v9337 = vrot.slane %v9328, 2
    %v9338 = vrot.slane %v9329, 2
    %v9339 = vsel %vm1938, %v9337, %v9338
    %9340 = vrot.lane.b32.xlu0 %v9336, 127
    %v9341 = vpop.permute.xlu0 %9340
    %9342 = vrot.lane.b32.xlu0 %v9339, 127
    %v9343 = vpop.permute.xlu0 %9342
    %v9346 = vadd.f32 %v9250, %v9341
    %v9347 = vadd.f32 %v9251, %v9343
    %s9348 = sld [smem:[#allocation10 + $0x8c]]
    %v9349 = vstv %s9348
    %v9350 = vmul.f32 %v8760, %v9349
    %v9351 = vmul.f32 %v8761, %v9349
    %v9352 = vmul.f32 %v8762, %v9349
    %v9353 = vmul.f32 %v8763, %v9349
    %v9358 = vrot.slane %v9350, 2
    %v9359 = vrot.slane %v9351, 2
    %v9360 = vsel %vm1938, %v9358, %v9359
    %v9361 = vrot.slane %v9352, 2
    %v9362 = vrot.slane %v9353, 2
    %v9363 = vsel %vm1938, %v9361, %v9362
    %9364 = vrot.lane.b32.xlu0 %v9360, 126
    %v9365 = vpop.permute.xlu0 %9364
    %9366 = vrot.lane.b32.xlu0 %v9363, 126
    %v9367 = vpop.permute.xlu0 %9366
    %v9370 = vadd.f32 %v9274, %v9365
    %v9371 = vadd.f32 %v9275, %v9367
    %s9372 = sld [smem:[#allocation10 + $0x8d]]
    %v9373 = vstv %s9372
    %v9374 = vmul.f32 %v8760, %v9373
    %v9375 = vmul.f32 %v8761, %v9373
    %v9376 = vmul.f32 %v8762, %v9373
    %v9377 = vmul.f32 %v8763, %v9373
    %v9382 = vrot.slane %v9374, 2
    %v9383 = vrot.slane %v9375, 2
    %v9384 = vsel %vm1938, %v9382, %v9383
    %v9385 = vrot.slane %v9376, 2
    %v9386 = vrot.slane %v9377, 2
    %v9387 = vsel %vm1938, %v9385, %v9386
    %9388 = vrot.lane.b32.xlu0 %v9384, 126
    %v9389 = vpop.permute.xlu0 %9388
    %9390 = vrot.lane.b32.xlu0 %v9387, 126
    %v9391 = vpop.permute.xlu0 %9390
    %v9394 = vadd.f32 %v9298, %v9389
    %v9395 = vadd.f32 %v9299, %v9391
    %s9396 = sld [smem:[#allocation10 + $0x8e]]
    %v9397 = vstv %s9396
    %v9398 = vmul.f32 %v8760, %v9397
    %v9399 = vmul.f32 %v8761, %v9397
    %v9400 = vmul.f32 %v8762, %v9397
    %v9401 = vmul.f32 %v8763, %v9397
    %v9406 = vrot.slane %v9398, 2
    %v9407 = vrot.slane %v9399, 2
    %v9408 = vsel %vm1938, %v9406, %v9407
    %v9409 = vrot.slane %v9400, 2
    %v9410 = vrot.slane %v9401, 2
    %v9411 = vsel %vm1938, %v9409, %v9410
    %9412 = vrot.lane.b32.xlu0 %v9408, 126
    %v9413 = vpop.permute.xlu0 %9412
    %9414 = vrot.lane.b32.xlu0 %v9411, 126
    %v9415 = vpop.permute.xlu0 %9414
    %v9418 = vadd.f32 %v9322, %v9413
    %v9419 = vadd.f32 %v9323, %v9415
    %s9420 = sld [smem:[#allocation10 + $0x8f]]
    %v9421 = vstv %s9420
    %v9422 = vmul.f32 %v8760, %v9421
    %v9423 = vmul.f32 %v8761, %v9421
    %v9424 = vmul.f32 %v8762, %v9421
    %v9425 = vmul.f32 %v8763, %v9421
    %v9430 = vrot.slane %v9422, 2
    %v9431 = vrot.slane %v9423, 2
    %v9432 = vsel %vm1938, %v9430, %v9431
    %v9433 = vrot.slane %v9424, 2
    %v9434 = vrot.slane %v9425, 2
    %v9435 = vsel %vm1938, %v9433, %v9434
    %9436 = vrot.lane.b32.xlu0 %v9432, 126
    %v9437 = vpop.permute.xlu0 %9436
    %9438 = vrot.lane.b32.xlu0 %v9435, 126
    %v9439 = vpop.permute.xlu0 %9438
    %v9442 = vadd.f32 %v9346, %v9437
    %v9443 = vadd.f32 %v9347, %v9439
    %v9444 = vsel %vm6311, %v9370, 0.0
    %v9445 = vsel %vm6311, %v9371, 0.0
    %v9446 = vadd.f32 %v9444, %v9445
    %9447 = vadd.xlane.f32.xlu0 %v9446
    %v9448 = vpop.xlane.xlu0 %9447
    %v9449 = vrot.slane %v9448, 4
    %v9450 = vadd.f32 %v9448, %v9449
    %v9451 = vrot.slane %v9450, 2
    %v9452 = vadd.f32 %v9450, %v9451
    %v9453 = vrot.slane %v9452, 1
    %v9454 = vadd.f32 %v9452, %v9453
    %s9455 = vtos %v9454
    %s9456 = smul.f32 %s9455, 0.0078125
    %v9457 = vmul.f32 %v9370, %v9370
    %v9458 = vmul.f32 %v9371, %v9371
    %v9459 = vsel %vm6311, %v9457, 0.0
    %v9460 = vsel %vm6311, %v9458, 0.0
    %v9461 = vadd.f32 %v9459, %v9460
    %9462 = vadd.xlane.f32.xlu0 %v9461
    %v9463 = vpop.xlane.xlu0 %9462
    %v9464 = vrot.slane %v9463, 4
    %v9465 = vadd.f32 %v9463, %v9464
    %v9466 = vrot.slane %v9465, 2
    %v9467 = vadd.f32 %v9465, %v9466
    %v9468 = vrot.slane %v9467, 1
    %v9469 = vadd.f32 %v9467, %v9468
    %s9470 = vtos %v9469
    %s9471 = smul.f32 %s9470, 0.0078125
    %s9472 = smul.f32 %s9456, %s9456
    %s9473 = ssub.f32 %s9471, %s9472
    %s9474 = sld [smem:[#allocation12 + $0x4]]
    %s9475 = sadd.f32 %s9473, 1e-05
    %v9476 = vstv %s9475
    %v9477 = vrsqrt.pop %v9476
    %s9478 = vtos %v9477
    %s9479 = smul.f32 %s9474, %s9478
    %s9480 = sld [smem:[#allocation13 + $0x4]]
    %s9481 = smul.f32 %s9456, %s9479
    %s9482 = ssub.f32 %s9480, %s9481
    %v9483 = vstv %s9479
    %v9484 = vmul.f32 %v9370, %v9483
    %v9485 = vmul.f32 %v9371, %v9483
    %v9486 = vstv %s9482
    %v9487 = vadd.f32 %v9484, %v9486
    %v9488 = vadd.f32 %v9485, %v9486
    %v9489 = vsub.f32 %v9487, 0.5
    %v9490 = vsub.f32 %v9488, 0.5
    %v9491 = vmul.f32 %v9489, 0.5
    %v9492 = vmul.f32 %v9490, 0.5
    %v9493 = vtanh.pop %v9491
    %v9494 = vtanh.pop %v9492
    %v9495 = vmul.f32 %v9493, 0.5
    %v9496 = vmul.f32 %v9494, 0.5
    %v9497 = vadd.f32 %v9495, 0.5
    %v9498 = vadd.f32 %v9496, 0.5
    %v9499 = vmul.f32 %v9497, 0.5
    %v9500 = vmul.f32 %v9498, 0.5
    %v9501 = vadd.f32 %v9499, 0.25
    %v9502 = vadd.f32 %v9500, 0.25
    %v9503 = vsub.f32 %v9487, %v9501
    %v9504 = vsub.f32 %v9488, %v9502
    %v9505 = vmul.f32 %v9503, 0.5
    %v9506 = vmul.f32 %v9504, 0.5
    %v9507 = vtanh.pop %v9505
    %v9508 = vtanh.pop %v9506
    %v9509 = vmul.f32 %v9507, 0.5
    %v9510 = vmul.f32 %v9508, 0.5
    %v9511 = vadd.f32 %v9509, 0.5
    %v9512 = vadd.f32 %v9510, 0.5
    %v9513 = vmul.f32 %v9501, 0.5
    %v9514 = vmul.f32 %v9502, 0.5
    %v9515 = vmul.f32 %v9511, 0.5
    %v9516 = vmul.f32 %v9512, 0.5
    %v9517 = vadd.f32 %v9513, %v9515
    %v9518 = vadd.f32 %v9514, %v9516
    %v9519 = vsub.f32 %v9487, %v9517
    %v9520 = vsub.f32 %v9488, %v9518
    %v9521 = vmul.f32 %v9519, 0.5
    %v9522 = vmul.f32 %v9520, 0.5
    %v9523 = vtanh.pop %v9521
    %v9524 = vtanh.pop %v9522
    %v9525 = vmul.f32 %v9523, 0.5
    %v9526 = vmul.f32 %v9524, 0.5
    %v9527 = vadd.f32 %v9525, 0.5
    %v9528 = vadd.f32 %v9526, 0.5
    %v9529 = vmul.f32 %v9517, 0.5
    %v9530 = vmul.f32 %v9518, 0.5
    %v9531 = vmul.f32 %v9527, 0.5
    %v9532 = vmul.f32 %v9528, 0.5
    %v9533 = vadd.f32 %v9529, %v9531
    %v9534 = vadd.f32 %v9530, %v9532
    %v9535 = vsel %vm6311, %v9394, 0.0
    %v9536 = vsel %vm6311, %v9395, 0.0
    %v9537 = vadd.f32 %v9535, %v9536
    %9538 = vadd.xlane.f32.xlu0 %v9537
    %v9539 = vpop.xlane.xlu0 %9538
    %v9540 = vrot.slane %v9539, 4
    %v9541 = vadd.f32 %v9539, %v9540
    %v9542 = vrot.slane %v9541, 2
    %v9543 = vadd.f32 %v9541, %v9542
    %v9544 = vrot.slane %v9543, 1
    %v9545 = vadd.f32 %v9543, %v9544
    %s9546 = vtos %v9545
    %s9547 = smul.f32 %s9546, 0.0078125
    %v9548 = vmul.f32 %v9394, %v9394
    %v9549 = vmul.f32 %v9395, %v9395
    %v9550 = vsel %vm6311, %v9548, 0.0
    %v9551 = vsel %vm6311, %v9549, 0.0
    %v9552 = vadd.f32 %v9550, %v9551
    %9553 = vadd.xlane.f32.xlu0 %v9552
    %v9554 = vpop.xlane.xlu0 %9553
    %v9555 = vrot.slane %v9554, 4
    %v9556 = vadd.f32 %v9554, %v9555
    %v9557 = vrot.slane %v9556, 2
    %v9558 = vadd.f32 %v9556, %v9557
    %v9559 = vrot.slane %v9558, 1
    %v9560 = vadd.f32 %v9558, %v9559
    %s9561 = vtos %v9560
    %s9562 = smul.f32 %s9561, 0.0078125
    %s9563 = smul.f32 %s9547, %s9547
    %s9564 = ssub.f32 %s9562, %s9563
    %s9565 = sld [smem:[#allocation12 + $0x5]]
    %s9566 = sadd.f32 %s9564, 1e-05
    %v9567 = vstv %s9566
    %v9568 = vrsqrt.pop %v9567
    %s9569 = vtos %v9568
    %s9570 = smul.f32 %s9565, %s9569
    %s9571 = sld [smem:[#allocation13 + $0x5]]
    %s9572 = smul.f32 %s9547, %s9570
    %s9573 = ssub.f32 %s9571, %s9572
    %v9574 = vstv %s9570
    %v9575 = vmul.f32 %v9394, %v9574
    %v9576 = vmul.f32 %v9395, %v9574
    %v9577 = vstv %s9573
    %v9578 = vadd.f32 %v9575, %v9577
    %v9579 = vadd.f32 %v9576, %v9577
    %v9580 = vsub.f32 %v9578, 0.5
    %v9581 = vsub.f32 %v9579, 0.5
    %v9582 = vmul.f32 %v9580, 0.5
    %v9583 = vmul.f32 %v9581, 0.5
    %v9584 = vtanh.pop %v9582
    %v9585 = vtanh.pop %v9583
    %v9586 = vmul.f32 %v9584, 0.5
    %v9587 = vmul.f32 %v9585, 0.5
    %v9588 = vadd.f32 %v9586, 0.5
    %v9589 = vadd.f32 %v9587, 0.5
    %v9590 = vmul.f32 %v9588, 0.5
    %v9591 = vmul.f32 %v9589, 0.5
    %v9592 = vadd.f32 %v9590, 0.25
    %v9593 = vadd.f32 %v9591, 0.25
    %v9594 = vsub.f32 %v9578, %v9592
    %v9595 = vsub.f32 %v9579, %v9593
    %v9596 = vmul.f32 %v9594, 0.5
    %v9597 = vmul.f32 %v9595, 0.5
    %v9598 = vtanh.pop %v9596
    %v9599 = vtanh.pop %v9597
    %v9600 = vmul.f32 %v9598, 0.5
    %v9601 = vmul.f32 %v9599, 0.5
    %v9602 = vadd.f32 %v9600, 0.5
    %v9603 = vadd.f32 %v9601, 0.5
    %v9604 = vmul.f32 %v9592, 0.5
    %v9605 = vmul.f32 %v9593, 0.5
    %v9606 = vmul.f32 %v9602, 0.5
    %v9607 = vmul.f32 %v9603, 0.5
    %v9608 = vadd.f32 %v9604, %v9606
    %v9609 = vadd.f32 %v9605, %v9607
    %v9610 = vsub.f32 %v9578, %v9608
    %v9611 = vsub.f32 %v9579, %v9609
    %v9612 = vmul.f32 %v9610, 0.5
    %v9613 = vmul.f32 %v9611, 0.5
    %v9614 = vtanh.pop %v9612
    %v9615 = vtanh.pop %v9613
    %v9616 = vmul.f32 %v9614, 0.5
    %v9617 = vmul.f32 %v9615, 0.5
    %v9618 = vadd.f32 %v9616, 0.5
    %v9619 = vadd.f32 %v9617, 0.5
    %v9620 = vmul.f32 %v9608, 0.5
    %v9621 = vmul.f32 %v9609, 0.5
    %v9622 = vmul.f32 %v9618, 0.5
    %v9623 = vmul.f32 %v9619, 0.5
    %v9624 = vadd.f32 %v9620, %v9622
    %v9625 = vadd.f32 %v9621, %v9623
    %v9626 = vsel %vm6311, %v9418, 0.0
    %v9627 = vsel %vm6311, %v9419, 0.0
    %v9628 = vadd.f32 %v9626, %v9627
    %9629 = vadd.xlane.f32.xlu0 %v9628
    %v9630 = vpop.xlane.xlu0 %9629
    %v9631 = vrot.slane %v9630, 4
    %v9632 = vadd.f32 %v9630, %v9631
    %v9633 = vrot.slane %v9632, 2
    %v9634 = vadd.f32 %v9632, %v9633
    %v9635 = vrot.slane %v9634, 1
    %v9636 = vadd.f32 %v9634, %v9635
    %s9637 = vtos %v9636
    %s9638 = smul.f32 %s9637, 0.0078125
    %v9639 = vmul.f32 %v9418, %v9418
    %v9640 = vmul.f32 %v9419, %v9419
    %v9641 = vsel %vm6311, %v9639, 0.0
    %v9642 = vsel %vm6311, %v9640, 0.0
    %v9643 = vadd.f32 %v9641, %v9642
    %9644 = vadd.xlane.f32.xlu0 %v9643
    %v9645 = vpop.xlane.xlu0 %9644
    %v9646 = vrot.slane %v9645, 4
    %v9647 = vadd.f32 %v9645, %v9646
    %v9648 = vrot.slane %v9647, 2
    %v9649 = vadd.f32 %v9647, %v9648
    %v9650 = vrot.slane %v9649, 1
    %v9651 = vadd.f32 %v9649, %v9650
    %s9652 = vtos %v9651
    %s9653 = smul.f32 %s9652, 0.0078125
    %s9654 = smul.f32 %s9638, %s9638
    %s9655 = ssub.f32 %s9653, %s9654
    %s9656 = sld [smem:[#allocation12 + $0x6]]
    %s9657 = sadd.f32 %s9655, 1e-05
    %v9658 = vstv %s9657
    %v9659 = vrsqrt.pop %v9658
    %s9660 = vtos %v9659
    %s9661 = smul.f32 %s9656, %s9660
    %s9662 = sld [smem:[#allocation13 + $0x6]]
    %s9663 = smul.f32 %s9638, %s9661
    %s9664 = ssub.f32 %s9662, %s9663
    %v9665 = vstv %s9661
    %v9666 = vmul.f32 %v9418, %v9665
    %v9667 = vmul.f32 %v9419, %v9665
    %v9668 = vstv %s9664
    %v9669 = vadd.f32 %v9666, %v9668
    %v9670 = vadd.f32 %v9667, %v9668
    %v9671 = vsub.f32 %v9669, 0.5
    %v9672 = vsub.f32 %v9670, 0.5
    %v9673 = vmul.f32 %v9671, 0.5
    %v9674 = vmul.f32 %v9672, 0.5
    %v9675 = vtanh.pop %v9673
    %v9676 = vtanh.pop %v9674
    %v9677 = vmul.f32 %v9675, 0.5
    %v9678 = vmul.f32 %v9676, 0.5
    %v9679 = vadd.f32 %v9677, 0.5
    %v9680 = vadd.f32 %v9678, 0.5
    %v9681 = vmul.f32 %v9679, 0.5
    %v9682 = vmul.f32 %v9680, 0.5
    %v9683 = vadd.f32 %v9681, 0.25
    %v9684 = vadd.f32 %v9682, 0.25
    %v9685 = vsub.f32 %v9669, %v9683
    %v9686 = vsub.f32 %v9670, %v9684
    %v9687 = vmul.f32 %v9685, 0.5
    %v9688 = vmul.f32 %v9686, 0.5
    %v9689 = vtanh.pop %v9687
    %v9690 = vtanh.pop %v9688
    %v9691 = vmul.f32 %v9689, 0.5
    %v9692 = vmul.f32 %v9690, 0.5
    %v9693 = vadd.f32 %v9691, 0.5
    %v9694 = vadd.f32 %v9692, 0.5
    %v9695 = vmul.f32 %v9683, 0.5
    %v9696 = vmul.f32 %v9684, 0.5
    %v9697 = vmul.f32 %v9693, 0.5
    %v9698 = vmul.f32 %v9694, 0.5
    %v9699 = vadd.f32 %v9695, %v9697
    %v9700 = vadd.f32 %v9696, %v9698
    %v9701 = vsub.f32 %v9669, %v9699
    %v9702 = vsub.f32 %v9670, %v9700
    %v9703 = vmul.f32 %v9701, 0.5
    %v9704 = vmul.f32 %v9702, 0.5
    %v9705 = vtanh.pop %v9703
    %v9706 = vtanh.pop %v9704
    %v9707 = vmul.f32 %v9705, 0.5
    %v9708 = vmul.f32 %v9706, 0.5
    %v9709 = vadd.f32 %v9707, 0.5
    %v9710 = vadd.f32 %v9708, 0.5
    %v9711 = vmul.f32 %v9699, 0.5
    %v9712 = vmul.f32 %v9700, 0.5
    %v9713 = vmul.f32 %v9709, 0.5
    %v9714 = vmul.f32 %v9710, 0.5
    %v9715 = vadd.f32 %v9711, %v9713
    %v9716 = vadd.f32 %v9712, %v9714
    %v9717 = vsel %vm6311, %v9442, 0.0
    %v9718 = vsel %vm6311, %v9443, 0.0
    %v9719 = vadd.f32 %v9717, %v9718
    %9720 = vadd.xlane.f32.xlu0 %v9719
    %v9721 = vpop.xlane.xlu0 %9720
    %v9722 = vrot.slane %v9721, 4
    %v9723 = vadd.f32 %v9721, %v9722
    %v9724 = vrot.slane %v9723, 2
    %v9725 = vadd.f32 %v9723, %v9724
    %v9726 = vrot.slane %v9725, 1
    %v9727 = vadd.f32 %v9725, %v9726
    %s9728 = vtos %v9727
    %s9729 = smul.f32 %s9728, 0.0078125
    %v9730 = vmul.f32 %v9442, %v9442
    %v9731 = vmul.f32 %v9443, %v9443
    %v9732 = vsel %vm6311, %v9730, 0.0
    %v9733 = vsel %vm6311, %v9731, 0.0
    %v9734 = vadd.f32 %v9732, %v9733
    %9735 = vadd.xlane.f32.xlu0 %v9734
    %v9736 = vpop.xlane.xlu0 %9735
    %v9737 = vrot.slane %v9736, 4
    %v9738 = vadd.f32 %v9736, %v9737
    %v9739 = vrot.slane %v9738, 2
    %v9740 = vadd.f32 %v9738, %v9739
    %v9741 = vrot.slane %v9740, 1
    %v9742 = vadd.f32 %v9740, %v9741
    %s9743 = vtos %v9742
    %s9744 = smul.f32 %s9743, 0.0078125
    %s9745 = smul.f32 %s9729, %s9729
    %s9746 = ssub.f32 %s9744, %s9745
    %s9747 = sld [smem:[#allocation12 + $0x7]]
    %s9748 = sadd.f32 %s9746, 1e-05
    %v9749 = vstv %s9748
    %v9750 = vrsqrt.pop %v9749
    %s9751 = vtos %v9750
    %s9752 = smul.f32 %s9747, %s9751
    %s9753 = sld [smem:[#allocation13 + $0x7]]
    %s9754 = smul.f32 %s9729, %s9752
    %s9755 = ssub.f32 %s9753, %s9754
    %v9756 = vstv %s9752
    %v9757 = vmul.f32 %v9442, %v9756
    %v9758 = vmul.f32 %v9443, %v9756
    %v9759 = vstv %s9755
    %v9760 = vadd.f32 %v9757, %v9759
    %v9761 = vadd.f32 %v9758, %v9759
    %v9762 = vsub.f32 %v9760, 0.5
    %v9763 = vsub.f32 %v9761, 0.5
    %v9764 = vmul.f32 %v9762, 0.5
    %v9765 = vmul.f32 %v9763, 0.5
    %v9766 = vtanh.pop %v9764
    %v9767 = vtanh.pop %v9765
    %v9768 = vmul.f32 %v9766, 0.5
    %v9769 = vmul.f32 %v9767, 0.5
    %v9770 = vadd.f32 %v9768, 0.5
    %v9771 = vadd.f32 %v9769, 0.5
    %v9772 = vmul.f32 %v9770, 0.5
    %v9773 = vmul.f32 %v9771, 0.5
    %v9774 = vadd.f32 %v9772, 0.25
    %v9775 = vadd.f32 %v9773, 0.25
    %v9776 = vsub.f32 %v9760, %v9774
    %v9777 = vsub.f32 %v9761, %v9775
    %v9778 = vmul.f32 %v9776, 0.5
    %v9779 = vmul.f32 %v9777, 0.5
    %v9780 = vtanh.pop %v9778
    %v9781 = vtanh.pop %v9779
    %v9782 = vmul.f32 %v9780, 0.5
    %v9783 = vmul.f32 %v9781, 0.5
    %v9784 = vadd.f32 %v9782, 0.5
    %v9785 = vadd.f32 %v9783, 0.5
    %v9786 = vmul.f32 %v9774, 0.5
    %v9787 = vmul.f32 %v9775, 0.5
    %v9788 = vmul.f32 %v9784, 0.5
    %v9789 = vmul.f32 %v9785, 0.5
    %v9790 = vadd.f32 %v9786, %v9788
    %v9791 = vadd.f32 %v9787, %v9789
    %v9792 = vsub.f32 %v9760, %v9790
    %v9793 = vsub.f32 %v9761, %v9791
    %v9794 = vmul.f32 %v9792, 0.5
    %v9795 = vmul.f32 %v9793, 0.5
    %v9796 = vtanh.pop %v9794
    %v9797 = vtanh.pop %v9795
    %v9798 = vmul.f32 %v9796, 0.5
    %v9799 = vmul.f32 %v9797, 0.5
    %v9800 = vadd.f32 %v9798, 0.5
    %v9801 = vadd.f32 %v9799, 0.5
    %v9802 = vmul.f32 %v9790, 0.5
    %v9803 = vmul.f32 %v9791, 0.5
    %v9804 = vmul.f32 %v9800, 0.5
    %v9805 = vmul.f32 %v9801, 0.5
    %v9806 = vadd.f32 %v9802, %v9804
    %v9807 = vadd.f32 %v9803, %v9805
    %9808 = vst.msk [vmem:[#allocation15] sm:$0xff] %vm6311, %v9533
    %9809 = vst.msk [vmem:[#allocation15 + $0x8] sm:$0xff] %vm6311, %v9624
    %9810 = vst.msk [vmem:[#allocation15 + $0x10] sm:$0xff] %vm6311, %v9715
    %9811 = vst.msk [vmem:[#allocation15 + $0x18] sm:$0xff] %vm6311, %v9806
    %9812 = vst.msk [vmem:[#allocation15 + $0x20] sm:$0xff] %vm6311, %v9534
    %9813 = vst.msk [vmem:[#allocation15 + $0x28] sm:$0xff] %vm6311, %v9625
    %9814 = vst.msk [vmem:[#allocation15 + $0x30] sm:$0xff] %vm6311, %v9716
    %9815 = vst.msk [vmem:[#allocation15 + $0x38] sm:$0xff] %vm6311, %v9807
    // Predicated region
    $region50: #{_forward_impl.1} parent=1 // pred_check
      _
    $region51: #{_forward_impl.1} parent=1 // pred_check_branch
      %9817 = sbr.rel (0) target = $region53
    $region52: #{_forward_impl.1} parent=1 // pred_region
      %s9819 = ssub.s32 1024, 1024
      %9820 = vsyncadd [#allocation5], %s9819
      %s9821 = sshll.u32 [#allocation15], 4
      %s9822 = int_to_ptr.vmem [resolvable:$true] %s9821
      %9827 = dma.vmem_to_hbm [thread:$0]  %s9822, 1024, %s6, [#allocation5], 128, 128, 8
    $region53: #{_forward_impl.1} parent=1 // pred_fallthru
      _
    // Predicated region
    $region54: #{_forward_impl.1} parent=1 // pred_check
      _
    $region55: #{_forward_impl.1} parent=1 // pred_check_branch
      %9829 = sbr.rel (0) target = $region57
    $region56: #{_forward_impl.1} parent=1 // pred_region
      %9830 = dma.done [#allocation5], 1024
    $region57: #{_forward_impl.1} parent=1 // pred_fallthru
      _
    %9831 = vsyncpa [#allocation4], 1
    %9832 = vsyncpa [#allocation8], 1
    %9833 = vsyncpa [#allocation5], 1
    %9834 = vsyncpa [#allocation6], 1
    %9835 = vsyncpa [#allocation11], 1
    %9836 = vsyncpa [#allocation14], 1

</llo_original>
